<compile_context>
chip_gen: v6e
topology: v6e:2x2x1
jax: 0.10.0
libtpu: 0.0.40
codegen_flags: <defaults>
</compile_context>

<pallas_src>
import math
import random

import numpy as np

import jax
import jax.numpy as jnp
from jax import lax
from jax.experimental import pallas as pl
from jax.experimental.pallas import tpu as pltpu


# ---------------------------------------------------------------------------
# Host-side index construction (verbatim port of the PyTorch / numpy logic).
# ---------------------------------------------------------------------------
def mosaic_indexes(size: int):
    forward_indexes = np.arange(size).reshape(
        int(math.sqrt(size)), int(math.sqrt(size))
    )
    rand = random.randint(0, 1)
    if rand == 0:
        a = forward_indexes[:, 0::2]
        b = forward_indexes[:, 1::2]
        for i in range(16):
            if i % 2 != 0:
                temps = a[i].copy()
                a[i] = b[i]
                b[i] = temps
        forward_indexes = np.concatenate((a, b)).reshape(-1)
    else:
        a = forward_indexes[:, 1::2]
        b = forward_indexes[:, 0::2]
        for i in range(16):
            if i % 2 != 0:
                temps = a[i].copy()
                a[i] = b[i]
                b[i] = temps
        forward_indexes = np.concatenate((a, b)).reshape(-1)
    backward_indexes = np.argsort(forward_indexes)
    return (forward_indexes, backward_indexes)


# ---------------------------------------------------------------------------
# Pallas kernel: per-batch row gather via one-hot MXU matmul, operating directly
# on the (T, B, C) layout (no wrapper transposes).
#   out[r, b, :] = x[idx[b, r], b, :]
# ---------------------------------------------------------------------------
def _mosaic_gather_kernel(idx_ref, x_ref, o_ref):
    # idx_ref : VMEM (bblk, remain_T) int32   gather indexes, lane-dense
    # x_ref   : VMEM (T, bblk, C)             sequence slab, original layout
    # o_ref   : VMEM (remain_T, bblk, C)      output slab, original layout
    remain_t, bblk, _ = o_ref.shape
    t = x_ref.shape[0]

    # Batch-major relayout in VMEM (XLU is idle in this kernel; no HBM traffic).
    x_btc = jnp.transpose(x_ref[...], (1, 0, 2))            # (bblk, T, C)

    # one-hot[b, r, s] = (s == idx[b, r]); broadcastable iota (never materialized
    # at full (bblk, remain_t, t) in int32) compared against the lane-broadcast
    # index column.  One-hot kept in the matmul input dtype (bf16 if x is bf16).
    idx_col = idx_ref[...].reshape(bblk, remain_t, 1)        # tiny relayout
    s_iota = lax.broadcasted_iota(jnp.int32, (1, 1, t), 2)
    onehot = (s_iota == idx_col).astype(x_ref.dtype)         # (bblk, remain_t, t)

    # One MXU pass per batch in the block (flash-attention 'bqk,bkd->bqd' pattern);
    # exact for 0/1 weights with f32 accumulation.
    gathered = jnp.einsum(
        "brt,btc->brc", onehot, x_btc,
        preferred_element_type=jnp.float32,
    )                                                        # (bblk, remain_t, C)

    # Back to the original (remain_T, B, C) layout; lane-dense (C) unmasked stores.
    o_ref[...] = jnp.transpose(gathered, (1, 0, 2)).astype(o_ref.dtype)


def _pick_bblk(B: int, T: int, remain_t: int, C: int, itemsize: int) -> int:
    """Batches per grid step.

    Prefers sublane-aligned (multiple-of-8) divisors of B that (a) keep the
    per-step VMEM footprint within a v7x-safe budget and (b) leave >= 2 grid
    steps so the BlockSpec pipeline overlaps DMA with compute (and megacore can
    shard on v7x).  Falls back to the full batch (grid=(1,)) for small / odd B.
    """
    budget = 28 * 1024 * 1024  # v7x has 64 MiB physical VMEM per TC

    def footprint(bblk: int) -> int:
        x_blk = T * bblk * C * itemsize
        o_blk = remain_t * bblk * C * itemsize
        idx_blk = bblk * remain_t * 4
        onehot = bblk * remain_t * T * itemsize
        # double-buffered pipelined blocks + in-kernel relayout copies + one-hot
        return 2 * (x_blk + o_blk + idx_blk) + onehot + x_blk + o_blk

    aligned = [d for d in range(8, B + 1, 8)
               if B % d == 0 and footprint(d) <= budget]
    pipelined = [d for d in aligned if B // d >= 2]
    if pipelined:
        return max(pipelined)
    if aligned:
        return max(aligned)
    return B


def _mosaic_gather(x_tbc: jax.Array, idx_bt: jax.Array) -> jax.Array:
    """x_tbc: (T, B, C); idx_bt: (B, remain_T) int32 -> (remain_T, B, C)."""
    T, B, C = x_tbc.shape
    remain_t = idx_bt.shape[1]

    if not jnp.issubdtype(x_tbc.dtype, jnp.floating):
        # One-hot MXU gather is exact only for float dtypes (and v7x MXU has no
        # integer path).
        raise TypeError(f"patch_shuffle_mosaic requires a float dtype, got {x_tbc.dtype}")

    bblk = _pick_bblk(B, T, remain_t, C, x_tbc.dtype.itemsize)
    grid = (B // bblk,)

    return pl.pallas_call(
        _mosaic_gather_kernel,
        grid=grid,
        in_specs=[
            pl.BlockSpec((bblk, remain_t), lambda g: (g, 0)),
            pl.BlockSpec((T, bblk, C), lambda g: (0, g, 0)),
        ],
        out_specs=pl.BlockSpec((remain_t, bblk, C), lambda g: (0, g, 0)),
        out_shape=jax.ShapeDtypeStruct((remain_t, B, C), x_tbc.dtype),
        compiler_params=pltpu.CompilerParams(
            dimension_semantics=("parallel",),
            # Within v7x's 64 MiB physical VMEM; far above v5e's 16 MiB default.
            vmem_limit_bytes=48 * 1024 * 1024,
        ),
    )(idx_bt, x_tbc)


# ---------------------------------------------------------------------------
# Module forward (wrapper): matches PatchShuffleMosaic.forward semantics.
# ---------------------------------------------------------------------------
def patch_shuffle_mosaic_forward(patches_tbc: jax.Array, seed: int = 0):
    T, B, C = patches_tbc.shape
    remain_T = int(T * (1 - 0.5))

    random.seed(seed)  # deterministic stand-in for python's global RNG state
    idx_pairs = [mosaic_indexes(T) for _ in range(B)]
    # (T, B) index tensors, stacked along the last axis as in the PyTorch code.
    fwd_np = np.stack([p[0] for p in idx_pairs], axis=-1).astype(np.int32)
    bwd_np = np.stack([p[1] for p in idx_pairs], axis=-1).astype(np.int32)

    # Host-side (numpy) truncate + transpose of the gather indexes; lane-dense
    # (B, remain_T) layout for the kernel (remain_T on lanes, no size-1 padding).
    idx_np = np.ascontiguousarray(fwd_np[:remain_T].T)  # (B, remain_T)
    assert idx_np.min() >= 0 and idx_np.max() < T, "gather index out of range"

    # Kernel consumes and produces the original (T, B, C) / (remain_T, B, C)
    # layouts directly -- no wrapper transposes / extra HBM passes.
    out_tbc = _mosaic_gather(patches_tbc, jnp.asarray(idx_np))

    return out_tbc, jnp.asarray(fwd_np), jnp.asarray(bwd_np)


# ---------------------------------------------------------------------------
# Demo / self-check
# ---------------------------------------------------------------------------
if __name__ == "__main__":
    # T must be 256 (16x16 patch grid) because mosaic_indexes hard-codes range(16).
    # B=16 keeps shapes small while exercising the pipelined path (grid=(2,)).
    T, B, C = 256, 16, 128
    key = jax.random.PRNGKey(0)
    patches = jax.random.normal(key, (T, B, C), dtype=jnp.float32)

    out, fwd_idx, bwd_idx = patch_shuffle_mosaic_forward(patches, seed=0)
    out = jax.block_until_ready(out)

    # Pure-JAX reference of the gather + truncation.
    remain_T = T // 2
    ref = jnp.take_along_axis(
        patches, fwd_idx[:remain_T, :, None].astype(jnp.int32), axis=0
    )

    assert out.shape == (remain_T, B, C), out.shape
    assert fwd_idx.shape == (T, B) and bwd_idx.shape == (T, B)
    # backward_indexes really is the argsort-inverse of forward_indexes
    assert bool(
        jnp.all(jnp.take_along_axis(fwd_idx, bwd_idx, axis=0)
                == jnp.arange(T, dtype=jnp.int32)[:, None])
    )
    assert bool(jnp.allclose(out, ref)), "kernel gather mismatch vs reference"

    print("KERNEL_OK")
</pallas_src>

<mosaic_0001>
module attributes {stable_mosaic.version = 11 : i64} {
  func.func @_mosaic_gather_kernel(%arg0: i32, %arg1: memref<8x128xi32, #tpu.memory_space<vmem>>, %arg2: memref<256x8x128xf32, #tpu.memory_space<vmem>>, %arg3: memref<128x8x128xf32, #tpu.memory_space<vmem>>) attributes {dimension_semantics = [#tpu.dimension_semantics<parallel>], iteration_bounds = array<i64: 2>, scalar_prefetch = 0 : i64, scratch_operands = 0 : i64, tpu.core_type = #tpu.core_type<tc>, window_params = [{transform_indices = @transform_0, window_bounds = array<i64: 8, 128>}, {transform_indices = @transform_1, window_bounds = array<i64: 256, 8, 128>}, {transform_indices = @transform_2, window_bounds = array<i64: 128, 8, 128>}]} {
    %c0 = arith.constant 0 : index
    %c0_0 = arith.constant 0 : index
    %c0_1 = arith.constant 0 : index
    %0 = vector.load %arg2[%c0, %c0_0, %c0_1] : memref<256x8x128xf32, #tpu.memory_space<vmem>>, vector<256x8x128xf32>
    %1 = tpu.transpose %0, [1, 0, 2] : vector<256x8x128xf32> -> vector<8x256x128xf32>
    %c0_2 = arith.constant 0 : index
    %c0_3 = arith.constant 0 : index
    %2 = vector.load %arg1[%c0_2, %c0_3] : memref<8x128xi32, #tpu.memory_space<vmem>>, vector<8x128xi32>
    %3 = vector.shape_cast %2 : vector<8x128xi32> to vector<8x128x1xi32>
    %4 = tpu.iota {dimensions = array<i32: 2>} : vector<1x1x256xi32>
    %5 = vector.broadcast %4 : vector<1x1x256xi32> to vector<8x128x256xi32>
    %6 = vector.broadcast %3 : vector<8x128x1xi32> to vector<8x128x256xi32>
    %7 = arith.cmpi eq, %5, %6 : vector<8x128x256xi32>
    %8 = arith.extui %7 : vector<8x128x256xi1> to vector<8x128x256xi32>
    %9 = arith.sitofp %8 : vector<8x128x256xi32> to vector<8x128x256xf32>
    "tpu.trace_start"() <{level = 10 : i32, message = "brt,btc->brc"}> : () -> ()
    %cst = arith.constant dense<0.000000e+00> : vector<8x128x128xf32>
    %10 = tpu.matmul %9, %1, %cst {dimension_numbers = #tpu.dot_dimension_numbers<[2], [1], [1], [2], [0, 0, 0, 1, 1, 2], [0], [0]>} : vector<8x128x256xf32>, vector<8x256x128xf32>, vector<8x128x128xf32> -> vector<8x128x128xf32>
    "tpu.trace_stop"() : () -> ()
    %11 = tpu.transpose %10, [1, 0, 2] : vector<8x128x128xf32> -> vector<128x8x128xf32>
    %c0_4 = arith.constant 0 : index
    %c0_5 = arith.constant 0 : index
    %c0_6 = arith.constant 0 : index
    %12 = vector.load %arg3[%c0_4, %c0_5, %c0_6] : memref<128x8x128xf32, #tpu.memory_space<vmem>>, vector<128x8x128xf32>
    tpu.vector_store %arg3[%c0_4, %c0_5, %c0_6], %11 {strides = array<i32>} : memref<128x8x128xf32, #tpu.memory_space<vmem>>, vector<128x8x128xf32>,
    return
  }
  func.func @transform_0(%arg0: i32) -> (i32, i32) {
    %c0_i32 = arith.constant 0 : i32
    %c0_i32_0 = arith.constant 0 : i32
    return %arg0, %c0_i32 : i32, i32
  }
  func.func @transform_1(%arg0: i32) -> (i32, i32, i32) {
    %c0_i32 = arith.constant 0 : i32
    %c0_i32_0 = arith.constant 0 : i32
    %c0_i32_1 = arith.constant 0 : i32
    return %c0_i32, %arg0, %c0_i32_0 : i32, i32, i32
  }
  func.func @transform_2(%arg0: i32) -> (i32, i32, i32) {
    %c0_i32 = arith.constant 0 : i32
    %c0_i32_0 = arith.constant 0 : i32
    %c0_i32_1 = arith.constant 0 : i32
    return %c0_i32, %arg0, %c0_i32_0 : i32, i32, i32
  }
}

</mosaic_0001>

<llo_original>
// kernel: tpu_custom_call.1
$region0: #{tpu_custom_call.1}
  #allocation0 [shape = 'u32[]', space=smem, size = 0x4, offset = 0x4, fixed_abs, tag = 'smem constant byte address 0x4 - core index']
  #allocation1 [shape = 'u32[144,128]{1,0:T(1,128)}', space=vmem, size = 0x12000, scoped, tag = 'internal scratch']
  %s0 = inlined_call_operand.hbm [shape: s32[16,128], index: 0, kind: input, shape index: {}]
  %s1 = inlined_call_operand.hbm [shape: f32[256,16,128], index: 1, kind: input, shape index: {}]
  %s2 = inlined_call_operand.hbm [shape: f32[128,16,128], index: 2, kind: output, shape index: {}]
  %s3 = sld [smem:[#allocation0]]
  $region49: #{tpu_custom_call.1} parent=0
    _
  %s5 = ssub.s32 1, %s3
  %s6 = scalar_select 0, %s5, %s3
  $region1: #{tpu_custom_call.1} parent=0
    #allocation2 [shape = 'u8[8192]{0}', space=vmem, size = 0x2000, scoped, tag = 'input window, operand 0']
    #allocation3 [shape = 's32[2]{0}', space=sflag, size = 0x8, scoped, tag = 'scoped memory for tpu_custom_call.1']
    #allocation4 [shape = 's32[2]{0}', space=sflag, size = 0x8, scoped, tag = 'scoped memory for tpu_custom_call.1']
    #allocation5 [shape = 'u8[2097152]{0}', space=vmem, size = 0x200000, scoped, tag = 'input window, operand 1']
    #allocation6 [shape = 's32[2]{0}', space=sflag, size = 0x8, scoped, tag = 'scoped memory for tpu_custom_call.1']
    #allocation7 [shape = 'u8[1048576]{0}', space=vmem, size = 0x100000, scoped, tag = 'output window, operand 0']
    %7 = vsyncpa [#allocation3], 0
    %s8 = scalar_lea.sflag [#allocation3], 1
    %9 = vsyncpa %s8, 0
    %10 = vsyncpa [#allocation6], 0
    %s11 = scalar_lea.sflag [#allocation6], 1
    %12 = vsyncpa %s11, 0
    %13 = vsyncpa [#allocation4], 0
    %s14 = scalar_lea.sflag [#allocation4], 1
    %15 = vsyncpa %s14, 0
    loop: start=0, step=1, limit=4
    $region2: #{tpu_custom_call.1} parent=1 // loop_pre_header
      _
    $region3: #{tpu_custom_call.1} parent=1 // loop_header
      %s17 = sphi 0, %s21
      %p18 = scmp.ge.s32.totalorder %s17, 4
      %s27 = sphi 0, %s29
      %s30 = sphi 0, %s27
      %s31 = sphi 0, %s30
      %s47 = sphi 0, %s31
      %s53 = sphi 0, %s55
      %s56 = sphi 0, %s53
      %s57 = sphi 0, %s56
      %s73 = sphi 0, %s57
      %s79 = sphi 0, %s81
      %s82 = sphi 0, %s79
      %s83 = sphi 0, %s82
      %s99 = sphi 0, %s83
    $region4: #{tpu_custom_call.1} parent=1 // loop_header_branch
      %20 = sbr.rel (%p18) target = $region8
    $region5: #{tpu_custom_call.1} parent=1 // loop_body
      %s22 = ssub.s32 %s17, 1
      %s23 = ssub.s32 %s17, 2
      %s24 = sadd.s32 %s17, 1
      %s25 = ssub.s32 %s17, %s24
      %p26 = scmp.eq.s32.totalorder %s25, 0
      %s28 = sadd.s32 %s27, 1
      %s29 = scalar_select %p26, %s27, %s28
      %p32 = pneg %p26
      %p33 = scmp.eq.s32.totalorder %s17, 1
      %p34 = por %p32, %p33
      %p35 = scmp.ne.s32.totalorder %s27, %s30
      %p36 = scmp.eq.s32.totalorder %s17, 0
      %p37 = por %p35, %p36
      %p38 = scmp.ne.s32.totalorder %s27, %s30
      %p39 = scmp.eq.s32.totalorder %s22, 1
      %p40 = por %p38, %p39
      %p41 = scmp.ne.s32.totalorder %s30, %s31
      %p42 = scmp.eq.s32.totalorder %s22, 0
      %p43 = por %p41, %p42
      %p44 = scmp.ne.s32.totalorder %s30, %s31
      %p45 = scmp.eq.s32.totalorder %s23, 1
      %p46 = por %p44, %p45
      %p48 = scmp.ne.s32.totalorder %s31, %s47
      %p49 = scmp.eq.s32.totalorder %s23, 0
      %p50 = por %p48, %p49
      %s51 = ssub.s32 %s17, %s24
      %p52 = scmp.eq.s32.totalorder %s51, 0
      %s54 = sadd.s32 %s53, 1
      %s55 = scalar_select %p52, %s53, %s54
      %p58 = pneg %p52
      %p59 = scmp.eq.s32.totalorder %s17, 1
      %p60 = por %p58, %p59
      %p61 = scmp.ne.s32.totalorder %s53, %s56
      %p62 = scmp.eq.s32.totalorder %s17, 0
      %p63 = por %p61, %p62
      %p64 = scmp.ne.s32.totalorder %s53, %s56
      %p65 = scmp.eq.s32.totalorder %s22, 1
      %p66 = por %p64, %p65
      %p67 = scmp.ne.s32.totalorder %s56, %s57
      %p68 = scmp.eq.s32.totalorder %s22, 0
      %p69 = por %p67, %p68
      %p70 = scmp.ne.s32.totalorder %s56, %s57
      %p71 = scmp.eq.s32.totalorder %s23, 1
      %p72 = por %p70, %p71
      %p74 = scmp.ne.s32.totalorder %s57, %s73
      %p75 = scmp.eq.s32.totalorder %s23, 0
      %p76 = por %p74, %p75
      %s77 = ssub.s32 %s17, %s24
      %p78 = scmp.eq.s32.totalorder %s77, 0
      %s80 = sadd.s32 %s79, 1
      %s81 = scalar_select %p78, %s79, %s80
      %p84 = pneg %p78
      %p85 = scmp.eq.s32.totalorder %s17, 1
      %p86 = por %p84, %p85
      %p87 = scmp.ne.s32.totalorder %s79, %s82
      %p88 = scmp.eq.s32.totalorder %s17, 0
      %p89 = por %p87, %p88
      %p90 = scmp.ne.s32.totalorder %s79, %s82
      %p91 = scmp.eq.s32.totalorder %s22, 1
      %p92 = por %p90, %p91
      %p93 = scmp.ne.s32.totalorder %s82, %s83
      %p94 = scmp.eq.s32.totalorder %s22, 0
      %p95 = por %p93, %p94
      %p96 = scmp.ne.s32.totalorder %s82, %s83
      %p97 = scmp.eq.s32.totalorder %s23, 1
      %p98 = por %p96, %p97
      %p100 = scmp.ne.s32.totalorder %s83, %s99
      %p101 = scmp.eq.s32.totalorder %s23, 0
      %p102 = por %p100, %p101
      %p103 = scmp.le.s32.totalorder 1, %s17
      %p104 = scmp.lt.s32.totalorder %s17, 3
      %p105 = pnand %p103, %p104
      %p106 = pneg %p105
      // Predicated region
      $region9: #{tpu_custom_call.1} parent=5 // pred_check
        _
      $region10: #{tpu_custom_call.1} parent=5 // pred_check_branch
        %108 = sbr.rel (%p105) target = $region12
      $region11: #{tpu_custom_call.1} parent=5 // pred_region
        %s109 = ssub.s32 %s17, 1
      $region12: #{tpu_custom_call.1} parent=5 // pred_fallthru
        _
      %p110 = scmp.lt.s32.totalorder %s17, 2
      // Predicated region
      $region13: #{tpu_custom_call.1} parent=5 // pred_check
        %p111 = pneg %p110
      $region14: #{tpu_custom_call.1} parent=5 // pred_check_branch
        %113 = sbr.rel (%p111) target = $region16
      $region15: #{tpu_custom_call.1} parent=5 // pred_region
        // Predicated region
        $region17: #{tpu_custom_call.1} parent=15 // pred_check
          %p114 = pneg %p37
        $region18: #{tpu_custom_call.1} parent=15 // pred_check_branch
          %116 = sbr.rel (%p114) target = $region20
        $region19: #{tpu_custom_call.1} parent=15 // pred_region
          %s117 = sand.u32 %s27, 1
          %s118 = scalar_lea.sflag [#allocation3], %s117
          %s119 = sand.u32 %s27, 1
          %s120 = smul.addr %s119, 8
          %s121 = scalar_lea.vmem [#allocation2], %s120
          %s123 = ssub.s32 128, 128
          %124 = vsyncadd %s118, %s123
          %s125 = smul.addr %s17, 128
          %s126 = scalar_lea.hbm %s0, %s125
          %s128 = sshll.u32 %s121, 4
          %s129 = int_to_ptr.vmem [resolvable:$true] %s128
          %131 = dma.hbm_to_vmem [thread:$0]  %s126, 128, %s129, %s118
        $region20: #{tpu_custom_call.1} parent=15 // pred_fallthru
          _
        // Predicated region
        $region21: #{tpu_custom_call.1} parent=15 // pred_check
          %p132 = pneg %p63
        $region22: #{tpu_custom_call.1} parent=15 // pred_check_branch
          %134 = sbr.rel (%p132) target = $region24
        $region23: #{tpu_custom_call.1} parent=15 // pred_region
          %s135 = sand.u32 %s53, 1
          %s136 = scalar_lea.sflag [#allocation6], %s135
          %s137 = sand.u32 %s53, 1
          %s138 = smul.addr %s137, 2048
          %s139 = scalar_lea.vmem [#allocation5], %s138
          %s141 = ssub.s32 32768, 32768
          %142 = vsyncadd %s136, %s141
          %s143 = smul.addr %s17, 128
          %s144 = scalar_lea.hbm %s1, %s143
          %s145 = sshll.u32 %s139, 4
          %s146 = int_to_ptr.vmem [resolvable:$true] %s145
          %151 = dma.hbm_to_vmem [thread:$0]  %s144, 32768, %s146, %s136, 256, 128, 8
        $region24: #{tpu_custom_call.1} parent=15 // pred_fallthru
          _
      $region16: #{tpu_custom_call.1} parent=5 // pred_fallthru
        _
      %p152 = scmp.le.s32.totalorder 1, %s17
      %p153 = scmp.lt.s32.totalorder %s17, 3
      %p154 = pnand %p152, %p153
      %p155 = pneg %p154
      // Predicated region
      $region25: #{tpu_custom_call.1} parent=5 // pred_check
        _
      $region26: #{tpu_custom_call.1} parent=5 // pred_check_branch
        %157 = sbr.rel (%p154) target = $region28
      $region27: #{tpu_custom_call.1} parent=5 // pred_region
        %s158 = ssub.s32 %s17, 1
        %s159 = sand.u32 %s30, 1
        %s160 = scalar_lea.sflag [#allocation3], %s159
        %s161 = sand.u32 %s30, 1
        %s162 = smul.addr %s161, 8
        %s163 = scalar_lea.vmem [#allocation2], %s162
        // Predicated region
        $region29: #{tpu_custom_call.1} parent=27 // pred_check
          %p164 = pneg %p43
        $region30: #{tpu_custom_call.1} parent=27 // pred_check_branch
          %166 = sbr.rel (%p164) target = $region32
        $region31: #{tpu_custom_call.1} parent=27 // pred_region
          %167 = dma.done %s160, 128
        $region32: #{tpu_custom_call.1} parent=27 // pred_fallthru
          _
        %s168 = sand.u32 %s56, 1
        %s169 = scalar_lea.sflag [#allocation6], %s168
        %s170 = sand.u32 %s56, 1
        %s171 = smul.addr %s170, 2048
        %s172 = scalar_lea.vmem [#allocation5], %s171
        // Predicated region
        $region33: #{tpu_custom_call.1} parent=27 // pred_check
          %p173 = pneg %p69
        $region34: #{tpu_custom_call.1} parent=27 // pred_check_branch
          %175 = sbr.rel (%p173) target = $region36
        $region35: #{tpu_custom_call.1} parent=27 // pred_region
          %176 = dma.done %s169, 32768
        $region36: #{tpu_custom_call.1} parent=27 // pred_fallthru
          _
        %s177 = sand.u32 %s30, 1
        %s178 = scalar_lea.sflag [#allocation3], %s177
        %s179 = sand.u32 %s30, 1
        %s180 = smul.addr %s179, 8
        %s181 = scalar_lea.vmem [#allocation2], %s180
        %p182 = pneg %p43
        %p183 = pneg %p40
        %s184 = sand.u32 %s56, 1
        %s185 = scalar_lea.sflag [#allocation6], %s184
        %s186 = sand.u32 %s56, 1
        %s187 = smul.addr %s186, 2048
        %s188 = scalar_lea.vmem [#allocation5], %s187
        %p189 = pneg %p69
        %p190 = pneg %p66
        %p191 = pneg %p95
        %p192 = pneg %p92
        %s193 = sand.u32 %s82, 1
        %s194 = scalar_lea.sflag [#allocation4], %s193
        %s195 = sand.u32 %s82, 1
        %s196 = smul.addr %s195, 1024
        %s197 = scalar_lea.vmem [#allocation7], %s196
        %v198 = vld [vmem:[%s172] sm:$0xff]
        %v199 = vld [vmem:[%s172 + $0x8] sm:$0xff]
        %v200 = vld [vmem:[%s172 + $0x10] sm:$0xff]
        %v201 = vld [vmem:[%s172 + $0x18] sm:$0xff]
        %v202 = vld [vmem:[%s172 + $0x20] sm:$0xff]
        %v203 = vld [vmem:[%s172 + $0x28] sm:$0xff]
        %v204 = vld [vmem:[%s172 + $0x30] sm:$0xff]
        %v205 = vld [vmem:[%s172 + $0x38] sm:$0xff]
        %v206 = vld [vmem:[%s172 + $0x40] sm:$0xff]
        %v207 = vld [vmem:[%s172 + $0x48] sm:$0xff]
        %v208 = vld [vmem:[%s172 + $0x50] sm:$0xff]
        %v209 = vld [vmem:[%s172 + $0x58] sm:$0xff]
        %v210 = vld [vmem:[%s172 + $0x60] sm:$0xff]
        %v211 = vld [vmem:[%s172 + $0x68] sm:$0xff]
        %v212 = vld [vmem:[%s172 + $0x70] sm:$0xff]
        %v213 = vld [vmem:[%s172 + $0x78] sm:$0xff]
        %v214 = vld [vmem:[%s172 + $0x80] sm:$0xff]
        %v215 = vld [vmem:[%s172 + $0x88] sm:$0xff]
        %v216 = vld [vmem:[%s172 + $0x90] sm:$0xff]
        %v217 = vld [vmem:[%s172 + $0x98] sm:$0xff]
        %v218 = vld [vmem:[%s172 + $0xa0] sm:$0xff]
        %v219 = vld [vmem:[%s172 + $0xa8] sm:$0xff]
        %v220 = vld [vmem:[%s172 + $0xb0] sm:$0xff]
        %v221 = vld [vmem:[%s172 + $0xb8] sm:$0xff]
        %v222 = vld [vmem:[%s172 + $0xc0] sm:$0xff]
        %v223 = vld [vmem:[%s172 + $0xc8] sm:$0xff]
        %v224 = vld [vmem:[%s172 + $0xd0] sm:$0xff]
        %v225 = vld [vmem:[%s172 + $0xd8] sm:$0xff]
        %v226 = vld [vmem:[%s172 + $0xe0] sm:$0xff]
        %v227 = vld [vmem:[%s172 + $0xe8] sm:$0xff]
        %v228 = vld [vmem:[%s172 + $0xf0] sm:$0xff]
        %v229 = vld [vmem:[%s172 + $0xf8] sm:$0xff]
        %v230 = vld [vmem:[%s172 + $0x100] sm:$0xff]
        %v231 = vld [vmem:[%s172 + $0x108] sm:$0xff]
        %v232 = vld [vmem:[%s172 + $0x110] sm:$0xff]
        %v233 = vld [vmem:[%s172 + $0x118] sm:$0xff]
        %v234 = vld [vmem:[%s172 + $0x120] sm:$0xff]
        %v235 = vld [vmem:[%s172 + $0x128] sm:$0xff]
        %v236 = vld [vmem:[%s172 + $0x130] sm:$0xff]
        %v237 = vld [vmem:[%s172 + $0x138] sm:$0xff]
        %v238 = vld [vmem:[%s172 + $0x140] sm:$0xff]
        %v239 = vld [vmem:[%s172 + $0x148] sm:$0xff]
        %v240 = vld [vmem:[%s172 + $0x150] sm:$0xff]
        %v241 = vld [vmem:[%s172 + $0x158] sm:$0xff]
        %v242 = vld [vmem:[%s172 + $0x160] sm:$0xff]
        %v243 = vld [vmem:[%s172 + $0x168] sm:$0xff]
        %v244 = vld [vmem:[%s172 + $0x170] sm:$0xff]
        %v245 = vld [vmem:[%s172 + $0x178] sm:$0xff]
        %v246 = vld [vmem:[%s172 + $0x180] sm:$0xff]
        %v247 = vld [vmem:[%s172 + $0x188] sm:$0xff]
        %v248 = vld [vmem:[%s172 + $0x190] sm:$0xff]
        %v249 = vld [vmem:[%s172 + $0x198] sm:$0xff]
        %v250 = vld [vmem:[%s172 + $0x1a0] sm:$0xff]
        %v251 = vld [vmem:[%s172 + $0x1a8] sm:$0xff]
        %v252 = vld [vmem:[%s172 + $0x1b0] sm:$0xff]
        %v253 = vld [vmem:[%s172 + $0x1b8] sm:$0xff]
        %v254 = vld [vmem:[%s172 + $0x1c0] sm:$0xff]
        %v255 = vld [vmem:[%s172 + $0x1c8] sm:$0xff]
        %v256 = vld [vmem:[%s172 + $0x1d0] sm:$0xff]
        %v257 = vld [vmem:[%s172 + $0x1d8] sm:$0xff]
        %v258 = vld [vmem:[%s172 + $0x1e0] sm:$0xff]
        %v259 = vld [vmem:[%s172 + $0x1e8] sm:$0xff]
        %v260 = vld [vmem:[%s172 + $0x1f0] sm:$0xff]
        %v261 = vld [vmem:[%s172 + $0x1f8] sm:$0xff]
        %v262 = vld [vmem:[%s172 + $0x200] sm:$0xff]
        %v263 = vld [vmem:[%s172 + $0x208] sm:$0xff]
        %v264 = vld [vmem:[%s172 + $0x210] sm:$0xff]
        %v265 = vld [vmem:[%s172 + $0x218] sm:$0xff]
        %v266 = vld [vmem:[%s172 + $0x220] sm:$0xff]
        %v267 = vld [vmem:[%s172 + $0x228] sm:$0xff]
        %v268 = vld [vmem:[%s172 + $0x230] sm:$0xff]
        %v269 = vld [vmem:[%s172 + $0x238] sm:$0xff]
        %v270 = vld [vmem:[%s172 + $0x240] sm:$0xff]
        %v271 = vld [vmem:[%s172 + $0x248] sm:$0xff]
        %v272 = vld [vmem:[%s172 + $0x250] sm:$0xff]
        %v273 = vld [vmem:[%s172 + $0x258] sm:$0xff]
        %v274 = vld [vmem:[%s172 + $0x260] sm:$0xff]
        %v275 = vld [vmem:[%s172 + $0x268] sm:$0xff]
        %v276 = vld [vmem:[%s172 + $0x270] sm:$0xff]
        %v277 = vld [vmem:[%s172 + $0x278] sm:$0xff]
        %v278 = vld [vmem:[%s172 + $0x280] sm:$0xff]
        %v279 = vld [vmem:[%s172 + $0x288] sm:$0xff]
        %v280 = vld [vmem:[%s172 + $0x290] sm:$0xff]
        %v281 = vld [vmem:[%s172 + $0x298] sm:$0xff]
        %v282 = vld [vmem:[%s172 + $0x2a0] sm:$0xff]
        %v283 = vld [vmem:[%s172 + $0x2a8] sm:$0xff]
        %v284 = vld [vmem:[%s172 + $0x2b0] sm:$0xff]
        %v285 = vld [vmem:[%s172 + $0x2b8] sm:$0xff]
        %v286 = vld [vmem:[%s172 + $0x2c0] sm:$0xff]
        %v287 = vld [vmem:[%s172 + $0x2c8] sm:$0xff]
        %v288 = vld [vmem:[%s172 + $0x2d0] sm:$0xff]
        %v289 = vld [vmem:[%s172 + $0x2d8] sm:$0xff]
        %v290 = vld [vmem:[%s172 + $0x2e0] sm:$0xff]
        %v291 = vld [vmem:[%s172 + $0x2e8] sm:$0xff]
        %v292 = vld [vmem:[%s172 + $0x2f0] sm:$0xff]
        %v293 = vld [vmem:[%s172 + $0x2f8] sm:$0xff]
        %v294 = vld [vmem:[%s172 + $0x300] sm:$0xff]
        %v295 = vld [vmem:[%s172 + $0x308] sm:$0xff]
        %v296 = vld [vmem:[%s172 + $0x310] sm:$0xff]
        %v297 = vld [vmem:[%s172 + $0x318] sm:$0xff]
        %v298 = vld [vmem:[%s172 + $0x320] sm:$0xff]
        %v299 = vld [vmem:[%s172 + $0x328] sm:$0xff]
        %v300 = vld [vmem:[%s172 + $0x330] sm:$0xff]
        %v301 = vld [vmem:[%s172 + $0x338] sm:$0xff]
        %v302 = vld [vmem:[%s172 + $0x340] sm:$0xff]
        %v303 = vld [vmem:[%s172 + $0x348] sm:$0xff]
        %v304 = vld [vmem:[%s172 + $0x350] sm:$0xff]
        %v305 = vld [vmem:[%s172 + $0x358] sm:$0xff]
        %v306 = vld [vmem:[%s172 + $0x360] sm:$0xff]
        %v307 = vld [vmem:[%s172 + $0x368] sm:$0xff]
        %v308 = vld [vmem:[%s172 + $0x370] sm:$0xff]
        %v309 = vld [vmem:[%s172 + $0x378] sm:$0xff]
        %v310 = vld [vmem:[%s172 + $0x380] sm:$0xff]
        %v311 = vld [vmem:[%s172 + $0x388] sm:$0xff]
        %v312 = vld [vmem:[%s172 + $0x390] sm:$0xff]
        %v313 = vld [vmem:[%s172 + $0x398] sm:$0xff]
        %v314 = vld [vmem:[%s172 + $0x3a0] sm:$0xff]
        %v315 = vld [vmem:[%s172 + $0x3a8] sm:$0xff]
        %v316 = vld [vmem:[%s172 + $0x3b0] sm:$0xff]
        %v317 = vld [vmem:[%s172 + $0x3b8] sm:$0xff]
        %v318 = vld [vmem:[%s172 + $0x3c0] sm:$0xff]
        %v319 = vld [vmem:[%s172 + $0x3c8] sm:$0xff]
        %v320 = vld [vmem:[%s172 + $0x3d0] sm:$0xff]
        %v321 = vld [vmem:[%s172 + $0x3d8] sm:$0xff]
        %v322 = vld [vmem:[%s172 + $0x3e0] sm:$0xff]
        %v323 = vld [vmem:[%s172 + $0x3e8] sm:$0xff]
        %v324 = vld [vmem:[%s172 + $0x3f0] sm:$0xff]
        %v325 = vld [vmem:[%s172 + $0x3f8] sm:$0xff]
        %v326 = vld [vmem:[%s172 + $0x400] sm:$0xff]
        %v327 = vld [vmem:[%s172 + $0x408] sm:$0xff]
        %v328 = vld [vmem:[%s172 + $0x410] sm:$0xff]
        %v329 = vld [vmem:[%s172 + $0x418] sm:$0xff]
        %v330 = vld [vmem:[%s172 + $0x420] sm:$0xff]
        %v331 = vld [vmem:[%s172 + $0x428] sm:$0xff]
        %v332 = vld [vmem:[%s172 + $0x430] sm:$0xff]
        %v333 = vld [vmem:[%s172 + $0x438] sm:$0xff]
        %v334 = vld [vmem:[%s172 + $0x440] sm:$0xff]
        %v335 = vld [vmem:[%s172 + $0x448] sm:$0xff]
        %v336 = vld [vmem:[%s172 + $0x450] sm:$0xff]
        %v337 = vld [vmem:[%s172 + $0x458] sm:$0xff]
        %v338 = vld [vmem:[%s172 + $0x460] sm:$0xff]
        %v339 = vld [vmem:[%s172 + $0x468] sm:$0xff]
        %v340 = vld [vmem:[%s172 + $0x470] sm:$0xff]
        %v341 = vld [vmem:[%s172 + $0x478] sm:$0xff]
        %v342 = vld [vmem:[%s172 + $0x480] sm:$0xff]
        %v343 = vld [vmem:[%s172 + $0x488] sm:$0xff]
        %v344 = vld [vmem:[%s172 + $0x490] sm:$0xff]
        %v345 = vld [vmem:[%s172 + $0x498] sm:$0xff]
        %v346 = vld [vmem:[%s172 + $0x4a0] sm:$0xff]
        %v347 = vld [vmem:[%s172 + $0x4a8] sm:$0xff]
        %v348 = vld [vmem:[%s172 + $0x4b0] sm:$0xff]
        %v349 = vld [vmem:[%s172 + $0x4b8] sm:$0xff]
        %v350 = vld [vmem:[%s172 + $0x4c0] sm:$0xff]
        %v351 = vld [vmem:[%s172 + $0x4c8] sm:$0xff]
        %v352 = vld [vmem:[%s172 + $0x4d0] sm:$0xff]
        %v353 = vld [vmem:[%s172 + $0x4d8] sm:$0xff]
        %v354 = vld [vmem:[%s172 + $0x4e0] sm:$0xff]
        %v355 = vld [vmem:[%s172 + $0x4e8] sm:$0xff]
        %v356 = vld [vmem:[%s172 + $0x4f0] sm:$0xff]
        %v357 = vld [vmem:[%s172 + $0x4f8] sm:$0xff]
        %v358 = vld [vmem:[%s172 + $0x500] sm:$0xff]
        %v359 = vld [vmem:[%s172 + $0x508] sm:$0xff]
        %v360 = vld [vmem:[%s172 + $0x510] sm:$0xff]
        %v361 = vld [vmem:[%s172 + $0x518] sm:$0xff]
        %v362 = vld [vmem:[%s172 + $0x520] sm:$0xff]
        %v363 = vld [vmem:[%s172 + $0x528] sm:$0xff]
        %v364 = vld [vmem:[%s172 + $0x530] sm:$0xff]
        %v365 = vld [vmem:[%s172 + $0x538] sm:$0xff]
        %v366 = vld [vmem:[%s172 + $0x540] sm:$0xff]
        %v367 = vld [vmem:[%s172 + $0x548] sm:$0xff]
        %v368 = vld [vmem:[%s172 + $0x550] sm:$0xff]
        %v369 = vld [vmem:[%s172 + $0x558] sm:$0xff]
        %v370 = vld [vmem:[%s172 + $0x560] sm:$0xff]
        %v371 = vld [vmem:[%s172 + $0x568] sm:$0xff]
        %v372 = vld [vmem:[%s172 + $0x570] sm:$0xff]
        %v373 = vld [vmem:[%s172 + $0x578] sm:$0xff]
        %v374 = vld [vmem:[%s172 + $0x580] sm:$0xff]
        %v375 = vld [vmem:[%s172 + $0x588] sm:$0xff]
        %v376 = vld [vmem:[%s172 + $0x590] sm:$0xff]
        %v377 = vld [vmem:[%s172 + $0x598] sm:$0xff]
        %v378 = vld [vmem:[%s172 + $0x5a0] sm:$0xff]
        %v379 = vld [vmem:[%s172 + $0x5a8] sm:$0xff]
        %v380 = vld [vmem:[%s172 + $0x5b0] sm:$0xff]
        %v381 = vld [vmem:[%s172 + $0x5b8] sm:$0xff]
        %v382 = vld [vmem:[%s172 + $0x5c0] sm:$0xff]
        %v383 = vld [vmem:[%s172 + $0x5c8] sm:$0xff]
        %v384 = vld [vmem:[%s172 + $0x5d0] sm:$0xff]
        %v385 = vld [vmem:[%s172 + $0x5d8] sm:$0xff]
        %v386 = vld [vmem:[%s172 + $0x5e0] sm:$0xff]
        %v387 = vld [vmem:[%s172 + $0x5e8] sm:$0xff]
        %v388 = vld [vmem:[%s172 + $0x5f0] sm:$0xff]
        %v389 = vld [vmem:[%s172 + $0x5f8] sm:$0xff]
        %v390 = vld [vmem:[%s172 + $0x600] sm:$0xff]
        %v391 = vld [vmem:[%s172 + $0x608] sm:$0xff]
        %v392 = vld [vmem:[%s172 + $0x610] sm:$0xff]
        %v393 = vld [vmem:[%s172 + $0x618] sm:$0xff]
        %v394 = vld [vmem:[%s172 + $0x620] sm:$0xff]
        %v395 = vld [vmem:[%s172 + $0x628] sm:$0xff]
        %v396 = vld [vmem:[%s172 + $0x630] sm:$0xff]
        %v397 = vld [vmem:[%s172 + $0x638] sm:$0xff]
        %v398 = vld [vmem:[%s172 + $0x640] sm:$0xff]
        %v399 = vld [vmem:[%s172 + $0x648] sm:$0xff]
        %v400 = vld [vmem:[%s172 + $0x650] sm:$0xff]
        %v401 = vld [vmem:[%s172 + $0x658] sm:$0xff]
        %v402 = vld [vmem:[%s172 + $0x660] sm:$0xff]
        %v403 = vld [vmem:[%s172 + $0x668] sm:$0xff]
        %v404 = vld [vmem:[%s172 + $0x670] sm:$0xff]
        %v405 = vld [vmem:[%s172 + $0x678] sm:$0xff]
        %v406 = vld [vmem:[%s172 + $0x680] sm:$0xff]
        %v407 = vld [vmem:[%s172 + $0x688] sm:$0xff]
        %v408 = vld [vmem:[%s172 + $0x690] sm:$0xff]
        %v409 = vld [vmem:[%s172 + $0x698] sm:$0xff]
        %v410 = vld [vmem:[%s172 + $0x6a0] sm:$0xff]
        %v411 = vld [vmem:[%s172 + $0x6a8] sm:$0xff]
        %v412 = vld [vmem:[%s172 + $0x6b0] sm:$0xff]
        %v413 = vld [vmem:[%s172 + $0x6b8] sm:$0xff]
        %v414 = vld [vmem:[%s172 + $0x6c0] sm:$0xff]
        %v415 = vld [vmem:[%s172 + $0x6c8] sm:$0xff]
        %v416 = vld [vmem:[%s172 + $0x6d0] sm:$0xff]
        %v417 = vld [vmem:[%s172 + $0x6d8] sm:$0xff]
        %v418 = vld [vmem:[%s172 + $0x6e0] sm:$0xff]
        %v419 = vld [vmem:[%s172 + $0x6e8] sm:$0xff]
        %v420 = vld [vmem:[%s172 + $0x6f0] sm:$0xff]
        %v421 = vld [vmem:[%s172 + $0x6f8] sm:$0xff]
        %v422 = vld [vmem:[%s172 + $0x700] sm:$0xff]
        %v423 = vld [vmem:[%s172 + $0x708] sm:$0xff]
        %v424 = vld [vmem:[%s172 + $0x710] sm:$0xff]
        %v425 = vld [vmem:[%s172 + $0x718] sm:$0xff]
        %v426 = vld [vmem:[%s172 + $0x720] sm:$0xff]
        %v427 = vld [vmem:[%s172 + $0x728] sm:$0xff]
        %v428 = vld [vmem:[%s172 + $0x730] sm:$0xff]
        %v429 = vld [vmem:[%s172 + $0x738] sm:$0xff]
        %v430 = vld [vmem:[%s172 + $0x740] sm:$0xff]
        %v431 = vld [vmem:[%s172 + $0x748] sm:$0xff]
        %v432 = vld [vmem:[%s172 + $0x750] sm:$0xff]
        %v433 = vld [vmem:[%s172 + $0x758] sm:$0xff]
        %v434 = vld [vmem:[%s172 + $0x760] sm:$0xff]
        %v435 = vld [vmem:[%s172 + $0x768] sm:$0xff]
        %v436 = vld [vmem:[%s172 + $0x770] sm:$0xff]
        %v437 = vld [vmem:[%s172 + $0x778] sm:$0xff]
        %v438 = vld [vmem:[%s172 + $0x780] sm:$0xff]
        %v439 = vld [vmem:[%s172 + $0x788] sm:$0xff]
        %v440 = vld [vmem:[%s172 + $0x790] sm:$0xff]
        %v441 = vld [vmem:[%s172 + $0x798] sm:$0xff]
        %v442 = vld [vmem:[%s172 + $0x7a0] sm:$0xff]
        %v443 = vld [vmem:[%s172 + $0x7a8] sm:$0xff]
        %v444 = vld [vmem:[%s172 + $0x7b0] sm:$0xff]
        %v445 = vld [vmem:[%s172 + $0x7b8] sm:$0xff]
        %v446 = vld [vmem:[%s172 + $0x7c0] sm:$0xff]
        %v447 = vld [vmem:[%s172 + $0x7c8] sm:$0xff]
        %v448 = vld [vmem:[%s172 + $0x7d0] sm:$0xff]
        %v449 = vld [vmem:[%s172 + $0x7d8] sm:$0xff]
        %v450 = vld [vmem:[%s172 + $0x7e0] sm:$0xff]
        %v451 = vld [vmem:[%s172 + $0x7e8] sm:$0xff]
        %v452 = vld [vmem:[%s172 + $0x7f0] sm:$0xff]
        %v453 = vld [vmem:[%s172 + $0x7f8] sm:$0xff]
        %v454 = vcombine.low %v198, %v200
        %v455 = vcombine.high %v198, %v200
        %v457 = vunpack.c.l.s4 1983009808
        %v458 = vunpack.c.0.s8 %v457
        %v459 = vlaneseq
        %v460 = vshrl.u32 %v459, 7
        %v461 = vsub.s32 %v458, %v460
        %v462 = vrot.slane %v454, %v461
        %v464 = vunpack.c.l.s4 1983009808
        %v465 = vunpack.c.0.s8 %v464
        %v466 = vlaneseq
        %v467 = vshrl.u32 %v466, 7
        %v468 = vsub.s32 %v465, %v467
        %v469 = vrot.slane %v455, %v468
        %v470 = vcombine.low %v199, %v201
        %v471 = vcombine.high %v199, %v201
        %v473 = vunpack.c.l.s4 1983009808
        %v474 = vunpack.c.0.s8 %v473
        %v475 = vlaneseq
        %v476 = vshrl.u32 %v475, 7
        %v477 = vsub.s32 %v474, %v476
        %v478 = vrot.slane %v470, %v477
        %v480 = vunpack.c.l.s4 1983009808
        %v481 = vunpack.c.0.s8 %v480
        %v482 = vlaneseq
        %v483 = vshrl.u32 %v482, 7
        %v484 = vsub.s32 %v481, %v483
        %v485 = vrot.slane %v471, %v484
        %v486 = vcombine.low %v202, %v204
        %v487 = vcombine.high %v202, %v204
        %v489 = vunpack.c.l.s4 1983009808
        %v490 = vunpack.c.0.s8 %v489
        %v491 = vlaneseq
        %v492 = vshrl.u32 %v491, 7
        %v493 = vsub.s32 %v490, %v492
        %v494 = vrot.slane %v486, %v493
        %v496 = vunpack.c.l.s4 1983009808
        %v497 = vunpack.c.0.s8 %v496
        %v498 = vlaneseq
        %v499 = vshrl.u32 %v498, 7
        %v500 = vsub.s32 %v497, %v499
        %v501 = vrot.slane %v487, %v500
        %v502 = vcombine.low %v203, %v205
        %v503 = vcombine.high %v203, %v205
        %v505 = vunpack.c.l.s4 1983009808
        %v506 = vunpack.c.0.s8 %v505
        %v507 = vlaneseq
        %v508 = vshrl.u32 %v507, 7
        %v509 = vsub.s32 %v506, %v508
        %v510 = vrot.slane %v502, %v509
        %v512 = vunpack.c.l.s4 1983009808
        %v513 = vunpack.c.0.s8 %v512
        %v514 = vlaneseq
        %v515 = vshrl.u32 %v514, 7
        %v516 = vsub.s32 %v513, %v515
        %v517 = vrot.slane %v503, %v516
        %v518 = vcombine.low %v462, %v478
        %v519 = vcombine.high %v462, %v478
        %v521 = vunpack.c.l.s4 1934713408
        %v522 = vunpack.c.0.s8 %v521
        %v523 = vlaneseq
        %v524 = vshrl.u32 %v523, 7
        %v525 = vsub.s32 %v522, %v524
        %v526 = vrot.slane %v518, %v525
        %v528 = vunpack.c.l.s4 1934713408
        %v529 = vunpack.c.0.s8 %v528
        %v530 = vlaneseq
        %v531 = vshrl.u32 %v530, 7
        %v532 = vsub.s32 %v529, %v531
        %v533 = vrot.slane %v519, %v532
        %v534 = vcombine.low %v469, %v485
        %v535 = vcombine.high %v469, %v485
        %v537 = vunpack.c.l.s4 1934713408
        %v538 = vunpack.c.0.s8 %v537
        %v539 = vlaneseq
        %v540 = vshrl.u32 %v539, 7
        %v541 = vsub.s32 %v538, %v540
        %v542 = vrot.slane %v534, %v541
        %v544 = vunpack.c.l.s4 1934713408
        %v545 = vunpack.c.0.s8 %v544
        %v546 = vlaneseq
        %v547 = vshrl.u32 %v546, 7
        %v548 = vsub.s32 %v545, %v547
        %v549 = vrot.slane %v535, %v548
        %v550 = vcombine.low %v494, %v510
        %v551 = vcombine.high %v494, %v510
        %v553 = vunpack.c.l.s4 1934713408
        %v554 = vunpack.c.0.s8 %v553
        %v555 = vlaneseq
        %v556 = vshrl.u32 %v555, 7
        %v557 = vsub.s32 %v554, %v556
        %v558 = vrot.slane %v550, %v557
        %v560 = vunpack.c.l.s4 1934713408
        %v561 = vunpack.c.0.s8 %v560
        %v562 = vlaneseq
        %v563 = vshrl.u32 %v562, 7
        %v564 = vsub.s32 %v561, %v563
        %v565 = vrot.slane %v551, %v564
        %v566 = vcombine.low %v501, %v517
        %v567 = vcombine.high %v501, %v517
        %v569 = vunpack.c.l.s4 1934713408
        %v570 = vunpack.c.0.s8 %v569
        %v571 = vlaneseq
        %v572 = vshrl.u32 %v571, 7
        %v573 = vsub.s32 %v570, %v572
        %v574 = vrot.slane %v566, %v573
        %v576 = vunpack.c.l.s4 1934713408
        %v577 = vunpack.c.0.s8 %v576
        %v578 = vlaneseq
        %v579 = vshrl.u32 %v578, 7
        %v580 = vsub.s32 %v577, %v579
        %v581 = vrot.slane %v567, %v580
        %v582 = vcombine.low %v526, %v558
        %v583 = vcombine.high %v526, %v558
        %v584 = vcombine.low %v533, %v565
        %v585 = vcombine.high %v533, %v565
        %v586 = vcombine.low %v542, %v574
        %v587 = vcombine.high %v542, %v574
        %v588 = vcombine.low %v549, %v581
        %v589 = vcombine.high %v549, %v581
        %v590 = vcombine.low %v206, %v208
        %v591 = vcombine.high %v206, %v208
        %v593 = vunpack.c.l.s4 1983009808
        %v594 = vunpack.c.0.s8 %v593
        %v595 = vlaneseq
        %v596 = vshrl.u32 %v595, 7
        %v597 = vsub.s32 %v594, %v596
        %v598 = vrot.slane %v590, %v597
        %v600 = vunpack.c.l.s4 1983009808
        %v601 = vunpack.c.0.s8 %v600
        %v602 = vlaneseq
        %v603 = vshrl.u32 %v602, 7
        %v604 = vsub.s32 %v601, %v603
        %v605 = vrot.slane %v591, %v604
        %v606 = vcombine.low %v207, %v209
        %v607 = vcombine.high %v207, %v209
        %v609 = vunpack.c.l.s4 1983009808
        %v610 = vunpack.c.0.s8 %v609
        %v611 = vlaneseq
        %v612 = vshrl.u32 %v611, 7
        %v613 = vsub.s32 %v610, %v612
        %v614 = vrot.slane %v606, %v613
        %v616 = vunpack.c.l.s4 1983009808
        %v617 = vunpack.c.0.s8 %v616
        %v618 = vlaneseq
        %v619 = vshrl.u32 %v618, 7
        %v620 = vsub.s32 %v617, %v619
        %v621 = vrot.slane %v607, %v620
        %v622 = vcombine.low %v210, %v212
        %v623 = vcombine.high %v210, %v212
        %v625 = vunpack.c.l.s4 1983009808
        %v626 = vunpack.c.0.s8 %v625
        %v627 = vlaneseq
        %v628 = vshrl.u32 %v627, 7
        %v629 = vsub.s32 %v626, %v628
        %v630 = vrot.slane %v622, %v629
        %v632 = vunpack.c.l.s4 1983009808
        %v633 = vunpack.c.0.s8 %v632
        %v634 = vlaneseq
        %v635 = vshrl.u32 %v634, 7
        %v636 = vsub.s32 %v633, %v635
        %v637 = vrot.slane %v623, %v636
        %v638 = vcombine.low %v211, %v213
        %v639 = vcombine.high %v211, %v213
        %v641 = vunpack.c.l.s4 1983009808
        %v642 = vunpack.c.0.s8 %v641
        %v643 = vlaneseq
        %v644 = vshrl.u32 %v643, 7
        %v645 = vsub.s32 %v642, %v644
        %v646 = vrot.slane %v638, %v645
        %v648 = vunpack.c.l.s4 1983009808
        %v649 = vunpack.c.0.s8 %v648
        %v650 = vlaneseq
        %v651 = vshrl.u32 %v650, 7
        %v652 = vsub.s32 %v649, %v651
        %v653 = vrot.slane %v639, %v652
        %v654 = vcombine.low %v598, %v614
        %v655 = vcombine.high %v598, %v614
        %v657 = vunpack.c.l.s4 1934713408
        %v658 = vunpack.c.0.s8 %v657
        %v659 = vlaneseq
        %v660 = vshrl.u32 %v659, 7
        %v661 = vsub.s32 %v658, %v660
        %v662 = vrot.slane %v654, %v661
        %v664 = vunpack.c.l.s4 1934713408
        %v665 = vunpack.c.0.s8 %v664
        %v666 = vlaneseq
        %v667 = vshrl.u32 %v666, 7
        %v668 = vsub.s32 %v665, %v667
        %v669 = vrot.slane %v655, %v668
        %v670 = vcombine.low %v605, %v621
        %v671 = vcombine.high %v605, %v621
        %v673 = vunpack.c.l.s4 1934713408
        %v674 = vunpack.c.0.s8 %v673
        %v675 = vlaneseq
        %v676 = vshrl.u32 %v675, 7
        %v677 = vsub.s32 %v674, %v676
        %v678 = vrot.slane %v670, %v677
        %v680 = vunpack.c.l.s4 1934713408
        %v681 = vunpack.c.0.s8 %v680
        %v682 = vlaneseq
        %v683 = vshrl.u32 %v682, 7
        %v684 = vsub.s32 %v681, %v683
        %v685 = vrot.slane %v671, %v684
        %v686 = vcombine.low %v630, %v646
        %v687 = vcombine.high %v630, %v646
        %v689 = vunpack.c.l.s4 1934713408
        %v690 = vunpack.c.0.s8 %v689
        %v691 = vlaneseq
        %v692 = vshrl.u32 %v691, 7
        %v693 = vsub.s32 %v690, %v692
        %v694 = vrot.slane %v686, %v693
        %v696 = vunpack.c.l.s4 1934713408
        %v697 = vunpack.c.0.s8 %v696
        %v698 = vlaneseq
        %v699 = vshrl.u32 %v698, 7
        %v700 = vsub.s32 %v697, %v699
        %v701 = vrot.slane %v687, %v700
        %v702 = vcombine.low %v637, %v653
        %v703 = vcombine.high %v637, %v653
        %v705 = vunpack.c.l.s4 1934713408
        %v706 = vunpack.c.0.s8 %v705
        %v707 = vlaneseq
        %v708 = vshrl.u32 %v707, 7
        %v709 = vsub.s32 %v706, %v708
        %v710 = vrot.slane %v702, %v709
        %v712 = vunpack.c.l.s4 1934713408
        %v713 = vunpack.c.0.s8 %v712
        %v714 = vlaneseq
        %v715 = vshrl.u32 %v714, 7
        %v716 = vsub.s32 %v713, %v715
        %v717 = vrot.slane %v703, %v716
        %v718 = vcombine.low %v662, %v694
        %v719 = vcombine.high %v662, %v694
        %v720 = vcombine.low %v669, %v701
        %v721 = vcombine.high %v669, %v701
        %v722 = vcombine.low %v678, %v710
        %v723 = vcombine.high %v678, %v710
        %v724 = vcombine.low %v685, %v717
        %v725 = vcombine.high %v685, %v717
        %v726 = vcombine.low %v214, %v216
        %v727 = vcombine.high %v214, %v216
        %v729 = vunpack.c.l.s4 1983009808
        %v730 = vunpack.c.0.s8 %v729
        %v731 = vlaneseq
        %v732 = vshrl.u32 %v731, 7
        %v733 = vsub.s32 %v730, %v732
        %v734 = vrot.slane %v726, %v733
        %v736 = vunpack.c.l.s4 1983009808
        %v737 = vunpack.c.0.s8 %v736
        %v738 = vlaneseq
        %v739 = vshrl.u32 %v738, 7
        %v740 = vsub.s32 %v737, %v739
        %v741 = vrot.slane %v727, %v740
        %v742 = vcombine.low %v215, %v217
        %v743 = vcombine.high %v215, %v217
        %v745 = vunpack.c.l.s4 1983009808
        %v746 = vunpack.c.0.s8 %v745
        %v747 = vlaneseq
        %v748 = vshrl.u32 %v747, 7
        %v749 = vsub.s32 %v746, %v748
        %v750 = vrot.slane %v742, %v749
        %v752 = vunpack.c.l.s4 1983009808
        %v753 = vunpack.c.0.s8 %v752
        %v754 = vlaneseq
        %v755 = vshrl.u32 %v754, 7
        %v756 = vsub.s32 %v753, %v755
        %v757 = vrot.slane %v743, %v756
        %v758 = vcombine.low %v218, %v220
        %v759 = vcombine.high %v218, %v220
        %v761 = vunpack.c.l.s4 1983009808
        %v762 = vunpack.c.0.s8 %v761
        %v763 = vlaneseq
        %v764 = vshrl.u32 %v763, 7
        %v765 = vsub.s32 %v762, %v764
        %v766 = vrot.slane %v758, %v765
        %v768 = vunpack.c.l.s4 1983009808
        %v769 = vunpack.c.0.s8 %v768
        %v770 = vlaneseq
        %v771 = vshrl.u32 %v770, 7
        %v772 = vsub.s32 %v769, %v771
        %v773 = vrot.slane %v759, %v772
        %v774 = vcombine.low %v219, %v221
        %v775 = vcombine.high %v219, %v221
        %v777 = vunpack.c.l.s4 1983009808
        %v778 = vunpack.c.0.s8 %v777
        %v779 = vlaneseq
        %v780 = vshrl.u32 %v779, 7
        %v781 = vsub.s32 %v778, %v780
        %v782 = vrot.slane %v774, %v781
        %v784 = vunpack.c.l.s4 1983009808
        %v785 = vunpack.c.0.s8 %v784
        %v786 = vlaneseq
        %v787 = vshrl.u32 %v786, 7
        %v788 = vsub.s32 %v785, %v787
        %v789 = vrot.slane %v775, %v788
        %v790 = vcombine.low %v734, %v750
        %v791 = vcombine.high %v734, %v750
        %v793 = vunpack.c.l.s4 1934713408
        %v794 = vunpack.c.0.s8 %v793
        %v795 = vlaneseq
        %v796 = vshrl.u32 %v795, 7
        %v797 = vsub.s32 %v794, %v796
        %v798 = vrot.slane %v790, %v797
        %v800 = vunpack.c.l.s4 1934713408
        %v801 = vunpack.c.0.s8 %v800
        %v802 = vlaneseq
        %v803 = vshrl.u32 %v802, 7
        %v804 = vsub.s32 %v801, %v803
        %v805 = vrot.slane %v791, %v804
        %v806 = vcombine.low %v741, %v757
        %v807 = vcombine.high %v741, %v757
        %v809 = vunpack.c.l.s4 1934713408
        %v810 = vunpack.c.0.s8 %v809
        %v811 = vlaneseq
        %v812 = vshrl.u32 %v811, 7
        %v813 = vsub.s32 %v810, %v812
        %v814 = vrot.slane %v806, %v813
        %v816 = vunpack.c.l.s4 1934713408
        %v817 = vunpack.c.0.s8 %v816
        %v818 = vlaneseq
        %v819 = vshrl.u32 %v818, 7
        %v820 = vsub.s32 %v817, %v819
        %v821 = vrot.slane %v807, %v820
        %v822 = vcombine.low %v766, %v782
        %v823 = vcombine.high %v766, %v782
        %v825 = vunpack.c.l.s4 1934713408
        %v826 = vunpack.c.0.s8 %v825
        %v827 = vlaneseq
        %v828 = vshrl.u32 %v827, 7
        %v829 = vsub.s32 %v826, %v828
        %v830 = vrot.slane %v822, %v829
        %v832 = vunpack.c.l.s4 1934713408
        %v833 = vunpack.c.0.s8 %v832
        %v834 = vlaneseq
        %v835 = vshrl.u32 %v834, 7
        %v836 = vsub.s32 %v833, %v835
        %v837 = vrot.slane %v823, %v836
        %v838 = vcombine.low %v773, %v789
        %v839 = vcombine.high %v773, %v789
        %v841 = vunpack.c.l.s4 1934713408
        %v842 = vunpack.c.0.s8 %v841
        %v843 = vlaneseq
        %v844 = vshrl.u32 %v843, 7
        %v845 = vsub.s32 %v842, %v844
        %v846 = vrot.slane %v838, %v845
        %v848 = vunpack.c.l.s4 1934713408
        %v849 = vunpack.c.0.s8 %v848
        %v850 = vlaneseq
        %v851 = vshrl.u32 %v850, 7
        %v852 = vsub.s32 %v849, %v851
        %v853 = vrot.slane %v839, %v852
        %v854 = vcombine.low %v798, %v830
        %v855 = vcombine.high %v798, %v830
        %v856 = vcombine.low %v805, %v837
        %v857 = vcombine.high %v805, %v837
        %v858 = vcombine.low %v814, %v846
        %v859 = vcombine.high %v814, %v846
        %v860 = vcombine.low %v821, %v853
        %v861 = vcombine.high %v821, %v853
        %v862 = vcombine.low %v222, %v224
        %v863 = vcombine.high %v222, %v224
        %v865 = vunpack.c.l.s4 1983009808
        %v866 = vunpack.c.0.s8 %v865
        %v867 = vlaneseq
        %v868 = vshrl.u32 %v867, 7
        %v869 = vsub.s32 %v866, %v868
        %v870 = vrot.slane %v862, %v869
        %v872 = vunpack.c.l.s4 1983009808
        %v873 = vunpack.c.0.s8 %v872
        %v874 = vlaneseq
        %v875 = vshrl.u32 %v874, 7
        %v876 = vsub.s32 %v873, %v875
        %v877 = vrot.slane %v863, %v876
        %v878 = vcombine.low %v223, %v225
        %v879 = vcombine.high %v223, %v225
        %v881 = vunpack.c.l.s4 1983009808
        %v882 = vunpack.c.0.s8 %v881
        %v883 = vlaneseq
        %v884 = vshrl.u32 %v883, 7
        %v885 = vsub.s32 %v882, %v884
        %v886 = vrot.slane %v878, %v885
        %v888 = vunpack.c.l.s4 1983009808
        %v889 = vunpack.c.0.s8 %v888
        %v890 = vlaneseq
        %v891 = vshrl.u32 %v890, 7
        %v892 = vsub.s32 %v889, %v891
        %v893 = vrot.slane %v879, %v892
        %v894 = vcombine.low %v226, %v228
        %v895 = vcombine.high %v226, %v228
        %v897 = vunpack.c.l.s4 1983009808
        %v898 = vunpack.c.0.s8 %v897
        %v899 = vlaneseq
        %v900 = vshrl.u32 %v899, 7
        %v901 = vsub.s32 %v898, %v900
        %v902 = vrot.slane %v894, %v901
        %v904 = vunpack.c.l.s4 1983009808
        %v905 = vunpack.c.0.s8 %v904
        %v906 = vlaneseq
        %v907 = vshrl.u32 %v906, 7
        %v908 = vsub.s32 %v905, %v907
        %v909 = vrot.slane %v895, %v908
        %v910 = vcombine.low %v227, %v229
        %v911 = vcombine.high %v227, %v229
        %v913 = vunpack.c.l.s4 1983009808
        %v914 = vunpack.c.0.s8 %v913
        %v915 = vlaneseq
        %v916 = vshrl.u32 %v915, 7
        %v917 = vsub.s32 %v914, %v916
        %v918 = vrot.slane %v910, %v917
        %v920 = vunpack.c.l.s4 1983009808
        %v921 = vunpack.c.0.s8 %v920
        %v922 = vlaneseq
        %v923 = vshrl.u32 %v922, 7
        %v924 = vsub.s32 %v921, %v923
        %v925 = vrot.slane %v911, %v924
        %v926 = vcombine.low %v870, %v886
        %v927 = vcombine.high %v870, %v886
        %v929 = vunpack.c.l.s4 1934713408
        %v930 = vunpack.c.0.s8 %v929
        %v931 = vlaneseq
        %v932 = vshrl.u32 %v931, 7
        %v933 = vsub.s32 %v930, %v932
        %v934 = vrot.slane %v926, %v933
        %v936 = vunpack.c.l.s4 1934713408
        %v937 = vunpack.c.0.s8 %v936
        %v938 = vlaneseq
        %v939 = vshrl.u32 %v938, 7
        %v940 = vsub.s32 %v937, %v939
        %v941 = vrot.slane %v927, %v940
        %v942 = vcombine.low %v877, %v893
        %v943 = vcombine.high %v877, %v893
        %v945 = vunpack.c.l.s4 1934713408
        %v946 = vunpack.c.0.s8 %v945
        %v947 = vlaneseq
        %v948 = vshrl.u32 %v947, 7
        %v949 = vsub.s32 %v946, %v948
        %v950 = vrot.slane %v942, %v949
        %v952 = vunpack.c.l.s4 1934713408
        %v953 = vunpack.c.0.s8 %v952
        %v954 = vlaneseq
        %v955 = vshrl.u32 %v954, 7
        %v956 = vsub.s32 %v953, %v955
        %v957 = vrot.slane %v943, %v956
        %v958 = vcombine.low %v902, %v918
        %v959 = vcombine.high %v902, %v918
        %v961 = vunpack.c.l.s4 1934713408
        %v962 = vunpack.c.0.s8 %v961
        %v963 = vlaneseq
        %v964 = vshrl.u32 %v963, 7
        %v965 = vsub.s32 %v962, %v964
        %v966 = vrot.slane %v958, %v965
        %v968 = vunpack.c.l.s4 1934713408
        %v969 = vunpack.c.0.s8 %v968
        %v970 = vlaneseq
        %v971 = vshrl.u32 %v970, 7
        %v972 = vsub.s32 %v969, %v971
        %v973 = vrot.slane %v959, %v972
        %v974 = vcombine.low %v909, %v925
        %v975 = vcombine.high %v909, %v925
        %v977 = vunpack.c.l.s4 1934713408
        %v978 = vunpack.c.0.s8 %v977
        %v979 = vlaneseq
        %v980 = vshrl.u32 %v979, 7
        %v981 = vsub.s32 %v978, %v980
        %v982 = vrot.slane %v974, %v981
        %v984 = vunpack.c.l.s4 1934713408
        %v985 = vunpack.c.0.s8 %v984
        %v986 = vlaneseq
        %v987 = vshrl.u32 %v986, 7
        %v988 = vsub.s32 %v985, %v987
        %v989 = vrot.slane %v975, %v988
        %v990 = vcombine.low %v934, %v966
        %v991 = vcombine.high %v934, %v966
        %v992 = vcombine.low %v941, %v973
        %v993 = vcombine.high %v941, %v973
        %v994 = vcombine.low %v950, %v982
        %v995 = vcombine.high %v950, %v982
        %v996 = vcombine.low %v957, %v989
        %v997 = vcombine.high %v957, %v989
        %v998 = vcombine.low %v230, %v232
        %v999 = vcombine.high %v230, %v232
        %v1001 = vunpack.c.l.s4 1983009808
        %v1002 = vunpack.c.0.s8 %v1001
        %v1003 = vlaneseq
        %v1004 = vshrl.u32 %v1003, 7
        %v1005 = vsub.s32 %v1002, %v1004
        %v1006 = vrot.slane %v998, %v1005
        %v1008 = vunpack.c.l.s4 1983009808
        %v1009 = vunpack.c.0.s8 %v1008
        %v1010 = vlaneseq
        %v1011 = vshrl.u32 %v1010, 7
        %v1012 = vsub.s32 %v1009, %v1011
        %v1013 = vrot.slane %v999, %v1012
        %v1014 = vcombine.low %v231, %v233
        %v1015 = vcombine.high %v231, %v233
        %v1017 = vunpack.c.l.s4 1983009808
        %v1018 = vunpack.c.0.s8 %v1017
        %v1019 = vlaneseq
        %v1020 = vshrl.u32 %v1019, 7
        %v1021 = vsub.s32 %v1018, %v1020
        %v1022 = vrot.slane %v1014, %v1021
        %v1024 = vunpack.c.l.s4 1983009808
        %v1025 = vunpack.c.0.s8 %v1024
        %v1026 = vlaneseq
        %v1027 = vshrl.u32 %v1026, 7
        %v1028 = vsub.s32 %v1025, %v1027
        %v1029 = vrot.slane %v1015, %v1028
        %v1030 = vcombine.low %v234, %v236
        %v1031 = vcombine.high %v234, %v236
        %v1033 = vunpack.c.l.s4 1983009808
        %v1034 = vunpack.c.0.s8 %v1033
        %v1035 = vlaneseq
        %v1036 = vshrl.u32 %v1035, 7
        %v1037 = vsub.s32 %v1034, %v1036
        %v1038 = vrot.slane %v1030, %v1037
        %v1040 = vunpack.c.l.s4 1983009808
        %v1041 = vunpack.c.0.s8 %v1040
        %v1042 = vlaneseq
        %v1043 = vshrl.u32 %v1042, 7
        %v1044 = vsub.s32 %v1041, %v1043
        %v1045 = vrot.slane %v1031, %v1044
        %v1046 = vcombine.low %v235, %v237
        %v1047 = vcombine.high %v235, %v237
        %v1049 = vunpack.c.l.s4 1983009808
        %v1050 = vunpack.c.0.s8 %v1049
        %v1051 = vlaneseq
        %v1052 = vshrl.u32 %v1051, 7
        %v1053 = vsub.s32 %v1050, %v1052
        %v1054 = vrot.slane %v1046, %v1053
        %v1056 = vunpack.c.l.s4 1983009808
        %v1057 = vunpack.c.0.s8 %v1056
        %v1058 = vlaneseq
        %v1059 = vshrl.u32 %v1058, 7
        %v1060 = vsub.s32 %v1057, %v1059
        %v1061 = vrot.slane %v1047, %v1060
        %v1062 = vcombine.low %v1006, %v1022
        %v1063 = vcombine.high %v1006, %v1022
        %v1065 = vunpack.c.l.s4 1934713408
        %v1066 = vunpack.c.0.s8 %v1065
        %v1067 = vlaneseq
        %v1068 = vshrl.u32 %v1067, 7
        %v1069 = vsub.s32 %v1066, %v1068
        %v1070 = vrot.slane %v1062, %v1069
        %v1072 = vunpack.c.l.s4 1934713408
        %v1073 = vunpack.c.0.s8 %v1072
        %v1074 = vlaneseq
        %v1075 = vshrl.u32 %v1074, 7
        %v1076 = vsub.s32 %v1073, %v1075
        %v1077 = vrot.slane %v1063, %v1076
        %v1078 = vcombine.low %v1013, %v1029
        %v1079 = vcombine.high %v1013, %v1029
        %v1081 = vunpack.c.l.s4 1934713408
        %v1082 = vunpack.c.0.s8 %v1081
        %v1083 = vlaneseq
        %v1084 = vshrl.u32 %v1083, 7
        %v1085 = vsub.s32 %v1082, %v1084
        %v1086 = vrot.slane %v1078, %v1085
        %v1088 = vunpack.c.l.s4 1934713408
        %v1089 = vunpack.c.0.s8 %v1088
        %v1090 = vlaneseq
        %v1091 = vshrl.u32 %v1090, 7
        %v1092 = vsub.s32 %v1089, %v1091
        %v1093 = vrot.slane %v1079, %v1092
        %v1094 = vcombine.low %v1038, %v1054
        %v1095 = vcombine.high %v1038, %v1054
        %v1097 = vunpack.c.l.s4 1934713408
        %v1098 = vunpack.c.0.s8 %v1097
        %v1099 = vlaneseq
        %v1100 = vshrl.u32 %v1099, 7
        %v1101 = vsub.s32 %v1098, %v1100
        %v1102 = vrot.slane %v1094, %v1101
        %v1104 = vunpack.c.l.s4 1934713408
        %v1105 = vunpack.c.0.s8 %v1104
        %v1106 = vlaneseq
        %v1107 = vshrl.u32 %v1106, 7
        %v1108 = vsub.s32 %v1105, %v1107
        %v1109 = vrot.slane %v1095, %v1108
        %v1110 = vcombine.low %v1045, %v1061
        %v1111 = vcombine.high %v1045, %v1061
        %v1113 = vunpack.c.l.s4 1934713408
        %v1114 = vunpack.c.0.s8 %v1113
        %v1115 = vlaneseq
        %v1116 = vshrl.u32 %v1115, 7
        %v1117 = vsub.s32 %v1114, %v1116
        %v1118 = vrot.slane %v1110, %v1117
        %v1120 = vunpack.c.l.s4 1934713408
        %v1121 = vunpack.c.0.s8 %v1120
        %v1122 = vlaneseq
        %v1123 = vshrl.u32 %v1122, 7
        %v1124 = vsub.s32 %v1121, %v1123
        %v1125 = vrot.slane %v1111, %v1124
        %v1126 = vcombine.low %v1070, %v1102
        %v1127 = vcombine.high %v1070, %v1102
        %v1128 = vcombine.low %v1077, %v1109
        %v1129 = vcombine.high %v1077, %v1109
        %v1130 = vcombine.low %v1086, %v1118
        %v1131 = vcombine.high %v1086, %v1118
        %v1132 = vcombine.low %v1093, %v1125
        %v1133 = vcombine.high %v1093, %v1125
        %v1134 = vcombine.low %v238, %v240
        %v1135 = vcombine.high %v238, %v240
        %v1137 = vunpack.c.l.s4 1983009808
        %v1138 = vunpack.c.0.s8 %v1137
        %v1139 = vlaneseq
        %v1140 = vshrl.u32 %v1139, 7
        %v1141 = vsub.s32 %v1138, %v1140
        %v1142 = vrot.slane %v1134, %v1141
        %v1144 = vunpack.c.l.s4 1983009808
        %v1145 = vunpack.c.0.s8 %v1144
        %v1146 = vlaneseq
        %v1147 = vshrl.u32 %v1146, 7
        %v1148 = vsub.s32 %v1145, %v1147
        %v1149 = vrot.slane %v1135, %v1148
        %v1150 = vcombine.low %v239, %v241
        %v1151 = vcombine.high %v239, %v241
        %v1153 = vunpack.c.l.s4 1983009808
        %v1154 = vunpack.c.0.s8 %v1153
        %v1155 = vlaneseq
        %v1156 = vshrl.u32 %v1155, 7
        %v1157 = vsub.s32 %v1154, %v1156
        %v1158 = vrot.slane %v1150, %v1157
        %v1160 = vunpack.c.l.s4 1983009808
        %v1161 = vunpack.c.0.s8 %v1160
        %v1162 = vlaneseq
        %v1163 = vshrl.u32 %v1162, 7
        %v1164 = vsub.s32 %v1161, %v1163
        %v1165 = vrot.slane %v1151, %v1164
        %v1166 = vcombine.low %v242, %v244
        %v1167 = vcombine.high %v242, %v244
        %v1169 = vunpack.c.l.s4 1983009808
        %v1170 = vunpack.c.0.s8 %v1169
        %v1171 = vlaneseq
        %v1172 = vshrl.u32 %v1171, 7
        %v1173 = vsub.s32 %v1170, %v1172
        %v1174 = vrot.slane %v1166, %v1173
        %v1176 = vunpack.c.l.s4 1983009808
        %v1177 = vunpack.c.0.s8 %v1176
        %v1178 = vlaneseq
        %v1179 = vshrl.u32 %v1178, 7
        %v1180 = vsub.s32 %v1177, %v1179
        %v1181 = vrot.slane %v1167, %v1180
        %v1182 = vcombine.low %v243, %v245
        %v1183 = vcombine.high %v243, %v245
        %v1185 = vunpack.c.l.s4 1983009808
        %v1186 = vunpack.c.0.s8 %v1185
        %v1187 = vlaneseq
        %v1188 = vshrl.u32 %v1187, 7
        %v1189 = vsub.s32 %v1186, %v1188
        %v1190 = vrot.slane %v1182, %v1189
        %v1192 = vunpack.c.l.s4 1983009808
        %v1193 = vunpack.c.0.s8 %v1192
        %v1194 = vlaneseq
        %v1195 = vshrl.u32 %v1194, 7
        %v1196 = vsub.s32 %v1193, %v1195
        %v1197 = vrot.slane %v1183, %v1196
        %v1198 = vcombine.low %v1142, %v1158
        %v1199 = vcombine.high %v1142, %v1158
        %v1201 = vunpack.c.l.s4 1934713408
        %v1202 = vunpack.c.0.s8 %v1201
        %v1203 = vlaneseq
        %v1204 = vshrl.u32 %v1203, 7
        %v1205 = vsub.s32 %v1202, %v1204
        %v1206 = vrot.slane %v1198, %v1205
        %v1208 = vunpack.c.l.s4 1934713408
        %v1209 = vunpack.c.0.s8 %v1208
        %v1210 = vlaneseq
        %v1211 = vshrl.u32 %v1210, 7
        %v1212 = vsub.s32 %v1209, %v1211
        %v1213 = vrot.slane %v1199, %v1212
        %v1214 = vcombine.low %v1149, %v1165
        %v1215 = vcombine.high %v1149, %v1165
        %v1217 = vunpack.c.l.s4 1934713408
        %v1218 = vunpack.c.0.s8 %v1217
        %v1219 = vlaneseq
        %v1220 = vshrl.u32 %v1219, 7
        %v1221 = vsub.s32 %v1218, %v1220
        %v1222 = vrot.slane %v1214, %v1221
        %v1224 = vunpack.c.l.s4 1934713408
        %v1225 = vunpack.c.0.s8 %v1224
        %v1226 = vlaneseq
        %v1227 = vshrl.u32 %v1226, 7
        %v1228 = vsub.s32 %v1225, %v1227
        %v1229 = vrot.slane %v1215, %v1228
        %v1230 = vcombine.low %v1174, %v1190
        %v1231 = vcombine.high %v1174, %v1190
        %v1233 = vunpack.c.l.s4 1934713408
        %v1234 = vunpack.c.0.s8 %v1233
        %v1235 = vlaneseq
        %v1236 = vshrl.u32 %v1235, 7
        %v1237 = vsub.s32 %v1234, %v1236
        %v1238 = vrot.slane %v1230, %v1237
        %v1240 = vunpack.c.l.s4 1934713408
        %v1241 = vunpack.c.0.s8 %v1240
        %v1242 = vlaneseq
        %v1243 = vshrl.u32 %v1242, 7
        %v1244 = vsub.s32 %v1241, %v1243
        %v1245 = vrot.slane %v1231, %v1244
        %v1246 = vcombine.low %v1181, %v1197
        %v1247 = vcombine.high %v1181, %v1197
        %v1249 = vunpack.c.l.s4 1934713408
        %v1250 = vunpack.c.0.s8 %v1249
        %v1251 = vlaneseq
        %v1252 = vshrl.u32 %v1251, 7
        %v1253 = vsub.s32 %v1250, %v1252
        %v1254 = vrot.slane %v1246, %v1253
        %v1256 = vunpack.c.l.s4 1934713408
        %v1257 = vunpack.c.0.s8 %v1256
        %v1258 = vlaneseq
        %v1259 = vshrl.u32 %v1258, 7
        %v1260 = vsub.s32 %v1257, %v1259
        %v1261 = vrot.slane %v1247, %v1260
        %v1262 = vcombine.low %v1206, %v1238
        %v1263 = vcombine.high %v1206, %v1238
        %v1264 = vcombine.low %v1213, %v1245
        %v1265 = vcombine.high %v1213, %v1245
        %v1266 = vcombine.low %v1222, %v1254
        %v1267 = vcombine.high %v1222, %v1254
        %v1268 = vcombine.low %v1229, %v1261
        %v1269 = vcombine.high %v1229, %v1261
        %v1270 = vcombine.low %v246, %v248
        %v1271 = vcombine.high %v246, %v248
        %v1273 = vunpack.c.l.s4 1983009808
        %v1274 = vunpack.c.0.s8 %v1273
        %v1275 = vlaneseq
        %v1276 = vshrl.u32 %v1275, 7
        %v1277 = vsub.s32 %v1274, %v1276
        %v1278 = vrot.slane %v1270, %v1277
        %v1280 = vunpack.c.l.s4 1983009808
        %v1281 = vunpack.c.0.s8 %v1280
        %v1282 = vlaneseq
        %v1283 = vshrl.u32 %v1282, 7
        %v1284 = vsub.s32 %v1281, %v1283
        %v1285 = vrot.slane %v1271, %v1284
        %v1286 = vcombine.low %v247, %v249
        %v1287 = vcombine.high %v247, %v249
        %v1289 = vunpack.c.l.s4 1983009808
        %v1290 = vunpack.c.0.s8 %v1289
        %v1291 = vlaneseq
        %v1292 = vshrl.u32 %v1291, 7
        %v1293 = vsub.s32 %v1290, %v1292
        %v1294 = vrot.slane %v1286, %v1293
        %v1296 = vunpack.c.l.s4 1983009808
        %v1297 = vunpack.c.0.s8 %v1296
        %v1298 = vlaneseq
        %v1299 = vshrl.u32 %v1298, 7
        %v1300 = vsub.s32 %v1297, %v1299
        %v1301 = vrot.slane %v1287, %v1300
        %v1302 = vcombine.low %v250, %v252
        %v1303 = vcombine.high %v250, %v252
        %v1305 = vunpack.c.l.s4 1983009808
        %v1306 = vunpack.c.0.s8 %v1305
        %v1307 = vlaneseq
        %v1308 = vshrl.u32 %v1307, 7
        %v1309 = vsub.s32 %v1306, %v1308
        %v1310 = vrot.slane %v1302, %v1309
        %v1312 = vunpack.c.l.s4 1983009808
        %v1313 = vunpack.c.0.s8 %v1312
        %v1314 = vlaneseq
        %v1315 = vshrl.u32 %v1314, 7
        %v1316 = vsub.s32 %v1313, %v1315
        %v1317 = vrot.slane %v1303, %v1316
        %v1318 = vcombine.low %v251, %v253
        %v1319 = vcombine.high %v251, %v253
        %v1321 = vunpack.c.l.s4 1983009808
        %v1322 = vunpack.c.0.s8 %v1321
        %v1323 = vlaneseq
        %v1324 = vshrl.u32 %v1323, 7
        %v1325 = vsub.s32 %v1322, %v1324
        %v1326 = vrot.slane %v1318, %v1325
        %v1328 = vunpack.c.l.s4 1983009808
        %v1329 = vunpack.c.0.s8 %v1328
        %v1330 = vlaneseq
        %v1331 = vshrl.u32 %v1330, 7
        %v1332 = vsub.s32 %v1329, %v1331
        %v1333 = vrot.slane %v1319, %v1332
        %v1334 = vcombine.low %v1278, %v1294
        %v1335 = vcombine.high %v1278, %v1294
        %v1337 = vunpack.c.l.s4 1934713408
        %v1338 = vunpack.c.0.s8 %v1337
        %v1339 = vlaneseq
        %v1340 = vshrl.u32 %v1339, 7
        %v1341 = vsub.s32 %v1338, %v1340
        %v1342 = vrot.slane %v1334, %v1341
        %v1344 = vunpack.c.l.s4 1934713408
        %v1345 = vunpack.c.0.s8 %v1344
        %v1346 = vlaneseq
        %v1347 = vshrl.u32 %v1346, 7
        %v1348 = vsub.s32 %v1345, %v1347
        %v1349 = vrot.slane %v1335, %v1348
        %v1350 = vcombine.low %v1285, %v1301
        %v1351 = vcombine.high %v1285, %v1301
        %v1353 = vunpack.c.l.s4 1934713408
        %v1354 = vunpack.c.0.s8 %v1353
        %v1355 = vlaneseq
        %v1356 = vshrl.u32 %v1355, 7
        %v1357 = vsub.s32 %v1354, %v1356
        %v1358 = vrot.slane %v1350, %v1357
        %v1360 = vunpack.c.l.s4 1934713408
        %v1361 = vunpack.c.0.s8 %v1360
        %v1362 = vlaneseq
        %v1363 = vshrl.u32 %v1362, 7
        %v1364 = vsub.s32 %v1361, %v1363
        %v1365 = vrot.slane %v1351, %v1364
        %v1366 = vcombine.low %v1310, %v1326
        %v1367 = vcombine.high %v1310, %v1326
        %v1369 = vunpack.c.l.s4 1934713408
        %v1370 = vunpack.c.0.s8 %v1369
        %v1371 = vlaneseq
        %v1372 = vshrl.u32 %v1371, 7
        %v1373 = vsub.s32 %v1370, %v1372
        %v1374 = vrot.slane %v1366, %v1373
        %v1376 = vunpack.c.l.s4 1934713408
        %v1377 = vunpack.c.0.s8 %v1376
        %v1378 = vlaneseq
        %v1379 = vshrl.u32 %v1378, 7
        %v1380 = vsub.s32 %v1377, %v1379
        %v1381 = vrot.slane %v1367, %v1380
        %v1382 = vcombine.low %v1317, %v1333
        %v1383 = vcombine.high %v1317, %v1333
        %v1385 = vunpack.c.l.s4 1934713408
        %v1386 = vunpack.c.0.s8 %v1385
        %v1387 = vlaneseq
        %v1388 = vshrl.u32 %v1387, 7
        %v1389 = vsub.s32 %v1386, %v1388
        %v1390 = vrot.slane %v1382, %v1389
        %v1392 = vunpack.c.l.s4 1934713408
        %v1393 = vunpack.c.0.s8 %v1392
        %v1394 = vlaneseq
        %v1395 = vshrl.u32 %v1394, 7
        %v1396 = vsub.s32 %v1393, %v1395
        %v1397 = vrot.slane %v1383, %v1396
        %v1398 = vcombine.low %v1342, %v1374
        %v1399 = vcombine.high %v1342, %v1374
        %v1400 = vcombine.low %v1349, %v1381
        %v1401 = vcombine.high %v1349, %v1381
        %v1402 = vcombine.low %v1358, %v1390
        %v1403 = vcombine.high %v1358, %v1390
        %v1404 = vcombine.low %v1365, %v1397
        %v1405 = vcombine.high %v1365, %v1397
        %v1406 = vcombine.low %v254, %v256
        %v1407 = vcombine.high %v254, %v256
        %v1409 = vunpack.c.l.s4 1983009808
        %v1410 = vunpack.c.0.s8 %v1409
        %v1411 = vlaneseq
        %v1412 = vshrl.u32 %v1411, 7
        %v1413 = vsub.s32 %v1410, %v1412
        %v1414 = vrot.slane %v1406, %v1413
        %v1416 = vunpack.c.l.s4 1983009808
        %v1417 = vunpack.c.0.s8 %v1416
        %v1418 = vlaneseq
        %v1419 = vshrl.u32 %v1418, 7
        %v1420 = vsub.s32 %v1417, %v1419
        %v1421 = vrot.slane %v1407, %v1420
        %v1422 = vcombine.low %v255, %v257
        %v1423 = vcombine.high %v255, %v257
        %v1425 = vunpack.c.l.s4 1983009808
        %v1426 = vunpack.c.0.s8 %v1425
        %v1427 = vlaneseq
        %v1428 = vshrl.u32 %v1427, 7
        %v1429 = vsub.s32 %v1426, %v1428
        %v1430 = vrot.slane %v1422, %v1429
        %v1432 = vunpack.c.l.s4 1983009808
        %v1433 = vunpack.c.0.s8 %v1432
        %v1434 = vlaneseq
        %v1435 = vshrl.u32 %v1434, 7
        %v1436 = vsub.s32 %v1433, %v1435
        %v1437 = vrot.slane %v1423, %v1436
        %v1438 = vcombine.low %v258, %v260
        %v1439 = vcombine.high %v258, %v260
        %v1441 = vunpack.c.l.s4 1983009808
        %v1442 = vunpack.c.0.s8 %v1441
        %v1443 = vlaneseq
        %v1444 = vshrl.u32 %v1443, 7
        %v1445 = vsub.s32 %v1442, %v1444
        %v1446 = vrot.slane %v1438, %v1445
        %v1448 = vunpack.c.l.s4 1983009808
        %v1449 = vunpack.c.0.s8 %v1448
        %v1450 = vlaneseq
        %v1451 = vshrl.u32 %v1450, 7
        %v1452 = vsub.s32 %v1449, %v1451
        %v1453 = vrot.slane %v1439, %v1452
        %v1454 = vcombine.low %v259, %v261
        %v1455 = vcombine.high %v259, %v261
        %v1457 = vunpack.c.l.s4 1983009808
        %v1458 = vunpack.c.0.s8 %v1457
        %v1459 = vlaneseq
        %v1460 = vshrl.u32 %v1459, 7
        %v1461 = vsub.s32 %v1458, %v1460
        %v1462 = vrot.slane %v1454, %v1461
        %v1464 = vunpack.c.l.s4 1983009808
        %v1465 = vunpack.c.0.s8 %v1464
        %v1466 = vlaneseq
        %v1467 = vshrl.u32 %v1466, 7
        %v1468 = vsub.s32 %v1465, %v1467
        %v1469 = vrot.slane %v1455, %v1468
        %v1470 = vcombine.low %v1414, %v1430
        %v1471 = vcombine.high %v1414, %v1430
        %v1473 = vunpack.c.l.s4 1934713408
        %v1474 = vunpack.c.0.s8 %v1473
        %v1475 = vlaneseq
        %v1476 = vshrl.u32 %v1475, 7
        %v1477 = vsub.s32 %v1474, %v1476
        %v1478 = vrot.slane %v1470, %v1477
        %v1480 = vunpack.c.l.s4 1934713408
        %v1481 = vunpack.c.0.s8 %v1480
        %v1482 = vlaneseq
        %v1483 = vshrl.u32 %v1482, 7
        %v1484 = vsub.s32 %v1481, %v1483
        %v1485 = vrot.slane %v1471, %v1484
        %v1486 = vcombine.low %v1421, %v1437
        %v1487 = vcombine.high %v1421, %v1437
        %v1489 = vunpack.c.l.s4 1934713408
        %v1490 = vunpack.c.0.s8 %v1489
        %v1491 = vlaneseq
        %v1492 = vshrl.u32 %v1491, 7
        %v1493 = vsub.s32 %v1490, %v1492
        %v1494 = vrot.slane %v1486, %v1493
        %v1496 = vunpack.c.l.s4 1934713408
        %v1497 = vunpack.c.0.s8 %v1496
        %v1498 = vlaneseq
        %v1499 = vshrl.u32 %v1498, 7
        %v1500 = vsub.s32 %v1497, %v1499
        %v1501 = vrot.slane %v1487, %v1500
        %v1502 = vcombine.low %v1446, %v1462
        %v1503 = vcombine.high %v1446, %v1462
        %v1505 = vunpack.c.l.s4 1934713408
        %v1506 = vunpack.c.0.s8 %v1505
        %v1507 = vlaneseq
        %v1508 = vshrl.u32 %v1507, 7
        %v1509 = vsub.s32 %v1506, %v1508
        %v1510 = vrot.slane %v1502, %v1509
        %v1512 = vunpack.c.l.s4 1934713408
        %v1513 = vunpack.c.0.s8 %v1512
        %v1514 = vlaneseq
        %v1515 = vshrl.u32 %v1514, 7
        %v1516 = vsub.s32 %v1513, %v1515
        %v1517 = vrot.slane %v1503, %v1516
        %v1518 = vcombine.low %v1453, %v1469
        %v1519 = vcombine.high %v1453, %v1469
        %v1521 = vunpack.c.l.s4 1934713408
        %v1522 = vunpack.c.0.s8 %v1521
        %v1523 = vlaneseq
        %v1524 = vshrl.u32 %v1523, 7
        %v1525 = vsub.s32 %v1522, %v1524
        %v1526 = vrot.slane %v1518, %v1525
        %v1528 = vunpack.c.l.s4 1934713408
        %v1529 = vunpack.c.0.s8 %v1528
        %v1530 = vlaneseq
        %v1531 = vshrl.u32 %v1530, 7
        %v1532 = vsub.s32 %v1529, %v1531
        %v1533 = vrot.slane %v1519, %v1532
        %v1534 = vcombine.low %v1478, %v1510
        %v1535 = vcombine.high %v1478, %v1510
        %v1536 = vcombine.low %v1485, %v1517
        %v1537 = vcombine.high %v1485, %v1517
        %v1538 = vcombine.low %v1494, %v1526
        %v1539 = vcombine.high %v1494, %v1526
        %v1540 = vcombine.low %v1501, %v1533
        %v1541 = vcombine.high %v1501, %v1533
        %v1542 = vcombine.low %v262, %v264
        %v1543 = vcombine.high %v262, %v264
        %v1545 = vunpack.c.l.s4 1983009808
        %v1546 = vunpack.c.0.s8 %v1545
        %v1547 = vlaneseq
        %v1548 = vshrl.u32 %v1547, 7
        %v1549 = vsub.s32 %v1546, %v1548
        %v1550 = vrot.slane %v1542, %v1549
        %v1552 = vunpack.c.l.s4 1983009808
        %v1553 = vunpack.c.0.s8 %v1552
        %v1554 = vlaneseq
        %v1555 = vshrl.u32 %v1554, 7
        %v1556 = vsub.s32 %v1553, %v1555
        %v1557 = vrot.slane %v1543, %v1556
        %v1558 = vcombine.low %v263, %v265
        %v1559 = vcombine.high %v263, %v265
        %v1561 = vunpack.c.l.s4 1983009808
        %v1562 = vunpack.c.0.s8 %v1561
        %v1563 = vlaneseq
        %v1564 = vshrl.u32 %v1563, 7
        %v1565 = vsub.s32 %v1562, %v1564
        %v1566 = vrot.slane %v1558, %v1565
        %v1568 = vunpack.c.l.s4 1983009808
        %v1569 = vunpack.c.0.s8 %v1568
        %v1570 = vlaneseq
        %v1571 = vshrl.u32 %v1570, 7
        %v1572 = vsub.s32 %v1569, %v1571
        %v1573 = vrot.slane %v1559, %v1572
        %v1574 = vcombine.low %v266, %v268
        %v1575 = vcombine.high %v266, %v268
        %v1577 = vunpack.c.l.s4 1983009808
        %v1578 = vunpack.c.0.s8 %v1577
        %v1579 = vlaneseq
        %v1580 = vshrl.u32 %v1579, 7
        %v1581 = vsub.s32 %v1578, %v1580
        %v1582 = vrot.slane %v1574, %v1581
        %v1584 = vunpack.c.l.s4 1983009808
        %v1585 = vunpack.c.0.s8 %v1584
        %v1586 = vlaneseq
        %v1587 = vshrl.u32 %v1586, 7
        %v1588 = vsub.s32 %v1585, %v1587
        %v1589 = vrot.slane %v1575, %v1588
        %v1590 = vcombine.low %v267, %v269
        %v1591 = vcombine.high %v267, %v269
        %v1593 = vunpack.c.l.s4 1983009808
        %v1594 = vunpack.c.0.s8 %v1593
        %v1595 = vlaneseq
        %v1596 = vshrl.u32 %v1595, 7
        %v1597 = vsub.s32 %v1594, %v1596
        %v1598 = vrot.slane %v1590, %v1597
        %v1600 = vunpack.c.l.s4 1983009808
        %v1601 = vunpack.c.0.s8 %v1600
        %v1602 = vlaneseq
        %v1603 = vshrl.u32 %v1602, 7
        %v1604 = vsub.s32 %v1601, %v1603
        %v1605 = vrot.slane %v1591, %v1604
        %v1606 = vcombine.low %v1550, %v1566
        %v1607 = vcombine.high %v1550, %v1566
        %v1609 = vunpack.c.l.s4 1934713408
        %v1610 = vunpack.c.0.s8 %v1609
        %v1611 = vlaneseq
        %v1612 = vshrl.u32 %v1611, 7
        %v1613 = vsub.s32 %v1610, %v1612
        %v1614 = vrot.slane %v1606, %v1613
        %v1616 = vunpack.c.l.s4 1934713408
        %v1617 = vunpack.c.0.s8 %v1616
        %v1618 = vlaneseq
        %v1619 = vshrl.u32 %v1618, 7
        %v1620 = vsub.s32 %v1617, %v1619
        %v1621 = vrot.slane %v1607, %v1620
        %v1622 = vcombine.low %v1557, %v1573
        %v1623 = vcombine.high %v1557, %v1573
        %v1625 = vunpack.c.l.s4 1934713408
        %v1626 = vunpack.c.0.s8 %v1625
        %v1627 = vlaneseq
        %v1628 = vshrl.u32 %v1627, 7
        %v1629 = vsub.s32 %v1626, %v1628
        %v1630 = vrot.slane %v1622, %v1629
        %v1632 = vunpack.c.l.s4 1934713408
        %v1633 = vunpack.c.0.s8 %v1632
        %v1634 = vlaneseq
        %v1635 = vshrl.u32 %v1634, 7
        %v1636 = vsub.s32 %v1633, %v1635
        %v1637 = vrot.slane %v1623, %v1636
        %v1638 = vcombine.low %v1582, %v1598
        %v1639 = vcombine.high %v1582, %v1598
        %v1641 = vunpack.c.l.s4 1934713408
        %v1642 = vunpack.c.0.s8 %v1641
        %v1643 = vlaneseq
        %v1644 = vshrl.u32 %v1643, 7
        %v1645 = vsub.s32 %v1642, %v1644
        %v1646 = vrot.slane %v1638, %v1645
        %v1648 = vunpack.c.l.s4 1934713408
        %v1649 = vunpack.c.0.s8 %v1648
        %v1650 = vlaneseq
        %v1651 = vshrl.u32 %v1650, 7
        %v1652 = vsub.s32 %v1649, %v1651
        %v1653 = vrot.slane %v1639, %v1652
        %v1654 = vcombine.low %v1589, %v1605
        %v1655 = vcombine.high %v1589, %v1605
        %v1657 = vunpack.c.l.s4 1934713408
        %v1658 = vunpack.c.0.s8 %v1657
        %v1659 = vlaneseq
        %v1660 = vshrl.u32 %v1659, 7
        %v1661 = vsub.s32 %v1658, %v1660
        %v1662 = vrot.slane %v1654, %v1661
        %v1664 = vunpack.c.l.s4 1934713408
        %v1665 = vunpack.c.0.s8 %v1664
        %v1666 = vlaneseq
        %v1667 = vshrl.u32 %v1666, 7
        %v1668 = vsub.s32 %v1665, %v1667
        %v1669 = vrot.slane %v1655, %v1668
        %v1670 = vcombine.low %v1614, %v1646
        %v1671 = vcombine.high %v1614, %v1646
        %v1672 = vcombine.low %v1621, %v1653
        %v1673 = vcombine.high %v1621, %v1653
        %v1674 = vcombine.low %v1630, %v1662
        %v1675 = vcombine.high %v1630, %v1662
        %v1676 = vcombine.low %v1637, %v1669
        %v1677 = vcombine.high %v1637, %v1669
        %v1678 = vcombine.low %v270, %v272
        %v1679 = vcombine.high %v270, %v272
        %v1681 = vunpack.c.l.s4 1983009808
        %v1682 = vunpack.c.0.s8 %v1681
        %v1683 = vlaneseq
        %v1684 = vshrl.u32 %v1683, 7
        %v1685 = vsub.s32 %v1682, %v1684
        %v1686 = vrot.slane %v1678, %v1685
        %v1688 = vunpack.c.l.s4 1983009808
        %v1689 = vunpack.c.0.s8 %v1688
        %v1690 = vlaneseq
        %v1691 = vshrl.u32 %v1690, 7
        %v1692 = vsub.s32 %v1689, %v1691
        %v1693 = vrot.slane %v1679, %v1692
        %v1694 = vcombine.low %v271, %v273
        %v1695 = vcombine.high %v271, %v273
        %v1697 = vunpack.c.l.s4 1983009808
        %v1698 = vunpack.c.0.s8 %v1697
        %v1699 = vlaneseq
        %v1700 = vshrl.u32 %v1699, 7
        %v1701 = vsub.s32 %v1698, %v1700
        %v1702 = vrot.slane %v1694, %v1701
        %v1704 = vunpack.c.l.s4 1983009808
        %v1705 = vunpack.c.0.s8 %v1704
        %v1706 = vlaneseq
        %v1707 = vshrl.u32 %v1706, 7
        %v1708 = vsub.s32 %v1705, %v1707
        %v1709 = vrot.slane %v1695, %v1708
        %v1710 = vcombine.low %v274, %v276
        %v1711 = vcombine.high %v274, %v276
        %v1713 = vunpack.c.l.s4 1983009808
        %v1714 = vunpack.c.0.s8 %v1713
        %v1715 = vlaneseq
        %v1716 = vshrl.u32 %v1715, 7
        %v1717 = vsub.s32 %v1714, %v1716
        %v1718 = vrot.slane %v1710, %v1717
        %v1720 = vunpack.c.l.s4 1983009808
        %v1721 = vunpack.c.0.s8 %v1720
        %v1722 = vlaneseq
        %v1723 = vshrl.u32 %v1722, 7
        %v1724 = vsub.s32 %v1721, %v1723
        %v1725 = vrot.slane %v1711, %v1724
        %v1726 = vcombine.low %v275, %v277
        %v1727 = vcombine.high %v275, %v277
        %v1729 = vunpack.c.l.s4 1983009808
        %v1730 = vunpack.c.0.s8 %v1729
        %v1731 = vlaneseq
        %v1732 = vshrl.u32 %v1731, 7
        %v1733 = vsub.s32 %v1730, %v1732
        %v1734 = vrot.slane %v1726, %v1733
        %v1736 = vunpack.c.l.s4 1983009808
        %v1737 = vunpack.c.0.s8 %v1736
        %v1738 = vlaneseq
        %v1739 = vshrl.u32 %v1738, 7
        %v1740 = vsub.s32 %v1737, %v1739
        %v1741 = vrot.slane %v1727, %v1740
        %v1742 = vcombine.low %v1686, %v1702
        %v1743 = vcombine.high %v1686, %v1702
        %v1745 = vunpack.c.l.s4 1934713408
        %v1746 = vunpack.c.0.s8 %v1745
        %v1747 = vlaneseq
        %v1748 = vshrl.u32 %v1747, 7
        %v1749 = vsub.s32 %v1746, %v1748
        %v1750 = vrot.slane %v1742, %v1749
        %v1752 = vunpack.c.l.s4 1934713408
        %v1753 = vunpack.c.0.s8 %v1752
        %v1754 = vlaneseq
        %v1755 = vshrl.u32 %v1754, 7
        %v1756 = vsub.s32 %v1753, %v1755
        %v1757 = vrot.slane %v1743, %v1756
        %v1758 = vcombine.low %v1693, %v1709
        %v1759 = vcombine.high %v1693, %v1709
        %v1761 = vunpack.c.l.s4 1934713408
        %v1762 = vunpack.c.0.s8 %v1761
        %v1763 = vlaneseq
        %v1764 = vshrl.u32 %v1763, 7
        %v1765 = vsub.s32 %v1762, %v1764
        %v1766 = vrot.slane %v1758, %v1765
        %v1768 = vunpack.c.l.s4 1934713408
        %v1769 = vunpack.c.0.s8 %v1768
        %v1770 = vlaneseq
        %v1771 = vshrl.u32 %v1770, 7
        %v1772 = vsub.s32 %v1769, %v1771
        %v1773 = vrot.slane %v1759, %v1772
        %v1774 = vcombine.low %v1718, %v1734
        %v1775 = vcombine.high %v1718, %v1734
        %v1777 = vunpack.c.l.s4 1934713408
        %v1778 = vunpack.c.0.s8 %v1777
        %v1779 = vlaneseq
        %v1780 = vshrl.u32 %v1779, 7
        %v1781 = vsub.s32 %v1778, %v1780
        %v1782 = vrot.slane %v1774, %v1781
        %v1784 = vunpack.c.l.s4 1934713408
        %v1785 = vunpack.c.0.s8 %v1784
        %v1786 = vlaneseq
        %v1787 = vshrl.u32 %v1786, 7
        %v1788 = vsub.s32 %v1785, %v1787
        %v1789 = vrot.slane %v1775, %v1788
        %v1790 = vcombine.low %v1725, %v1741
        %v1791 = vcombine.high %v1725, %v1741
        %v1793 = vunpack.c.l.s4 1934713408
        %v1794 = vunpack.c.0.s8 %v1793
        %v1795 = vlaneseq
        %v1796 = vshrl.u32 %v1795, 7
        %v1797 = vsub.s32 %v1794, %v1796
        %v1798 = vrot.slane %v1790, %v1797
        %v1800 = vunpack.c.l.s4 1934713408
        %v1801 = vunpack.c.0.s8 %v1800
        %v1802 = vlaneseq
        %v1803 = vshrl.u32 %v1802, 7
        %v1804 = vsub.s32 %v1801, %v1803
        %v1805 = vrot.slane %v1791, %v1804
        %v1806 = vcombine.low %v1750, %v1782
        %v1807 = vcombine.high %v1750, %v1782
        %v1808 = vcombine.low %v1757, %v1789
        %v1809 = vcombine.high %v1757, %v1789
        %v1810 = vcombine.low %v1766, %v1798
        %v1811 = vcombine.high %v1766, %v1798
        %v1812 = vcombine.low %v1773, %v1805
        %v1813 = vcombine.high %v1773, %v1805
        %v1814 = vcombine.low %v278, %v280
        %v1815 = vcombine.high %v278, %v280
        %v1817 = vunpack.c.l.s4 1983009808
        %v1818 = vunpack.c.0.s8 %v1817
        %v1819 = vlaneseq
        %v1820 = vshrl.u32 %v1819, 7
        %v1821 = vsub.s32 %v1818, %v1820
        %v1822 = vrot.slane %v1814, %v1821
        %v1824 = vunpack.c.l.s4 1983009808
        %v1825 = vunpack.c.0.s8 %v1824
        %v1826 = vlaneseq
        %v1827 = vshrl.u32 %v1826, 7
        %v1828 = vsub.s32 %v1825, %v1827
        %v1829 = vrot.slane %v1815, %v1828
        %v1830 = vcombine.low %v279, %v281
        %v1831 = vcombine.high %v279, %v281
        %v1833 = vunpack.c.l.s4 1983009808
        %v1834 = vunpack.c.0.s8 %v1833
        %v1835 = vlaneseq
        %v1836 = vshrl.u32 %v1835, 7
        %v1837 = vsub.s32 %v1834, %v1836
        %v1838 = vrot.slane %v1830, %v1837
        %v1840 = vunpack.c.l.s4 1983009808
        %v1841 = vunpack.c.0.s8 %v1840
        %v1842 = vlaneseq
        %v1843 = vshrl.u32 %v1842, 7
        %v1844 = vsub.s32 %v1841, %v1843
        %v1845 = vrot.slane %v1831, %v1844
        %v1846 = vcombine.low %v282, %v284
        %v1847 = vcombine.high %v282, %v284
        %v1849 = vunpack.c.l.s4 1983009808
        %v1850 = vunpack.c.0.s8 %v1849
        %v1851 = vlaneseq
        %v1852 = vshrl.u32 %v1851, 7
        %v1853 = vsub.s32 %v1850, %v1852
        %v1854 = vrot.slane %v1846, %v1853
        %v1856 = vunpack.c.l.s4 1983009808
        %v1857 = vunpack.c.0.s8 %v1856
        %v1858 = vlaneseq
        %v1859 = vshrl.u32 %v1858, 7
        %v1860 = vsub.s32 %v1857, %v1859
        %v1861 = vrot.slane %v1847, %v1860
        %v1862 = vcombine.low %v283, %v285
        %v1863 = vcombine.high %v283, %v285
        %v1865 = vunpack.c.l.s4 1983009808
        %v1866 = vunpack.c.0.s8 %v1865
        %v1867 = vlaneseq
        %v1868 = vshrl.u32 %v1867, 7
        %v1869 = vsub.s32 %v1866, %v1868
        %v1870 = vrot.slane %v1862, %v1869
        %v1872 = vunpack.c.l.s4 1983009808
        %v1873 = vunpack.c.0.s8 %v1872
        %v1874 = vlaneseq
        %v1875 = vshrl.u32 %v1874, 7
        %v1876 = vsub.s32 %v1873, %v1875
        %v1877 = vrot.slane %v1863, %v1876
        %v1878 = vcombine.low %v1822, %v1838
        %v1879 = vcombine.high %v1822, %v1838
        %v1881 = vunpack.c.l.s4 1934713408
        %v1882 = vunpack.c.0.s8 %v1881
        %v1883 = vlaneseq
        %v1884 = vshrl.u32 %v1883, 7
        %v1885 = vsub.s32 %v1882, %v1884
        %v1886 = vrot.slane %v1878, %v1885
        %v1888 = vunpack.c.l.s4 1934713408
        %v1889 = vunpack.c.0.s8 %v1888
        %v1890 = vlaneseq
        %v1891 = vshrl.u32 %v1890, 7
        %v1892 = vsub.s32 %v1889, %v1891
        %v1893 = vrot.slane %v1879, %v1892
        %v1894 = vcombine.low %v1829, %v1845
        %v1895 = vcombine.high %v1829, %v1845
        %v1897 = vunpack.c.l.s4 1934713408
        %v1898 = vunpack.c.0.s8 %v1897
        %v1899 = vlaneseq
        %v1900 = vshrl.u32 %v1899, 7
        %v1901 = vsub.s32 %v1898, %v1900
        %v1902 = vrot.slane %v1894, %v1901
        %v1904 = vunpack.c.l.s4 1934713408
        %v1905 = vunpack.c.0.s8 %v1904
        %v1906 = vlaneseq
        %v1907 = vshrl.u32 %v1906, 7
        %v1908 = vsub.s32 %v1905, %v1907
        %v1909 = vrot.slane %v1895, %v1908
        %v1910 = vcombine.low %v1854, %v1870
        %v1911 = vcombine.high %v1854, %v1870
        %v1913 = vunpack.c.l.s4 1934713408
        %v1914 = vunpack.c.0.s8 %v1913
        %v1915 = vlaneseq
        %v1916 = vshrl.u32 %v1915, 7
        %v1917 = vsub.s32 %v1914, %v1916
        %v1918 = vrot.slane %v1910, %v1917
        %v1920 = vunpack.c.l.s4 1934713408
        %v1921 = vunpack.c.0.s8 %v1920
        %v1922 = vlaneseq
        %v1923 = vshrl.u32 %v1922, 7
        %v1924 = vsub.s32 %v1921, %v1923
        %v1925 = vrot.slane %v1911, %v1924
        %v1926 = vcombine.low %v1861, %v1877
        %v1927 = vcombine.high %v1861, %v1877
        %v1929 = vunpack.c.l.s4 1934713408
        %v1930 = vunpack.c.0.s8 %v1929
        %v1931 = vlaneseq
        %v1932 = vshrl.u32 %v1931, 7
        %v1933 = vsub.s32 %v1930, %v1932
        %v1934 = vrot.slane %v1926, %v1933
        %v1936 = vunpack.c.l.s4 1934713408
        %v1937 = vunpack.c.0.s8 %v1936
        %v1938 = vlaneseq
        %v1939 = vshrl.u32 %v1938, 7
        %v1940 = vsub.s32 %v1937, %v1939
        %v1941 = vrot.slane %v1927, %v1940
        %v1942 = vcombine.low %v1886, %v1918
        %v1943 = vcombine.high %v1886, %v1918
        %v1944 = vcombine.low %v1893, %v1925
        %v1945 = vcombine.high %v1893, %v1925
        %v1946 = vcombine.low %v1902, %v1934
        %v1947 = vcombine.high %v1902, %v1934
        %v1948 = vcombine.low %v1909, %v1941
        %v1949 = vcombine.high %v1909, %v1941
        %v1950 = vcombine.low %v286, %v288
        %v1951 = vcombine.high %v286, %v288
        %v1953 = vunpack.c.l.s4 1983009808
        %v1954 = vunpack.c.0.s8 %v1953
        %v1955 = vlaneseq
        %v1956 = vshrl.u32 %v1955, 7
        %v1957 = vsub.s32 %v1954, %v1956
        %v1958 = vrot.slane %v1950, %v1957
        %v1960 = vunpack.c.l.s4 1983009808
        %v1961 = vunpack.c.0.s8 %v1960
        %v1962 = vlaneseq
        %v1963 = vshrl.u32 %v1962, 7
        %v1964 = vsub.s32 %v1961, %v1963
        %v1965 = vrot.slane %v1951, %v1964
        %v1966 = vcombine.low %v287, %v289
        %v1967 = vcombine.high %v287, %v289
        %v1969 = vunpack.c.l.s4 1983009808
        %v1970 = vunpack.c.0.s8 %v1969
        %v1971 = vlaneseq
        %v1972 = vshrl.u32 %v1971, 7
        %v1973 = vsub.s32 %v1970, %v1972
        %v1974 = vrot.slane %v1966, %v1973
        %v1976 = vunpack.c.l.s4 1983009808
        %v1977 = vunpack.c.0.s8 %v1976
        %v1978 = vlaneseq
        %v1979 = vshrl.u32 %v1978, 7
        %v1980 = vsub.s32 %v1977, %v1979
        %v1981 = vrot.slane %v1967, %v1980
        %v1982 = vcombine.low %v290, %v292
        %v1983 = vcombine.high %v290, %v292
        %v1985 = vunpack.c.l.s4 1983009808
        %v1986 = vunpack.c.0.s8 %v1985
        %v1987 = vlaneseq
        %v1988 = vshrl.u32 %v1987, 7
        %v1989 = vsub.s32 %v1986, %v1988
        %v1990 = vrot.slane %v1982, %v1989
        %v1992 = vunpack.c.l.s4 1983009808
        %v1993 = vunpack.c.0.s8 %v1992
        %v1994 = vlaneseq
        %v1995 = vshrl.u32 %v1994, 7
        %v1996 = vsub.s32 %v1993, %v1995
        %v1997 = vrot.slane %v1983, %v1996
        %v1998 = vcombine.low %v291, %v293
        %v1999 = vcombine.high %v291, %v293
        %v2001 = vunpack.c.l.s4 1983009808
        %v2002 = vunpack.c.0.s8 %v2001
        %v2003 = vlaneseq
        %v2004 = vshrl.u32 %v2003, 7
        %v2005 = vsub.s32 %v2002, %v2004
        %v2006 = vrot.slane %v1998, %v2005
        %v2008 = vunpack.c.l.s4 1983009808
        %v2009 = vunpack.c.0.s8 %v2008
        %v2010 = vlaneseq
        %v2011 = vshrl.u32 %v2010, 7
        %v2012 = vsub.s32 %v2009, %v2011
        %v2013 = vrot.slane %v1999, %v2012
        %v2014 = vcombine.low %v1958, %v1974
        %v2015 = vcombine.high %v1958, %v1974
        %v2017 = vunpack.c.l.s4 1934713408
        %v2018 = vunpack.c.0.s8 %v2017
        %v2019 = vlaneseq
        %v2020 = vshrl.u32 %v2019, 7
        %v2021 = vsub.s32 %v2018, %v2020
        %v2022 = vrot.slane %v2014, %v2021
        %v2024 = vunpack.c.l.s4 1934713408
        %v2025 = vunpack.c.0.s8 %v2024
        %v2026 = vlaneseq
        %v2027 = vshrl.u32 %v2026, 7
        %v2028 = vsub.s32 %v2025, %v2027
        %v2029 = vrot.slane %v2015, %v2028
        %v2030 = vcombine.low %v1965, %v1981
        %v2031 = vcombine.high %v1965, %v1981
        %v2033 = vunpack.c.l.s4 1934713408
        %v2034 = vunpack.c.0.s8 %v2033
        %v2035 = vlaneseq
        %v2036 = vshrl.u32 %v2035, 7
        %v2037 = vsub.s32 %v2034, %v2036
        %v2038 = vrot.slane %v2030, %v2037
        %v2040 = vunpack.c.l.s4 1934713408
        %v2041 = vunpack.c.0.s8 %v2040
        %v2042 = vlaneseq
        %v2043 = vshrl.u32 %v2042, 7
        %v2044 = vsub.s32 %v2041, %v2043
        %v2045 = vrot.slane %v2031, %v2044
        %v2046 = vcombine.low %v1990, %v2006
        %v2047 = vcombine.high %v1990, %v2006
        %v2049 = vunpack.c.l.s4 1934713408
        %v2050 = vunpack.c.0.s8 %v2049
        %v2051 = vlaneseq
        %v2052 = vshrl.u32 %v2051, 7
        %v2053 = vsub.s32 %v2050, %v2052
        %v2054 = vrot.slane %v2046, %v2053
        %v2056 = vunpack.c.l.s4 1934713408
        %v2057 = vunpack.c.0.s8 %v2056
        %v2058 = vlaneseq
        %v2059 = vshrl.u32 %v2058, 7
        %v2060 = vsub.s32 %v2057, %v2059
        %v2061 = vrot.slane %v2047, %v2060
        %v2062 = vcombine.low %v1997, %v2013
        %v2063 = vcombine.high %v1997, %v2013
        %v2065 = vunpack.c.l.s4 1934713408
        %v2066 = vunpack.c.0.s8 %v2065
        %v2067 = vlaneseq
        %v2068 = vshrl.u32 %v2067, 7
        %v2069 = vsub.s32 %v2066, %v2068
        %v2070 = vrot.slane %v2062, %v2069
        %v2072 = vunpack.c.l.s4 1934713408
        %v2073 = vunpack.c.0.s8 %v2072
        %v2074 = vlaneseq
        %v2075 = vshrl.u32 %v2074, 7
        %v2076 = vsub.s32 %v2073, %v2075
        %v2077 = vrot.slane %v2063, %v2076
        %v2078 = vcombine.low %v2022, %v2054
        %v2079 = vcombine.high %v2022, %v2054
        %v2080 = vcombine.low %v2029, %v2061
        %v2081 = vcombine.high %v2029, %v2061
        %v2082 = vcombine.low %v2038, %v2070
        %v2083 = vcombine.high %v2038, %v2070
        %v2084 = vcombine.low %v2045, %v2077
        %v2085 = vcombine.high %v2045, %v2077
        %v2086 = vcombine.low %v294, %v296
        %v2087 = vcombine.high %v294, %v296
        %v2089 = vunpack.c.l.s4 1983009808
        %v2090 = vunpack.c.0.s8 %v2089
        %v2091 = vlaneseq
        %v2092 = vshrl.u32 %v2091, 7
        %v2093 = vsub.s32 %v2090, %v2092
        %v2094 = vrot.slane %v2086, %v2093
        %v2096 = vunpack.c.l.s4 1983009808
        %v2097 = vunpack.c.0.s8 %v2096
        %v2098 = vlaneseq
        %v2099 = vshrl.u32 %v2098, 7
        %v2100 = vsub.s32 %v2097, %v2099
        %v2101 = vrot.slane %v2087, %v2100
        %v2102 = vcombine.low %v295, %v297
        %v2103 = vcombine.high %v295, %v297
        %v2105 = vunpack.c.l.s4 1983009808
        %v2106 = vunpack.c.0.s8 %v2105
        %v2107 = vlaneseq
        %v2108 = vshrl.u32 %v2107, 7
        %v2109 = vsub.s32 %v2106, %v2108
        %v2110 = vrot.slane %v2102, %v2109
        %v2112 = vunpack.c.l.s4 1983009808
        %v2113 = vunpack.c.0.s8 %v2112
        %v2114 = vlaneseq
        %v2115 = vshrl.u32 %v2114, 7
        %v2116 = vsub.s32 %v2113, %v2115
        %v2117 = vrot.slane %v2103, %v2116
        %v2118 = vcombine.low %v298, %v300
        %v2119 = vcombine.high %v298, %v300
        %v2121 = vunpack.c.l.s4 1983009808
        %v2122 = vunpack.c.0.s8 %v2121
        %v2123 = vlaneseq
        %v2124 = vshrl.u32 %v2123, 7
        %v2125 = vsub.s32 %v2122, %v2124
        %v2126 = vrot.slane %v2118, %v2125
        %v2128 = vunpack.c.l.s4 1983009808
        %v2129 = vunpack.c.0.s8 %v2128
        %v2130 = vlaneseq
        %v2131 = vshrl.u32 %v2130, 7
        %v2132 = vsub.s32 %v2129, %v2131
        %v2133 = vrot.slane %v2119, %v2132
        %v2134 = vcombine.low %v299, %v301
        %v2135 = vcombine.high %v299, %v301
        %v2137 = vunpack.c.l.s4 1983009808
        %v2138 = vunpack.c.0.s8 %v2137
        %v2139 = vlaneseq
        %v2140 = vshrl.u32 %v2139, 7
        %v2141 = vsub.s32 %v2138, %v2140
        %v2142 = vrot.slane %v2134, %v2141
        %v2144 = vunpack.c.l.s4 1983009808
        %v2145 = vunpack.c.0.s8 %v2144
        %v2146 = vlaneseq
        %v2147 = vshrl.u32 %v2146, 7
        %v2148 = vsub.s32 %v2145, %v2147
        %v2149 = vrot.slane %v2135, %v2148
        %v2150 = vcombine.low %v2094, %v2110
        %v2151 = vcombine.high %v2094, %v2110
        %v2153 = vunpack.c.l.s4 1934713408
        %v2154 = vunpack.c.0.s8 %v2153
        %v2155 = vlaneseq
        %v2156 = vshrl.u32 %v2155, 7
        %v2157 = vsub.s32 %v2154, %v2156
        %v2158 = vrot.slane %v2150, %v2157
        %v2160 = vunpack.c.l.s4 1934713408
        %v2161 = vunpack.c.0.s8 %v2160
        %v2162 = vlaneseq
        %v2163 = vshrl.u32 %v2162, 7
        %v2164 = vsub.s32 %v2161, %v2163
        %v2165 = vrot.slane %v2151, %v2164
        %v2166 = vcombine.low %v2101, %v2117
        %v2167 = vcombine.high %v2101, %v2117
        %v2169 = vunpack.c.l.s4 1934713408
        %v2170 = vunpack.c.0.s8 %v2169
        %v2171 = vlaneseq
        %v2172 = vshrl.u32 %v2171, 7
        %v2173 = vsub.s32 %v2170, %v2172
        %v2174 = vrot.slane %v2166, %v2173
        %v2176 = vunpack.c.l.s4 1934713408
        %v2177 = vunpack.c.0.s8 %v2176
        %v2178 = vlaneseq
        %v2179 = vshrl.u32 %v2178, 7
        %v2180 = vsub.s32 %v2177, %v2179
        %v2181 = vrot.slane %v2167, %v2180
        %v2182 = vcombine.low %v2126, %v2142
        %v2183 = vcombine.high %v2126, %v2142
        %v2185 = vunpack.c.l.s4 1934713408
        %v2186 = vunpack.c.0.s8 %v2185
        %v2187 = vlaneseq
        %v2188 = vshrl.u32 %v2187, 7
        %v2189 = vsub.s32 %v2186, %v2188
        %v2190 = vrot.slane %v2182, %v2189
        %v2192 = vunpack.c.l.s4 1934713408
        %v2193 = vunpack.c.0.s8 %v2192
        %v2194 = vlaneseq
        %v2195 = vshrl.u32 %v2194, 7
        %v2196 = vsub.s32 %v2193, %v2195
        %v2197 = vrot.slane %v2183, %v2196
        %v2198 = vcombine.low %v2133, %v2149
        %v2199 = vcombine.high %v2133, %v2149
        %v2201 = vunpack.c.l.s4 1934713408
        %v2202 = vunpack.c.0.s8 %v2201
        %v2203 = vlaneseq
        %v2204 = vshrl.u32 %v2203, 7
        %v2205 = vsub.s32 %v2202, %v2204
        %v2206 = vrot.slane %v2198, %v2205
        %v2208 = vunpack.c.l.s4 1934713408
        %v2209 = vunpack.c.0.s8 %v2208
        %v2210 = vlaneseq
        %v2211 = vshrl.u32 %v2210, 7
        %v2212 = vsub.s32 %v2209, %v2211
        %v2213 = vrot.slane %v2199, %v2212
        %v2214 = vcombine.low %v2158, %v2190
        %v2215 = vcombine.high %v2158, %v2190
        %v2216 = vcombine.low %v2165, %v2197
        %v2217 = vcombine.high %v2165, %v2197
        %v2218 = vcombine.low %v2174, %v2206
        %v2219 = vcombine.high %v2174, %v2206
        %v2220 = vcombine.low %v2181, %v2213
        %v2221 = vcombine.high %v2181, %v2213
        %v2222 = vcombine.low %v302, %v304
        %v2223 = vcombine.high %v302, %v304
        %v2225 = vunpack.c.l.s4 1983009808
        %v2226 = vunpack.c.0.s8 %v2225
        %v2227 = vlaneseq
        %v2228 = vshrl.u32 %v2227, 7
        %v2229 = vsub.s32 %v2226, %v2228
        %v2230 = vrot.slane %v2222, %v2229
        %v2232 = vunpack.c.l.s4 1983009808
        %v2233 = vunpack.c.0.s8 %v2232
        %v2234 = vlaneseq
        %v2235 = vshrl.u32 %v2234, 7
        %v2236 = vsub.s32 %v2233, %v2235
        %v2237 = vrot.slane %v2223, %v2236
        %v2238 = vcombine.low %v303, %v305
        %v2239 = vcombine.high %v303, %v305
        %v2241 = vunpack.c.l.s4 1983009808
        %v2242 = vunpack.c.0.s8 %v2241
        %v2243 = vlaneseq
        %v2244 = vshrl.u32 %v2243, 7
        %v2245 = vsub.s32 %v2242, %v2244
        %v2246 = vrot.slane %v2238, %v2245
        %v2248 = vunpack.c.l.s4 1983009808
        %v2249 = vunpack.c.0.s8 %v2248
        %v2250 = vlaneseq
        %v2251 = vshrl.u32 %v2250, 7
        %v2252 = vsub.s32 %v2249, %v2251
        %v2253 = vrot.slane %v2239, %v2252
        %v2254 = vcombine.low %v306, %v308
        %v2255 = vcombine.high %v306, %v308
        %v2257 = vunpack.c.l.s4 1983009808
        %v2258 = vunpack.c.0.s8 %v2257
        %v2259 = vlaneseq
        %v2260 = vshrl.u32 %v2259, 7
        %v2261 = vsub.s32 %v2258, %v2260
        %v2262 = vrot.slane %v2254, %v2261
        %v2264 = vunpack.c.l.s4 1983009808
        %v2265 = vunpack.c.0.s8 %v2264
        %v2266 = vlaneseq
        %v2267 = vshrl.u32 %v2266, 7
        %v2268 = vsub.s32 %v2265, %v2267
        %v2269 = vrot.slane %v2255, %v2268
        %v2270 = vcombine.low %v307, %v309
        %v2271 = vcombine.high %v307, %v309
        %v2273 = vunpack.c.l.s4 1983009808
        %v2274 = vunpack.c.0.s8 %v2273
        %v2275 = vlaneseq
        %v2276 = vshrl.u32 %v2275, 7
        %v2277 = vsub.s32 %v2274, %v2276
        %v2278 = vrot.slane %v2270, %v2277
        %v2280 = vunpack.c.l.s4 1983009808
        %v2281 = vunpack.c.0.s8 %v2280
        %v2282 = vlaneseq
        %v2283 = vshrl.u32 %v2282, 7
        %v2284 = vsub.s32 %v2281, %v2283
        %v2285 = vrot.slane %v2271, %v2284
        %v2286 = vcombine.low %v2230, %v2246
        %v2287 = vcombine.high %v2230, %v2246
        %v2289 = vunpack.c.l.s4 1934713408
        %v2290 = vunpack.c.0.s8 %v2289
        %v2291 = vlaneseq
        %v2292 = vshrl.u32 %v2291, 7
        %v2293 = vsub.s32 %v2290, %v2292
        %v2294 = vrot.slane %v2286, %v2293
        %v2296 = vunpack.c.l.s4 1934713408
        %v2297 = vunpack.c.0.s8 %v2296
        %v2298 = vlaneseq
        %v2299 = vshrl.u32 %v2298, 7
        %v2300 = vsub.s32 %v2297, %v2299
        %v2301 = vrot.slane %v2287, %v2300
        %v2302 = vcombine.low %v2237, %v2253
        %v2303 = vcombine.high %v2237, %v2253
        %v2305 = vunpack.c.l.s4 1934713408
        %v2306 = vunpack.c.0.s8 %v2305
        %v2307 = vlaneseq
        %v2308 = vshrl.u32 %v2307, 7
        %v2309 = vsub.s32 %v2306, %v2308
        %v2310 = vrot.slane %v2302, %v2309
        %v2312 = vunpack.c.l.s4 1934713408
        %v2313 = vunpack.c.0.s8 %v2312
        %v2314 = vlaneseq
        %v2315 = vshrl.u32 %v2314, 7
        %v2316 = vsub.s32 %v2313, %v2315
        %v2317 = vrot.slane %v2303, %v2316
        %v2318 = vcombine.low %v2262, %v2278
        %v2319 = vcombine.high %v2262, %v2278
        %v2321 = vunpack.c.l.s4 1934713408
        %v2322 = vunpack.c.0.s8 %v2321
        %v2323 = vlaneseq
        %v2324 = vshrl.u32 %v2323, 7
        %v2325 = vsub.s32 %v2322, %v2324
        %v2326 = vrot.slane %v2318, %v2325
        %v2328 = vunpack.c.l.s4 1934713408
        %v2329 = vunpack.c.0.s8 %v2328
        %v2330 = vlaneseq
        %v2331 = vshrl.u32 %v2330, 7
        %v2332 = vsub.s32 %v2329, %v2331
        %v2333 = vrot.slane %v2319, %v2332
        %v2334 = vcombine.low %v2269, %v2285
        %v2335 = vcombine.high %v2269, %v2285
        %v2337 = vunpack.c.l.s4 1934713408
        %v2338 = vunpack.c.0.s8 %v2337
        %v2339 = vlaneseq
        %v2340 = vshrl.u32 %v2339, 7
        %v2341 = vsub.s32 %v2338, %v2340
        %v2342 = vrot.slane %v2334, %v2341
        %v2344 = vunpack.c.l.s4 1934713408
        %v2345 = vunpack.c.0.s8 %v2344
        %v2346 = vlaneseq
        %v2347 = vshrl.u32 %v2346, 7
        %v2348 = vsub.s32 %v2345, %v2347
        %v2349 = vrot.slane %v2335, %v2348
        %v2350 = vcombine.low %v2294, %v2326
        %v2351 = vcombine.high %v2294, %v2326
        %v2352 = vcombine.low %v2301, %v2333
        %v2353 = vcombine.high %v2301, %v2333
        %v2354 = vcombine.low %v2310, %v2342
        %v2355 = vcombine.high %v2310, %v2342
        %v2356 = vcombine.low %v2317, %v2349
        %v2357 = vcombine.high %v2317, %v2349
        %v2358 = vcombine.low %v310, %v312
        %v2359 = vcombine.high %v310, %v312
        %v2361 = vunpack.c.l.s4 1983009808
        %v2362 = vunpack.c.0.s8 %v2361
        %v2363 = vlaneseq
        %v2364 = vshrl.u32 %v2363, 7
        %v2365 = vsub.s32 %v2362, %v2364
        %v2366 = vrot.slane %v2358, %v2365
        %v2368 = vunpack.c.l.s4 1983009808
        %v2369 = vunpack.c.0.s8 %v2368
        %v2370 = vlaneseq
        %v2371 = vshrl.u32 %v2370, 7
        %v2372 = vsub.s32 %v2369, %v2371
        %v2373 = vrot.slane %v2359, %v2372
        %v2374 = vcombine.low %v311, %v313
        %v2375 = vcombine.high %v311, %v313
        %v2377 = vunpack.c.l.s4 1983009808
        %v2378 = vunpack.c.0.s8 %v2377
        %v2379 = vlaneseq
        %v2380 = vshrl.u32 %v2379, 7
        %v2381 = vsub.s32 %v2378, %v2380
        %v2382 = vrot.slane %v2374, %v2381
        %v2384 = vunpack.c.l.s4 1983009808
        %v2385 = vunpack.c.0.s8 %v2384
        %v2386 = vlaneseq
        %v2387 = vshrl.u32 %v2386, 7
        %v2388 = vsub.s32 %v2385, %v2387
        %v2389 = vrot.slane %v2375, %v2388
        %v2390 = vcombine.low %v314, %v316
        %v2391 = vcombine.high %v314, %v316
        %v2393 = vunpack.c.l.s4 1983009808
        %v2394 = vunpack.c.0.s8 %v2393
        %v2395 = vlaneseq
        %v2396 = vshrl.u32 %v2395, 7
        %v2397 = vsub.s32 %v2394, %v2396
        %v2398 = vrot.slane %v2390, %v2397
        %v2400 = vunpack.c.l.s4 1983009808
        %v2401 = vunpack.c.0.s8 %v2400
        %v2402 = vlaneseq
        %v2403 = vshrl.u32 %v2402, 7
        %v2404 = vsub.s32 %v2401, %v2403
        %v2405 = vrot.slane %v2391, %v2404
        %v2406 = vcombine.low %v315, %v317
        %v2407 = vcombine.high %v315, %v317
        %v2409 = vunpack.c.l.s4 1983009808
        %v2410 = vunpack.c.0.s8 %v2409
        %v2411 = vlaneseq
        %v2412 = vshrl.u32 %v2411, 7
        %v2413 = vsub.s32 %v2410, %v2412
        %v2414 = vrot.slane %v2406, %v2413
        %v2416 = vunpack.c.l.s4 1983009808
        %v2417 = vunpack.c.0.s8 %v2416
        %v2418 = vlaneseq
        %v2419 = vshrl.u32 %v2418, 7
        %v2420 = vsub.s32 %v2417, %v2419
        %v2421 = vrot.slane %v2407, %v2420
        %v2422 = vcombine.low %v2366, %v2382
        %v2423 = vcombine.high %v2366, %v2382
        %v2425 = vunpack.c.l.s4 1934713408
        %v2426 = vunpack.c.0.s8 %v2425
        %v2427 = vlaneseq
        %v2428 = vshrl.u32 %v2427, 7
        %v2429 = vsub.s32 %v2426, %v2428
        %v2430 = vrot.slane %v2422, %v2429
        %v2432 = vunpack.c.l.s4 1934713408
        %v2433 = vunpack.c.0.s8 %v2432
        %v2434 = vlaneseq
        %v2435 = vshrl.u32 %v2434, 7
        %v2436 = vsub.s32 %v2433, %v2435
        %v2437 = vrot.slane %v2423, %v2436
        %v2438 = vcombine.low %v2373, %v2389
        %v2439 = vcombine.high %v2373, %v2389
        %v2441 = vunpack.c.l.s4 1934713408
        %v2442 = vunpack.c.0.s8 %v2441
        %v2443 = vlaneseq
        %v2444 = vshrl.u32 %v2443, 7
        %v2445 = vsub.s32 %v2442, %v2444
        %v2446 = vrot.slane %v2438, %v2445
        %v2448 = vunpack.c.l.s4 1934713408
        %v2449 = vunpack.c.0.s8 %v2448
        %v2450 = vlaneseq
        %v2451 = vshrl.u32 %v2450, 7
        %v2452 = vsub.s32 %v2449, %v2451
        %v2453 = vrot.slane %v2439, %v2452
        %v2454 = vcombine.low %v2398, %v2414
        %v2455 = vcombine.high %v2398, %v2414
        %v2457 = vunpack.c.l.s4 1934713408
        %v2458 = vunpack.c.0.s8 %v2457
        %v2459 = vlaneseq
        %v2460 = vshrl.u32 %v2459, 7
        %v2461 = vsub.s32 %v2458, %v2460
        %v2462 = vrot.slane %v2454, %v2461
        %v2464 = vunpack.c.l.s4 1934713408
        %v2465 = vunpack.c.0.s8 %v2464
        %v2466 = vlaneseq
        %v2467 = vshrl.u32 %v2466, 7
        %v2468 = vsub.s32 %v2465, %v2467
        %v2469 = vrot.slane %v2455, %v2468
        %v2470 = vcombine.low %v2405, %v2421
        %v2471 = vcombine.high %v2405, %v2421
        %v2473 = vunpack.c.l.s4 1934713408
        %v2474 = vunpack.c.0.s8 %v2473
        %v2475 = vlaneseq
        %v2476 = vshrl.u32 %v2475, 7
        %v2477 = vsub.s32 %v2474, %v2476
        %v2478 = vrot.slane %v2470, %v2477
        %v2480 = vunpack.c.l.s4 1934713408
        %v2481 = vunpack.c.0.s8 %v2480
        %v2482 = vlaneseq
        %v2483 = vshrl.u32 %v2482, 7
        %v2484 = vsub.s32 %v2481, %v2483
        %v2485 = vrot.slane %v2471, %v2484
        %v2486 = vcombine.low %v2430, %v2462
        %v2487 = vcombine.high %v2430, %v2462
        %v2488 = vcombine.low %v2437, %v2469
        %v2489 = vcombine.high %v2437, %v2469
        %v2490 = vcombine.low %v2446, %v2478
        %v2491 = vcombine.high %v2446, %v2478
        %v2492 = vcombine.low %v2453, %v2485
        %v2493 = vcombine.high %v2453, %v2485
        %v2494 = vcombine.low %v318, %v320
        %v2495 = vcombine.high %v318, %v320
        %v2497 = vunpack.c.l.s4 1983009808
        %v2498 = vunpack.c.0.s8 %v2497
        %v2499 = vlaneseq
        %v2500 = vshrl.u32 %v2499, 7
        %v2501 = vsub.s32 %v2498, %v2500
        %v2502 = vrot.slane %v2494, %v2501
        %v2504 = vunpack.c.l.s4 1983009808
        %v2505 = vunpack.c.0.s8 %v2504
        %v2506 = vlaneseq
        %v2507 = vshrl.u32 %v2506, 7
        %v2508 = vsub.s32 %v2505, %v2507
        %v2509 = vrot.slane %v2495, %v2508
        %v2510 = vcombine.low %v319, %v321
        %v2511 = vcombine.high %v319, %v321
        %v2513 = vunpack.c.l.s4 1983009808
        %v2514 = vunpack.c.0.s8 %v2513
        %v2515 = vlaneseq
        %v2516 = vshrl.u32 %v2515, 7
        %v2517 = vsub.s32 %v2514, %v2516
        %v2518 = vrot.slane %v2510, %v2517
        %v2520 = vunpack.c.l.s4 1983009808
        %v2521 = vunpack.c.0.s8 %v2520
        %v2522 = vlaneseq
        %v2523 = vshrl.u32 %v2522, 7
        %v2524 = vsub.s32 %v2521, %v2523
        %v2525 = vrot.slane %v2511, %v2524
        %v2526 = vcombine.low %v322, %v324
        %v2527 = vcombine.high %v322, %v324
        %v2529 = vunpack.c.l.s4 1983009808
        %v2530 = vunpack.c.0.s8 %v2529
        %v2531 = vlaneseq
        %v2532 = vshrl.u32 %v2531, 7
        %v2533 = vsub.s32 %v2530, %v2532
        %v2534 = vrot.slane %v2526, %v2533
        %v2536 = vunpack.c.l.s4 1983009808
        %v2537 = vunpack.c.0.s8 %v2536
        %v2538 = vlaneseq
        %v2539 = vshrl.u32 %v2538, 7
        %v2540 = vsub.s32 %v2537, %v2539
        %v2541 = vrot.slane %v2527, %v2540
        %v2542 = vcombine.low %v323, %v325
        %v2543 = vcombine.high %v323, %v325
        %v2545 = vunpack.c.l.s4 1983009808
        %v2546 = vunpack.c.0.s8 %v2545
        %v2547 = vlaneseq
        %v2548 = vshrl.u32 %v2547, 7
        %v2549 = vsub.s32 %v2546, %v2548
        %v2550 = vrot.slane %v2542, %v2549
        %v2552 = vunpack.c.l.s4 1983009808
        %v2553 = vunpack.c.0.s8 %v2552
        %v2554 = vlaneseq
        %v2555 = vshrl.u32 %v2554, 7
        %v2556 = vsub.s32 %v2553, %v2555
        %v2557 = vrot.slane %v2543, %v2556
        %v2558 = vcombine.low %v2502, %v2518
        %v2559 = vcombine.high %v2502, %v2518
        %v2561 = vunpack.c.l.s4 1934713408
        %v2562 = vunpack.c.0.s8 %v2561
        %v2563 = vlaneseq
        %v2564 = vshrl.u32 %v2563, 7
        %v2565 = vsub.s32 %v2562, %v2564
        %v2566 = vrot.slane %v2558, %v2565
        %v2568 = vunpack.c.l.s4 1934713408
        %v2569 = vunpack.c.0.s8 %v2568
        %v2570 = vlaneseq
        %v2571 = vshrl.u32 %v2570, 7
        %v2572 = vsub.s32 %v2569, %v2571
        %v2573 = vrot.slane %v2559, %v2572
        %v2574 = vcombine.low %v2509, %v2525
        %v2575 = vcombine.high %v2509, %v2525
        %v2577 = vunpack.c.l.s4 1934713408
        %v2578 = vunpack.c.0.s8 %v2577
        %v2579 = vlaneseq
        %v2580 = vshrl.u32 %v2579, 7
        %v2581 = vsub.s32 %v2578, %v2580
        %v2582 = vrot.slane %v2574, %v2581
        %v2584 = vunpack.c.l.s4 1934713408
        %v2585 = vunpack.c.0.s8 %v2584
        %v2586 = vlaneseq
        %v2587 = vshrl.u32 %v2586, 7
        %v2588 = vsub.s32 %v2585, %v2587
        %v2589 = vrot.slane %v2575, %v2588
        %v2590 = vcombine.low %v2534, %v2550
        %v2591 = vcombine.high %v2534, %v2550
        %v2593 = vunpack.c.l.s4 1934713408
        %v2594 = vunpack.c.0.s8 %v2593
        %v2595 = vlaneseq
        %v2596 = vshrl.u32 %v2595, 7
        %v2597 = vsub.s32 %v2594, %v2596
        %v2598 = vrot.slane %v2590, %v2597
        %v2600 = vunpack.c.l.s4 1934713408
        %v2601 = vunpack.c.0.s8 %v2600
        %v2602 = vlaneseq
        %v2603 = vshrl.u32 %v2602, 7
        %v2604 = vsub.s32 %v2601, %v2603
        %v2605 = vrot.slane %v2591, %v2604
        %v2606 = vcombine.low %v2541, %v2557
        %v2607 = vcombine.high %v2541, %v2557
        %v2609 = vunpack.c.l.s4 1934713408
        %v2610 = vunpack.c.0.s8 %v2609
        %v2611 = vlaneseq
        %v2612 = vshrl.u32 %v2611, 7
        %v2613 = vsub.s32 %v2610, %v2612
        %v2614 = vrot.slane %v2606, %v2613
        %v2616 = vunpack.c.l.s4 1934713408
        %v2617 = vunpack.c.0.s8 %v2616
        %v2618 = vlaneseq
        %v2619 = vshrl.u32 %v2618, 7
        %v2620 = vsub.s32 %v2617, %v2619
        %v2621 = vrot.slane %v2607, %v2620
        %v2622 = vcombine.low %v2566, %v2598
        %v2623 = vcombine.high %v2566, %v2598
        %v2624 = vcombine.low %v2573, %v2605
        %v2625 = vcombine.high %v2573, %v2605
        %v2626 = vcombine.low %v2582, %v2614
        %v2627 = vcombine.high %v2582, %v2614
        %v2628 = vcombine.low %v2589, %v2621
        %v2629 = vcombine.high %v2589, %v2621
        %v2630 = vcombine.low %v326, %v328
        %v2631 = vcombine.high %v326, %v328
        %v2633 = vunpack.c.l.s4 1983009808
        %v2634 = vunpack.c.0.s8 %v2633
        %v2635 = vlaneseq
        %v2636 = vshrl.u32 %v2635, 7
        %v2637 = vsub.s32 %v2634, %v2636
        %v2638 = vrot.slane %v2630, %v2637
        %v2640 = vunpack.c.l.s4 1983009808
        %v2641 = vunpack.c.0.s8 %v2640
        %v2642 = vlaneseq
        %v2643 = vshrl.u32 %v2642, 7
        %v2644 = vsub.s32 %v2641, %v2643
        %v2645 = vrot.slane %v2631, %v2644
        %v2646 = vcombine.low %v327, %v329
        %v2647 = vcombine.high %v327, %v329
        %v2649 = vunpack.c.l.s4 1983009808
        %v2650 = vunpack.c.0.s8 %v2649
        %v2651 = vlaneseq
        %v2652 = vshrl.u32 %v2651, 7
        %v2653 = vsub.s32 %v2650, %v2652
        %v2654 = vrot.slane %v2646, %v2653
        %v2656 = vunpack.c.l.s4 1983009808
        %v2657 = vunpack.c.0.s8 %v2656
        %v2658 = vlaneseq
        %v2659 = vshrl.u32 %v2658, 7
        %v2660 = vsub.s32 %v2657, %v2659
        %v2661 = vrot.slane %v2647, %v2660
        %v2662 = vcombine.low %v330, %v332
        %v2663 = vcombine.high %v330, %v332
        %v2665 = vunpack.c.l.s4 1983009808
        %v2666 = vunpack.c.0.s8 %v2665
        %v2667 = vlaneseq
        %v2668 = vshrl.u32 %v2667, 7
        %v2669 = vsub.s32 %v2666, %v2668
        %v2670 = vrot.slane %v2662, %v2669
        %v2672 = vunpack.c.l.s4 1983009808
        %v2673 = vunpack.c.0.s8 %v2672
        %v2674 = vlaneseq
        %v2675 = vshrl.u32 %v2674, 7
        %v2676 = vsub.s32 %v2673, %v2675
        %v2677 = vrot.slane %v2663, %v2676
        %v2678 = vcombine.low %v331, %v333
        %v2679 = vcombine.high %v331, %v333
        %v2681 = vunpack.c.l.s4 1983009808
        %v2682 = vunpack.c.0.s8 %v2681
        %v2683 = vlaneseq
        %v2684 = vshrl.u32 %v2683, 7
        %v2685 = vsub.s32 %v2682, %v2684
        %v2686 = vrot.slane %v2678, %v2685
        %v2688 = vunpack.c.l.s4 1983009808
        %v2689 = vunpack.c.0.s8 %v2688
        %v2690 = vlaneseq
        %v2691 = vshrl.u32 %v2690, 7
        %v2692 = vsub.s32 %v2689, %v2691
        %v2693 = vrot.slane %v2679, %v2692
        %v2694 = vcombine.low %v2638, %v2654
        %v2695 = vcombine.high %v2638, %v2654
        %v2697 = vunpack.c.l.s4 1934713408
        %v2698 = vunpack.c.0.s8 %v2697
        %v2699 = vlaneseq
        %v2700 = vshrl.u32 %v2699, 7
        %v2701 = vsub.s32 %v2698, %v2700
        %v2702 = vrot.slane %v2694, %v2701
        %v2704 = vunpack.c.l.s4 1934713408
        %v2705 = vunpack.c.0.s8 %v2704
        %v2706 = vlaneseq
        %v2707 = vshrl.u32 %v2706, 7
        %v2708 = vsub.s32 %v2705, %v2707
        %v2709 = vrot.slane %v2695, %v2708
        %v2710 = vcombine.low %v2645, %v2661
        %v2711 = vcombine.high %v2645, %v2661
        %v2713 = vunpack.c.l.s4 1934713408
        %v2714 = vunpack.c.0.s8 %v2713
        %v2715 = vlaneseq
        %v2716 = vshrl.u32 %v2715, 7
        %v2717 = vsub.s32 %v2714, %v2716
        %v2718 = vrot.slane %v2710, %v2717
        %v2720 = vunpack.c.l.s4 1934713408
        %v2721 = vunpack.c.0.s8 %v2720
        %v2722 = vlaneseq
        %v2723 = vshrl.u32 %v2722, 7
        %v2724 = vsub.s32 %v2721, %v2723
        %v2725 = vrot.slane %v2711, %v2724
        %v2726 = vcombine.low %v2670, %v2686
        %v2727 = vcombine.high %v2670, %v2686
        %v2729 = vunpack.c.l.s4 1934713408
        %v2730 = vunpack.c.0.s8 %v2729
        %v2731 = vlaneseq
        %v2732 = vshrl.u32 %v2731, 7
        %v2733 = vsub.s32 %v2730, %v2732
        %v2734 = vrot.slane %v2726, %v2733
        %v2736 = vunpack.c.l.s4 1934713408
        %v2737 = vunpack.c.0.s8 %v2736
        %v2738 = vlaneseq
        %v2739 = vshrl.u32 %v2738, 7
        %v2740 = vsub.s32 %v2737, %v2739
        %v2741 = vrot.slane %v2727, %v2740
        %v2742 = vcombine.low %v2677, %v2693
        %v2743 = vcombine.high %v2677, %v2693
        %v2745 = vunpack.c.l.s4 1934713408
        %v2746 = vunpack.c.0.s8 %v2745
        %v2747 = vlaneseq
        %v2748 = vshrl.u32 %v2747, 7
        %v2749 = vsub.s32 %v2746, %v2748
        %v2750 = vrot.slane %v2742, %v2749
        %v2752 = vunpack.c.l.s4 1934713408
        %v2753 = vunpack.c.0.s8 %v2752
        %v2754 = vlaneseq
        %v2755 = vshrl.u32 %v2754, 7
        %v2756 = vsub.s32 %v2753, %v2755
        %v2757 = vrot.slane %v2743, %v2756
        %v2758 = vcombine.low %v2702, %v2734
        %v2759 = vcombine.high %v2702, %v2734
        %v2760 = vcombine.low %v2709, %v2741
        %v2761 = vcombine.high %v2709, %v2741
        %v2762 = vcombine.low %v2718, %v2750
        %v2763 = vcombine.high %v2718, %v2750
        %v2764 = vcombine.low %v2725, %v2757
        %v2765 = vcombine.high %v2725, %v2757
        %v2766 = vcombine.low %v334, %v336
        %v2767 = vcombine.high %v334, %v336
        %v2769 = vunpack.c.l.s4 1983009808
        %v2770 = vunpack.c.0.s8 %v2769
        %v2771 = vlaneseq
        %v2772 = vshrl.u32 %v2771, 7
        %v2773 = vsub.s32 %v2770, %v2772
        %v2774 = vrot.slane %v2766, %v2773
        %v2776 = vunpack.c.l.s4 1983009808
        %v2777 = vunpack.c.0.s8 %v2776
        %v2778 = vlaneseq
        %v2779 = vshrl.u32 %v2778, 7
        %v2780 = vsub.s32 %v2777, %v2779
        %v2781 = vrot.slane %v2767, %v2780
        %v2782 = vcombine.low %v335, %v337
        %v2783 = vcombine.high %v335, %v337
        %v2785 = vunpack.c.l.s4 1983009808
        %v2786 = vunpack.c.0.s8 %v2785
        %v2787 = vlaneseq
        %v2788 = vshrl.u32 %v2787, 7
        %v2789 = vsub.s32 %v2786, %v2788
        %v2790 = vrot.slane %v2782, %v2789
        %v2792 = vunpack.c.l.s4 1983009808
        %v2793 = vunpack.c.0.s8 %v2792
        %v2794 = vlaneseq
        %v2795 = vshrl.u32 %v2794, 7
        %v2796 = vsub.s32 %v2793, %v2795
        %v2797 = vrot.slane %v2783, %v2796
        %v2798 = vcombine.low %v338, %v340
        %v2799 = vcombine.high %v338, %v340
        %v2801 = vunpack.c.l.s4 1983009808
        %v2802 = vunpack.c.0.s8 %v2801
        %v2803 = vlaneseq
        %v2804 = vshrl.u32 %v2803, 7
        %v2805 = vsub.s32 %v2802, %v2804
        %v2806 = vrot.slane %v2798, %v2805
        %v2808 = vunpack.c.l.s4 1983009808
        %v2809 = vunpack.c.0.s8 %v2808
        %v2810 = vlaneseq
        %v2811 = vshrl.u32 %v2810, 7
        %v2812 = vsub.s32 %v2809, %v2811
        %v2813 = vrot.slane %v2799, %v2812
        %v2814 = vcombine.low %v339, %v341
        %v2815 = vcombine.high %v339, %v341
        %v2817 = vunpack.c.l.s4 1983009808
        %v2818 = vunpack.c.0.s8 %v2817
        %v2819 = vlaneseq
        %v2820 = vshrl.u32 %v2819, 7
        %v2821 = vsub.s32 %v2818, %v2820
        %v2822 = vrot.slane %v2814, %v2821
        %v2824 = vunpack.c.l.s4 1983009808
        %v2825 = vunpack.c.0.s8 %v2824
        %v2826 = vlaneseq
        %v2827 = vshrl.u32 %v2826, 7
        %v2828 = vsub.s32 %v2825, %v2827
        %v2829 = vrot.slane %v2815, %v2828
        %v2830 = vcombine.low %v2774, %v2790
        %v2831 = vcombine.high %v2774, %v2790
        %v2833 = vunpack.c.l.s4 1934713408
        %v2834 = vunpack.c.0.s8 %v2833
        %v2835 = vlaneseq
        %v2836 = vshrl.u32 %v2835, 7
        %v2837 = vsub.s32 %v2834, %v2836
        %v2838 = vrot.slane %v2830, %v2837
        %v2840 = vunpack.c.l.s4 1934713408
        %v2841 = vunpack.c.0.s8 %v2840
        %v2842 = vlaneseq
        %v2843 = vshrl.u32 %v2842, 7
        %v2844 = vsub.s32 %v2841, %v2843
        %v2845 = vrot.slane %v2831, %v2844
        %v2846 = vcombine.low %v2781, %v2797
        %v2847 = vcombine.high %v2781, %v2797
        %v2849 = vunpack.c.l.s4 1934713408
        %v2850 = vunpack.c.0.s8 %v2849
        %v2851 = vlaneseq
        %v2852 = vshrl.u32 %v2851, 7
        %v2853 = vsub.s32 %v2850, %v2852
        %v2854 = vrot.slane %v2846, %v2853
        %v2856 = vunpack.c.l.s4 1934713408
        %v2857 = vunpack.c.0.s8 %v2856
        %v2858 = vlaneseq
        %v2859 = vshrl.u32 %v2858, 7
        %v2860 = vsub.s32 %v2857, %v2859
        %v2861 = vrot.slane %v2847, %v2860
        %v2862 = vcombine.low %v2806, %v2822
        %v2863 = vcombine.high %v2806, %v2822
        %v2865 = vunpack.c.l.s4 1934713408
        %v2866 = vunpack.c.0.s8 %v2865
        %v2867 = vlaneseq
        %v2868 = vshrl.u32 %v2867, 7
        %v2869 = vsub.s32 %v2866, %v2868
        %v2870 = vrot.slane %v2862, %v2869
        %v2872 = vunpack.c.l.s4 1934713408
        %v2873 = vunpack.c.0.s8 %v2872
        %v2874 = vlaneseq
        %v2875 = vshrl.u32 %v2874, 7
        %v2876 = vsub.s32 %v2873, %v2875
        %v2877 = vrot.slane %v2863, %v2876
        %v2878 = vcombine.low %v2813, %v2829
        %v2879 = vcombine.high %v2813, %v2829
        %v2881 = vunpack.c.l.s4 1934713408
        %v2882 = vunpack.c.0.s8 %v2881
        %v2883 = vlaneseq
        %v2884 = vshrl.u32 %v2883, 7
        %v2885 = vsub.s32 %v2882, %v2884
        %v2886 = vrot.slane %v2878, %v2885
        %v2888 = vunpack.c.l.s4 1934713408
        %v2889 = vunpack.c.0.s8 %v2888
        %v2890 = vlaneseq
        %v2891 = vshrl.u32 %v2890, 7
        %v2892 = vsub.s32 %v2889, %v2891
        %v2893 = vrot.slane %v2879, %v2892
        %v2894 = vcombine.low %v2838, %v2870
        %v2895 = vcombine.high %v2838, %v2870
        %v2896 = vcombine.low %v2845, %v2877
        %v2897 = vcombine.high %v2845, %v2877
        %v2898 = vcombine.low %v2854, %v2886
        %v2899 = vcombine.high %v2854, %v2886
        %v2900 = vcombine.low %v2861, %v2893
        %v2901 = vcombine.high %v2861, %v2893
        %v2902 = vcombine.low %v342, %v344
        %v2903 = vcombine.high %v342, %v344
        %v2905 = vunpack.c.l.s4 1983009808
        %v2906 = vunpack.c.0.s8 %v2905
        %v2907 = vlaneseq
        %v2908 = vshrl.u32 %v2907, 7
        %v2909 = vsub.s32 %v2906, %v2908
        %v2910 = vrot.slane %v2902, %v2909
        %v2912 = vunpack.c.l.s4 1983009808
        %v2913 = vunpack.c.0.s8 %v2912
        %v2914 = vlaneseq
        %v2915 = vshrl.u32 %v2914, 7
        %v2916 = vsub.s32 %v2913, %v2915
        %v2917 = vrot.slane %v2903, %v2916
        %v2918 = vcombine.low %v343, %v345
        %v2919 = vcombine.high %v343, %v345
        %v2921 = vunpack.c.l.s4 1983009808
        %v2922 = vunpack.c.0.s8 %v2921
        %v2923 = vlaneseq
        %v2924 = vshrl.u32 %v2923, 7
        %v2925 = vsub.s32 %v2922, %v2924
        %v2926 = vrot.slane %v2918, %v2925
        %v2928 = vunpack.c.l.s4 1983009808
        %v2929 = vunpack.c.0.s8 %v2928
        %v2930 = vlaneseq
        %v2931 = vshrl.u32 %v2930, 7
        %v2932 = vsub.s32 %v2929, %v2931
        %v2933 = vrot.slane %v2919, %v2932
        %v2934 = vcombine.low %v346, %v348
        %v2935 = vcombine.high %v346, %v348
        %v2937 = vunpack.c.l.s4 1983009808
        %v2938 = vunpack.c.0.s8 %v2937
        %v2939 = vlaneseq
        %v2940 = vshrl.u32 %v2939, 7
        %v2941 = vsub.s32 %v2938, %v2940
        %v2942 = vrot.slane %v2934, %v2941
        %v2944 = vunpack.c.l.s4 1983009808
        %v2945 = vunpack.c.0.s8 %v2944
        %v2946 = vlaneseq
        %v2947 = vshrl.u32 %v2946, 7
        %v2948 = vsub.s32 %v2945, %v2947
        %v2949 = vrot.slane %v2935, %v2948
        %v2950 = vcombine.low %v347, %v349
        %v2951 = vcombine.high %v347, %v349
        %v2953 = vunpack.c.l.s4 1983009808
        %v2954 = vunpack.c.0.s8 %v2953
        %v2955 = vlaneseq
        %v2956 = vshrl.u32 %v2955, 7
        %v2957 = vsub.s32 %v2954, %v2956
        %v2958 = vrot.slane %v2950, %v2957
        %v2960 = vunpack.c.l.s4 1983009808
        %v2961 = vunpack.c.0.s8 %v2960
        %v2962 = vlaneseq
        %v2963 = vshrl.u32 %v2962, 7
        %v2964 = vsub.s32 %v2961, %v2963
        %v2965 = vrot.slane %v2951, %v2964
        %v2966 = vcombine.low %v2910, %v2926
        %v2967 = vcombine.high %v2910, %v2926
        %v2969 = vunpack.c.l.s4 1934713408
        %v2970 = vunpack.c.0.s8 %v2969
        %v2971 = vlaneseq
        %v2972 = vshrl.u32 %v2971, 7
        %v2973 = vsub.s32 %v2970, %v2972
        %v2974 = vrot.slane %v2966, %v2973
        %v2976 = vunpack.c.l.s4 1934713408
        %v2977 = vunpack.c.0.s8 %v2976
        %v2978 = vlaneseq
        %v2979 = vshrl.u32 %v2978, 7
        %v2980 = vsub.s32 %v2977, %v2979
        %v2981 = vrot.slane %v2967, %v2980
        %v2982 = vcombine.low %v2917, %v2933
        %v2983 = vcombine.high %v2917, %v2933
        %v2985 = vunpack.c.l.s4 1934713408
        %v2986 = vunpack.c.0.s8 %v2985
        %v2987 = vlaneseq
        %v2988 = vshrl.u32 %v2987, 7
        %v2989 = vsub.s32 %v2986, %v2988
        %v2990 = vrot.slane %v2982, %v2989
        %v2992 = vunpack.c.l.s4 1934713408
        %v2993 = vunpack.c.0.s8 %v2992
        %v2994 = vlaneseq
        %v2995 = vshrl.u32 %v2994, 7
        %v2996 = vsub.s32 %v2993, %v2995
        %v2997 = vrot.slane %v2983, %v2996
        %v2998 = vcombine.low %v2942, %v2958
        %v2999 = vcombine.high %v2942, %v2958
        %v3001 = vunpack.c.l.s4 1934713408
        %v3002 = vunpack.c.0.s8 %v3001
        %v3003 = vlaneseq
        %v3004 = vshrl.u32 %v3003, 7
        %v3005 = vsub.s32 %v3002, %v3004
        %v3006 = vrot.slane %v2998, %v3005
        %v3008 = vunpack.c.l.s4 1934713408
        %v3009 = vunpack.c.0.s8 %v3008
        %v3010 = vlaneseq
        %v3011 = vshrl.u32 %v3010, 7
        %v3012 = vsub.s32 %v3009, %v3011
        %v3013 = vrot.slane %v2999, %v3012
        %v3014 = vcombine.low %v2949, %v2965
        %v3015 = vcombine.high %v2949, %v2965
        %v3017 = vunpack.c.l.s4 1934713408
        %v3018 = vunpack.c.0.s8 %v3017
        %v3019 = vlaneseq
        %v3020 = vshrl.u32 %v3019, 7
        %v3021 = vsub.s32 %v3018, %v3020
        %v3022 = vrot.slane %v3014, %v3021
        %v3024 = vunpack.c.l.s4 1934713408
        %v3025 = vunpack.c.0.s8 %v3024
        %v3026 = vlaneseq
        %v3027 = vshrl.u32 %v3026, 7
        %v3028 = vsub.s32 %v3025, %v3027
        %v3029 = vrot.slane %v3015, %v3028
        %v3030 = vcombine.low %v2974, %v3006
        %v3031 = vcombine.high %v2974, %v3006
        %v3032 = vcombine.low %v2981, %v3013
        %v3033 = vcombine.high %v2981, %v3013
        %v3034 = vcombine.low %v2990, %v3022
        %v3035 = vcombine.high %v2990, %v3022
        %v3036 = vcombine.low %v2997, %v3029
        %v3037 = vcombine.high %v2997, %v3029
        %v3038 = vcombine.low %v350, %v352
        %v3039 = vcombine.high %v350, %v352
        %v3041 = vunpack.c.l.s4 1983009808
        %v3042 = vunpack.c.0.s8 %v3041
        %v3043 = vlaneseq
        %v3044 = vshrl.u32 %v3043, 7
        %v3045 = vsub.s32 %v3042, %v3044
        %v3046 = vrot.slane %v3038, %v3045
        %v3048 = vunpack.c.l.s4 1983009808
        %v3049 = vunpack.c.0.s8 %v3048
        %v3050 = vlaneseq
        %v3051 = vshrl.u32 %v3050, 7
        %v3052 = vsub.s32 %v3049, %v3051
        %v3053 = vrot.slane %v3039, %v3052
        %v3054 = vcombine.low %v351, %v353
        %v3055 = vcombine.high %v351, %v353
        %v3057 = vunpack.c.l.s4 1983009808
        %v3058 = vunpack.c.0.s8 %v3057
        %v3059 = vlaneseq
        %v3060 = vshrl.u32 %v3059, 7
        %v3061 = vsub.s32 %v3058, %v3060
        %v3062 = vrot.slane %v3054, %v3061
        %v3064 = vunpack.c.l.s4 1983009808
        %v3065 = vunpack.c.0.s8 %v3064
        %v3066 = vlaneseq
        %v3067 = vshrl.u32 %v3066, 7
        %v3068 = vsub.s32 %v3065, %v3067
        %v3069 = vrot.slane %v3055, %v3068
        %v3070 = vcombine.low %v354, %v356
        %v3071 = vcombine.high %v354, %v356
        %v3073 = vunpack.c.l.s4 1983009808
        %v3074 = vunpack.c.0.s8 %v3073
        %v3075 = vlaneseq
        %v3076 = vshrl.u32 %v3075, 7
        %v3077 = vsub.s32 %v3074, %v3076
        %v3078 = vrot.slane %v3070, %v3077
        %v3080 = vunpack.c.l.s4 1983009808
        %v3081 = vunpack.c.0.s8 %v3080
        %v3082 = vlaneseq
        %v3083 = vshrl.u32 %v3082, 7
        %v3084 = vsub.s32 %v3081, %v3083
        %v3085 = vrot.slane %v3071, %v3084
        %v3086 = vcombine.low %v355, %v357
        %v3087 = vcombine.high %v355, %v357
        %v3089 = vunpack.c.l.s4 1983009808
        %v3090 = vunpack.c.0.s8 %v3089
        %v3091 = vlaneseq
        %v3092 = vshrl.u32 %v3091, 7
        %v3093 = vsub.s32 %v3090, %v3092
        %v3094 = vrot.slane %v3086, %v3093
        %v3096 = vunpack.c.l.s4 1983009808
        %v3097 = vunpack.c.0.s8 %v3096
        %v3098 = vlaneseq
        %v3099 = vshrl.u32 %v3098, 7
        %v3100 = vsub.s32 %v3097, %v3099
        %v3101 = vrot.slane %v3087, %v3100
        %v3102 = vcombine.low %v3046, %v3062
        %v3103 = vcombine.high %v3046, %v3062
        %v3105 = vunpack.c.l.s4 1934713408
        %v3106 = vunpack.c.0.s8 %v3105
        %v3107 = vlaneseq
        %v3108 = vshrl.u32 %v3107, 7
        %v3109 = vsub.s32 %v3106, %v3108
        %v3110 = vrot.slane %v3102, %v3109
        %v3112 = vunpack.c.l.s4 1934713408
        %v3113 = vunpack.c.0.s8 %v3112
        %v3114 = vlaneseq
        %v3115 = vshrl.u32 %v3114, 7
        %v3116 = vsub.s32 %v3113, %v3115
        %v3117 = vrot.slane %v3103, %v3116
        %v3118 = vcombine.low %v3053, %v3069
        %v3119 = vcombine.high %v3053, %v3069
        %v3121 = vunpack.c.l.s4 1934713408
        %v3122 = vunpack.c.0.s8 %v3121
        %v3123 = vlaneseq
        %v3124 = vshrl.u32 %v3123, 7
        %v3125 = vsub.s32 %v3122, %v3124
        %v3126 = vrot.slane %v3118, %v3125
        %v3128 = vunpack.c.l.s4 1934713408
        %v3129 = vunpack.c.0.s8 %v3128
        %v3130 = vlaneseq
        %v3131 = vshrl.u32 %v3130, 7
        %v3132 = vsub.s32 %v3129, %v3131
        %v3133 = vrot.slane %v3119, %v3132
        %v3134 = vcombine.low %v3078, %v3094
        %v3135 = vcombine.high %v3078, %v3094
        %v3137 = vunpack.c.l.s4 1934713408
        %v3138 = vunpack.c.0.s8 %v3137
        %v3139 = vlaneseq
        %v3140 = vshrl.u32 %v3139, 7
        %v3141 = vsub.s32 %v3138, %v3140
        %v3142 = vrot.slane %v3134, %v3141
        %v3144 = vunpack.c.l.s4 1934713408
        %v3145 = vunpack.c.0.s8 %v3144
        %v3146 = vlaneseq
        %v3147 = vshrl.u32 %v3146, 7
        %v3148 = vsub.s32 %v3145, %v3147
        %v3149 = vrot.slane %v3135, %v3148
        %v3150 = vcombine.low %v3085, %v3101
        %v3151 = vcombine.high %v3085, %v3101
        %v3153 = vunpack.c.l.s4 1934713408
        %v3154 = vunpack.c.0.s8 %v3153
        %v3155 = vlaneseq
        %v3156 = vshrl.u32 %v3155, 7
        %v3157 = vsub.s32 %v3154, %v3156
        %v3158 = vrot.slane %v3150, %v3157
        %v3160 = vunpack.c.l.s4 1934713408
        %v3161 = vunpack.c.0.s8 %v3160
        %v3162 = vlaneseq
        %v3163 = vshrl.u32 %v3162, 7
        %v3164 = vsub.s32 %v3161, %v3163
        %v3165 = vrot.slane %v3151, %v3164
        %v3166 = vcombine.low %v3110, %v3142
        %v3167 = vcombine.high %v3110, %v3142
        %v3168 = vcombine.low %v3117, %v3149
        %v3169 = vcombine.high %v3117, %v3149
        %v3170 = vcombine.low %v3126, %v3158
        %v3171 = vcombine.high %v3126, %v3158
        %v3172 = vcombine.low %v3133, %v3165
        %v3173 = vcombine.high %v3133, %v3165
        %v3174 = vcombine.low %v358, %v360
        %v3175 = vcombine.high %v358, %v360
        %v3177 = vunpack.c.l.s4 1983009808
        %v3178 = vunpack.c.0.s8 %v3177
        %v3179 = vlaneseq
        %v3180 = vshrl.u32 %v3179, 7
        %v3181 = vsub.s32 %v3178, %v3180
        %v3182 = vrot.slane %v3174, %v3181
        %v3184 = vunpack.c.l.s4 1983009808
        %v3185 = vunpack.c.0.s8 %v3184
        %v3186 = vlaneseq
        %v3187 = vshrl.u32 %v3186, 7
        %v3188 = vsub.s32 %v3185, %v3187
        %v3189 = vrot.slane %v3175, %v3188
        %v3190 = vcombine.low %v359, %v361
        %v3191 = vcombine.high %v359, %v361
        %v3193 = vunpack.c.l.s4 1983009808
        %v3194 = vunpack.c.0.s8 %v3193
        %v3195 = vlaneseq
        %v3196 = vshrl.u32 %v3195, 7
        %v3197 = vsub.s32 %v3194, %v3196
        %v3198 = vrot.slane %v3190, %v3197
        %v3200 = vunpack.c.l.s4 1983009808
        %v3201 = vunpack.c.0.s8 %v3200
        %v3202 = vlaneseq
        %v3203 = vshrl.u32 %v3202, 7
        %v3204 = vsub.s32 %v3201, %v3203
        %v3205 = vrot.slane %v3191, %v3204
        %v3206 = vcombine.low %v362, %v364
        %v3207 = vcombine.high %v362, %v364
        %v3209 = vunpack.c.l.s4 1983009808
        %v3210 = vunpack.c.0.s8 %v3209
        %v3211 = vlaneseq
        %v3212 = vshrl.u32 %v3211, 7
        %v3213 = vsub.s32 %v3210, %v3212
        %v3214 = vrot.slane %v3206, %v3213
        %v3216 = vunpack.c.l.s4 1983009808
        %v3217 = vunpack.c.0.s8 %v3216
        %v3218 = vlaneseq
        %v3219 = vshrl.u32 %v3218, 7
        %v3220 = vsub.s32 %v3217, %v3219
        %v3221 = vrot.slane %v3207, %v3220
        %v3222 = vcombine.low %v363, %v365
        %v3223 = vcombine.high %v363, %v365
        %v3225 = vunpack.c.l.s4 1983009808
        %v3226 = vunpack.c.0.s8 %v3225
        %v3227 = vlaneseq
        %v3228 = vshrl.u32 %v3227, 7
        %v3229 = vsub.s32 %v3226, %v3228
        %v3230 = vrot.slane %v3222, %v3229
        %v3232 = vunpack.c.l.s4 1983009808
        %v3233 = vunpack.c.0.s8 %v3232
        %v3234 = vlaneseq
        %v3235 = vshrl.u32 %v3234, 7
        %v3236 = vsub.s32 %v3233, %v3235
        %v3237 = vrot.slane %v3223, %v3236
        %v3238 = vcombine.low %v3182, %v3198
        %v3239 = vcombine.high %v3182, %v3198
        %v3241 = vunpack.c.l.s4 1934713408
        %v3242 = vunpack.c.0.s8 %v3241
        %v3243 = vlaneseq
        %v3244 = vshrl.u32 %v3243, 7
        %v3245 = vsub.s32 %v3242, %v3244
        %v3246 = vrot.slane %v3238, %v3245
        %v3248 = vunpack.c.l.s4 1934713408
        %v3249 = vunpack.c.0.s8 %v3248
        %v3250 = vlaneseq
        %v3251 = vshrl.u32 %v3250, 7
        %v3252 = vsub.s32 %v3249, %v3251
        %v3253 = vrot.slane %v3239, %v3252
        %v3254 = vcombine.low %v3189, %v3205
        %v3255 = vcombine.high %v3189, %v3205
        %v3257 = vunpack.c.l.s4 1934713408
        %v3258 = vunpack.c.0.s8 %v3257
        %v3259 = vlaneseq
        %v3260 = vshrl.u32 %v3259, 7
        %v3261 = vsub.s32 %v3258, %v3260
        %v3262 = vrot.slane %v3254, %v3261
        %v3264 = vunpack.c.l.s4 1934713408
        %v3265 = vunpack.c.0.s8 %v3264
        %v3266 = vlaneseq
        %v3267 = vshrl.u32 %v3266, 7
        %v3268 = vsub.s32 %v3265, %v3267
        %v3269 = vrot.slane %v3255, %v3268
        %v3270 = vcombine.low %v3214, %v3230
        %v3271 = vcombine.high %v3214, %v3230
        %v3273 = vunpack.c.l.s4 1934713408
        %v3274 = vunpack.c.0.s8 %v3273
        %v3275 = vlaneseq
        %v3276 = vshrl.u32 %v3275, 7
        %v3277 = vsub.s32 %v3274, %v3276
        %v3278 = vrot.slane %v3270, %v3277
        %v3280 = vunpack.c.l.s4 1934713408
        %v3281 = vunpack.c.0.s8 %v3280
        %v3282 = vlaneseq
        %v3283 = vshrl.u32 %v3282, 7
        %v3284 = vsub.s32 %v3281, %v3283
        %v3285 = vrot.slane %v3271, %v3284
        %v3286 = vcombine.low %v3221, %v3237
        %v3287 = vcombine.high %v3221, %v3237
        %v3289 = vunpack.c.l.s4 1934713408
        %v3290 = vunpack.c.0.s8 %v3289
        %v3291 = vlaneseq
        %v3292 = vshrl.u32 %v3291, 7
        %v3293 = vsub.s32 %v3290, %v3292
        %v3294 = vrot.slane %v3286, %v3293
        %v3296 = vunpack.c.l.s4 1934713408
        %v3297 = vunpack.c.0.s8 %v3296
        %v3298 = vlaneseq
        %v3299 = vshrl.u32 %v3298, 7
        %v3300 = vsub.s32 %v3297, %v3299
        %v3301 = vrot.slane %v3287, %v3300
        %v3302 = vcombine.low %v3246, %v3278
        %v3303 = vcombine.high %v3246, %v3278
        %v3304 = vcombine.low %v3253, %v3285
        %v3305 = vcombine.high %v3253, %v3285
        %v3306 = vcombine.low %v3262, %v3294
        %v3307 = vcombine.high %v3262, %v3294
        %v3308 = vcombine.low %v3269, %v3301
        %v3309 = vcombine.high %v3269, %v3301
        %v3310 = vcombine.low %v366, %v368
        %v3311 = vcombine.high %v366, %v368
        %v3313 = vunpack.c.l.s4 1983009808
        %v3314 = vunpack.c.0.s8 %v3313
        %v3315 = vlaneseq
        %v3316 = vshrl.u32 %v3315, 7
        %v3317 = vsub.s32 %v3314, %v3316
        %v3318 = vrot.slane %v3310, %v3317
        %v3320 = vunpack.c.l.s4 1983009808
        %v3321 = vunpack.c.0.s8 %v3320
        %v3322 = vlaneseq
        %v3323 = vshrl.u32 %v3322, 7
        %v3324 = vsub.s32 %v3321, %v3323
        %v3325 = vrot.slane %v3311, %v3324
        %v3326 = vcombine.low %v367, %v369
        %v3327 = vcombine.high %v367, %v369
        %v3329 = vunpack.c.l.s4 1983009808
        %v3330 = vunpack.c.0.s8 %v3329
        %v3331 = vlaneseq
        %v3332 = vshrl.u32 %v3331, 7
        %v3333 = vsub.s32 %v3330, %v3332
        %v3334 = vrot.slane %v3326, %v3333
        %v3336 = vunpack.c.l.s4 1983009808
        %v3337 = vunpack.c.0.s8 %v3336
        %v3338 = vlaneseq
        %v3339 = vshrl.u32 %v3338, 7
        %v3340 = vsub.s32 %v3337, %v3339
        %v3341 = vrot.slane %v3327, %v3340
        %v3342 = vcombine.low %v370, %v372
        %v3343 = vcombine.high %v370, %v372
        %v3345 = vunpack.c.l.s4 1983009808
        %v3346 = vunpack.c.0.s8 %v3345
        %v3347 = vlaneseq
        %v3348 = vshrl.u32 %v3347, 7
        %v3349 = vsub.s32 %v3346, %v3348
        %v3350 = vrot.slane %v3342, %v3349
        %v3352 = vunpack.c.l.s4 1983009808
        %v3353 = vunpack.c.0.s8 %v3352
        %v3354 = vlaneseq
        %v3355 = vshrl.u32 %v3354, 7
        %v3356 = vsub.s32 %v3353, %v3355
        %v3357 = vrot.slane %v3343, %v3356
        %v3358 = vcombine.low %v371, %v373
        %v3359 = vcombine.high %v371, %v373
        %v3361 = vunpack.c.l.s4 1983009808
        %v3362 = vunpack.c.0.s8 %v3361
        %v3363 = vlaneseq
        %v3364 = vshrl.u32 %v3363, 7
        %v3365 = vsub.s32 %v3362, %v3364
        %v3366 = vrot.slane %v3358, %v3365
        %v3368 = vunpack.c.l.s4 1983009808
        %v3369 = vunpack.c.0.s8 %v3368
        %v3370 = vlaneseq
        %v3371 = vshrl.u32 %v3370, 7
        %v3372 = vsub.s32 %v3369, %v3371
        %v3373 = vrot.slane %v3359, %v3372
        %v3374 = vcombine.low %v3318, %v3334
        %v3375 = vcombine.high %v3318, %v3334
        %v3377 = vunpack.c.l.s4 1934713408
        %v3378 = vunpack.c.0.s8 %v3377
        %v3379 = vlaneseq
        %v3380 = vshrl.u32 %v3379, 7
        %v3381 = vsub.s32 %v3378, %v3380
        %v3382 = vrot.slane %v3374, %v3381
        %v3384 = vunpack.c.l.s4 1934713408
        %v3385 = vunpack.c.0.s8 %v3384
        %v3386 = vlaneseq
        %v3387 = vshrl.u32 %v3386, 7
        %v3388 = vsub.s32 %v3385, %v3387
        %v3389 = vrot.slane %v3375, %v3388
        %v3390 = vcombine.low %v3325, %v3341
        %v3391 = vcombine.high %v3325, %v3341
        %v3393 = vunpack.c.l.s4 1934713408
        %v3394 = vunpack.c.0.s8 %v3393
        %v3395 = vlaneseq
        %v3396 = vshrl.u32 %v3395, 7
        %v3397 = vsub.s32 %v3394, %v3396
        %v3398 = vrot.slane %v3390, %v3397
        %v3400 = vunpack.c.l.s4 1934713408
        %v3401 = vunpack.c.0.s8 %v3400
        %v3402 = vlaneseq
        %v3403 = vshrl.u32 %v3402, 7
        %v3404 = vsub.s32 %v3401, %v3403
        %v3405 = vrot.slane %v3391, %v3404
        %v3406 = vcombine.low %v3350, %v3366
        %v3407 = vcombine.high %v3350, %v3366
        %v3409 = vunpack.c.l.s4 1934713408
        %v3410 = vunpack.c.0.s8 %v3409
        %v3411 = vlaneseq
        %v3412 = vshrl.u32 %v3411, 7
        %v3413 = vsub.s32 %v3410, %v3412
        %v3414 = vrot.slane %v3406, %v3413
        %v3416 = vunpack.c.l.s4 1934713408
        %v3417 = vunpack.c.0.s8 %v3416
        %v3418 = vlaneseq
        %v3419 = vshrl.u32 %v3418, 7
        %v3420 = vsub.s32 %v3417, %v3419
        %v3421 = vrot.slane %v3407, %v3420
        %v3422 = vcombine.low %v3357, %v3373
        %v3423 = vcombine.high %v3357, %v3373
        %v3425 = vunpack.c.l.s4 1934713408
        %v3426 = vunpack.c.0.s8 %v3425
        %v3427 = vlaneseq
        %v3428 = vshrl.u32 %v3427, 7
        %v3429 = vsub.s32 %v3426, %v3428
        %v3430 = vrot.slane %v3422, %v3429
        %v3432 = vunpack.c.l.s4 1934713408
        %v3433 = vunpack.c.0.s8 %v3432
        %v3434 = vlaneseq
        %v3435 = vshrl.u32 %v3434, 7
        %v3436 = vsub.s32 %v3433, %v3435
        %v3437 = vrot.slane %v3423, %v3436
        %v3438 = vcombine.low %v3382, %v3414
        %v3439 = vcombine.high %v3382, %v3414
        %v3440 = vcombine.low %v3389, %v3421
        %v3441 = vcombine.high %v3389, %v3421
        %v3442 = vcombine.low %v3398, %v3430
        %v3443 = vcombine.high %v3398, %v3430
        %v3444 = vcombine.low %v3405, %v3437
        %v3445 = vcombine.high %v3405, %v3437
        %v3446 = vcombine.low %v374, %v376
        %v3447 = vcombine.high %v374, %v376
        %v3449 = vunpack.c.l.s4 1983009808
        %v3450 = vunpack.c.0.s8 %v3449
        %v3451 = vlaneseq
        %v3452 = vshrl.u32 %v3451, 7
        %v3453 = vsub.s32 %v3450, %v3452
        %v3454 = vrot.slane %v3446, %v3453
        %v3456 = vunpack.c.l.s4 1983009808
        %v3457 = vunpack.c.0.s8 %v3456
        %v3458 = vlaneseq
        %v3459 = vshrl.u32 %v3458, 7
        %v3460 = vsub.s32 %v3457, %v3459
        %v3461 = vrot.slane %v3447, %v3460
        %v3462 = vcombine.low %v375, %v377
        %v3463 = vcombine.high %v375, %v377
        %v3465 = vunpack.c.l.s4 1983009808
        %v3466 = vunpack.c.0.s8 %v3465
        %v3467 = vlaneseq
        %v3468 = vshrl.u32 %v3467, 7
        %v3469 = vsub.s32 %v3466, %v3468
        %v3470 = vrot.slane %v3462, %v3469
        %v3472 = vunpack.c.l.s4 1983009808
        %v3473 = vunpack.c.0.s8 %v3472
        %v3474 = vlaneseq
        %v3475 = vshrl.u32 %v3474, 7
        %v3476 = vsub.s32 %v3473, %v3475
        %v3477 = vrot.slane %v3463, %v3476
        %v3478 = vcombine.low %v378, %v380
        %v3479 = vcombine.high %v378, %v380
        %v3481 = vunpack.c.l.s4 1983009808
        %v3482 = vunpack.c.0.s8 %v3481
        %v3483 = vlaneseq
        %v3484 = vshrl.u32 %v3483, 7
        %v3485 = vsub.s32 %v3482, %v3484
        %v3486 = vrot.slane %v3478, %v3485
        %v3488 = vunpack.c.l.s4 1983009808
        %v3489 = vunpack.c.0.s8 %v3488
        %v3490 = vlaneseq
        %v3491 = vshrl.u32 %v3490, 7
        %v3492 = vsub.s32 %v3489, %v3491
        %v3493 = vrot.slane %v3479, %v3492
        %v3494 = vcombine.low %v379, %v381
        %v3495 = vcombine.high %v379, %v381
        %v3497 = vunpack.c.l.s4 1983009808
        %v3498 = vunpack.c.0.s8 %v3497
        %v3499 = vlaneseq
        %v3500 = vshrl.u32 %v3499, 7
        %v3501 = vsub.s32 %v3498, %v3500
        %v3502 = vrot.slane %v3494, %v3501
        %v3504 = vunpack.c.l.s4 1983009808
        %v3505 = vunpack.c.0.s8 %v3504
        %v3506 = vlaneseq
        %v3507 = vshrl.u32 %v3506, 7
        %v3508 = vsub.s32 %v3505, %v3507
        %v3509 = vrot.slane %v3495, %v3508
        %v3510 = vcombine.low %v3454, %v3470
        %v3511 = vcombine.high %v3454, %v3470
        %v3513 = vunpack.c.l.s4 1934713408
        %v3514 = vunpack.c.0.s8 %v3513
        %v3515 = vlaneseq
        %v3516 = vshrl.u32 %v3515, 7
        %v3517 = vsub.s32 %v3514, %v3516
        %v3518 = vrot.slane %v3510, %v3517
        %v3520 = vunpack.c.l.s4 1934713408
        %v3521 = vunpack.c.0.s8 %v3520
        %v3522 = vlaneseq
        %v3523 = vshrl.u32 %v3522, 7
        %v3524 = vsub.s32 %v3521, %v3523
        %v3525 = vrot.slane %v3511, %v3524
        %v3526 = vcombine.low %v3461, %v3477
        %v3527 = vcombine.high %v3461, %v3477
        %v3529 = vunpack.c.l.s4 1934713408
        %v3530 = vunpack.c.0.s8 %v3529
        %v3531 = vlaneseq
        %v3532 = vshrl.u32 %v3531, 7
        %v3533 = vsub.s32 %v3530, %v3532
        %v3534 = vrot.slane %v3526, %v3533
        %v3536 = vunpack.c.l.s4 1934713408
        %v3537 = vunpack.c.0.s8 %v3536
        %v3538 = vlaneseq
        %v3539 = vshrl.u32 %v3538, 7
        %v3540 = vsub.s32 %v3537, %v3539
        %v3541 = vrot.slane %v3527, %v3540
        %v3542 = vcombine.low %v3486, %v3502
        %v3543 = vcombine.high %v3486, %v3502
        %v3545 = vunpack.c.l.s4 1934713408
        %v3546 = vunpack.c.0.s8 %v3545
        %v3547 = vlaneseq
        %v3548 = vshrl.u32 %v3547, 7
        %v3549 = vsub.s32 %v3546, %v3548
        %v3550 = vrot.slane %v3542, %v3549
        %v3552 = vunpack.c.l.s4 1934713408
        %v3553 = vunpack.c.0.s8 %v3552
        %v3554 = vlaneseq
        %v3555 = vshrl.u32 %v3554, 7
        %v3556 = vsub.s32 %v3553, %v3555
        %v3557 = vrot.slane %v3543, %v3556
        %v3558 = vcombine.low %v3493, %v3509
        %v3559 = vcombine.high %v3493, %v3509
        %v3561 = vunpack.c.l.s4 1934713408
        %v3562 = vunpack.c.0.s8 %v3561
        %v3563 = vlaneseq
        %v3564 = vshrl.u32 %v3563, 7
        %v3565 = vsub.s32 %v3562, %v3564
        %v3566 = vrot.slane %v3558, %v3565
        %v3568 = vunpack.c.l.s4 1934713408
        %v3569 = vunpack.c.0.s8 %v3568
        %v3570 = vlaneseq
        %v3571 = vshrl.u32 %v3570, 7
        %v3572 = vsub.s32 %v3569, %v3571
        %v3573 = vrot.slane %v3559, %v3572
        %v3574 = vcombine.low %v3518, %v3550
        %v3575 = vcombine.high %v3518, %v3550
        %v3576 = vcombine.low %v3525, %v3557
        %v3577 = vcombine.high %v3525, %v3557
        %v3578 = vcombine.low %v3534, %v3566
        %v3579 = vcombine.high %v3534, %v3566
        %v3580 = vcombine.low %v3541, %v3573
        %v3581 = vcombine.high %v3541, %v3573
        %v3582 = vcombine.low %v382, %v384
        %v3583 = vcombine.high %v382, %v384
        %v3585 = vunpack.c.l.s4 1983009808
        %v3586 = vunpack.c.0.s8 %v3585
        %v3587 = vlaneseq
        %v3588 = vshrl.u32 %v3587, 7
        %v3589 = vsub.s32 %v3586, %v3588
        %v3590 = vrot.slane %v3582, %v3589
        %v3592 = vunpack.c.l.s4 1983009808
        %v3593 = vunpack.c.0.s8 %v3592
        %v3594 = vlaneseq
        %v3595 = vshrl.u32 %v3594, 7
        %v3596 = vsub.s32 %v3593, %v3595
        %v3597 = vrot.slane %v3583, %v3596
        %v3598 = vcombine.low %v383, %v385
        %v3599 = vcombine.high %v383, %v385
        %v3601 = vunpack.c.l.s4 1983009808
        %v3602 = vunpack.c.0.s8 %v3601
        %v3603 = vlaneseq
        %v3604 = vshrl.u32 %v3603, 7
        %v3605 = vsub.s32 %v3602, %v3604
        %v3606 = vrot.slane %v3598, %v3605
        %v3608 = vunpack.c.l.s4 1983009808
        %v3609 = vunpack.c.0.s8 %v3608
        %v3610 = vlaneseq
        %v3611 = vshrl.u32 %v3610, 7
        %v3612 = vsub.s32 %v3609, %v3611
        %v3613 = vrot.slane %v3599, %v3612
        %v3614 = vcombine.low %v386, %v388
        %v3615 = vcombine.high %v386, %v388
        %v3617 = vunpack.c.l.s4 1983009808
        %v3618 = vunpack.c.0.s8 %v3617
        %v3619 = vlaneseq
        %v3620 = vshrl.u32 %v3619, 7
        %v3621 = vsub.s32 %v3618, %v3620
        %v3622 = vrot.slane %v3614, %v3621
        %v3624 = vunpack.c.l.s4 1983009808
        %v3625 = vunpack.c.0.s8 %v3624
        %v3626 = vlaneseq
        %v3627 = vshrl.u32 %v3626, 7
        %v3628 = vsub.s32 %v3625, %v3627
        %v3629 = vrot.slane %v3615, %v3628
        %v3630 = vcombine.low %v387, %v389
        %v3631 = vcombine.high %v387, %v389
        %v3633 = vunpack.c.l.s4 1983009808
        %v3634 = vunpack.c.0.s8 %v3633
        %v3635 = vlaneseq
        %v3636 = vshrl.u32 %v3635, 7
        %v3637 = vsub.s32 %v3634, %v3636
        %v3638 = vrot.slane %v3630, %v3637
        %v3640 = vunpack.c.l.s4 1983009808
        %v3641 = vunpack.c.0.s8 %v3640
        %v3642 = vlaneseq
        %v3643 = vshrl.u32 %v3642, 7
        %v3644 = vsub.s32 %v3641, %v3643
        %v3645 = vrot.slane %v3631, %v3644
        %v3646 = vcombine.low %v3590, %v3606
        %v3647 = vcombine.high %v3590, %v3606
        %v3649 = vunpack.c.l.s4 1934713408
        %v3650 = vunpack.c.0.s8 %v3649
        %v3651 = vlaneseq
        %v3652 = vshrl.u32 %v3651, 7
        %v3653 = vsub.s32 %v3650, %v3652
        %v3654 = vrot.slane %v3646, %v3653
        %v3656 = vunpack.c.l.s4 1934713408
        %v3657 = vunpack.c.0.s8 %v3656
        %v3658 = vlaneseq
        %v3659 = vshrl.u32 %v3658, 7
        %v3660 = vsub.s32 %v3657, %v3659
        %v3661 = vrot.slane %v3647, %v3660
        %v3662 = vcombine.low %v3597, %v3613
        %v3663 = vcombine.high %v3597, %v3613
        %v3665 = vunpack.c.l.s4 1934713408
        %v3666 = vunpack.c.0.s8 %v3665
        %v3667 = vlaneseq
        %v3668 = vshrl.u32 %v3667, 7
        %v3669 = vsub.s32 %v3666, %v3668
        %v3670 = vrot.slane %v3662, %v3669
        %v3672 = vunpack.c.l.s4 1934713408
        %v3673 = vunpack.c.0.s8 %v3672
        %v3674 = vlaneseq
        %v3675 = vshrl.u32 %v3674, 7
        %v3676 = vsub.s32 %v3673, %v3675
        %v3677 = vrot.slane %v3663, %v3676
        %v3678 = vcombine.low %v3622, %v3638
        %v3679 = vcombine.high %v3622, %v3638
        %v3681 = vunpack.c.l.s4 1934713408
        %v3682 = vunpack.c.0.s8 %v3681
        %v3683 = vlaneseq
        %v3684 = vshrl.u32 %v3683, 7
        %v3685 = vsub.s32 %v3682, %v3684
        %v3686 = vrot.slane %v3678, %v3685
        %v3688 = vunpack.c.l.s4 1934713408
        %v3689 = vunpack.c.0.s8 %v3688
        %v3690 = vlaneseq
        %v3691 = vshrl.u32 %v3690, 7
        %v3692 = vsub.s32 %v3689, %v3691
        %v3693 = vrot.slane %v3679, %v3692
        %v3694 = vcombine.low %v3629, %v3645
        %v3695 = vcombine.high %v3629, %v3645
        %v3697 = vunpack.c.l.s4 1934713408
        %v3698 = vunpack.c.0.s8 %v3697
        %v3699 = vlaneseq
        %v3700 = vshrl.u32 %v3699, 7
        %v3701 = vsub.s32 %v3698, %v3700
        %v3702 = vrot.slane %v3694, %v3701
        %v3704 = vunpack.c.l.s4 1934713408
        %v3705 = vunpack.c.0.s8 %v3704
        %v3706 = vlaneseq
        %v3707 = vshrl.u32 %v3706, 7
        %v3708 = vsub.s32 %v3705, %v3707
        %v3709 = vrot.slane %v3695, %v3708
        %v3710 = vcombine.low %v3654, %v3686
        %v3711 = vcombine.high %v3654, %v3686
        %v3712 = vcombine.low %v3661, %v3693
        %v3713 = vcombine.high %v3661, %v3693
        %v3714 = vcombine.low %v3670, %v3702
        %v3715 = vcombine.high %v3670, %v3702
        %v3716 = vcombine.low %v3677, %v3709
        %v3717 = vcombine.high %v3677, %v3709
        %v3718 = vcombine.low %v390, %v392
        %v3719 = vcombine.high %v390, %v392
        %v3721 = vunpack.c.l.s4 1983009808
        %v3722 = vunpack.c.0.s8 %v3721
        %v3723 = vlaneseq
        %v3724 = vshrl.u32 %v3723, 7
        %v3725 = vsub.s32 %v3722, %v3724
        %v3726 = vrot.slane %v3718, %v3725
        %v3728 = vunpack.c.l.s4 1983009808
        %v3729 = vunpack.c.0.s8 %v3728
        %v3730 = vlaneseq
        %v3731 = vshrl.u32 %v3730, 7
        %v3732 = vsub.s32 %v3729, %v3731
        %v3733 = vrot.slane %v3719, %v3732
        %v3734 = vcombine.low %v391, %v393
        %v3735 = vcombine.high %v391, %v393
        %v3737 = vunpack.c.l.s4 1983009808
        %v3738 = vunpack.c.0.s8 %v3737
        %v3739 = vlaneseq
        %v3740 = vshrl.u32 %v3739, 7
        %v3741 = vsub.s32 %v3738, %v3740
        %v3742 = vrot.slane %v3734, %v3741
        %v3744 = vunpack.c.l.s4 1983009808
        %v3745 = vunpack.c.0.s8 %v3744
        %v3746 = vlaneseq
        %v3747 = vshrl.u32 %v3746, 7
        %v3748 = vsub.s32 %v3745, %v3747
        %v3749 = vrot.slane %v3735, %v3748
        %v3750 = vcombine.low %v394, %v396
        %v3751 = vcombine.high %v394, %v396
        %v3753 = vunpack.c.l.s4 1983009808
        %v3754 = vunpack.c.0.s8 %v3753
        %v3755 = vlaneseq
        %v3756 = vshrl.u32 %v3755, 7
        %v3757 = vsub.s32 %v3754, %v3756
        %v3758 = vrot.slane %v3750, %v3757
        %v3760 = vunpack.c.l.s4 1983009808
        %v3761 = vunpack.c.0.s8 %v3760
        %v3762 = vlaneseq
        %v3763 = vshrl.u32 %v3762, 7
        %v3764 = vsub.s32 %v3761, %v3763
        %v3765 = vrot.slane %v3751, %v3764
        %v3766 = vcombine.low %v395, %v397
        %v3767 = vcombine.high %v395, %v397
        %v3769 = vunpack.c.l.s4 1983009808
        %v3770 = vunpack.c.0.s8 %v3769
        %v3771 = vlaneseq
        %v3772 = vshrl.u32 %v3771, 7
        %v3773 = vsub.s32 %v3770, %v3772
        %v3774 = vrot.slane %v3766, %v3773
        %v3776 = vunpack.c.l.s4 1983009808
        %v3777 = vunpack.c.0.s8 %v3776
        %v3778 = vlaneseq
        %v3779 = vshrl.u32 %v3778, 7
        %v3780 = vsub.s32 %v3777, %v3779
        %v3781 = vrot.slane %v3767, %v3780
        %v3782 = vcombine.low %v3726, %v3742
        %v3783 = vcombine.high %v3726, %v3742
        %v3785 = vunpack.c.l.s4 1934713408
        %v3786 = vunpack.c.0.s8 %v3785
        %v3787 = vlaneseq
        %v3788 = vshrl.u32 %v3787, 7
        %v3789 = vsub.s32 %v3786, %v3788
        %v3790 = vrot.slane %v3782, %v3789
        %v3792 = vunpack.c.l.s4 1934713408
        %v3793 = vunpack.c.0.s8 %v3792
        %v3794 = vlaneseq
        %v3795 = vshrl.u32 %v3794, 7
        %v3796 = vsub.s32 %v3793, %v3795
        %v3797 = vrot.slane %v3783, %v3796
        %v3798 = vcombine.low %v3733, %v3749
        %v3799 = vcombine.high %v3733, %v3749
        %v3801 = vunpack.c.l.s4 1934713408
        %v3802 = vunpack.c.0.s8 %v3801
        %v3803 = vlaneseq
        %v3804 = vshrl.u32 %v3803, 7
        %v3805 = vsub.s32 %v3802, %v3804
        %v3806 = vrot.slane %v3798, %v3805
        %v3808 = vunpack.c.l.s4 1934713408
        %v3809 = vunpack.c.0.s8 %v3808
        %v3810 = vlaneseq
        %v3811 = vshrl.u32 %v3810, 7
        %v3812 = vsub.s32 %v3809, %v3811
        %v3813 = vrot.slane %v3799, %v3812
        %v3814 = vcombine.low %v3758, %v3774
        %v3815 = vcombine.high %v3758, %v3774
        %v3817 = vunpack.c.l.s4 1934713408
        %v3818 = vunpack.c.0.s8 %v3817
        %v3819 = vlaneseq
        %v3820 = vshrl.u32 %v3819, 7
        %v3821 = vsub.s32 %v3818, %v3820
        %v3822 = vrot.slane %v3814, %v3821
        %v3824 = vunpack.c.l.s4 1934713408
        %v3825 = vunpack.c.0.s8 %v3824
        %v3826 = vlaneseq
        %v3827 = vshrl.u32 %v3826, 7
        %v3828 = vsub.s32 %v3825, %v3827
        %v3829 = vrot.slane %v3815, %v3828
        %v3830 = vcombine.low %v3765, %v3781
        %v3831 = vcombine.high %v3765, %v3781
        %v3833 = vunpack.c.l.s4 1934713408
        %v3834 = vunpack.c.0.s8 %v3833
        %v3835 = vlaneseq
        %v3836 = vshrl.u32 %v3835, 7
        %v3837 = vsub.s32 %v3834, %v3836
        %v3838 = vrot.slane %v3830, %v3837
        %v3840 = vunpack.c.l.s4 1934713408
        %v3841 = vunpack.c.0.s8 %v3840
        %v3842 = vlaneseq
        %v3843 = vshrl.u32 %v3842, 7
        %v3844 = vsub.s32 %v3841, %v3843
        %v3845 = vrot.slane %v3831, %v3844
        %v3846 = vcombine.low %v3790, %v3822
        %v3847 = vcombine.high %v3790, %v3822
        %v3848 = vcombine.low %v3797, %v3829
        %v3849 = vcombine.high %v3797, %v3829
        %v3850 = vcombine.low %v3806, %v3838
        %v3851 = vcombine.high %v3806, %v3838
        %v3852 = vcombine.low %v3813, %v3845
        %v3853 = vcombine.high %v3813, %v3845
        %v3854 = vcombine.low %v398, %v400
        %v3855 = vcombine.high %v398, %v400
        %v3857 = vunpack.c.l.s4 1983009808
        %v3858 = vunpack.c.0.s8 %v3857
        %v3859 = vlaneseq
        %v3860 = vshrl.u32 %v3859, 7
        %v3861 = vsub.s32 %v3858, %v3860
        %v3862 = vrot.slane %v3854, %v3861
        %v3864 = vunpack.c.l.s4 1983009808
        %v3865 = vunpack.c.0.s8 %v3864
        %v3866 = vlaneseq
        %v3867 = vshrl.u32 %v3866, 7
        %v3868 = vsub.s32 %v3865, %v3867
        %v3869 = vrot.slane %v3855, %v3868
        %v3870 = vcombine.low %v399, %v401
        %v3871 = vcombine.high %v399, %v401
        %v3873 = vunpack.c.l.s4 1983009808
        %v3874 = vunpack.c.0.s8 %v3873
        %v3875 = vlaneseq
        %v3876 = vshrl.u32 %v3875, 7
        %v3877 = vsub.s32 %v3874, %v3876
        %v3878 = vrot.slane %v3870, %v3877
        %v3880 = vunpack.c.l.s4 1983009808
        %v3881 = vunpack.c.0.s8 %v3880
        %v3882 = vlaneseq
        %v3883 = vshrl.u32 %v3882, 7
        %v3884 = vsub.s32 %v3881, %v3883
        %v3885 = vrot.slane %v3871, %v3884
        %v3886 = vcombine.low %v402, %v404
        %v3887 = vcombine.high %v402, %v404
        %v3889 = vunpack.c.l.s4 1983009808
        %v3890 = vunpack.c.0.s8 %v3889
        %v3891 = vlaneseq
        %v3892 = vshrl.u32 %v3891, 7
        %v3893 = vsub.s32 %v3890, %v3892
        %v3894 = vrot.slane %v3886, %v3893
        %v3896 = vunpack.c.l.s4 1983009808
        %v3897 = vunpack.c.0.s8 %v3896
        %v3898 = vlaneseq
        %v3899 = vshrl.u32 %v3898, 7
        %v3900 = vsub.s32 %v3897, %v3899
        %v3901 = vrot.slane %v3887, %v3900
        %v3902 = vcombine.low %v403, %v405
        %v3903 = vcombine.high %v403, %v405
        %v3905 = vunpack.c.l.s4 1983009808
        %v3906 = vunpack.c.0.s8 %v3905
        %v3907 = vlaneseq
        %v3908 = vshrl.u32 %v3907, 7
        %v3909 = vsub.s32 %v3906, %v3908
        %v3910 = vrot.slane %v3902, %v3909
        %v3912 = vunpack.c.l.s4 1983009808
        %v3913 = vunpack.c.0.s8 %v3912
        %v3914 = vlaneseq
        %v3915 = vshrl.u32 %v3914, 7
        %v3916 = vsub.s32 %v3913, %v3915
        %v3917 = vrot.slane %v3903, %v3916
        %v3918 = vcombine.low %v3862, %v3878
        %v3919 = vcombine.high %v3862, %v3878
        %v3921 = vunpack.c.l.s4 1934713408
        %v3922 = vunpack.c.0.s8 %v3921
        %v3923 = vlaneseq
        %v3924 = vshrl.u32 %v3923, 7
        %v3925 = vsub.s32 %v3922, %v3924
        %v3926 = vrot.slane %v3918, %v3925
        %v3928 = vunpack.c.l.s4 1934713408
        %v3929 = vunpack.c.0.s8 %v3928
        %v3930 = vlaneseq
        %v3931 = vshrl.u32 %v3930, 7
        %v3932 = vsub.s32 %v3929, %v3931
        %v3933 = vrot.slane %v3919, %v3932
        %v3934 = vcombine.low %v3869, %v3885
        %v3935 = vcombine.high %v3869, %v3885
        %v3937 = vunpack.c.l.s4 1934713408
        %v3938 = vunpack.c.0.s8 %v3937
        %v3939 = vlaneseq
        %v3940 = vshrl.u32 %v3939, 7
        %v3941 = vsub.s32 %v3938, %v3940
        %v3942 = vrot.slane %v3934, %v3941
        %v3944 = vunpack.c.l.s4 1934713408
        %v3945 = vunpack.c.0.s8 %v3944
        %v3946 = vlaneseq
        %v3947 = vshrl.u32 %v3946, 7
        %v3948 = vsub.s32 %v3945, %v3947
        %v3949 = vrot.slane %v3935, %v3948
        %v3950 = vcombine.low %v3894, %v3910
        %v3951 = vcombine.high %v3894, %v3910
        %v3953 = vunpack.c.l.s4 1934713408
        %v3954 = vunpack.c.0.s8 %v3953
        %v3955 = vlaneseq
        %v3956 = vshrl.u32 %v3955, 7
        %v3957 = vsub.s32 %v3954, %v3956
        %v3958 = vrot.slane %v3950, %v3957
        %v3960 = vunpack.c.l.s4 1934713408
        %v3961 = vunpack.c.0.s8 %v3960
        %v3962 = vlaneseq
        %v3963 = vshrl.u32 %v3962, 7
        %v3964 = vsub.s32 %v3961, %v3963
        %v3965 = vrot.slane %v3951, %v3964
        %v3966 = vcombine.low %v3901, %v3917
        %v3967 = vcombine.high %v3901, %v3917
        %v3969 = vunpack.c.l.s4 1934713408
        %v3970 = vunpack.c.0.s8 %v3969
        %v3971 = vlaneseq
        %v3972 = vshrl.u32 %v3971, 7
        %v3973 = vsub.s32 %v3970, %v3972
        %v3974 = vrot.slane %v3966, %v3973
        %v3976 = vunpack.c.l.s4 1934713408
        %v3977 = vunpack.c.0.s8 %v3976
        %v3978 = vlaneseq
        %v3979 = vshrl.u32 %v3978, 7
        %v3980 = vsub.s32 %v3977, %v3979
        %v3981 = vrot.slane %v3967, %v3980
        %v3982 = vcombine.low %v3926, %v3958
        %v3983 = vcombine.high %v3926, %v3958
        %v3984 = vcombine.low %v3933, %v3965
        %v3985 = vcombine.high %v3933, %v3965
        %v3986 = vcombine.low %v3942, %v3974
        %v3987 = vcombine.high %v3942, %v3974
        %v3988 = vcombine.low %v3949, %v3981
        %v3989 = vcombine.high %v3949, %v3981
        %v3990 = vcombine.low %v406, %v408
        %v3991 = vcombine.high %v406, %v408
        %v3993 = vunpack.c.l.s4 1983009808
        %v3994 = vunpack.c.0.s8 %v3993
        %v3995 = vlaneseq
        %v3996 = vshrl.u32 %v3995, 7
        %v3997 = vsub.s32 %v3994, %v3996
        %v3998 = vrot.slane %v3990, %v3997
        %v4000 = vunpack.c.l.s4 1983009808
        %v4001 = vunpack.c.0.s8 %v4000
        %v4002 = vlaneseq
        %v4003 = vshrl.u32 %v4002, 7
        %v4004 = vsub.s32 %v4001, %v4003
        %v4005 = vrot.slane %v3991, %v4004
        %v4006 = vcombine.low %v407, %v409
        %v4007 = vcombine.high %v407, %v409
        %v4009 = vunpack.c.l.s4 1983009808
        %v4010 = vunpack.c.0.s8 %v4009
        %v4011 = vlaneseq
        %v4012 = vshrl.u32 %v4011, 7
        %v4013 = vsub.s32 %v4010, %v4012
        %v4014 = vrot.slane %v4006, %v4013
        %v4016 = vunpack.c.l.s4 1983009808
        %v4017 = vunpack.c.0.s8 %v4016
        %v4018 = vlaneseq
        %v4019 = vshrl.u32 %v4018, 7
        %v4020 = vsub.s32 %v4017, %v4019
        %v4021 = vrot.slane %v4007, %v4020
        %v4022 = vcombine.low %v410, %v412
        %v4023 = vcombine.high %v410, %v412
        %v4025 = vunpack.c.l.s4 1983009808
        %v4026 = vunpack.c.0.s8 %v4025
        %v4027 = vlaneseq
        %v4028 = vshrl.u32 %v4027, 7
        %v4029 = vsub.s32 %v4026, %v4028
        %v4030 = vrot.slane %v4022, %v4029
        %v4032 = vunpack.c.l.s4 1983009808
        %v4033 = vunpack.c.0.s8 %v4032
        %v4034 = vlaneseq
        %v4035 = vshrl.u32 %v4034, 7
        %v4036 = vsub.s32 %v4033, %v4035
        %v4037 = vrot.slane %v4023, %v4036
        %v4038 = vcombine.low %v411, %v413
        %v4039 = vcombine.high %v411, %v413
        %v4041 = vunpack.c.l.s4 1983009808
        %v4042 = vunpack.c.0.s8 %v4041
        %v4043 = vlaneseq
        %v4044 = vshrl.u32 %v4043, 7
        %v4045 = vsub.s32 %v4042, %v4044
        %v4046 = vrot.slane %v4038, %v4045
        %v4048 = vunpack.c.l.s4 1983009808
        %v4049 = vunpack.c.0.s8 %v4048
        %v4050 = vlaneseq
        %v4051 = vshrl.u32 %v4050, 7
        %v4052 = vsub.s32 %v4049, %v4051
        %v4053 = vrot.slane %v4039, %v4052
        %v4054 = vcombine.low %v3998, %v4014
        %v4055 = vcombine.high %v3998, %v4014
        %v4057 = vunpack.c.l.s4 1934713408
        %v4058 = vunpack.c.0.s8 %v4057
        %v4059 = vlaneseq
        %v4060 = vshrl.u32 %v4059, 7
        %v4061 = vsub.s32 %v4058, %v4060
        %v4062 = vrot.slane %v4054, %v4061
        %v4064 = vunpack.c.l.s4 1934713408
        %v4065 = vunpack.c.0.s8 %v4064
        %v4066 = vlaneseq
        %v4067 = vshrl.u32 %v4066, 7
        %v4068 = vsub.s32 %v4065, %v4067
        %v4069 = vrot.slane %v4055, %v4068
        %v4070 = vcombine.low %v4005, %v4021
        %v4071 = vcombine.high %v4005, %v4021
        %v4073 = vunpack.c.l.s4 1934713408
        %v4074 = vunpack.c.0.s8 %v4073
        %v4075 = vlaneseq
        %v4076 = vshrl.u32 %v4075, 7
        %v4077 = vsub.s32 %v4074, %v4076
        %v4078 = vrot.slane %v4070, %v4077
        %v4080 = vunpack.c.l.s4 1934713408
        %v4081 = vunpack.c.0.s8 %v4080
        %v4082 = vlaneseq
        %v4083 = vshrl.u32 %v4082, 7
        %v4084 = vsub.s32 %v4081, %v4083
        %v4085 = vrot.slane %v4071, %v4084
        %v4086 = vcombine.low %v4030, %v4046
        %v4087 = vcombine.high %v4030, %v4046
        %v4089 = vunpack.c.l.s4 1934713408
        %v4090 = vunpack.c.0.s8 %v4089
        %v4091 = vlaneseq
        %v4092 = vshrl.u32 %v4091, 7
        %v4093 = vsub.s32 %v4090, %v4092
        %v4094 = vrot.slane %v4086, %v4093
        %v4096 = vunpack.c.l.s4 1934713408
        %v4097 = vunpack.c.0.s8 %v4096
        %v4098 = vlaneseq
        %v4099 = vshrl.u32 %v4098, 7
        %v4100 = vsub.s32 %v4097, %v4099
        %v4101 = vrot.slane %v4087, %v4100
        %v4102 = vcombine.low %v4037, %v4053
        %v4103 = vcombine.high %v4037, %v4053
        %v4105 = vunpack.c.l.s4 1934713408
        %v4106 = vunpack.c.0.s8 %v4105
        %v4107 = vlaneseq
        %v4108 = vshrl.u32 %v4107, 7
        %v4109 = vsub.s32 %v4106, %v4108
        %v4110 = vrot.slane %v4102, %v4109
        %v4112 = vunpack.c.l.s4 1934713408
        %v4113 = vunpack.c.0.s8 %v4112
        %v4114 = vlaneseq
        %v4115 = vshrl.u32 %v4114, 7
        %v4116 = vsub.s32 %v4113, %v4115
        %v4117 = vrot.slane %v4103, %v4116
        %v4118 = vcombine.low %v4062, %v4094
        %v4119 = vcombine.high %v4062, %v4094
        %v4120 = vcombine.low %v4069, %v4101
        %v4121 = vcombine.high %v4069, %v4101
        %v4122 = vcombine.low %v4078, %v4110
        %v4123 = vcombine.high %v4078, %v4110
        %v4124 = vcombine.low %v4085, %v4117
        %v4125 = vcombine.high %v4085, %v4117
        %v4126 = vcombine.low %v414, %v416
        %v4127 = vcombine.high %v414, %v416
        %v4129 = vunpack.c.l.s4 1983009808
        %v4130 = vunpack.c.0.s8 %v4129
        %v4131 = vlaneseq
        %v4132 = vshrl.u32 %v4131, 7
        %v4133 = vsub.s32 %v4130, %v4132
        %v4134 = vrot.slane %v4126, %v4133
        %v4136 = vunpack.c.l.s4 1983009808
        %v4137 = vunpack.c.0.s8 %v4136
        %v4138 = vlaneseq
        %v4139 = vshrl.u32 %v4138, 7
        %v4140 = vsub.s32 %v4137, %v4139
        %v4141 = vrot.slane %v4127, %v4140
        %v4142 = vcombine.low %v415, %v417
        %v4143 = vcombine.high %v415, %v417
        %v4145 = vunpack.c.l.s4 1983009808
        %v4146 = vunpack.c.0.s8 %v4145
        %v4147 = vlaneseq
        %v4148 = vshrl.u32 %v4147, 7
        %v4149 = vsub.s32 %v4146, %v4148
        %v4150 = vrot.slane %v4142, %v4149
        %v4152 = vunpack.c.l.s4 1983009808
        %v4153 = vunpack.c.0.s8 %v4152
        %v4154 = vlaneseq
        %v4155 = vshrl.u32 %v4154, 7
        %v4156 = vsub.s32 %v4153, %v4155
        %v4157 = vrot.slane %v4143, %v4156
        %v4158 = vcombine.low %v418, %v420
        %v4159 = vcombine.high %v418, %v420
        %v4161 = vunpack.c.l.s4 1983009808
        %v4162 = vunpack.c.0.s8 %v4161
        %v4163 = vlaneseq
        %v4164 = vshrl.u32 %v4163, 7
        %v4165 = vsub.s32 %v4162, %v4164
        %v4166 = vrot.slane %v4158, %v4165
        %v4168 = vunpack.c.l.s4 1983009808
        %v4169 = vunpack.c.0.s8 %v4168
        %v4170 = vlaneseq
        %v4171 = vshrl.u32 %v4170, 7
        %v4172 = vsub.s32 %v4169, %v4171
        %v4173 = vrot.slane %v4159, %v4172
        %v4174 = vcombine.low %v419, %v421
        %v4175 = vcombine.high %v419, %v421
        %v4177 = vunpack.c.l.s4 1983009808
        %v4178 = vunpack.c.0.s8 %v4177
        %v4179 = vlaneseq
        %v4180 = vshrl.u32 %v4179, 7
        %v4181 = vsub.s32 %v4178, %v4180
        %v4182 = vrot.slane %v4174, %v4181
        %v4184 = vunpack.c.l.s4 1983009808
        %v4185 = vunpack.c.0.s8 %v4184
        %v4186 = vlaneseq
        %v4187 = vshrl.u32 %v4186, 7
        %v4188 = vsub.s32 %v4185, %v4187
        %v4189 = vrot.slane %v4175, %v4188
        %v4190 = vcombine.low %v4134, %v4150
        %v4191 = vcombine.high %v4134, %v4150
        %v4193 = vunpack.c.l.s4 1934713408
        %v4194 = vunpack.c.0.s8 %v4193
        %v4195 = vlaneseq
        %v4196 = vshrl.u32 %v4195, 7
        %v4197 = vsub.s32 %v4194, %v4196
        %v4198 = vrot.slane %v4190, %v4197
        %v4200 = vunpack.c.l.s4 1934713408
        %v4201 = vunpack.c.0.s8 %v4200
        %v4202 = vlaneseq
        %v4203 = vshrl.u32 %v4202, 7
        %v4204 = vsub.s32 %v4201, %v4203
        %v4205 = vrot.slane %v4191, %v4204
        %v4206 = vcombine.low %v4141, %v4157
        %v4207 = vcombine.high %v4141, %v4157
        %v4209 = vunpack.c.l.s4 1934713408
        %v4210 = vunpack.c.0.s8 %v4209
        %v4211 = vlaneseq
        %v4212 = vshrl.u32 %v4211, 7
        %v4213 = vsub.s32 %v4210, %v4212
        %v4214 = vrot.slane %v4206, %v4213
        %v4216 = vunpack.c.l.s4 1934713408
        %v4217 = vunpack.c.0.s8 %v4216
        %v4218 = vlaneseq
        %v4219 = vshrl.u32 %v4218, 7
        %v4220 = vsub.s32 %v4217, %v4219
        %v4221 = vrot.slane %v4207, %v4220
        %v4222 = vcombine.low %v4166, %v4182
        %v4223 = vcombine.high %v4166, %v4182
        %v4225 = vunpack.c.l.s4 1934713408
        %v4226 = vunpack.c.0.s8 %v4225
        %v4227 = vlaneseq
        %v4228 = vshrl.u32 %v4227, 7
        %v4229 = vsub.s32 %v4226, %v4228
        %v4230 = vrot.slane %v4222, %v4229
        %v4232 = vunpack.c.l.s4 1934713408
        %v4233 = vunpack.c.0.s8 %v4232
        %v4234 = vlaneseq
        %v4235 = vshrl.u32 %v4234, 7
        %v4236 = vsub.s32 %v4233, %v4235
        %v4237 = vrot.slane %v4223, %v4236
        %v4238 = vcombine.low %v4173, %v4189
        %v4239 = vcombine.high %v4173, %v4189
        %v4241 = vunpack.c.l.s4 1934713408
        %v4242 = vunpack.c.0.s8 %v4241
        %v4243 = vlaneseq
        %v4244 = vshrl.u32 %v4243, 7
        %v4245 = vsub.s32 %v4242, %v4244
        %v4246 = vrot.slane %v4238, %v4245
        %v4248 = vunpack.c.l.s4 1934713408
        %v4249 = vunpack.c.0.s8 %v4248
        %v4250 = vlaneseq
        %v4251 = vshrl.u32 %v4250, 7
        %v4252 = vsub.s32 %v4249, %v4251
        %v4253 = vrot.slane %v4239, %v4252
        %v4254 = vcombine.low %v4198, %v4230
        %v4255 = vcombine.high %v4198, %v4230
        %v4256 = vcombine.low %v4205, %v4237
        %v4257 = vcombine.high %v4205, %v4237
        %v4258 = vcombine.low %v4214, %v4246
        %v4259 = vcombine.high %v4214, %v4246
        %v4260 = vcombine.low %v4221, %v4253
        %v4261 = vcombine.high %v4221, %v4253
        %v4262 = vcombine.low %v422, %v424
        %v4263 = vcombine.high %v422, %v424
        %v4265 = vunpack.c.l.s4 1983009808
        %v4266 = vunpack.c.0.s8 %v4265
        %v4267 = vlaneseq
        %v4268 = vshrl.u32 %v4267, 7
        %v4269 = vsub.s32 %v4266, %v4268
        %v4270 = vrot.slane %v4262, %v4269
        %v4272 = vunpack.c.l.s4 1983009808
        %v4273 = vunpack.c.0.s8 %v4272
        %v4274 = vlaneseq
        %v4275 = vshrl.u32 %v4274, 7
        %v4276 = vsub.s32 %v4273, %v4275
        %v4277 = vrot.slane %v4263, %v4276
        %v4278 = vcombine.low %v423, %v425
        %v4279 = vcombine.high %v423, %v425
        %v4281 = vunpack.c.l.s4 1983009808
        %v4282 = vunpack.c.0.s8 %v4281
        %v4283 = vlaneseq
        %v4284 = vshrl.u32 %v4283, 7
        %v4285 = vsub.s32 %v4282, %v4284
        %v4286 = vrot.slane %v4278, %v4285
        %v4288 = vunpack.c.l.s4 1983009808
        %v4289 = vunpack.c.0.s8 %v4288
        %v4290 = vlaneseq
        %v4291 = vshrl.u32 %v4290, 7
        %v4292 = vsub.s32 %v4289, %v4291
        %v4293 = vrot.slane %v4279, %v4292
        %v4294 = vcombine.low %v426, %v428
        %v4295 = vcombine.high %v426, %v428
        %v4297 = vunpack.c.l.s4 1983009808
        %v4298 = vunpack.c.0.s8 %v4297
        %v4299 = vlaneseq
        %v4300 = vshrl.u32 %v4299, 7
        %v4301 = vsub.s32 %v4298, %v4300
        %v4302 = vrot.slane %v4294, %v4301
        %v4304 = vunpack.c.l.s4 1983009808
        %v4305 = vunpack.c.0.s8 %v4304
        %v4306 = vlaneseq
        %v4307 = vshrl.u32 %v4306, 7
        %v4308 = vsub.s32 %v4305, %v4307
        %v4309 = vrot.slane %v4295, %v4308
        %v4310 = vcombine.low %v427, %v429
        %v4311 = vcombine.high %v427, %v429
        %v4313 = vunpack.c.l.s4 1983009808
        %v4314 = vunpack.c.0.s8 %v4313
        %v4315 = vlaneseq
        %v4316 = vshrl.u32 %v4315, 7
        %v4317 = vsub.s32 %v4314, %v4316
        %v4318 = vrot.slane %v4310, %v4317
        %v4320 = vunpack.c.l.s4 1983009808
        %v4321 = vunpack.c.0.s8 %v4320
        %v4322 = vlaneseq
        %v4323 = vshrl.u32 %v4322, 7
        %v4324 = vsub.s32 %v4321, %v4323
        %v4325 = vrot.slane %v4311, %v4324
        %v4326 = vcombine.low %v4270, %v4286
        %v4327 = vcombine.high %v4270, %v4286
        %v4329 = vunpack.c.l.s4 1934713408
        %v4330 = vunpack.c.0.s8 %v4329
        %v4331 = vlaneseq
        %v4332 = vshrl.u32 %v4331, 7
        %v4333 = vsub.s32 %v4330, %v4332
        %v4334 = vrot.slane %v4326, %v4333
        %v4336 = vunpack.c.l.s4 1934713408
        %v4337 = vunpack.c.0.s8 %v4336
        %v4338 = vlaneseq
        %v4339 = vshrl.u32 %v4338, 7
        %v4340 = vsub.s32 %v4337, %v4339
        %v4341 = vrot.slane %v4327, %v4340
        %v4342 = vcombine.low %v4277, %v4293
        %v4343 = vcombine.high %v4277, %v4293
        %v4345 = vunpack.c.l.s4 1934713408
        %v4346 = vunpack.c.0.s8 %v4345
        %v4347 = vlaneseq
        %v4348 = vshrl.u32 %v4347, 7
        %v4349 = vsub.s32 %v4346, %v4348
        %v4350 = vrot.slane %v4342, %v4349
        %v4352 = vunpack.c.l.s4 1934713408
        %v4353 = vunpack.c.0.s8 %v4352
        %v4354 = vlaneseq
        %v4355 = vshrl.u32 %v4354, 7
        %v4356 = vsub.s32 %v4353, %v4355
        %v4357 = vrot.slane %v4343, %v4356
        %v4358 = vcombine.low %v4302, %v4318
        %v4359 = vcombine.high %v4302, %v4318
        %v4361 = vunpack.c.l.s4 1934713408
        %v4362 = vunpack.c.0.s8 %v4361
        %v4363 = vlaneseq
        %v4364 = vshrl.u32 %v4363, 7
        %v4365 = vsub.s32 %v4362, %v4364
        %v4366 = vrot.slane %v4358, %v4365
        %v4368 = vunpack.c.l.s4 1934713408
        %v4369 = vunpack.c.0.s8 %v4368
        %v4370 = vlaneseq
        %v4371 = vshrl.u32 %v4370, 7
        %v4372 = vsub.s32 %v4369, %v4371
        %v4373 = vrot.slane %v4359, %v4372
        %v4374 = vcombine.low %v4309, %v4325
        %v4375 = vcombine.high %v4309, %v4325
        %v4377 = vunpack.c.l.s4 1934713408
        %v4378 = vunpack.c.0.s8 %v4377
        %v4379 = vlaneseq
        %v4380 = vshrl.u32 %v4379, 7
        %v4381 = vsub.s32 %v4378, %v4380
        %v4382 = vrot.slane %v4374, %v4381
        %v4384 = vunpack.c.l.s4 1934713408
        %v4385 = vunpack.c.0.s8 %v4384
        %v4386 = vlaneseq
        %v4387 = vshrl.u32 %v4386, 7
        %v4388 = vsub.s32 %v4385, %v4387
        %v4389 = vrot.slane %v4375, %v4388
        %v4390 = vcombine.low %v4334, %v4366
        %v4391 = vcombine.high %v4334, %v4366
        %v4392 = vcombine.low %v4341, %v4373
        %v4393 = vcombine.high %v4341, %v4373
        %v4394 = vcombine.low %v4350, %v4382
        %v4395 = vcombine.high %v4350, %v4382
        %v4396 = vcombine.low %v4357, %v4389
        %v4397 = vcombine.high %v4357, %v4389
        %v4398 = vcombine.low %v430, %v432
        %v4399 = vcombine.high %v430, %v432
        %v4401 = vunpack.c.l.s4 1983009808
        %v4402 = vunpack.c.0.s8 %v4401
        %v4403 = vlaneseq
        %v4404 = vshrl.u32 %v4403, 7
        %v4405 = vsub.s32 %v4402, %v4404
        %v4406 = vrot.slane %v4398, %v4405
        %v4408 = vunpack.c.l.s4 1983009808
        %v4409 = vunpack.c.0.s8 %v4408
        %v4410 = vlaneseq
        %v4411 = vshrl.u32 %v4410, 7
        %v4412 = vsub.s32 %v4409, %v4411
        %v4413 = vrot.slane %v4399, %v4412
        %v4414 = vcombine.low %v431, %v433
        %v4415 = vcombine.high %v431, %v433
        %v4417 = vunpack.c.l.s4 1983009808
        %v4418 = vunpack.c.0.s8 %v4417
        %v4419 = vlaneseq
        %v4420 = vshrl.u32 %v4419, 7
        %v4421 = vsub.s32 %v4418, %v4420
        %v4422 = vrot.slane %v4414, %v4421
        %v4424 = vunpack.c.l.s4 1983009808
        %v4425 = vunpack.c.0.s8 %v4424
        %v4426 = vlaneseq
        %v4427 = vshrl.u32 %v4426, 7
        %v4428 = vsub.s32 %v4425, %v4427
        %v4429 = vrot.slane %v4415, %v4428
        %v4430 = vcombine.low %v434, %v436
        %v4431 = vcombine.high %v434, %v436
        %v4433 = vunpack.c.l.s4 1983009808
        %v4434 = vunpack.c.0.s8 %v4433
        %v4435 = vlaneseq
        %v4436 = vshrl.u32 %v4435, 7
        %v4437 = vsub.s32 %v4434, %v4436
        %v4438 = vrot.slane %v4430, %v4437
        %v4440 = vunpack.c.l.s4 1983009808
        %v4441 = vunpack.c.0.s8 %v4440
        %v4442 = vlaneseq
        %v4443 = vshrl.u32 %v4442, 7
        %v4444 = vsub.s32 %v4441, %v4443
        %v4445 = vrot.slane %v4431, %v4444
        %v4446 = vcombine.low %v435, %v437
        %v4447 = vcombine.high %v435, %v437
        %v4449 = vunpack.c.l.s4 1983009808
        %v4450 = vunpack.c.0.s8 %v4449
        %v4451 = vlaneseq
        %v4452 = vshrl.u32 %v4451, 7
        %v4453 = vsub.s32 %v4450, %v4452
        %v4454 = vrot.slane %v4446, %v4453
        %v4456 = vunpack.c.l.s4 1983009808
        %v4457 = vunpack.c.0.s8 %v4456
        %v4458 = vlaneseq
        %v4459 = vshrl.u32 %v4458, 7
        %v4460 = vsub.s32 %v4457, %v4459
        %v4461 = vrot.slane %v4447, %v4460
        %v4462 = vcombine.low %v4406, %v4422
        %v4463 = vcombine.high %v4406, %v4422
        %v4465 = vunpack.c.l.s4 1934713408
        %v4466 = vunpack.c.0.s8 %v4465
        %v4467 = vlaneseq
        %v4468 = vshrl.u32 %v4467, 7
        %v4469 = vsub.s32 %v4466, %v4468
        %v4470 = vrot.slane %v4462, %v4469
        %v4472 = vunpack.c.l.s4 1934713408
        %v4473 = vunpack.c.0.s8 %v4472
        %v4474 = vlaneseq
        %v4475 = vshrl.u32 %v4474, 7
        %v4476 = vsub.s32 %v4473, %v4475
        %v4477 = vrot.slane %v4463, %v4476
        %v4478 = vcombine.low %v4413, %v4429
        %v4479 = vcombine.high %v4413, %v4429
        %v4481 = vunpack.c.l.s4 1934713408
        %v4482 = vunpack.c.0.s8 %v4481
        %v4483 = vlaneseq
        %v4484 = vshrl.u32 %v4483, 7
        %v4485 = vsub.s32 %v4482, %v4484
        %v4486 = vrot.slane %v4478, %v4485
        %v4488 = vunpack.c.l.s4 1934713408
        %v4489 = vunpack.c.0.s8 %v4488
        %v4490 = vlaneseq
        %v4491 = vshrl.u32 %v4490, 7
        %v4492 = vsub.s32 %v4489, %v4491
        %v4493 = vrot.slane %v4479, %v4492
        %v4494 = vcombine.low %v4438, %v4454
        %v4495 = vcombine.high %v4438, %v4454
        %v4497 = vunpack.c.l.s4 1934713408
        %v4498 = vunpack.c.0.s8 %v4497
        %v4499 = vlaneseq
        %v4500 = vshrl.u32 %v4499, 7
        %v4501 = vsub.s32 %v4498, %v4500
        %v4502 = vrot.slane %v4494, %v4501
        %v4504 = vunpack.c.l.s4 1934713408
        %v4505 = vunpack.c.0.s8 %v4504
        %v4506 = vlaneseq
        %v4507 = vshrl.u32 %v4506, 7
        %v4508 = vsub.s32 %v4505, %v4507
        %v4509 = vrot.slane %v4495, %v4508
        %v4510 = vcombine.low %v4445, %v4461
        %v4511 = vcombine.high %v4445, %v4461
        %v4513 = vunpack.c.l.s4 1934713408
        %v4514 = vunpack.c.0.s8 %v4513
        %v4515 = vlaneseq
        %v4516 = vshrl.u32 %v4515, 7
        %v4517 = vsub.s32 %v4514, %v4516
        %v4518 = vrot.slane %v4510, %v4517
        %v4520 = vunpack.c.l.s4 1934713408
        %v4521 = vunpack.c.0.s8 %v4520
        %v4522 = vlaneseq
        %v4523 = vshrl.u32 %v4522, 7
        %v4524 = vsub.s32 %v4521, %v4523
        %v4525 = vrot.slane %v4511, %v4524
        %v4526 = vcombine.low %v4470, %v4502
        %v4527 = vcombine.high %v4470, %v4502
        %v4528 = vcombine.low %v4477, %v4509
        %v4529 = vcombine.high %v4477, %v4509
        %v4530 = vcombine.low %v4486, %v4518
        %v4531 = vcombine.high %v4486, %v4518
        %v4532 = vcombine.low %v4493, %v4525
        %v4533 = vcombine.high %v4493, %v4525
        %v4534 = vcombine.low %v438, %v440
        %v4535 = vcombine.high %v438, %v440
        %v4537 = vunpack.c.l.s4 1983009808
        %v4538 = vunpack.c.0.s8 %v4537
        %v4539 = vlaneseq
        %v4540 = vshrl.u32 %v4539, 7
        %v4541 = vsub.s32 %v4538, %v4540
        %v4542 = vrot.slane %v4534, %v4541
        %v4544 = vunpack.c.l.s4 1983009808
        %v4545 = vunpack.c.0.s8 %v4544
        %v4546 = vlaneseq
        %v4547 = vshrl.u32 %v4546, 7
        %v4548 = vsub.s32 %v4545, %v4547
        %v4549 = vrot.slane %v4535, %v4548
        %v4550 = vcombine.low %v439, %v441
        %v4551 = vcombine.high %v439, %v441
        %v4553 = vunpack.c.l.s4 1983009808
        %v4554 = vunpack.c.0.s8 %v4553
        %v4555 = vlaneseq
        %v4556 = vshrl.u32 %v4555, 7
        %v4557 = vsub.s32 %v4554, %v4556
        %v4558 = vrot.slane %v4550, %v4557
        %v4560 = vunpack.c.l.s4 1983009808
        %v4561 = vunpack.c.0.s8 %v4560
        %v4562 = vlaneseq
        %v4563 = vshrl.u32 %v4562, 7
        %v4564 = vsub.s32 %v4561, %v4563
        %v4565 = vrot.slane %v4551, %v4564
        %v4566 = vcombine.low %v442, %v444
        %v4567 = vcombine.high %v442, %v444
        %v4569 = vunpack.c.l.s4 1983009808
        %v4570 = vunpack.c.0.s8 %v4569
        %v4571 = vlaneseq
        %v4572 = vshrl.u32 %v4571, 7
        %v4573 = vsub.s32 %v4570, %v4572
        %v4574 = vrot.slane %v4566, %v4573
        %v4576 = vunpack.c.l.s4 1983009808
        %v4577 = vunpack.c.0.s8 %v4576
        %v4578 = vlaneseq
        %v4579 = vshrl.u32 %v4578, 7
        %v4580 = vsub.s32 %v4577, %v4579
        %v4581 = vrot.slane %v4567, %v4580
        %v4582 = vcombine.low %v443, %v445
        %v4583 = vcombine.high %v443, %v445
        %v4585 = vunpack.c.l.s4 1983009808
        %v4586 = vunpack.c.0.s8 %v4585
        %v4587 = vlaneseq
        %v4588 = vshrl.u32 %v4587, 7
        %v4589 = vsub.s32 %v4586, %v4588
        %v4590 = vrot.slane %v4582, %v4589
        %v4592 = vunpack.c.l.s4 1983009808
        %v4593 = vunpack.c.0.s8 %v4592
        %v4594 = vlaneseq
        %v4595 = vshrl.u32 %v4594, 7
        %v4596 = vsub.s32 %v4593, %v4595
        %v4597 = vrot.slane %v4583, %v4596
        %v4598 = vcombine.low %v4542, %v4558
        %v4599 = vcombine.high %v4542, %v4558
        %v4601 = vunpack.c.l.s4 1934713408
        %v4602 = vunpack.c.0.s8 %v4601
        %v4603 = vlaneseq
        %v4604 = vshrl.u32 %v4603, 7
        %v4605 = vsub.s32 %v4602, %v4604
        %v4606 = vrot.slane %v4598, %v4605
        %v4608 = vunpack.c.l.s4 1934713408
        %v4609 = vunpack.c.0.s8 %v4608
        %v4610 = vlaneseq
        %v4611 = vshrl.u32 %v4610, 7
        %v4612 = vsub.s32 %v4609, %v4611
        %v4613 = vrot.slane %v4599, %v4612
        %v4614 = vcombine.low %v4549, %v4565
        %v4615 = vcombine.high %v4549, %v4565
        %v4617 = vunpack.c.l.s4 1934713408
        %v4618 = vunpack.c.0.s8 %v4617
        %v4619 = vlaneseq
        %v4620 = vshrl.u32 %v4619, 7
        %v4621 = vsub.s32 %v4618, %v4620
        %v4622 = vrot.slane %v4614, %v4621
        %v4624 = vunpack.c.l.s4 1934713408
        %v4625 = vunpack.c.0.s8 %v4624
        %v4626 = vlaneseq
        %v4627 = vshrl.u32 %v4626, 7
        %v4628 = vsub.s32 %v4625, %v4627
        %v4629 = vrot.slane %v4615, %v4628
        %v4630 = vcombine.low %v4574, %v4590
        %v4631 = vcombine.high %v4574, %v4590
        %v4633 = vunpack.c.l.s4 1934713408
        %v4634 = vunpack.c.0.s8 %v4633
        %v4635 = vlaneseq
        %v4636 = vshrl.u32 %v4635, 7
        %v4637 = vsub.s32 %v4634, %v4636
        %v4638 = vrot.slane %v4630, %v4637
        %v4640 = vunpack.c.l.s4 1934713408
        %v4641 = vunpack.c.0.s8 %v4640
        %v4642 = vlaneseq
        %v4643 = vshrl.u32 %v4642, 7
        %v4644 = vsub.s32 %v4641, %v4643
        %v4645 = vrot.slane %v4631, %v4644
        %v4646 = vcombine.low %v4581, %v4597
        %v4647 = vcombine.high %v4581, %v4597
        %v4649 = vunpack.c.l.s4 1934713408
        %v4650 = vunpack.c.0.s8 %v4649
        %v4651 = vlaneseq
        %v4652 = vshrl.u32 %v4651, 7
        %v4653 = vsub.s32 %v4650, %v4652
        %v4654 = vrot.slane %v4646, %v4653
        %v4656 = vunpack.c.l.s4 1934713408
        %v4657 = vunpack.c.0.s8 %v4656
        %v4658 = vlaneseq
        %v4659 = vshrl.u32 %v4658, 7
        %v4660 = vsub.s32 %v4657, %v4659
        %v4661 = vrot.slane %v4647, %v4660
        %v4662 = vcombine.low %v4606, %v4638
        %v4663 = vcombine.high %v4606, %v4638
        %v4664 = vcombine.low %v4613, %v4645
        %v4665 = vcombine.high %v4613, %v4645
        %v4666 = vcombine.low %v4622, %v4654
        %v4667 = vcombine.high %v4622, %v4654
        %v4668 = vcombine.low %v4629, %v4661
        %v4669 = vcombine.high %v4629, %v4661
        %v4670 = vcombine.low %v446, %v448
        %v4671 = vcombine.high %v446, %v448
        %v4673 = vunpack.c.l.s4 1983009808
        %v4674 = vunpack.c.0.s8 %v4673
        %v4675 = vlaneseq
        %v4676 = vshrl.u32 %v4675, 7
        %v4677 = vsub.s32 %v4674, %v4676
        %v4678 = vrot.slane %v4670, %v4677
        %v4680 = vunpack.c.l.s4 1983009808
        %v4681 = vunpack.c.0.s8 %v4680
        %v4682 = vlaneseq
        %v4683 = vshrl.u32 %v4682, 7
        %v4684 = vsub.s32 %v4681, %v4683
        %v4685 = vrot.slane %v4671, %v4684
        %v4686 = vcombine.low %v447, %v449
        %v4687 = vcombine.high %v447, %v449
        %v4689 = vunpack.c.l.s4 1983009808
        %v4690 = vunpack.c.0.s8 %v4689
        %v4691 = vlaneseq
        %v4692 = vshrl.u32 %v4691, 7
        %v4693 = vsub.s32 %v4690, %v4692
        %v4694 = vrot.slane %v4686, %v4693
        %v4696 = vunpack.c.l.s4 1983009808
        %v4697 = vunpack.c.0.s8 %v4696
        %v4698 = vlaneseq
        %v4699 = vshrl.u32 %v4698, 7
        %v4700 = vsub.s32 %v4697, %v4699
        %v4701 = vrot.slane %v4687, %v4700
        %v4702 = vcombine.low %v450, %v452
        %v4703 = vcombine.high %v450, %v452
        %v4705 = vunpack.c.l.s4 1983009808
        %v4706 = vunpack.c.0.s8 %v4705
        %v4707 = vlaneseq
        %v4708 = vshrl.u32 %v4707, 7
        %v4709 = vsub.s32 %v4706, %v4708
        %v4710 = vrot.slane %v4702, %v4709
        %v4712 = vunpack.c.l.s4 1983009808
        %v4713 = vunpack.c.0.s8 %v4712
        %v4714 = vlaneseq
        %v4715 = vshrl.u32 %v4714, 7
        %v4716 = vsub.s32 %v4713, %v4715
        %v4717 = vrot.slane %v4703, %v4716
        %v4718 = vcombine.low %v451, %v453
        %v4719 = vcombine.high %v451, %v453
        %v4721 = vunpack.c.l.s4 1983009808
        %v4722 = vunpack.c.0.s8 %v4721
        %v4723 = vlaneseq
        %v4724 = vshrl.u32 %v4723, 7
        %v4725 = vsub.s32 %v4722, %v4724
        %v4726 = vrot.slane %v4718, %v4725
        %v4728 = vunpack.c.l.s4 1983009808
        %v4729 = vunpack.c.0.s8 %v4728
        %v4730 = vlaneseq
        %v4731 = vshrl.u32 %v4730, 7
        %v4732 = vsub.s32 %v4729, %v4731
        %v4733 = vrot.slane %v4719, %v4732
        %v4734 = vcombine.low %v4678, %v4694
        %v4735 = vcombine.high %v4678, %v4694
        %v4737 = vunpack.c.l.s4 1934713408
        %v4738 = vunpack.c.0.s8 %v4737
        %v4739 = vlaneseq
        %v4740 = vshrl.u32 %v4739, 7
        %v4741 = vsub.s32 %v4738, %v4740
        %v4742 = vrot.slane %v4734, %v4741
        %v4744 = vunpack.c.l.s4 1934713408
        %v4745 = vunpack.c.0.s8 %v4744
        %v4746 = vlaneseq
        %v4747 = vshrl.u32 %v4746, 7
        %v4748 = vsub.s32 %v4745, %v4747
        %v4749 = vrot.slane %v4735, %v4748
        %v4750 = vcombine.low %v4685, %v4701
        %v4751 = vcombine.high %v4685, %v4701
        %v4753 = vunpack.c.l.s4 1934713408
        %v4754 = vunpack.c.0.s8 %v4753
        %v4755 = vlaneseq
        %v4756 = vshrl.u32 %v4755, 7
        %v4757 = vsub.s32 %v4754, %v4756
        %v4758 = vrot.slane %v4750, %v4757
        %v4760 = vunpack.c.l.s4 1934713408
        %v4761 = vunpack.c.0.s8 %v4760
        %v4762 = vlaneseq
        %v4763 = vshrl.u32 %v4762, 7
        %v4764 = vsub.s32 %v4761, %v4763
        %v4765 = vrot.slane %v4751, %v4764
        %v4766 = vcombine.low %v4710, %v4726
        %v4767 = vcombine.high %v4710, %v4726
        %v4769 = vunpack.c.l.s4 1934713408
        %v4770 = vunpack.c.0.s8 %v4769
        %v4771 = vlaneseq
        %v4772 = vshrl.u32 %v4771, 7
        %v4773 = vsub.s32 %v4770, %v4772
        %v4774 = vrot.slane %v4766, %v4773
        %v4776 = vunpack.c.l.s4 1934713408
        %v4777 = vunpack.c.0.s8 %v4776
        %v4778 = vlaneseq
        %v4779 = vshrl.u32 %v4778, 7
        %v4780 = vsub.s32 %v4777, %v4779
        %v4781 = vrot.slane %v4767, %v4780
        %v4782 = vcombine.low %v4717, %v4733
        %v4783 = vcombine.high %v4717, %v4733
        %v4785 = vunpack.c.l.s4 1934713408
        %v4786 = vunpack.c.0.s8 %v4785
        %v4787 = vlaneseq
        %v4788 = vshrl.u32 %v4787, 7
        %v4789 = vsub.s32 %v4786, %v4788
        %v4790 = vrot.slane %v4782, %v4789
        %v4792 = vunpack.c.l.s4 1934713408
        %v4793 = vunpack.c.0.s8 %v4792
        %v4794 = vlaneseq
        %v4795 = vshrl.u32 %v4794, 7
        %v4796 = vsub.s32 %v4793, %v4795
        %v4797 = vrot.slane %v4783, %v4796
        %v4798 = vcombine.low %v4742, %v4774
        %v4799 = vcombine.high %v4742, %v4774
        %v4800 = vcombine.low %v4749, %v4781
        %v4801 = vcombine.high %v4749, %v4781
        %v4802 = vcombine.low %v4758, %v4790
        %v4803 = vcombine.high %v4758, %v4790
        %v4804 = vcombine.low %v4765, %v4797
        %v4805 = vcombine.high %v4765, %v4797
        %v4806 = vld [vmem:[%s163] sm:$0xff]
        %v4807 = vlaneseq
        %v4808 = vshrl.u32 %v4807, 7
        %v4809 = vsub.s32 0, %v4808
        %v4810 = vrot.slane %v4806, %v4809
        %4812 = vbcast.lane.b32.xlu0 %v4810, 256
        %v4813 = vpop.permute.xlu0 %4812
        %s4815 = sor.u32 256, 8
        %4816 = vbcast.lane.b32.xlu0 %v4810, %s4815
        %v4817 = vpop.permute.xlu0 %4816
        %s4819 = sor.u32 256, 16
        %4820 = vbcast.lane.b32.xlu0 %v4810, %s4819
        %v4821 = vpop.permute.xlu0 %4820
        %s4823 = sor.u32 256, 24
        %4824 = vbcast.lane.b32.xlu0 %v4810, %s4823
        %v4825 = vpop.permute.xlu0 %4824
        %s4827 = sor.u32 256, 32
        %4828 = vbcast.lane.b32.xlu0 %v4810, %s4827
        %v4829 = vpop.permute.xlu0 %4828
        %s4831 = sor.u32 256, 40
        %4832 = vbcast.lane.b32.xlu0 %v4810, %s4831
        %v4833 = vpop.permute.xlu0 %4832
        %s4835 = sor.u32 256, 48
        %4836 = vbcast.lane.b32.xlu0 %v4810, %s4835
        %v4837 = vpop.permute.xlu0 %4836
        %s4839 = sor.u32 256, 56
        %4840 = vbcast.lane.b32.xlu0 %v4810, %s4839
        %v4841 = vpop.permute.xlu0 %4840
        %s4843 = sor.u32 256, 64
        %4844 = vbcast.lane.b32.xlu0 %v4810, %s4843
        %v4845 = vpop.permute.xlu0 %4844
        %s4847 = sor.u32 256, 72
        %4848 = vbcast.lane.b32.xlu0 %v4810, %s4847
        %v4849 = vpop.permute.xlu0 %4848
        %s4851 = sor.u32 256, 80
        %4852 = vbcast.lane.b32.xlu0 %v4810, %s4851
        %v4853 = vpop.permute.xlu0 %4852
        %s4855 = sor.u32 256, 88
        %4856 = vbcast.lane.b32.xlu0 %v4810, %s4855
        %v4857 = vpop.permute.xlu0 %4856
        %s4859 = sor.u32 256, 96
        %4860 = vbcast.lane.b32.xlu0 %v4810, %s4859
        %v4861 = vpop.permute.xlu0 %4860
        %s4863 = sor.u32 256, 104
        %4864 = vbcast.lane.b32.xlu0 %v4810, %s4863
        %v4865 = vpop.permute.xlu0 %4864
        %s4867 = sor.u32 256, 112
        %4868 = vbcast.lane.b32.xlu0 %v4810, %s4867
        %v4869 = vpop.permute.xlu0 %4868
        %s4871 = sor.u32 256, 120
        %4872 = vbcast.lane.b32.xlu0 %v4810, %s4871
        %v4873 = vpop.permute.xlu0 %4872
        %v4874 = vlaneseq
        %v4875 = vshrl.u32 %v4874, 7
        %v4876 = vsub.s32 1, %v4875
        %v4877 = vrot.slane %v4806, %v4876
        %4879 = vbcast.lane.b32.xlu0 %v4877, 256
        %v4880 = vpop.permute.xlu0 %4879
        %s4882 = sor.u32 256, 8
        %4883 = vbcast.lane.b32.xlu0 %v4877, %s4882
        %v4884 = vpop.permute.xlu0 %4883
        %s4886 = sor.u32 256, 16
        %4887 = vbcast.lane.b32.xlu0 %v4877, %s4886
        %v4888 = vpop.permute.xlu0 %4887
        %s4890 = sor.u32 256, 24
        %4891 = vbcast.lane.b32.xlu0 %v4877, %s4890
        %v4892 = vpop.permute.xlu0 %4891
        %s4894 = sor.u32 256, 32
        %4895 = vbcast.lane.b32.xlu0 %v4877, %s4894
        %v4896 = vpop.permute.xlu0 %4895
        %s4898 = sor.u32 256, 40
        %4899 = vbcast.lane.b32.xlu0 %v4877, %s4898
        %v4900 = vpop.permute.xlu0 %4899
        %s4902 = sor.u32 256, 48
        %4903 = vbcast.lane.b32.xlu0 %v4877, %s4902
        %v4904 = vpop.permute.xlu0 %4903
        %s4906 = sor.u32 256, 56
        %4907 = vbcast.lane.b32.xlu0 %v4877, %s4906
        %v4908 = vpop.permute.xlu0 %4907
        %s4910 = sor.u32 256, 64
        %4911 = vbcast.lane.b32.xlu0 %v4877, %s4910
        %v4912 = vpop.permute.xlu0 %4911
        %s4914 = sor.u32 256, 72
        %4915 = vbcast.lane.b32.xlu0 %v4877, %s4914
        %v4916 = vpop.permute.xlu0 %4915
        %s4918 = sor.u32 256, 80
        %4919 = vbcast.lane.b32.xlu0 %v4877, %s4918
        %v4920 = vpop.permute.xlu0 %4919
        %s4922 = sor.u32 256, 88
        %4923 = vbcast.lane.b32.xlu0 %v4877, %s4922
        %v4924 = vpop.permute.xlu0 %4923
        %s4926 = sor.u32 256, 96
        %4927 = vbcast.lane.b32.xlu0 %v4877, %s4926
        %v4928 = vpop.permute.xlu0 %4927
        %s4930 = sor.u32 256, 104
        %4931 = vbcast.lane.b32.xlu0 %v4877, %s4930
        %v4932 = vpop.permute.xlu0 %4931
        %s4934 = sor.u32 256, 112
        %4935 = vbcast.lane.b32.xlu0 %v4877, %s4934
        %v4936 = vpop.permute.xlu0 %4935
        %s4938 = sor.u32 256, 120
        %4939 = vbcast.lane.b32.xlu0 %v4877, %s4938
        %v4940 = vpop.permute.xlu0 %4939
        %v4941 = vlaneseq
        %v4942 = vshrl.u32 %v4941, 7
        %v4943 = vsub.s32 2, %v4942
        %v4944 = vrot.slane %v4806, %v4943
        %4946 = vbcast.lane.b32.xlu0 %v4944, 256
        %v4947 = vpop.permute.xlu0 %4946
        %s4949 = sor.u32 256, 8
        %4950 = vbcast.lane.b32.xlu0 %v4944, %s4949
        %v4951 = vpop.permute.xlu0 %4950
        %s4953 = sor.u32 256, 16
        %4954 = vbcast.lane.b32.xlu0 %v4944, %s4953
        %v4955 = vpop.permute.xlu0 %4954
        %s4957 = sor.u32 256, 24
        %4958 = vbcast.lane.b32.xlu0 %v4944, %s4957
        %v4959 = vpop.permute.xlu0 %4958
        %s4961 = sor.u32 256, 32
        %4962 = vbcast.lane.b32.xlu0 %v4944, %s4961
        %v4963 = vpop.permute.xlu0 %4962
        %s4965 = sor.u32 256, 40
        %4966 = vbcast.lane.b32.xlu0 %v4944, %s4965
        %v4967 = vpop.permute.xlu0 %4966
        %s4969 = sor.u32 256, 48
        %4970 = vbcast.lane.b32.xlu0 %v4944, %s4969
        %v4971 = vpop.permute.xlu0 %4970
        %s4973 = sor.u32 256, 56
        %4974 = vbcast.lane.b32.xlu0 %v4944, %s4973
        %v4975 = vpop.permute.xlu0 %4974
        %s4977 = sor.u32 256, 64
        %4978 = vbcast.lane.b32.xlu0 %v4944, %s4977
        %v4979 = vpop.permute.xlu0 %4978
        %s4981 = sor.u32 256, 72
        %4982 = vbcast.lane.b32.xlu0 %v4944, %s4981
        %v4983 = vpop.permute.xlu0 %4982
        %s4985 = sor.u32 256, 80
        %4986 = vbcast.lane.b32.xlu0 %v4944, %s4985
        %v4987 = vpop.permute.xlu0 %4986
        %s4989 = sor.u32 256, 88
        %4990 = vbcast.lane.b32.xlu0 %v4944, %s4989
        %v4991 = vpop.permute.xlu0 %4990
        %s4993 = sor.u32 256, 96
        %4994 = vbcast.lane.b32.xlu0 %v4944, %s4993
        %v4995 = vpop.permute.xlu0 %4994
        %s4997 = sor.u32 256, 104
        %4998 = vbcast.lane.b32.xlu0 %v4944, %s4997
        %v4999 = vpop.permute.xlu0 %4998
        %s5001 = sor.u32 256, 112
        %5002 = vbcast.lane.b32.xlu0 %v4944, %s5001
        %v5003 = vpop.permute.xlu0 %5002
        %s5005 = sor.u32 256, 120
        %5006 = vbcast.lane.b32.xlu0 %v4944, %s5005
        %v5007 = vpop.permute.xlu0 %5006
        %v5008 = vlaneseq
        %v5009 = vshrl.u32 %v5008, 7
        %v5010 = vsub.s32 3, %v5009
        %v5011 = vrot.slane %v4806, %v5010
        %5013 = vbcast.lane.b32.xlu0 %v5011, 256
        %v5014 = vpop.permute.xlu0 %5013
        %s5016 = sor.u32 256, 8
        %5017 = vbcast.lane.b32.xlu0 %v5011, %s5016
        %v5018 = vpop.permute.xlu0 %5017
        %s5020 = sor.u32 256, 16
        %5021 = vbcast.lane.b32.xlu0 %v5011, %s5020
        %v5022 = vpop.permute.xlu0 %5021
        %s5024 = sor.u32 256, 24
        %5025 = vbcast.lane.b32.xlu0 %v5011, %s5024
        %v5026 = vpop.permute.xlu0 %5025
        %s5028 = sor.u32 256, 32
        %5029 = vbcast.lane.b32.xlu0 %v5011, %s5028
        %v5030 = vpop.permute.xlu0 %5029
        %s5032 = sor.u32 256, 40
        %5033 = vbcast.lane.b32.xlu0 %v5011, %s5032
        %v5034 = vpop.permute.xlu0 %5033
        %s5036 = sor.u32 256, 48
        %5037 = vbcast.lane.b32.xlu0 %v5011, %s5036
        %v5038 = vpop.permute.xlu0 %5037
        %s5040 = sor.u32 256, 56
        %5041 = vbcast.lane.b32.xlu0 %v5011, %s5040
        %v5042 = vpop.permute.xlu0 %5041
        %s5044 = sor.u32 256, 64
        %5045 = vbcast.lane.b32.xlu0 %v5011, %s5044
        %v5046 = vpop.permute.xlu0 %5045
        %s5048 = sor.u32 256, 72
        %5049 = vbcast.lane.b32.xlu0 %v5011, %s5048
        %v5050 = vpop.permute.xlu0 %5049
        %s5052 = sor.u32 256, 80
        %5053 = vbcast.lane.b32.xlu0 %v5011, %s5052
        %v5054 = vpop.permute.xlu0 %5053
        %s5056 = sor.u32 256, 88
        %5057 = vbcast.lane.b32.xlu0 %v5011, %s5056
        %v5058 = vpop.permute.xlu0 %5057
        %s5060 = sor.u32 256, 96
        %5061 = vbcast.lane.b32.xlu0 %v5011, %s5060
        %v5062 = vpop.permute.xlu0 %5061
        %s5064 = sor.u32 256, 104
        %5065 = vbcast.lane.b32.xlu0 %v5011, %s5064
        %v5066 = vpop.permute.xlu0 %5065
        %s5068 = sor.u32 256, 112
        %5069 = vbcast.lane.b32.xlu0 %v5011, %s5068
        %v5070 = vpop.permute.xlu0 %5069
        %s5072 = sor.u32 256, 120
        %5073 = vbcast.lane.b32.xlu0 %v5011, %s5072
        %v5074 = vpop.permute.xlu0 %5073
        %v5075 = vlaneseq
        %v5076 = vshrl.u32 %v5075, 7
        %v5077 = vsub.s32 4, %v5076
        %v5078 = vrot.slane %v4806, %v5077
        %5080 = vbcast.lane.b32.xlu0 %v5078, 256
        %v5081 = vpop.permute.xlu0 %5080
        %s5083 = sor.u32 256, 8
        %5084 = vbcast.lane.b32.xlu0 %v5078, %s5083
        %v5085 = vpop.permute.xlu0 %5084
        %s5087 = sor.u32 256, 16
        %5088 = vbcast.lane.b32.xlu0 %v5078, %s5087
        %v5089 = vpop.permute.xlu0 %5088
        %s5091 = sor.u32 256, 24
        %5092 = vbcast.lane.b32.xlu0 %v5078, %s5091
        %v5093 = vpop.permute.xlu0 %5092
        %s5095 = sor.u32 256, 32
        %5096 = vbcast.lane.b32.xlu0 %v5078, %s5095
        %v5097 = vpop.permute.xlu0 %5096
        %s5099 = sor.u32 256, 40
        %5100 = vbcast.lane.b32.xlu0 %v5078, %s5099
        %v5101 = vpop.permute.xlu0 %5100
        %s5103 = sor.u32 256, 48
        %5104 = vbcast.lane.b32.xlu0 %v5078, %s5103
        %v5105 = vpop.permute.xlu0 %5104
        %s5107 = sor.u32 256, 56
        %5108 = vbcast.lane.b32.xlu0 %v5078, %s5107
        %v5109 = vpop.permute.xlu0 %5108
        %s5111 = sor.u32 256, 64
        %5112 = vbcast.lane.b32.xlu0 %v5078, %s5111
        %v5113 = vpop.permute.xlu0 %5112
        %s5115 = sor.u32 256, 72
        %5116 = vbcast.lane.b32.xlu0 %v5078, %s5115
        %v5117 = vpop.permute.xlu0 %5116
        %s5119 = sor.u32 256, 80
        %5120 = vbcast.lane.b32.xlu0 %v5078, %s5119
        %v5121 = vpop.permute.xlu0 %5120
        %s5123 = sor.u32 256, 88
        %5124 = vbcast.lane.b32.xlu0 %v5078, %s5123
        %v5125 = vpop.permute.xlu0 %5124
        %s5127 = sor.u32 256, 96
        %5128 = vbcast.lane.b32.xlu0 %v5078, %s5127
        %v5129 = vpop.permute.xlu0 %5128
        %s5131 = sor.u32 256, 104
        %5132 = vbcast.lane.b32.xlu0 %v5078, %s5131
        %v5133 = vpop.permute.xlu0 %5132
        %s5135 = sor.u32 256, 112
        %5136 = vbcast.lane.b32.xlu0 %v5078, %s5135
        %v5137 = vpop.permute.xlu0 %5136
        %s5139 = sor.u32 256, 120
        %5140 = vbcast.lane.b32.xlu0 %v5078, %s5139
        %v5141 = vpop.permute.xlu0 %5140
        %v5142 = vlaneseq
        %v5143 = vshrl.u32 %v5142, 7
        %v5144 = vsub.s32 5, %v5143
        %v5145 = vrot.slane %v4806, %v5144
        %5147 = vbcast.lane.b32.xlu0 %v5145, 256
        %v5148 = vpop.permute.xlu0 %5147
        %s5150 = sor.u32 256, 8
        %5151 = vbcast.lane.b32.xlu0 %v5145, %s5150
        %v5152 = vpop.permute.xlu0 %5151
        %s5154 = sor.u32 256, 16
        %5155 = vbcast.lane.b32.xlu0 %v5145, %s5154
        %v5156 = vpop.permute.xlu0 %5155
        %s5158 = sor.u32 256, 24
        %5159 = vbcast.lane.b32.xlu0 %v5145, %s5158
        %v5160 = vpop.permute.xlu0 %5159
        %s5162 = sor.u32 256, 32
        %5163 = vbcast.lane.b32.xlu0 %v5145, %s5162
        %v5164 = vpop.permute.xlu0 %5163
        %s5166 = sor.u32 256, 40
        %5167 = vbcast.lane.b32.xlu0 %v5145, %s5166
        %v5168 = vpop.permute.xlu0 %5167
        %s5170 = sor.u32 256, 48
        %5171 = vbcast.lane.b32.xlu0 %v5145, %s5170
        %v5172 = vpop.permute.xlu0 %5171
        %s5174 = sor.u32 256, 56
        %5175 = vbcast.lane.b32.xlu0 %v5145, %s5174
        %v5176 = vpop.permute.xlu0 %5175
        %s5178 = sor.u32 256, 64
        %5179 = vbcast.lane.b32.xlu0 %v5145, %s5178
        %v5180 = vpop.permute.xlu0 %5179
        %s5182 = sor.u32 256, 72
        %5183 = vbcast.lane.b32.xlu0 %v5145, %s5182
        %v5184 = vpop.permute.xlu0 %5183
        %s5186 = sor.u32 256, 80
        %5187 = vbcast.lane.b32.xlu0 %v5145, %s5186
        %v5188 = vpop.permute.xlu0 %5187
        %s5190 = sor.u32 256, 88
        %5191 = vbcast.lane.b32.xlu0 %v5145, %s5190
        %v5192 = vpop.permute.xlu0 %5191
        %s5194 = sor.u32 256, 96
        %5195 = vbcast.lane.b32.xlu0 %v5145, %s5194
        %v5196 = vpop.permute.xlu0 %5195
        %s5198 = sor.u32 256, 104
        %5199 = vbcast.lane.b32.xlu0 %v5145, %s5198
        %v5200 = vpop.permute.xlu0 %5199
        %s5202 = sor.u32 256, 112
        %5203 = vbcast.lane.b32.xlu0 %v5145, %s5202
        %v5204 = vpop.permute.xlu0 %5203
        %s5206 = sor.u32 256, 120
        %5207 = vbcast.lane.b32.xlu0 %v5145, %s5206
        %v5208 = vpop.permute.xlu0 %5207
        %v5209 = vlaneseq
        %v5210 = vshrl.u32 %v5209, 7
        %v5211 = vsub.s32 6, %v5210
        %v5212 = vrot.slane %v4806, %v5211
        %5214 = vbcast.lane.b32.xlu0 %v5212, 256
        %v5215 = vpop.permute.xlu0 %5214
        %s5217 = sor.u32 256, 8
        %5218 = vbcast.lane.b32.xlu0 %v5212, %s5217
        %v5219 = vpop.permute.xlu0 %5218
        %s5221 = sor.u32 256, 16
        %5222 = vbcast.lane.b32.xlu0 %v5212, %s5221
        %v5223 = vpop.permute.xlu0 %5222
        %s5225 = sor.u32 256, 24
        %5226 = vbcast.lane.b32.xlu0 %v5212, %s5225
        %v5227 = vpop.permute.xlu0 %5226
        %s5229 = sor.u32 256, 32
        %5230 = vbcast.lane.b32.xlu0 %v5212, %s5229
        %v5231 = vpop.permute.xlu0 %5230
        %s5233 = sor.u32 256, 40
        %5234 = vbcast.lane.b32.xlu0 %v5212, %s5233
        %v5235 = vpop.permute.xlu0 %5234
        %s5237 = sor.u32 256, 48
        %5238 = vbcast.lane.b32.xlu0 %v5212, %s5237
        %v5239 = vpop.permute.xlu0 %5238
        %s5241 = sor.u32 256, 56
        %5242 = vbcast.lane.b32.xlu0 %v5212, %s5241
        %v5243 = vpop.permute.xlu0 %5242
        %s5245 = sor.u32 256, 64
        %5246 = vbcast.lane.b32.xlu0 %v5212, %s5245
        %v5247 = vpop.permute.xlu0 %5246
        %s5249 = sor.u32 256, 72
        %5250 = vbcast.lane.b32.xlu0 %v5212, %s5249
        %v5251 = vpop.permute.xlu0 %5250
        %s5253 = sor.u32 256, 80
        %5254 = vbcast.lane.b32.xlu0 %v5212, %s5253
        %v5255 = vpop.permute.xlu0 %5254
        %s5257 = sor.u32 256, 88
        %5258 = vbcast.lane.b32.xlu0 %v5212, %s5257
        %v5259 = vpop.permute.xlu0 %5258
        %s5261 = sor.u32 256, 96
        %5262 = vbcast.lane.b32.xlu0 %v5212, %s5261
        %v5263 = vpop.permute.xlu0 %5262
        %s5265 = sor.u32 256, 104
        %5266 = vbcast.lane.b32.xlu0 %v5212, %s5265
        %v5267 = vpop.permute.xlu0 %5266
        %s5269 = sor.u32 256, 112
        %5270 = vbcast.lane.b32.xlu0 %v5212, %s5269
        %v5271 = vpop.permute.xlu0 %5270
        %s5273 = sor.u32 256, 120
        %5274 = vbcast.lane.b32.xlu0 %v5212, %s5273
        %v5275 = vpop.permute.xlu0 %5274
        %v5276 = vlaneseq
        %v5277 = vshrl.u32 %v5276, 7
        %v5278 = vsub.s32 7, %v5277
        %v5279 = vrot.slane %v4806, %v5278
        %5281 = vbcast.lane.b32.xlu0 %v5279, 256
        %v5282 = vpop.permute.xlu0 %5281
        %s5284 = sor.u32 256, 8
        %5285 = vbcast.lane.b32.xlu0 %v5279, %s5284
        %v5286 = vpop.permute.xlu0 %5285
        %s5288 = sor.u32 256, 16
        %5289 = vbcast.lane.b32.xlu0 %v5279, %s5288
        %v5290 = vpop.permute.xlu0 %5289
        %s5292 = sor.u32 256, 24
        %5293 = vbcast.lane.b32.xlu0 %v5279, %s5292
        %v5294 = vpop.permute.xlu0 %5293
        %s5296 = sor.u32 256, 32
        %5297 = vbcast.lane.b32.xlu0 %v5279, %s5296
        %v5298 = vpop.permute.xlu0 %5297
        %s5300 = sor.u32 256, 40
        %5301 = vbcast.lane.b32.xlu0 %v5279, %s5300
        %v5302 = vpop.permute.xlu0 %5301
        %s5304 = sor.u32 256, 48
        %5305 = vbcast.lane.b32.xlu0 %v5279, %s5304
        %v5306 = vpop.permute.xlu0 %5305
        %s5308 = sor.u32 256, 56
        %5309 = vbcast.lane.b32.xlu0 %v5279, %s5308
        %v5310 = vpop.permute.xlu0 %5309
        %s5312 = sor.u32 256, 64
        %5313 = vbcast.lane.b32.xlu0 %v5279, %s5312
        %v5314 = vpop.permute.xlu0 %5313
        %s5316 = sor.u32 256, 72
        %5317 = vbcast.lane.b32.xlu0 %v5279, %s5316
        %v5318 = vpop.permute.xlu0 %5317
        %s5320 = sor.u32 256, 80
        %5321 = vbcast.lane.b32.xlu0 %v5279, %s5320
        %v5322 = vpop.permute.xlu0 %5321
        %s5324 = sor.u32 256, 88
        %5325 = vbcast.lane.b32.xlu0 %v5279, %s5324
        %v5326 = vpop.permute.xlu0 %5325
        %s5328 = sor.u32 256, 96
        %5329 = vbcast.lane.b32.xlu0 %v5279, %s5328
        %v5330 = vpop.permute.xlu0 %5329
        %s5332 = sor.u32 256, 104
        %5333 = vbcast.lane.b32.xlu0 %v5279, %s5332
        %v5334 = vpop.permute.xlu0 %5333
        %s5336 = sor.u32 256, 112
        %5337 = vbcast.lane.b32.xlu0 %v5279, %s5336
        %v5338 = vpop.permute.xlu0 %5337
        %s5340 = sor.u32 256, 120
        %5341 = vbcast.lane.b32.xlu0 %v5279, %s5340
        %v5342 = vpop.permute.xlu0 %5341
        %v5343 = vlaneseq
        %v5344 = vand.u32 %v5343, 127
        %v5345 = vadd.s32 %v5344, 128
        %vm5346 = vcmp.eq.s32.totalorder %v5344, %v4813
        %vm5347 = vcmp.eq.s32.totalorder %v5345, %v4813
        %vm5348 = vcmp.eq.s32.totalorder %v5344, %v4817
        %vm5349 = vcmp.eq.s32.totalorder %v5345, %v4817
        %vm5350 = vcmp.eq.s32.totalorder %v5344, %v4821
        %vm5351 = vcmp.eq.s32.totalorder %v5345, %v4821
        %vm5352 = vcmp.eq.s32.totalorder %v5344, %v4825
        %vm5353 = vcmp.eq.s32.totalorder %v5345, %v4825
        %vm5354 = vcmp.eq.s32.totalorder %v5344, %v4829
        %vm5355 = vcmp.eq.s32.totalorder %v5345, %v4829
        %vm5356 = vcmp.eq.s32.totalorder %v5344, %v4833
        %vm5357 = vcmp.eq.s32.totalorder %v5345, %v4833
        %vm5358 = vcmp.eq.s32.totalorder %v5344, %v4837
        %vm5359 = vcmp.eq.s32.totalorder %v5345, %v4837
        %vm5360 = vcmp.eq.s32.totalorder %v5344, %v4841
        %vm5361 = vcmp.eq.s32.totalorder %v5345, %v4841
        %vm5362 = vcmp.eq.s32.totalorder %v5344, %v4845
        %vm5363 = vcmp.eq.s32.totalorder %v5345, %v4845
        %vm5364 = vcmp.eq.s32.totalorder %v5344, %v4849
        %vm5365 = vcmp.eq.s32.totalorder %v5345, %v4849
        %vm5366 = vcmp.eq.s32.totalorder %v5344, %v4853
        %vm5367 = vcmp.eq.s32.totalorder %v5345, %v4853
        %vm5368 = vcmp.eq.s32.totalorder %v5344, %v4857
        %vm5369 = vcmp.eq.s32.totalorder %v5345, %v4857
        %vm5370 = vcmp.eq.s32.totalorder %v5344, %v4861
        %vm5371 = vcmp.eq.s32.totalorder %v5345, %v4861
        %vm5372 = vcmp.eq.s32.totalorder %v5344, %v4865
        %vm5373 = vcmp.eq.s32.totalorder %v5345, %v4865
        %vm5374 = vcmp.eq.s32.totalorder %v5344, %v4869
        %vm5375 = vcmp.eq.s32.totalorder %v5345, %v4869
        %vm5376 = vcmp.eq.s32.totalorder %v5344, %v4873
        %vm5377 = vcmp.eq.s32.totalorder %v5345, %v4873
        %vm5378 = vcmp.eq.s32.totalorder %v5344, %v4880
        %vm5379 = vcmp.eq.s32.totalorder %v5345, %v4880
        %vm5380 = vcmp.eq.s32.totalorder %v5344, %v4884
        %vm5381 = vcmp.eq.s32.totalorder %v5345, %v4884
        %vm5382 = vcmp.eq.s32.totalorder %v5344, %v4888
        %vm5383 = vcmp.eq.s32.totalorder %v5345, %v4888
        %vm5384 = vcmp.eq.s32.totalorder %v5344, %v4892
        %vm5385 = vcmp.eq.s32.totalorder %v5345, %v4892
        %vm5386 = vcmp.eq.s32.totalorder %v5344, %v4896
        %vm5387 = vcmp.eq.s32.totalorder %v5345, %v4896
        %vm5388 = vcmp.eq.s32.totalorder %v5344, %v4900
        %vm5389 = vcmp.eq.s32.totalorder %v5345, %v4900
        %vm5390 = vcmp.eq.s32.totalorder %v5344, %v4904
        %vm5391 = vcmp.eq.s32.totalorder %v5345, %v4904
        %vm5392 = vcmp.eq.s32.totalorder %v5344, %v4908
        %vm5393 = vcmp.eq.s32.totalorder %v5345, %v4908
        %vm5394 = vcmp.eq.s32.totalorder %v5344, %v4912
        %vm5395 = vcmp.eq.s32.totalorder %v5345, %v4912
        %vm5396 = vcmp.eq.s32.totalorder %v5344, %v4916
        %vm5397 = vcmp.eq.s32.totalorder %v5345, %v4916
        %vm5398 = vcmp.eq.s32.totalorder %v5344, %v4920
        %vm5399 = vcmp.eq.s32.totalorder %v5345, %v4920
        %vm5400 = vcmp.eq.s32.totalorder %v5344, %v4924
        %vm5401 = vcmp.eq.s32.totalorder %v5345, %v4924
        %vm5402 = vcmp.eq.s32.totalorder %v5344, %v4928
        %vm5403 = vcmp.eq.s32.totalorder %v5345, %v4928
        %vm5404 = vcmp.eq.s32.totalorder %v5344, %v4932
        %vm5405 = vcmp.eq.s32.totalorder %v5345, %v4932
        %vm5406 = vcmp.eq.s32.totalorder %v5344, %v4936
        %vm5407 = vcmp.eq.s32.totalorder %v5345, %v4936
        %vm5408 = vcmp.eq.s32.totalorder %v5344, %v4940
        %vm5409 = vcmp.eq.s32.totalorder %v5345, %v4940
        %vm5410 = vcmp.eq.s32.totalorder %v5344, %v4947
        %vm5411 = vcmp.eq.s32.totalorder %v5345, %v4947
        %vm5412 = vcmp.eq.s32.totalorder %v5344, %v4951
        %vm5413 = vcmp.eq.s32.totalorder %v5345, %v4951
        %vm5414 = vcmp.eq.s32.totalorder %v5344, %v4955
        %vm5415 = vcmp.eq.s32.totalorder %v5345, %v4955
        %vm5416 = vcmp.eq.s32.totalorder %v5344, %v4959
        %vm5417 = vcmp.eq.s32.totalorder %v5345, %v4959
        %vm5418 = vcmp.eq.s32.totalorder %v5344, %v4963
        %vm5419 = vcmp.eq.s32.totalorder %v5345, %v4963
        %vm5420 = vcmp.eq.s32.totalorder %v5344, %v4967
        %vm5421 = vcmp.eq.s32.totalorder %v5345, %v4967
        %vm5422 = vcmp.eq.s32.totalorder %v5344, %v4971
        %vm5423 = vcmp.eq.s32.totalorder %v5345, %v4971
        %vm5424 = vcmp.eq.s32.totalorder %v5344, %v4975
        %vm5425 = vcmp.eq.s32.totalorder %v5345, %v4975
        %vm5426 = vcmp.eq.s32.totalorder %v5344, %v4979
        %vm5427 = vcmp.eq.s32.totalorder %v5345, %v4979
        %vm5428 = vcmp.eq.s32.totalorder %v5344, %v4983
        %vm5429 = vcmp.eq.s32.totalorder %v5345, %v4983
        %vm5430 = vcmp.eq.s32.totalorder %v5344, %v4987
        %vm5431 = vcmp.eq.s32.totalorder %v5345, %v4987
        %vm5432 = vcmp.eq.s32.totalorder %v5344, %v4991
        %vm5433 = vcmp.eq.s32.totalorder %v5345, %v4991
        %vm5434 = vcmp.eq.s32.totalorder %v5344, %v4995
        %vm5435 = vcmp.eq.s32.totalorder %v5345, %v4995
        %vm5436 = vcmp.eq.s32.totalorder %v5344, %v4999
        %vm5437 = vcmp.eq.s32.totalorder %v5345, %v4999
        %vm5438 = vcmp.eq.s32.totalorder %v5344, %v5003
        %vm5439 = vcmp.eq.s32.totalorder %v5345, %v5003
        %vm5440 = vcmp.eq.s32.totalorder %v5344, %v5007
        %vm5441 = vcmp.eq.s32.totalorder %v5345, %v5007
        %vm5442 = vcmp.eq.s32.totalorder %v5344, %v5014
        %vm5443 = vcmp.eq.s32.totalorder %v5345, %v5014
        %vm5444 = vcmp.eq.s32.totalorder %v5344, %v5018
        %vm5445 = vcmp.eq.s32.totalorder %v5345, %v5018
        %vm5446 = vcmp.eq.s32.totalorder %v5344, %v5022
        %vm5447 = vcmp.eq.s32.totalorder %v5345, %v5022
        %vm5448 = vcmp.eq.s32.totalorder %v5344, %v5026
        %vm5449 = vcmp.eq.s32.totalorder %v5345, %v5026
        %vm5450 = vcmp.eq.s32.totalorder %v5344, %v5030
        %vm5451 = vcmp.eq.s32.totalorder %v5345, %v5030
        %vm5452 = vcmp.eq.s32.totalorder %v5344, %v5034
        %vm5453 = vcmp.eq.s32.totalorder %v5345, %v5034
        %vm5454 = vcmp.eq.s32.totalorder %v5344, %v5038
        %vm5455 = vcmp.eq.s32.totalorder %v5345, %v5038
        %vm5456 = vcmp.eq.s32.totalorder %v5344, %v5042
        %vm5457 = vcmp.eq.s32.totalorder %v5345, %v5042
        %vm5458 = vcmp.eq.s32.totalorder %v5344, %v5046
        %vm5459 = vcmp.eq.s32.totalorder %v5345, %v5046
        %vm5460 = vcmp.eq.s32.totalorder %v5344, %v5050
        %vm5461 = vcmp.eq.s32.totalorder %v5345, %v5050
        %vm5462 = vcmp.eq.s32.totalorder %v5344, %v5054
        %vm5463 = vcmp.eq.s32.totalorder %v5345, %v5054
        %vm5464 = vcmp.eq.s32.totalorder %v5344, %v5058
        %vm5465 = vcmp.eq.s32.totalorder %v5345, %v5058
        %vm5466 = vcmp.eq.s32.totalorder %v5344, %v5062
        %vm5467 = vcmp.eq.s32.totalorder %v5345, %v5062
        %vm5468 = vcmp.eq.s32.totalorder %v5344, %v5066
        %vm5469 = vcmp.eq.s32.totalorder %v5345, %v5066
        %vm5470 = vcmp.eq.s32.totalorder %v5344, %v5070
        %vm5471 = vcmp.eq.s32.totalorder %v5345, %v5070
        %vm5472 = vcmp.eq.s32.totalorder %v5344, %v5074
        %vm5473 = vcmp.eq.s32.totalorder %v5345, %v5074
        %vm5474 = vcmp.eq.s32.totalorder %v5344, %v5081
        %vm5475 = vcmp.eq.s32.totalorder %v5345, %v5081
        %vm5476 = vcmp.eq.s32.totalorder %v5344, %v5085
        %vm5477 = vcmp.eq.s32.totalorder %v5345, %v5085
        %vm5478 = vcmp.eq.s32.totalorder %v5344, %v5089
        %vm5479 = vcmp.eq.s32.totalorder %v5345, %v5089
        %vm5480 = vcmp.eq.s32.totalorder %v5344, %v5093
        %vm5481 = vcmp.eq.s32.totalorder %v5345, %v5093
        %vm5482 = vcmp.eq.s32.totalorder %v5344, %v5097
        %vm5483 = vcmp.eq.s32.totalorder %v5345, %v5097
        %vm5484 = vcmp.eq.s32.totalorder %v5344, %v5101
        %vm5485 = vcmp.eq.s32.totalorder %v5345, %v5101
        %vm5486 = vcmp.eq.s32.totalorder %v5344, %v5105
        %vm5487 = vcmp.eq.s32.totalorder %v5345, %v5105
        %vm5488 = vcmp.eq.s32.totalorder %v5344, %v5109
        %vm5489 = vcmp.eq.s32.totalorder %v5345, %v5109
        %vm5490 = vcmp.eq.s32.totalorder %v5344, %v5113
        %vm5491 = vcmp.eq.s32.totalorder %v5345, %v5113
        %vm5492 = vcmp.eq.s32.totalorder %v5344, %v5117
        %vm5493 = vcmp.eq.s32.totalorder %v5345, %v5117
        %vm5494 = vcmp.eq.s32.totalorder %v5344, %v5121
        %vm5495 = vcmp.eq.s32.totalorder %v5345, %v5121
        %vm5496 = vcmp.eq.s32.totalorder %v5344, %v5125
        %vm5497 = vcmp.eq.s32.totalorder %v5345, %v5125
        %vm5498 = vcmp.eq.s32.totalorder %v5344, %v5129
        %vm5499 = vcmp.eq.s32.totalorder %v5345, %v5129
        %vm5500 = vcmp.eq.s32.totalorder %v5344, %v5133
        %vm5501 = vcmp.eq.s32.totalorder %v5345, %v5133
        %vm5502 = vcmp.eq.s32.totalorder %v5344, %v5137
        %vm5503 = vcmp.eq.s32.totalorder %v5345, %v5137
        %vm5504 = vcmp.eq.s32.totalorder %v5344, %v5141
        %vm5505 = vcmp.eq.s32.totalorder %v5345, %v5141
        %vm5506 = vcmp.eq.s32.totalorder %v5344, %v5148
        %vm5507 = vcmp.eq.s32.totalorder %v5345, %v5148
        %vm5508 = vcmp.eq.s32.totalorder %v5344, %v5152
        %vm5509 = vcmp.eq.s32.totalorder %v5345, %v5152
        %vm5510 = vcmp.eq.s32.totalorder %v5344, %v5156
        %vm5511 = vcmp.eq.s32.totalorder %v5345, %v5156
        %vm5512 = vcmp.eq.s32.totalorder %v5344, %v5160
        %vm5513 = vcmp.eq.s32.totalorder %v5345, %v5160
        %vm5514 = vcmp.eq.s32.totalorder %v5344, %v5164
        %vm5515 = vcmp.eq.s32.totalorder %v5345, %v5164
        %vm5516 = vcmp.eq.s32.totalorder %v5344, %v5168
        %vm5517 = vcmp.eq.s32.totalorder %v5345, %v5168
        %vm5518 = vcmp.eq.s32.totalorder %v5344, %v5172
        %vm5519 = vcmp.eq.s32.totalorder %v5345, %v5172
        %vm5520 = vcmp.eq.s32.totalorder %v5344, %v5176
        %vm5521 = vcmp.eq.s32.totalorder %v5345, %v5176
        %vm5522 = vcmp.eq.s32.totalorder %v5344, %v5180
        %vm5523 = vcmp.eq.s32.totalorder %v5345, %v5180
        %vm5524 = vcmp.eq.s32.totalorder %v5344, %v5184
        %vm5525 = vcmp.eq.s32.totalorder %v5345, %v5184
        %vm5526 = vcmp.eq.s32.totalorder %v5344, %v5188
        %vm5527 = vcmp.eq.s32.totalorder %v5345, %v5188
        %vm5528 = vcmp.eq.s32.totalorder %v5344, %v5192
        %vm5529 = vcmp.eq.s32.totalorder %v5345, %v5192
        %vm5530 = vcmp.eq.s32.totalorder %v5344, %v5196
        %vm5531 = vcmp.eq.s32.totalorder %v5345, %v5196
        %vm5532 = vcmp.eq.s32.totalorder %v5344, %v5200
        %vm5533 = vcmp.eq.s32.totalorder %v5345, %v5200
        %vm5534 = vcmp.eq.s32.totalorder %v5344, %v5204
        %vm5535 = vcmp.eq.s32.totalorder %v5345, %v5204
        %vm5536 = vcmp.eq.s32.totalorder %v5344, %v5208
        %vm5537 = vcmp.eq.s32.totalorder %v5345, %v5208
        %vm5538 = vcmp.eq.s32.totalorder %v5344, %v5215
        %vm5539 = vcmp.eq.s32.totalorder %v5345, %v5215
        %vm5540 = vcmp.eq.s32.totalorder %v5344, %v5219
        %vm5541 = vcmp.eq.s32.totalorder %v5345, %v5219
        %vm5542 = vcmp.eq.s32.totalorder %v5344, %v5223
        %vm5543 = vcmp.eq.s32.totalorder %v5345, %v5223
        %vm5544 = vcmp.eq.s32.totalorder %v5344, %v5227
        %vm5545 = vcmp.eq.s32.totalorder %v5345, %v5227
        %vm5546 = vcmp.eq.s32.totalorder %v5344, %v5231
        %vm5547 = vcmp.eq.s32.totalorder %v5345, %v5231
        %vm5548 = vcmp.eq.s32.totalorder %v5344, %v5235
        %vm5549 = vcmp.eq.s32.totalorder %v5345, %v5235
        %vm5550 = vcmp.eq.s32.totalorder %v5344, %v5239
        %vm5551 = vcmp.eq.s32.totalorder %v5345, %v5239
        %vm5552 = vcmp.eq.s32.totalorder %v5344, %v5243
        %vm5553 = vcmp.eq.s32.totalorder %v5345, %v5243
        %vm5554 = vcmp.eq.s32.totalorder %v5344, %v5247
        %vm5555 = vcmp.eq.s32.totalorder %v5345, %v5247
        %vm5556 = vcmp.eq.s32.totalorder %v5344, %v5251
        %vm5557 = vcmp.eq.s32.totalorder %v5345, %v5251
        %vm5558 = vcmp.eq.s32.totalorder %v5344, %v5255
        %vm5559 = vcmp.eq.s32.totalorder %v5345, %v5255
        %vm5560 = vcmp.eq.s32.totalorder %v5344, %v5259
        %vm5561 = vcmp.eq.s32.totalorder %v5345, %v5259
        %vm5562 = vcmp.eq.s32.totalorder %v5344, %v5263
        %vm5563 = vcmp.eq.s32.totalorder %v5345, %v5263
        %vm5564 = vcmp.eq.s32.totalorder %v5344, %v5267
        %vm5565 = vcmp.eq.s32.totalorder %v5345, %v5267
        %vm5566 = vcmp.eq.s32.totalorder %v5344, %v5271
        %vm5567 = vcmp.eq.s32.totalorder %v5345, %v5271
        %vm5568 = vcmp.eq.s32.totalorder %v5344, %v5275
        %vm5569 = vcmp.eq.s32.totalorder %v5345, %v5275
        %vm5570 = vcmp.eq.s32.totalorder %v5344, %v5282
        %vm5571 = vcmp.eq.s32.totalorder %v5345, %v5282
        %vm5572 = vcmp.eq.s32.totalorder %v5344, %v5286
        %vm5573 = vcmp.eq.s32.totalorder %v5345, %v5286
        %vm5574 = vcmp.eq.s32.totalorder %v5344, %v5290
        %vm5575 = vcmp.eq.s32.totalorder %v5345, %v5290
        %vm5576 = vcmp.eq.s32.totalorder %v5344, %v5294
        %vm5577 = vcmp.eq.s32.totalorder %v5345, %v5294
        %vm5578 = vcmp.eq.s32.totalorder %v5344, %v5298
        %vm5579 = vcmp.eq.s32.totalorder %v5345, %v5298
        %vm5580 = vcmp.eq.s32.totalorder %v5344, %v5302
        %vm5581 = vcmp.eq.s32.totalorder %v5345, %v5302
        %vm5582 = vcmp.eq.s32.totalorder %v5344, %v5306
        %vm5583 = vcmp.eq.s32.totalorder %v5345, %v5306
        %vm5584 = vcmp.eq.s32.totalorder %v5344, %v5310
        %vm5585 = vcmp.eq.s32.totalorder %v5345, %v5310
        %vm5586 = vcmp.eq.s32.totalorder %v5344, %v5314
        %vm5587 = vcmp.eq.s32.totalorder %v5345, %v5314
        %vm5588 = vcmp.eq.s32.totalorder %v5344, %v5318
        %vm5589 = vcmp.eq.s32.totalorder %v5345, %v5318
        %vm5590 = vcmp.eq.s32.totalorder %v5344, %v5322
        %vm5591 = vcmp.eq.s32.totalorder %v5345, %v5322
        %vm5592 = vcmp.eq.s32.totalorder %v5344, %v5326
        %vm5593 = vcmp.eq.s32.totalorder %v5345, %v5326
        %vm5594 = vcmp.eq.s32.totalorder %v5344, %v5330
        %vm5595 = vcmp.eq.s32.totalorder %v5345, %v5330
        %vm5596 = vcmp.eq.s32.totalorder %v5344, %v5334
        %vm5597 = vcmp.eq.s32.totalorder %v5345, %v5334
        %vm5598 = vcmp.eq.s32.totalorder %v5344, %v5338
        %vm5599 = vcmp.eq.s32.totalorder %v5345, %v5338
        %vm5600 = vcmp.eq.s32.totalorder %v5344, %v5342
        %vm5601 = vcmp.eq.s32.totalorder %v5345, %v5342
        %v5602 = vsel %vm5346, 1, 0
        %v5603 = vsel %vm5347, 1, 0
        %v5604 = vsel %vm5348, 1, 0
        %v5605 = vsel %vm5349, 1, 0
        %v5606 = vsel %vm5350, 1, 0
        %v5607 = vsel %vm5351, 1, 0
        %v5608 = vsel %vm5352, 1, 0
        %v5609 = vsel %vm5353, 1, 0
        %v5610 = vsel %vm5354, 1, 0
        %v5611 = vsel %vm5355, 1, 0
        %v5612 = vsel %vm5356, 1, 0
        %v5613 = vsel %vm5357, 1, 0
        %v5614 = vsel %vm5358, 1, 0
        %v5615 = vsel %vm5359, 1, 0
        %v5616 = vsel %vm5360, 1, 0
        %v5617 = vsel %vm5361, 1, 0
        %v5618 = vsel %vm5362, 1, 0
        %v5619 = vsel %vm5363, 1, 0
        %v5620 = vsel %vm5364, 1, 0
        %v5621 = vsel %vm5365, 1, 0
        %v5622 = vsel %vm5366, 1, 0
        %v5623 = vsel %vm5367, 1, 0
        %v5624 = vsel %vm5368, 1, 0
        %v5625 = vsel %vm5369, 1, 0
        %v5626 = vsel %vm5370, 1, 0
        %v5627 = vsel %vm5371, 1, 0
        %v5628 = vsel %vm5372, 1, 0
        %v5629 = vsel %vm5373, 1, 0
        %v5630 = vsel %vm5374, 1, 0
        %v5631 = vsel %vm5375, 1, 0
        %v5632 = vsel %vm5376, 1, 0
        %v5633 = vsel %vm5377, 1, 0
        %v5634 = vsel %vm5378, 1, 0
        %v5635 = vsel %vm5379, 1, 0
        %v5636 = vsel %vm5380, 1, 0
        %v5637 = vsel %vm5381, 1, 0
        %v5638 = vsel %vm5382, 1, 0
        %v5639 = vsel %vm5383, 1, 0
        %v5640 = vsel %vm5384, 1, 0
        %v5641 = vsel %vm5385, 1, 0
        %v5642 = vsel %vm5386, 1, 0
        %v5643 = vsel %vm5387, 1, 0
        %v5644 = vsel %vm5388, 1, 0
        %v5645 = vsel %vm5389, 1, 0
        %v5646 = vsel %vm5390, 1, 0
        %v5647 = vsel %vm5391, 1, 0
        %v5648 = vsel %vm5392, 1, 0
        %v5649 = vsel %vm5393, 1, 0
        %v5650 = vsel %vm5394, 1, 0
        %v5651 = vsel %vm5395, 1, 0
        %v5652 = vsel %vm5396, 1, 0
        %v5653 = vsel %vm5397, 1, 0
        %v5654 = vsel %vm5398, 1, 0
        %v5655 = vsel %vm5399, 1, 0
        %v5656 = vsel %vm5400, 1, 0
        %v5657 = vsel %vm5401, 1, 0
        %v5658 = vsel %vm5402, 1, 0
        %v5659 = vsel %vm5403, 1, 0
        %v5660 = vsel %vm5404, 1, 0
        %v5661 = vsel %vm5405, 1, 0
        %v5662 = vsel %vm5406, 1, 0
        %v5663 = vsel %vm5407, 1, 0
        %v5664 = vsel %vm5408, 1, 0
        %v5665 = vsel %vm5409, 1, 0
        %v5666 = vsel %vm5410, 1, 0
        %v5667 = vsel %vm5411, 1, 0
        %v5668 = vsel %vm5412, 1, 0
        %v5669 = vsel %vm5413, 1, 0
        %v5670 = vsel %vm5414, 1, 0
        %v5671 = vsel %vm5415, 1, 0
        %v5672 = vsel %vm5416, 1, 0
        %v5673 = vsel %vm5417, 1, 0
        %v5674 = vsel %vm5418, 1, 0
        %v5675 = vsel %vm5419, 1, 0
        %v5676 = vsel %vm5420, 1, 0
        %v5677 = vsel %vm5421, 1, 0
        %v5678 = vsel %vm5422, 1, 0
        %v5679 = vsel %vm5423, 1, 0
        %v5680 = vsel %vm5424, 1, 0
        %v5681 = vsel %vm5425, 1, 0
        %v5682 = vsel %vm5426, 1, 0
        %v5683 = vsel %vm5427, 1, 0
        %v5684 = vsel %vm5428, 1, 0
        %v5685 = vsel %vm5429, 1, 0
        %v5686 = vsel %vm5430, 1, 0
        %v5687 = vsel %vm5431, 1, 0
        %v5688 = vsel %vm5432, 1, 0
        %v5689 = vsel %vm5433, 1, 0
        %v5690 = vsel %vm5434, 1, 0
        %v5691 = vsel %vm5435, 1, 0
        %v5692 = vsel %vm5436, 1, 0
        %v5693 = vsel %vm5437, 1, 0
        %v5694 = vsel %vm5438, 1, 0
        %v5695 = vsel %vm5439, 1, 0
        %v5696 = vsel %vm5440, 1, 0
        %v5697 = vsel %vm5441, 1, 0
        %v5698 = vsel %vm5442, 1, 0
        %v5699 = vsel %vm5443, 1, 0
        %v5700 = vsel %vm5444, 1, 0
        %v5701 = vsel %vm5445, 1, 0
        %v5702 = vsel %vm5446, 1, 0
        %v5703 = vsel %vm5447, 1, 0
        %v5704 = vsel %vm5448, 1, 0
        %v5705 = vsel %vm5449, 1, 0
        %v5706 = vsel %vm5450, 1, 0
        %v5707 = vsel %vm5451, 1, 0
        %v5708 = vsel %vm5452, 1, 0
        %v5709 = vsel %vm5453, 1, 0
        %v5710 = vsel %vm5454, 1, 0
        %v5711 = vsel %vm5455, 1, 0
        %v5712 = vsel %vm5456, 1, 0
        %v5713 = vsel %vm5457, 1, 0
        %v5714 = vsel %vm5458, 1, 0
        %v5715 = vsel %vm5459, 1, 0
        %v5716 = vsel %vm5460, 1, 0
        %v5717 = vsel %vm5461, 1, 0
        %v5718 = vsel %vm5462, 1, 0
        %v5719 = vsel %vm5463, 1, 0
        %v5720 = vsel %vm5464, 1, 0
        %v5721 = vsel %vm5465, 1, 0
        %v5722 = vsel %vm5466, 1, 0
        %v5723 = vsel %vm5467, 1, 0
        %v5724 = vsel %vm5468, 1, 0
        %v5725 = vsel %vm5469, 1, 0
        %v5726 = vsel %vm5470, 1, 0
        %v5727 = vsel %vm5471, 1, 0
        %v5728 = vsel %vm5472, 1, 0
        %v5729 = vsel %vm5473, 1, 0
        %v5730 = vsel %vm5474, 1, 0
        %v5731 = vsel %vm5475, 1, 0
        %v5732 = vsel %vm5476, 1, 0
        %v5733 = vsel %vm5477, 1, 0
        %v5734 = vsel %vm5478, 1, 0
        %v5735 = vsel %vm5479, 1, 0
        %v5736 = vsel %vm5480, 1, 0
        %v5737 = vsel %vm5481, 1, 0
        %v5738 = vsel %vm5482, 1, 0
        %v5739 = vsel %vm5483, 1, 0
        %v5740 = vsel %vm5484, 1, 0
        %v5741 = vsel %vm5485, 1, 0
        %v5742 = vsel %vm5486, 1, 0
        %v5743 = vsel %vm5487, 1, 0
        %v5744 = vsel %vm5488, 1, 0
        %v5745 = vsel %vm5489, 1, 0
        %v5746 = vsel %vm5490, 1, 0
        %v5747 = vsel %vm5491, 1, 0
        %v5748 = vsel %vm5492, 1, 0
        %v5749 = vsel %vm5493, 1, 0
        %v5750 = vsel %vm5494, 1, 0
        %v5751 = vsel %vm5495, 1, 0
        %v5752 = vsel %vm5496, 1, 0
        %v5753 = vsel %vm5497, 1, 0
        %v5754 = vsel %vm5498, 1, 0
        %v5755 = vsel %vm5499, 1, 0
        %v5756 = vsel %vm5500, 1, 0
        %v5757 = vsel %vm5501, 1, 0
        %v5758 = vsel %vm5502, 1, 0
        %v5759 = vsel %vm5503, 1, 0
        %v5760 = vsel %vm5504, 1, 0
        %v5761 = vsel %vm5505, 1, 0
        %v5762 = vsel %vm5506, 1, 0
        %v5763 = vsel %vm5507, 1, 0
        %v5764 = vsel %vm5508, 1, 0
        %v5765 = vsel %vm5509, 1, 0
        %v5766 = vsel %vm5510, 1, 0
        %v5767 = vsel %vm5511, 1, 0
        %v5768 = vsel %vm5512, 1, 0
        %v5769 = vsel %vm5513, 1, 0
        %v5770 = vsel %vm5514, 1, 0
        %v5771 = vsel %vm5515, 1, 0
        %v5772 = vsel %vm5516, 1, 0
        %v5773 = vsel %vm5517, 1, 0
        %v5774 = vsel %vm5518, 1, 0
        %v5775 = vsel %vm5519, 1, 0
        %v5776 = vsel %vm5520, 1, 0
        %v5777 = vsel %vm5521, 1, 0
        %v5778 = vsel %vm5522, 1, 0
        %v5779 = vsel %vm5523, 1, 0
        %v5780 = vsel %vm5524, 1, 0
        %v5781 = vsel %vm5525, 1, 0
        %v5782 = vsel %vm5526, 1, 0
        %v5783 = vsel %vm5527, 1, 0
        %v5784 = vsel %vm5528, 1, 0
        %v5785 = vsel %vm5529, 1, 0
        %v5786 = vsel %vm5530, 1, 0
        %v5787 = vsel %vm5531, 1, 0
        %v5788 = vsel %vm5532, 1, 0
        %v5789 = vsel %vm5533, 1, 0
        %v5790 = vsel %vm5534, 1, 0
        %v5791 = vsel %vm5535, 1, 0
        %v5792 = vsel %vm5536, 1, 0
        %v5793 = vsel %vm5537, 1, 0
        %v5794 = vsel %vm5538, 1, 0
        %v5795 = vsel %vm5539, 1, 0
        %v5796 = vsel %vm5540, 1, 0
        %v5797 = vsel %vm5541, 1, 0
        %v5798 = vsel %vm5542, 1, 0
        %v5799 = vsel %vm5543, 1, 0
        %v5800 = vsel %vm5544, 1, 0
        %v5801 = vsel %vm5545, 1, 0
        %v5802 = vsel %vm5546, 1, 0
        %v5803 = vsel %vm5547, 1, 0
        %v5804 = vsel %vm5548, 1, 0
        %v5805 = vsel %vm5549, 1, 0
        %v5806 = vsel %vm5550, 1, 0
        %v5807 = vsel %vm5551, 1, 0
        %v5808 = vsel %vm5552, 1, 0
        %v5809 = vsel %vm5553, 1, 0
        %v5810 = vsel %vm5554, 1, 0
        %v5811 = vsel %vm5555, 1, 0
        %v5812 = vsel %vm5556, 1, 0
        %v5813 = vsel %vm5557, 1, 0
        %v5814 = vsel %vm5558, 1, 0
        %v5815 = vsel %vm5559, 1, 0
        %v5816 = vsel %vm5560, 1, 0
        %v5817 = vsel %vm5561, 1, 0
        %v5818 = vsel %vm5562, 1, 0
        %v5819 = vsel %vm5563, 1, 0
        %v5820 = vsel %vm5564, 1, 0
        %v5821 = vsel %vm5565, 1, 0
        %v5822 = vsel %vm5566, 1, 0
        %v5823 = vsel %vm5567, 1, 0
        %v5824 = vsel %vm5568, 1, 0
        %v5825 = vsel %vm5569, 1, 0
        %v5826 = vsel %vm5570, 1, 0
        %v5827 = vsel %vm5571, 1, 0
        %v5828 = vsel %vm5572, 1, 0
        %v5829 = vsel %vm5573, 1, 0
        %v5830 = vsel %vm5574, 1, 0
        %v5831 = vsel %vm5575, 1, 0
        %v5832 = vsel %vm5576, 1, 0
        %v5833 = vsel %vm5577, 1, 0
        %v5834 = vsel %vm5578, 1, 0
        %v5835 = vsel %vm5579, 1, 0
        %v5836 = vsel %vm5580, 1, 0
        %v5837 = vsel %vm5581, 1, 0
        %v5838 = vsel %vm5582, 1, 0
        %v5839 = vsel %vm5583, 1, 0
        %v5840 = vsel %vm5584, 1, 0
        %v5841 = vsel %vm5585, 1, 0
        %v5842 = vsel %vm5586, 1, 0
        %v5843 = vsel %vm5587, 1, 0
        %v5844 = vsel %vm5588, 1, 0
        %v5845 = vsel %vm5589, 1, 0
        %v5846 = vsel %vm5590, 1, 0
        %v5847 = vsel %vm5591, 1, 0
        %v5848 = vsel %vm5592, 1, 0
        %v5849 = vsel %vm5593, 1, 0
        %v5850 = vsel %vm5594, 1, 0
        %v5851 = vsel %vm5595, 1, 0
        %v5852 = vsel %vm5596, 1, 0
        %v5853 = vsel %vm5597, 1, 0
        %v5854 = vsel %vm5598, 1, 0
        %v5855 = vsel %vm5599, 1, 0
        %v5856 = vsel %vm5600, 1, 0
        %v5857 = vsel %vm5601, 1, 0
        %v5858 = vcvt.s32.f32 %v5602
        %v5859 = vcvt.s32.f32 %v5603
        %v5860 = vcvt.s32.f32 %v5604
        %v5861 = vcvt.s32.f32 %v5605
        %v5862 = vcvt.s32.f32 %v5606
        %v5863 = vcvt.s32.f32 %v5607
        %v5864 = vcvt.s32.f32 %v5608
        %v5865 = vcvt.s32.f32 %v5609
        %v5866 = vcvt.s32.f32 %v5610
        %v5867 = vcvt.s32.f32 %v5611
        %v5868 = vcvt.s32.f32 %v5612
        %v5869 = vcvt.s32.f32 %v5613
        %v5870 = vcvt.s32.f32 %v5614
        %v5871 = vcvt.s32.f32 %v5615
        %v5872 = vcvt.s32.f32 %v5616
        %v5873 = vcvt.s32.f32 %v5617
        %v5874 = vcvt.s32.f32 %v5618
        %v5875 = vcvt.s32.f32 %v5619
        %v5876 = vcvt.s32.f32 %v5620
        %v5877 = vcvt.s32.f32 %v5621
        %v5878 = vcvt.s32.f32 %v5622
        %v5879 = vcvt.s32.f32 %v5623
        %v5880 = vcvt.s32.f32 %v5624
        %v5881 = vcvt.s32.f32 %v5625
        %v5882 = vcvt.s32.f32 %v5626
        %v5883 = vcvt.s32.f32 %v5627
        %v5884 = vcvt.s32.f32 %v5628
        %v5885 = vcvt.s32.f32 %v5629
        %v5886 = vcvt.s32.f32 %v5630
        %v5887 = vcvt.s32.f32 %v5631
        %v5888 = vcvt.s32.f32 %v5632
        %v5889 = vcvt.s32.f32 %v5633
        %v5890 = vcvt.s32.f32 %v5634
        %v5891 = vcvt.s32.f32 %v5635
        %v5892 = vcvt.s32.f32 %v5636
        %v5893 = vcvt.s32.f32 %v5637
        %v5894 = vcvt.s32.f32 %v5638
        %v5895 = vcvt.s32.f32 %v5639
        %v5896 = vcvt.s32.f32 %v5640
        %v5897 = vcvt.s32.f32 %v5641
        %v5898 = vcvt.s32.f32 %v5642
        %v5899 = vcvt.s32.f32 %v5643
        %v5900 = vcvt.s32.f32 %v5644
        %v5901 = vcvt.s32.f32 %v5645
        %v5902 = vcvt.s32.f32 %v5646
        %v5903 = vcvt.s32.f32 %v5647
        %v5904 = vcvt.s32.f32 %v5648
        %v5905 = vcvt.s32.f32 %v5649
        %v5906 = vcvt.s32.f32 %v5650
        %v5907 = vcvt.s32.f32 %v5651
        %v5908 = vcvt.s32.f32 %v5652
        %v5909 = vcvt.s32.f32 %v5653
        %v5910 = vcvt.s32.f32 %v5654
        %v5911 = vcvt.s32.f32 %v5655
        %v5912 = vcvt.s32.f32 %v5656
        %v5913 = vcvt.s32.f32 %v5657
        %v5914 = vcvt.s32.f32 %v5658
        %v5915 = vcvt.s32.f32 %v5659
        %v5916 = vcvt.s32.f32 %v5660
        %v5917 = vcvt.s32.f32 %v5661
        %v5918 = vcvt.s32.f32 %v5662
        %v5919 = vcvt.s32.f32 %v5663
        %v5920 = vcvt.s32.f32 %v5664
        %v5921 = vcvt.s32.f32 %v5665
        %v5922 = vcvt.s32.f32 %v5666
        %v5923 = vcvt.s32.f32 %v5667
        %v5924 = vcvt.s32.f32 %v5668
        %v5925 = vcvt.s32.f32 %v5669
        %v5926 = vcvt.s32.f32 %v5670
        %v5927 = vcvt.s32.f32 %v5671
        %v5928 = vcvt.s32.f32 %v5672
        %v5929 = vcvt.s32.f32 %v5673
        %v5930 = vcvt.s32.f32 %v5674
        %v5931 = vcvt.s32.f32 %v5675
        %v5932 = vcvt.s32.f32 %v5676
        %v5933 = vcvt.s32.f32 %v5677
        %v5934 = vcvt.s32.f32 %v5678
        %v5935 = vcvt.s32.f32 %v5679
        %v5936 = vcvt.s32.f32 %v5680
        %v5937 = vcvt.s32.f32 %v5681
        %v5938 = vcvt.s32.f32 %v5682
        %v5939 = vcvt.s32.f32 %v5683
        %v5940 = vcvt.s32.f32 %v5684
        %v5941 = vcvt.s32.f32 %v5685
        %v5942 = vcvt.s32.f32 %v5686
        %v5943 = vcvt.s32.f32 %v5687
        %v5944 = vcvt.s32.f32 %v5688
        %v5945 = vcvt.s32.f32 %v5689
        %v5946 = vcvt.s32.f32 %v5690
        %v5947 = vcvt.s32.f32 %v5691
        %v5948 = vcvt.s32.f32 %v5692
        %v5949 = vcvt.s32.f32 %v5693
        %v5950 = vcvt.s32.f32 %v5694
        %v5951 = vcvt.s32.f32 %v5695
        %v5952 = vcvt.s32.f32 %v5696
        %v5953 = vcvt.s32.f32 %v5697
        %v5954 = vcvt.s32.f32 %v5698
        %v5955 = vcvt.s32.f32 %v5699
        %v5956 = vcvt.s32.f32 %v5700
        %v5957 = vcvt.s32.f32 %v5701
        %v5958 = vcvt.s32.f32 %v5702
        %v5959 = vcvt.s32.f32 %v5703
        %v5960 = vcvt.s32.f32 %v5704
        %v5961 = vcvt.s32.f32 %v5705
        %v5962 = vcvt.s32.f32 %v5706
        %v5963 = vcvt.s32.f32 %v5707
        %v5964 = vcvt.s32.f32 %v5708
        %v5965 = vcvt.s32.f32 %v5709
        %v5966 = vcvt.s32.f32 %v5710
        %v5967 = vcvt.s32.f32 %v5711
        %v5968 = vcvt.s32.f32 %v5712
        %v5969 = vcvt.s32.f32 %v5713
        %v5970 = vcvt.s32.f32 %v5714
        %v5971 = vcvt.s32.f32 %v5715
        %v5972 = vcvt.s32.f32 %v5716
        %v5973 = vcvt.s32.f32 %v5717
        %v5974 = vcvt.s32.f32 %v5718
        %v5975 = vcvt.s32.f32 %v5719
        %v5976 = vcvt.s32.f32 %v5720
        %v5977 = vcvt.s32.f32 %v5721
        %v5978 = vcvt.s32.f32 %v5722
        %v5979 = vcvt.s32.f32 %v5723
        %v5980 = vcvt.s32.f32 %v5724
        %v5981 = vcvt.s32.f32 %v5725
        %v5982 = vcvt.s32.f32 %v5726
        %v5983 = vcvt.s32.f32 %v5727
        %v5984 = vcvt.s32.f32 %v5728
        %v5985 = vcvt.s32.f32 %v5729
        %v5986 = vcvt.s32.f32 %v5730
        %v5987 = vcvt.s32.f32 %v5731
        %v5988 = vcvt.s32.f32 %v5732
        %v5989 = vcvt.s32.f32 %v5733
        %v5990 = vcvt.s32.f32 %v5734
        %v5991 = vcvt.s32.f32 %v5735
        %v5992 = vcvt.s32.f32 %v5736
        %v5993 = vcvt.s32.f32 %v5737
        %v5994 = vcvt.s32.f32 %v5738
        %v5995 = vcvt.s32.f32 %v5739
        %v5996 = vcvt.s32.f32 %v5740
        %v5997 = vcvt.s32.f32 %v5741
        %v5998 = vcvt.s32.f32 %v5742
        %v5999 = vcvt.s32.f32 %v5743
        %v6000 = vcvt.s32.f32 %v5744
        %v6001 = vcvt.s32.f32 %v5745
        %v6002 = vcvt.s32.f32 %v5746
        %v6003 = vcvt.s32.f32 %v5747
        %v6004 = vcvt.s32.f32 %v5748
        %v6005 = vcvt.s32.f32 %v5749
        %v6006 = vcvt.s32.f32 %v5750
        %v6007 = vcvt.s32.f32 %v5751
        %v6008 = vcvt.s32.f32 %v5752
        %v6009 = vcvt.s32.f32 %v5753
        %v6010 = vcvt.s32.f32 %v5754
        %v6011 = vcvt.s32.f32 %v5755
        %v6012 = vcvt.s32.f32 %v5756
        %v6013 = vcvt.s32.f32 %v5757
        %v6014 = vcvt.s32.f32 %v5758
        %v6015 = vcvt.s32.f32 %v5759
        %v6016 = vcvt.s32.f32 %v5760
        %v6017 = vcvt.s32.f32 %v5761
        %v6018 = vcvt.s32.f32 %v5762
        %v6019 = vcvt.s32.f32 %v5763
        %v6020 = vcvt.s32.f32 %v5764
        %v6021 = vcvt.s32.f32 %v5765
        %v6022 = vcvt.s32.f32 %v5766
        %v6023 = vcvt.s32.f32 %v5767
        %v6024 = vcvt.s32.f32 %v5768
        %v6025 = vcvt.s32.f32 %v5769
        %v6026 = vcvt.s32.f32 %v5770
        %v6027 = vcvt.s32.f32 %v5771
        %v6028 = vcvt.s32.f32 %v5772
        %v6029 = vcvt.s32.f32 %v5773
        %v6030 = vcvt.s32.f32 %v5774
        %v6031 = vcvt.s32.f32 %v5775
        %v6032 = vcvt.s32.f32 %v5776
        %v6033 = vcvt.s32.f32 %v5777
        %v6034 = vcvt.s32.f32 %v5778
        %v6035 = vcvt.s32.f32 %v5779
        %v6036 = vcvt.s32.f32 %v5780
        %v6037 = vcvt.s32.f32 %v5781
        %v6038 = vcvt.s32.f32 %v5782
        %v6039 = vcvt.s32.f32 %v5783
        %v6040 = vcvt.s32.f32 %v5784
        %v6041 = vcvt.s32.f32 %v5785
        %v6042 = vcvt.s32.f32 %v5786
        %v6043 = vcvt.s32.f32 %v5787
        %v6044 = vcvt.s32.f32 %v5788
        %v6045 = vcvt.s32.f32 %v5789
        %v6046 = vcvt.s32.f32 %v5790
        %v6047 = vcvt.s32.f32 %v5791
        %v6048 = vcvt.s32.f32 %v5792
        %v6049 = vcvt.s32.f32 %v5793
        %v6050 = vcvt.s32.f32 %v5794
        %v6051 = vcvt.s32.f32 %v5795
        %v6052 = vcvt.s32.f32 %v5796
        %v6053 = vcvt.s32.f32 %v5797
        %v6054 = vcvt.s32.f32 %v5798
        %v6055 = vcvt.s32.f32 %v5799
        %v6056 = vcvt.s32.f32 %v5800
        %v6057 = vcvt.s32.f32 %v5801
        %v6058 = vcvt.s32.f32 %v5802
        %v6059 = vcvt.s32.f32 %v5803
        %v6060 = vcvt.s32.f32 %v5804
        %v6061 = vcvt.s32.f32 %v5805
        %v6062 = vcvt.s32.f32 %v5806
        %v6063 = vcvt.s32.f32 %v5807
        %v6064 = vcvt.s32.f32 %v5808
        %v6065 = vcvt.s32.f32 %v5809
        %v6066 = vcvt.s32.f32 %v5810
        %v6067 = vcvt.s32.f32 %v5811
        %v6068 = vcvt.s32.f32 %v5812
        %v6069 = vcvt.s32.f32 %v5813
        %v6070 = vcvt.s32.f32 %v5814
        %v6071 = vcvt.s32.f32 %v5815
        %v6072 = vcvt.s32.f32 %v5816
        %v6073 = vcvt.s32.f32 %v5817
        %v6074 = vcvt.s32.f32 %v5818
        %v6075 = vcvt.s32.f32 %v5819
        %v6076 = vcvt.s32.f32 %v5820
        %v6077 = vcvt.s32.f32 %v5821
        %v6078 = vcvt.s32.f32 %v5822
        %v6079 = vcvt.s32.f32 %v5823
        %v6080 = vcvt.s32.f32 %v5824
        %v6081 = vcvt.s32.f32 %v5825
        %v6082 = vcvt.s32.f32 %v5826
        %v6083 = vcvt.s32.f32 %v5827
        %v6084 = vcvt.s32.f32 %v5828
        %v6085 = vcvt.s32.f32 %v5829
        %v6086 = vcvt.s32.f32 %v5830
        %v6087 = vcvt.s32.f32 %v5831
        %v6088 = vcvt.s32.f32 %v5832
        %v6089 = vcvt.s32.f32 %v5833
        %v6090 = vcvt.s32.f32 %v5834
        %v6091 = vcvt.s32.f32 %v5835
        %v6092 = vcvt.s32.f32 %v5836
        %v6093 = vcvt.s32.f32 %v5837
        %v6094 = vcvt.s32.f32 %v5838
        %v6095 = vcvt.s32.f32 %v5839
        %v6096 = vcvt.s32.f32 %v5840
        %v6097 = vcvt.s32.f32 %v5841
        %v6098 = vcvt.s32.f32 %v5842
        %v6099 = vcvt.s32.f32 %v5843
        %v6100 = vcvt.s32.f32 %v5844
        %v6101 = vcvt.s32.f32 %v5845
        %v6102 = vcvt.s32.f32 %v5846
        %v6103 = vcvt.s32.f32 %v5847
        %v6104 = vcvt.s32.f32 %v5848
        %v6105 = vcvt.s32.f32 %v5849
        %v6106 = vcvt.s32.f32 %v5850
        %v6107 = vcvt.s32.f32 %v5851
        %v6108 = vcvt.s32.f32 %v5852
        %v6109 = vcvt.s32.f32 %v5853
        %v6110 = vcvt.s32.f32 %v5854
        %v6111 = vcvt.s32.f32 %v5855
        %v6112 = vcvt.s32.f32 %v5856
        %v6113 = vcvt.s32.f32 %v5857
        %6114 = vmatprep.subr.mxu0 0.0
        %6115 = vmatpush1.msra.mxu0 %v2622
        %6116 = vmatprep.subr.mxu0 0.0
        %6117 = vmatpush1.msra.mxu0 %v2486
        %6118 = vmatprep.subr.mxu0 0.0
        %6119 = vmatpush1.msra.mxu0 %v2350
        %6120 = vmatprep.subr.mxu0 0.0
        %6121 = vmatpush1.msra.mxu0 %v2214
        %6122 = vmatprep.subr.mxu0 0.0
        %6123 = vmatpush1.msra.mxu0 %v2078
        %6124 = vmatprep.subr.mxu0 0.0
        %6125 = vmatpush1.msra.mxu0 %v1942
        %6126 = vmatprep.subr.mxu0 0.0
        %6127 = vmatpush1.msra.mxu0 %v1806
        %6128 = vmatprep.subr.mxu0 0.0
        %6129 = vmatpush1.msra.mxu0 %v1670
        %6130 = vmatprep.subr.mxu0 0.0
        %6131 = vmatpush1.msra.mxu0 %v1534
        %6132 = vmatprep.subr.mxu0 0.0
        %6133 = vmatpush1.msra.mxu0 %v1398
        %6134 = vmatprep.subr.mxu0 0.0
        %6135 = vmatpush1.msra.mxu0 %v1262
        %6136 = vmatprep.subr.mxu0 0.0
        %6137 = vmatpush1.msra.mxu0 %v1126
        %6138 = vmatprep.subr.mxu0 0.0
        %6139 = vmatpush1.msra.mxu0 %v990
        %6140 = vmatprep.subr.mxu0 0.0
        %6141 = vmatpush1.msra.mxu0 %v854
        %6142 = vmatprep.subr.mxu0 0.0
        %6143 = vmatpush1.msra.mxu0 %v718
        %6144 = vmatprep.subr.mxu0 0.0
        %6145 = vmatpush1.msra.mxu0 %v582
        %6146 = vmatprep.subr.mxu0 0.0
        %6147 = vmatpush2.msra.mxu0 %v4798
        %6148 = vmatprep.subr.mxu0 0.0
        %6149 = vmatpush2.msra.mxu0 %v4662
        %6150 = vmatprep.subr.mxu0 0.0
        %6151 = vmatpush2.msra.mxu0 %v4526
        %6152 = vmatprep.subr.mxu0 0.0
        %6153 = vmatpush2.msra.mxu0 %v4390
        %6154 = vmatprep.subr.mxu0 0.0
        %6155 = vmatpush2.msra.mxu0 %v4254
        %6156 = vmatprep.subr.mxu0 0.0
        %6157 = vmatpush2.msra.mxu0 %v4118
        %6158 = vmatprep.subr.mxu0 0.0
        %6159 = vmatpush2.msra.mxu0 %v3982
        %6160 = vmatprep.subr.mxu0 0.0
        %6161 = vmatpush2.msra.mxu0 %v3846
        %6162 = vmatprep.subr.mxu0 0.0
        %6163 = vmatpush2.msra.mxu0 %v3710
        %6164 = vmatprep.subr.mxu0 0.0
        %6165 = vmatpush2.msra.mxu0 %v3574
        %6166 = vmatprep.subr.mxu0 0.0
        %6167 = vmatpush2.msra.mxu0 %v3438
        %6168 = vmatprep.subr.mxu0 0.0
        %6169 = vmatpush2.msra.mxu0 %v3302
        %6170 = vmatprep.subr.mxu0 0.0
        %6171 = vmatpush2.msra.mxu0 %v3166
        %6172 = vmatprep.subr.mxu0 0.0
        %6173 = vmatpush2.msra.mxu0 %v3030
        %6174 = vmatprep.subr.mxu0 0.0
        %6175 = vmatpush2.msra.mxu0 %v2894
        %6176 = vmatprep.subr.mxu0 0.0
        %6177 = vmatpush2.msra.mxu0 %v2758
        %6178 = vmatprep.mubr.f32.mxu0 %v5859
        %6179 = vmatmul.mubr.f32.gmra.mxu0 %v5858
        %v6180 = vpop.f32.mrf.mxu0
        %v6181 = vadd.f32 0.0, %v6180
        %v6182 = vpop.f32.mrf.mxu0
        %6183 = vmatprep.mubr.f32.mxu0 %v5861
        %6184 = vmatmul.mubr.f32.gmra.mxu0 %v5860
        %v6185 = vpop.f32.mrf.mxu0
        %v6186 = vadd.f32 0.0, %v6185
        %v6187 = vpop.f32.mrf.mxu0
        %6188 = vmatprep.mubr.f32.mxu0 %v5863
        %6189 = vmatmul.mubr.f32.gmra.mxu0 %v5862
        %v6190 = vpop.f32.mrf.mxu0
        %v6191 = vadd.f32 0.0, %v6190
        %v6192 = vpop.f32.mrf.mxu0
        %6193 = vmatprep.mubr.f32.mxu0 %v5865
        %6194 = vmatmul.mubr.f32.gmra.mxu0 %v5864
        %v6195 = vpop.f32.mrf.mxu0
        %v6196 = vadd.f32 0.0, %v6195
        %v6197 = vpop.f32.mrf.mxu0
        %6198 = vmatprep.mubr.f32.mxu0 %v5867
        %6199 = vmatmul.mubr.f32.gmra.mxu0 %v5866
        %v6200 = vpop.f32.mrf.mxu0
        %v6201 = vadd.f32 0.0, %v6200
        %v6202 = vpop.f32.mrf.mxu0
        %6203 = vmatprep.mubr.f32.mxu0 %v5869
        %6204 = vmatmul.mubr.f32.gmra.mxu0 %v5868
        %v6205 = vpop.f32.mrf.mxu0
        %v6206 = vadd.f32 0.0, %v6205
        %v6207 = vpop.f32.mrf.mxu0
        %6208 = vmatprep.mubr.f32.mxu0 %v5871
        %6209 = vmatmul.mubr.f32.gmra.mxu0 %v5870
        %v6210 = vpop.f32.mrf.mxu0
        %v6211 = vadd.f32 0.0, %v6210
        %v6212 = vpop.f32.mrf.mxu0
        %6213 = vmatprep.mubr.f32.mxu0 %v5873
        %6214 = vmatmul.mubr.f32.gmra.mxu0 %v5872
        %v6215 = vpop.f32.mrf.mxu0
        %v6216 = vadd.f32 0.0, %v6215
        %v6217 = vpop.f32.mrf.mxu0
        %6218 = vmatprep.mubr.f32.mxu0 %v5875
        %6219 = vmatmul.mubr.f32.gmra.mxu0 %v5874
        %v6220 = vpop.f32.mrf.mxu0
        %v6221 = vadd.f32 0.0, %v6220
        %v6222 = vpop.f32.mrf.mxu0
        %6223 = vmatprep.mubr.f32.mxu0 %v5877
        %6224 = vmatmul.mubr.f32.gmra.mxu0 %v5876
        %v6225 = vpop.f32.mrf.mxu0
        %v6226 = vadd.f32 0.0, %v6225
        %v6227 = vpop.f32.mrf.mxu0
        %6228 = vmatprep.mubr.f32.mxu0 %v5879
        %6229 = vmatmul.mubr.f32.gmra.mxu0 %v5878
        %v6230 = vpop.f32.mrf.mxu0
        %v6231 = vadd.f32 0.0, %v6230
        %v6232 = vpop.f32.mrf.mxu0
        %6233 = vmatprep.mubr.f32.mxu0 %v5881
        %6234 = vmatmul.mubr.f32.gmra.mxu0 %v5880
        %v6235 = vpop.f32.mrf.mxu0
        %v6236 = vadd.f32 0.0, %v6235
        %v6237 = vpop.f32.mrf.mxu0
        %6238 = vmatprep.mubr.f32.mxu0 %v5883
        %6239 = vmatmul.mubr.f32.gmra.mxu0 %v5882
        %v6240 = vpop.f32.mrf.mxu0
        %v6241 = vadd.f32 0.0, %v6240
        %v6242 = vpop.f32.mrf.mxu0
        %6243 = vmatprep.mubr.f32.mxu0 %v5885
        %6244 = vmatmul.mubr.f32.gmra.mxu0 %v5884
        %v6245 = vpop.f32.mrf.mxu0
        %v6246 = vadd.f32 0.0, %v6245
        %v6247 = vpop.f32.mrf.mxu0
        %6248 = vmatprep.mubr.f32.mxu0 %v5887
        %6249 = vmatmul.mubr.f32.gmra.mxu0 %v5886
        %v6250 = vpop.f32.mrf.mxu0
        %v6251 = vadd.f32 0.0, %v6250
        %v6252 = vpop.f32.mrf.mxu0
        %6253 = vmatprep.mubr.f32.mxu0 %v5889
        %6254 = vmatmul.mubr.f32.gmra.mxu0 %v5888
        %v6255 = vpop.f32.mrf.mxu0
        %v6256 = vadd.f32 0.0, %v6255
        %v6257 = vpop.f32.mrf.mxu0
        %6258 = vdwg.mxu0
        %6259 = vmatprep.subr.mxu0 0.0
        %6260 = vmatpush1.msra.mxu0 %v2623
        %6261 = vmatprep.subr.mxu0 0.0
        %6262 = vmatpush1.msra.mxu0 %v2487
        %6263 = vmatprep.subr.mxu0 0.0
        %6264 = vmatpush1.msra.mxu0 %v2351
        %6265 = vmatprep.subr.mxu0 0.0
        %6266 = vmatpush1.msra.mxu0 %v2215
        %6267 = vmatprep.subr.mxu0 0.0
        %6268 = vmatpush1.msra.mxu0 %v2079
        %6269 = vmatprep.subr.mxu0 0.0
        %6270 = vmatpush1.msra.mxu0 %v1943
        %6271 = vmatprep.subr.mxu0 0.0
        %6272 = vmatpush1.msra.mxu0 %v1807
        %6273 = vmatprep.subr.mxu0 0.0
        %6274 = vmatpush1.msra.mxu0 %v1671
        %6275 = vmatprep.subr.mxu0 0.0
        %6276 = vmatpush1.msra.mxu0 %v1535
        %6277 = vmatprep.subr.mxu0 0.0
        %6278 = vmatpush1.msra.mxu0 %v1399
        %6279 = vmatprep.subr.mxu0 0.0
        %6280 = vmatpush1.msra.mxu0 %v1263
        %6281 = vmatprep.subr.mxu0 0.0
        %6282 = vmatpush1.msra.mxu0 %v1127
        %6283 = vmatprep.subr.mxu0 0.0
        %6284 = vmatpush1.msra.mxu0 %v991
        %6285 = vmatprep.subr.mxu0 0.0
        %6286 = vmatpush1.msra.mxu0 %v855
        %6287 = vmatprep.subr.mxu0 0.0
        %6288 = vmatpush1.msra.mxu0 %v719
        %6289 = vmatprep.subr.mxu0 0.0
        %6290 = vmatpush1.msra.mxu0 %v583
        %6291 = vmatprep.subr.mxu0 0.0
        %6292 = vmatpush2.msra.mxu0 %v4799
        %6293 = vmatprep.subr.mxu0 0.0
        %6294 = vmatpush2.msra.mxu0 %v4663
        %6295 = vmatprep.subr.mxu0 0.0
        %6296 = vmatpush2.msra.mxu0 %v4527
        %6297 = vmatprep.subr.mxu0 0.0
        %6298 = vmatpush2.msra.mxu0 %v4391
        %6299 = vmatprep.subr.mxu0 0.0
        %6300 = vmatpush2.msra.mxu0 %v4255
        %6301 = vmatprep.subr.mxu0 0.0
        %6302 = vmatpush2.msra.mxu0 %v4119
        %6303 = vmatprep.subr.mxu0 0.0
        %6304 = vmatpush2.msra.mxu0 %v3983
        %6305 = vmatprep.subr.mxu0 0.0
        %6306 = vmatpush2.msra.mxu0 %v3847
        %6307 = vmatprep.subr.mxu0 0.0
        %6308 = vmatpush2.msra.mxu0 %v3711
        %6309 = vmatprep.subr.mxu0 0.0
        %6310 = vmatpush2.msra.mxu0 %v3575
        %6311 = vmatprep.subr.mxu0 0.0
        %6312 = vmatpush2.msra.mxu0 %v3439
        %6313 = vmatprep.subr.mxu0 0.0
        %6314 = vmatpush2.msra.mxu0 %v3303
        %6315 = vmatprep.subr.mxu0 0.0
        %6316 = vmatpush2.msra.mxu0 %v3167
        %6317 = vmatprep.subr.mxu0 0.0
        %6318 = vmatpush2.msra.mxu0 %v3031
        %6319 = vmatprep.subr.mxu0 0.0
        %6320 = vmatpush2.msra.mxu0 %v2895
        %6321 = vmatprep.subr.mxu0 0.0
        %6322 = vmatpush2.msra.mxu0 %v2759
        %6323 = vmatprep.mubr.f32.mxu0 %v5891
        %6324 = vmatmul.mubr.f32.gmra.mxu0 %v5890
        %v6325 = vpop.f32.mrf.mxu0
        %v6326 = vadd.f32 0.0, %v6325
        %v6327 = vpop.f32.mrf.mxu0
        %6328 = vmatprep.mubr.f32.mxu0 %v5893
        %6329 = vmatmul.mubr.f32.gmra.mxu0 %v5892
        %v6330 = vpop.f32.mrf.mxu0
        %v6331 = vadd.f32 0.0, %v6330
        %v6332 = vpop.f32.mrf.mxu0
        %6333 = vmatprep.mubr.f32.mxu0 %v5895
        %6334 = vmatmul.mubr.f32.gmra.mxu0 %v5894
        %v6335 = vpop.f32.mrf.mxu0
        %v6336 = vadd.f32 0.0, %v6335
        %v6337 = vpop.f32.mrf.mxu0
        %6338 = vmatprep.mubr.f32.mxu0 %v5897
        %6339 = vmatmul.mubr.f32.gmra.mxu0 %v5896
        %v6340 = vpop.f32.mrf.mxu0
        %v6341 = vadd.f32 0.0, %v6340
        %v6342 = vpop.f32.mrf.mxu0
        %6343 = vmatprep.mubr.f32.mxu0 %v5899
        %6344 = vmatmul.mubr.f32.gmra.mxu0 %v5898
        %v6345 = vpop.f32.mrf.mxu0
        %v6346 = vadd.f32 0.0, %v6345
        %v6347 = vpop.f32.mrf.mxu0
        %6348 = vmatprep.mubr.f32.mxu0 %v5901
        %6349 = vmatmul.mubr.f32.gmra.mxu0 %v5900
        %v6350 = vpop.f32.mrf.mxu0
        %v6351 = vadd.f32 0.0, %v6350
        %v6352 = vpop.f32.mrf.mxu0
        %6353 = vmatprep.mubr.f32.mxu0 %v5903
        %6354 = vmatmul.mubr.f32.gmra.mxu0 %v5902
        %v6355 = vpop.f32.mrf.mxu0
        %v6356 = vadd.f32 0.0, %v6355
        %v6357 = vpop.f32.mrf.mxu0
        %6358 = vmatprep.mubr.f32.mxu0 %v5905
        %6359 = vmatmul.mubr.f32.gmra.mxu0 %v5904
        %v6360 = vpop.f32.mrf.mxu0
        %v6361 = vadd.f32 0.0, %v6360
        %v6362 = vpop.f32.mrf.mxu0
        %6363 = vmatprep.mubr.f32.mxu0 %v5907
        %6364 = vmatmul.mubr.f32.gmra.mxu0 %v5906
        %v6365 = vpop.f32.mrf.mxu0
        %v6366 = vadd.f32 0.0, %v6365
        %v6367 = vpop.f32.mrf.mxu0
        %6368 = vmatprep.mubr.f32.mxu0 %v5909
        %6369 = vmatmul.mubr.f32.gmra.mxu0 %v5908
        %v6370 = vpop.f32.mrf.mxu0
        %v6371 = vadd.f32 0.0, %v6370
        %v6372 = vpop.f32.mrf.mxu0
        %6373 = vmatprep.mubr.f32.mxu0 %v5911
        %6374 = vmatmul.mubr.f32.gmra.mxu0 %v5910
        %v6375 = vpop.f32.mrf.mxu0
        %v6376 = vadd.f32 0.0, %v6375
        %v6377 = vpop.f32.mrf.mxu0
        %6378 = vmatprep.mubr.f32.mxu0 %v5913
        %6379 = vmatmul.mubr.f32.gmra.mxu0 %v5912
        %v6380 = vpop.f32.mrf.mxu0
        %v6381 = vadd.f32 0.0, %v6380
        %v6382 = vpop.f32.mrf.mxu0
        %6383 = vmatprep.mubr.f32.mxu0 %v5915
        %6384 = vmatmul.mubr.f32.gmra.mxu0 %v5914
        %v6385 = vpop.f32.mrf.mxu0
        %v6386 = vadd.f32 0.0, %v6385
        %v6387 = vpop.f32.mrf.mxu0
        %6388 = vmatprep.mubr.f32.mxu0 %v5917
        %6389 = vmatmul.mubr.f32.gmra.mxu0 %v5916
        %v6390 = vpop.f32.mrf.mxu0
        %v6391 = vadd.f32 0.0, %v6390
        %v6392 = vpop.f32.mrf.mxu0
        %6393 = vmatprep.mubr.f32.mxu0 %v5919
        %6394 = vmatmul.mubr.f32.gmra.mxu0 %v5918
        %v6395 = vpop.f32.mrf.mxu0
        %v6396 = vadd.f32 0.0, %v6395
        %v6397 = vpop.f32.mrf.mxu0
        %6398 = vmatprep.mubr.f32.mxu0 %v5921
        %6399 = vmatmul.mubr.f32.gmra.mxu0 %v5920
        %v6400 = vpop.f32.mrf.mxu0
        %v6401 = vadd.f32 0.0, %v6400
        %v6402 = vpop.f32.mrf.mxu0
        %6403 = vdwg.mxu0
        %6404 = vmatprep.subr.mxu0 0.0
        %6405 = vmatpush1.msra.mxu0 %v2624
        %6406 = vmatprep.subr.mxu0 0.0
        %6407 = vmatpush1.msra.mxu0 %v2488
        %6408 = vmatprep.subr.mxu0 0.0
        %6409 = vmatpush1.msra.mxu0 %v2352
        %6410 = vmatprep.subr.mxu0 0.0
        %6411 = vmatpush1.msra.mxu0 %v2216
        %6412 = vmatprep.subr.mxu0 0.0
        %6413 = vmatpush1.msra.mxu0 %v2080
        %6414 = vmatprep.subr.mxu0 0.0
        %6415 = vmatpush1.msra.mxu0 %v1944
        %6416 = vmatprep.subr.mxu0 0.0
        %6417 = vmatpush1.msra.mxu0 %v1808
        %6418 = vmatprep.subr.mxu0 0.0
        %6419 = vmatpush1.msra.mxu0 %v1672
        %6420 = vmatprep.subr.mxu0 0.0
        %6421 = vmatpush1.msra.mxu0 %v1536
        %6422 = vmatprep.subr.mxu0 0.0
        %6423 = vmatpush1.msra.mxu0 %v1400
        %6424 = vmatprep.subr.mxu0 0.0
        %6425 = vmatpush1.msra.mxu0 %v1264
        %6426 = vmatprep.subr.mxu0 0.0
        %6427 = vmatpush1.msra.mxu0 %v1128
        %6428 = vmatprep.subr.mxu0 0.0
        %6429 = vmatpush1.msra.mxu0 %v992
        %6430 = vmatprep.subr.mxu0 0.0
        %6431 = vmatpush1.msra.mxu0 %v856
        %6432 = vmatprep.subr.mxu0 0.0
        %6433 = vmatpush1.msra.mxu0 %v720
        %6434 = vmatprep.subr.mxu0 0.0
        %6435 = vmatpush1.msra.mxu0 %v584
        %6436 = vmatprep.subr.mxu0 0.0
        %6437 = vmatpush2.msra.mxu0 %v4800
        %6438 = vmatprep.subr.mxu0 0.0
        %6439 = vmatpush2.msra.mxu0 %v4664
        %6440 = vmatprep.subr.mxu0 0.0
        %6441 = vmatpush2.msra.mxu0 %v4528
        %6442 = vmatprep.subr.mxu0 0.0
        %6443 = vmatpush2.msra.mxu0 %v4392
        %6444 = vmatprep.subr.mxu0 0.0
        %6445 = vmatpush2.msra.mxu0 %v4256
        %6446 = vmatprep.subr.mxu0 0.0
        %6447 = vmatpush2.msra.mxu0 %v4120
        %6448 = vmatprep.subr.mxu0 0.0
        %6449 = vmatpush2.msra.mxu0 %v3984
        %6450 = vmatprep.subr.mxu0 0.0
        %6451 = vmatpush2.msra.mxu0 %v3848
        %6452 = vmatprep.subr.mxu0 0.0
        %6453 = vmatpush2.msra.mxu0 %v3712
        %6454 = vmatprep.subr.mxu0 0.0
        %6455 = vmatpush2.msra.mxu0 %v3576
        %6456 = vmatprep.subr.mxu0 0.0
        %6457 = vmatpush2.msra.mxu0 %v3440
        %6458 = vmatprep.subr.mxu0 0.0
        %6459 = vmatpush2.msra.mxu0 %v3304
        %6460 = vmatprep.subr.mxu0 0.0
        %6461 = vmatpush2.msra.mxu0 %v3168
        %6462 = vmatprep.subr.mxu0 0.0
        %6463 = vmatpush2.msra.mxu0 %v3032
        %6464 = vmatprep.subr.mxu0 0.0
        %6465 = vmatpush2.msra.mxu0 %v2896
        %6466 = vmatprep.subr.mxu0 0.0
        %6467 = vmatpush2.msra.mxu0 %v2760
        %6468 = vmatprep.mubr.f32.mxu0 %v5923
        %6469 = vmatmul.mubr.f32.gmra.mxu0 %v5922
        %v6470 = vpop.f32.mrf.mxu0
        %v6471 = vadd.f32 0.0, %v6470
        %v6472 = vpop.f32.mrf.mxu0
        %6473 = vmatprep.mubr.f32.mxu0 %v5925
        %6474 = vmatmul.mubr.f32.gmra.mxu0 %v5924
        %v6475 = vpop.f32.mrf.mxu0
        %v6476 = vadd.f32 0.0, %v6475
        %v6477 = vpop.f32.mrf.mxu0
        %6478 = vmatprep.mubr.f32.mxu0 %v5927
        %6479 = vmatmul.mubr.f32.gmra.mxu0 %v5926
        %v6480 = vpop.f32.mrf.mxu0
        %v6481 = vadd.f32 0.0, %v6480
        %v6482 = vpop.f32.mrf.mxu0
        %6483 = vmatprep.mubr.f32.mxu0 %v5929
        %6484 = vmatmul.mubr.f32.gmra.mxu0 %v5928
        %v6485 = vpop.f32.mrf.mxu0
        %v6486 = vadd.f32 0.0, %v6485
        %v6487 = vpop.f32.mrf.mxu0
        %6488 = vmatprep.mubr.f32.mxu0 %v5931
        %6489 = vmatmul.mubr.f32.gmra.mxu0 %v5930
        %v6490 = vpop.f32.mrf.mxu0
        %v6491 = vadd.f32 0.0, %v6490
        %v6492 = vpop.f32.mrf.mxu0
        %6493 = vmatprep.mubr.f32.mxu0 %v5933
        %6494 = vmatmul.mubr.f32.gmra.mxu0 %v5932
        %v6495 = vpop.f32.mrf.mxu0
        %v6496 = vadd.f32 0.0, %v6495
        %v6497 = vpop.f32.mrf.mxu0
        %6498 = vmatprep.mubr.f32.mxu0 %v5935
        %6499 = vmatmul.mubr.f32.gmra.mxu0 %v5934
        %v6500 = vpop.f32.mrf.mxu0
        %v6501 = vadd.f32 0.0, %v6500
        %v6502 = vpop.f32.mrf.mxu0
        %6503 = vmatprep.mubr.f32.mxu0 %v5937
        %6504 = vmatmul.mubr.f32.gmra.mxu0 %v5936
        %v6505 = vpop.f32.mrf.mxu0
        %v6506 = vadd.f32 0.0, %v6505
        %v6507 = vpop.f32.mrf.mxu0
        %6508 = vmatprep.mubr.f32.mxu0 %v5939
        %6509 = vmatmul.mubr.f32.gmra.mxu0 %v5938
        %v6510 = vpop.f32.mrf.mxu0
        %v6511 = vadd.f32 0.0, %v6510
        %v6512 = vpop.f32.mrf.mxu0
        %6513 = vmatprep.mubr.f32.mxu0 %v5941
        %6514 = vmatmul.mubr.f32.gmra.mxu0 %v5940
        %v6515 = vpop.f32.mrf.mxu0
        %v6516 = vadd.f32 0.0, %v6515
        %v6517 = vpop.f32.mrf.mxu0
        %6518 = vmatprep.mubr.f32.mxu0 %v5943
        %6519 = vmatmul.mubr.f32.gmra.mxu0 %v5942
        %v6520 = vpop.f32.mrf.mxu0
        %v6521 = vadd.f32 0.0, %v6520
        %v6522 = vpop.f32.mrf.mxu0
        %6523 = vmatprep.mubr.f32.mxu0 %v5945
        %6524 = vmatmul.mubr.f32.gmra.mxu0 %v5944
        %v6525 = vpop.f32.mrf.mxu0
        %v6526 = vadd.f32 0.0, %v6525
        %v6527 = vpop.f32.mrf.mxu0
        %6528 = vmatprep.mubr.f32.mxu0 %v5947
        %6529 = vmatmul.mubr.f32.gmra.mxu0 %v5946
        %v6530 = vpop.f32.mrf.mxu0
        %v6531 = vadd.f32 0.0, %v6530
        %v6532 = vpop.f32.mrf.mxu0
        %6533 = vmatprep.mubr.f32.mxu0 %v5949
        %6534 = vmatmul.mubr.f32.gmra.mxu0 %v5948
        %v6535 = vpop.f32.mrf.mxu0
        %v6536 = vadd.f32 0.0, %v6535
        %v6537 = vpop.f32.mrf.mxu0
        %6538 = vmatprep.mubr.f32.mxu0 %v5951
        %6539 = vmatmul.mubr.f32.gmra.mxu0 %v5950
        %v6540 = vpop.f32.mrf.mxu0
        %v6541 = vadd.f32 0.0, %v6540
        %v6542 = vpop.f32.mrf.mxu0
        %6543 = vmatprep.mubr.f32.mxu0 %v5953
        %6544 = vmatmul.mubr.f32.gmra.mxu0 %v5952
        %v6545 = vpop.f32.mrf.mxu0
        %v6546 = vadd.f32 0.0, %v6545
        %v6547 = vpop.f32.mrf.mxu0
        %6548 = vdwg.mxu0
        %6549 = vmatprep.subr.mxu0 0.0
        %6550 = vmatpush1.msra.mxu0 %v2625
        %6551 = vmatprep.subr.mxu0 0.0
        %6552 = vmatpush1.msra.mxu0 %v2489
        %6553 = vmatprep.subr.mxu0 0.0
        %6554 = vmatpush1.msra.mxu0 %v2353
        %6555 = vmatprep.subr.mxu0 0.0
        %6556 = vmatpush1.msra.mxu0 %v2217
        %6557 = vmatprep.subr.mxu0 0.0
        %6558 = vmatpush1.msra.mxu0 %v2081
        %6559 = vmatprep.subr.mxu0 0.0
        %6560 = vmatpush1.msra.mxu0 %v1945
        %6561 = vmatprep.subr.mxu0 0.0
        %6562 = vmatpush1.msra.mxu0 %v1809
        %6563 = vmatprep.subr.mxu0 0.0
        %6564 = vmatpush1.msra.mxu0 %v1673
        %6565 = vmatprep.subr.mxu0 0.0
        %6566 = vmatpush1.msra.mxu0 %v1537
        %6567 = vmatprep.subr.mxu0 0.0
        %6568 = vmatpush1.msra.mxu0 %v1401
        %6569 = vmatprep.subr.mxu0 0.0
        %6570 = vmatpush1.msra.mxu0 %v1265
        %6571 = vmatprep.subr.mxu0 0.0
        %6572 = vmatpush1.msra.mxu0 %v1129
        %6573 = vmatprep.subr.mxu0 0.0
        %6574 = vmatpush1.msra.mxu0 %v993
        %6575 = vmatprep.subr.mxu0 0.0
        %6576 = vmatpush1.msra.mxu0 %v857
        %6577 = vmatprep.subr.mxu0 0.0
        %6578 = vmatpush1.msra.mxu0 %v721
        %6579 = vmatprep.subr.mxu0 0.0
        %6580 = vmatpush1.msra.mxu0 %v585
        %6581 = vmatprep.subr.mxu0 0.0
        %6582 = vmatpush2.msra.mxu0 %v4801
        %6583 = vmatprep.subr.mxu0 0.0
        %6584 = vmatpush2.msra.mxu0 %v4665
        %6585 = vmatprep.subr.mxu0 0.0
        %6586 = vmatpush2.msra.mxu0 %v4529
        %6587 = vmatprep.subr.mxu0 0.0
        %6588 = vmatpush2.msra.mxu0 %v4393
        %6589 = vmatprep.subr.mxu0 0.0
        %6590 = vmatpush2.msra.mxu0 %v4257
        %6591 = vmatprep.subr.mxu0 0.0
        %6592 = vmatpush2.msra.mxu0 %v4121
        %6593 = vmatprep.subr.mxu0 0.0
        %6594 = vmatpush2.msra.mxu0 %v3985
        %6595 = vmatprep.subr.mxu0 0.0
        %6596 = vmatpush2.msra.mxu0 %v3849
        %6597 = vmatprep.subr.mxu0 0.0
        %6598 = vmatpush2.msra.mxu0 %v3713
        %6599 = vmatprep.subr.mxu0 0.0
        %6600 = vmatpush2.msra.mxu0 %v3577
        %6601 = vmatprep.subr.mxu0 0.0
        %6602 = vmatpush2.msra.mxu0 %v3441
        %6603 = vmatprep.subr.mxu0 0.0
        %6604 = vmatpush2.msra.mxu0 %v3305
        %6605 = vmatprep.subr.mxu0 0.0
        %6606 = vmatpush2.msra.mxu0 %v3169
        %6607 = vmatprep.subr.mxu0 0.0
        %6608 = vmatpush2.msra.mxu0 %v3033
        %6609 = vmatprep.subr.mxu0 0.0
        %6610 = vmatpush2.msra.mxu0 %v2897
        %6611 = vmatprep.subr.mxu0 0.0
        %6612 = vmatpush2.msra.mxu0 %v2761
        %6613 = vmatprep.mubr.f32.mxu0 %v5955
        %6614 = vmatmul.mubr.f32.gmra.mxu0 %v5954
        %v6615 = vpop.f32.mrf.mxu0
        %v6616 = vadd.f32 0.0, %v6615
        %v6617 = vpop.f32.mrf.mxu0
        %6618 = vmatprep.mubr.f32.mxu0 %v5957
        %6619 = vmatmul.mubr.f32.gmra.mxu0 %v5956
        %v6620 = vpop.f32.mrf.mxu0
        %v6621 = vadd.f32 0.0, %v6620
        %v6622 = vpop.f32.mrf.mxu0
        %6623 = vmatprep.mubr.f32.mxu0 %v5959
        %6624 = vmatmul.mubr.f32.gmra.mxu0 %v5958
        %v6625 = vpop.f32.mrf.mxu0
        %v6626 = vadd.f32 0.0, %v6625
        %v6627 = vpop.f32.mrf.mxu0
        %6628 = vmatprep.mubr.f32.mxu0 %v5961
        %6629 = vmatmul.mubr.f32.gmra.mxu0 %v5960
        %v6630 = vpop.f32.mrf.mxu0
        %v6631 = vadd.f32 0.0, %v6630
        %v6632 = vpop.f32.mrf.mxu0
        %6633 = vmatprep.mubr.f32.mxu0 %v5963
        %6634 = vmatmul.mubr.f32.gmra.mxu0 %v5962
        %v6635 = vpop.f32.mrf.mxu0
        %v6636 = vadd.f32 0.0, %v6635
        %v6637 = vpop.f32.mrf.mxu0
        %6638 = vmatprep.mubr.f32.mxu0 %v5965
        %6639 = vmatmul.mubr.f32.gmra.mxu0 %v5964
        %v6640 = vpop.f32.mrf.mxu0
        %v6641 = vadd.f32 0.0, %v6640
        %v6642 = vpop.f32.mrf.mxu0
        %6643 = vmatprep.mubr.f32.mxu0 %v5967
        %6644 = vmatmul.mubr.f32.gmra.mxu0 %v5966
        %v6645 = vpop.f32.mrf.mxu0
        %v6646 = vadd.f32 0.0, %v6645
        %v6647 = vpop.f32.mrf.mxu0
        %6648 = vmatprep.mubr.f32.mxu0 %v5969
        %6649 = vmatmul.mubr.f32.gmra.mxu0 %v5968
        %v6650 = vpop.f32.mrf.mxu0
        %v6651 = vadd.f32 0.0, %v6650
        %v6652 = vpop.f32.mrf.mxu0
        %6653 = vmatprep.mubr.f32.mxu0 %v5971
        %6654 = vmatmul.mubr.f32.gmra.mxu0 %v5970
        %v6655 = vpop.f32.mrf.mxu0
        %v6656 = vadd.f32 0.0, %v6655
        %v6657 = vpop.f32.mrf.mxu0
        %6658 = vmatprep.mubr.f32.mxu0 %v5973
        %6659 = vmatmul.mubr.f32.gmra.mxu0 %v5972
        %v6660 = vpop.f32.mrf.mxu0
        %v6661 = vadd.f32 0.0, %v6660
        %v6662 = vpop.f32.mrf.mxu0
        %6663 = vmatprep.mubr.f32.mxu0 %v5975
        %6664 = vmatmul.mubr.f32.gmra.mxu0 %v5974
        %v6665 = vpop.f32.mrf.mxu0
        %v6666 = vadd.f32 0.0, %v6665
        %v6667 = vpop.f32.mrf.mxu0
        %6668 = vmatprep.mubr.f32.mxu0 %v5977
        %6669 = vmatmul.mubr.f32.gmra.mxu0 %v5976
        %v6670 = vpop.f32.mrf.mxu0
        %v6671 = vadd.f32 0.0, %v6670
        %v6672 = vpop.f32.mrf.mxu0
        %6673 = vmatprep.mubr.f32.mxu0 %v5979
        %6674 = vmatmul.mubr.f32.gmra.mxu0 %v5978
        %v6675 = vpop.f32.mrf.mxu0
        %v6676 = vadd.f32 0.0, %v6675
        %v6677 = vpop.f32.mrf.mxu0
        %6678 = vmatprep.mubr.f32.mxu0 %v5981
        %6679 = vmatmul.mubr.f32.gmra.mxu0 %v5980
        %v6680 = vpop.f32.mrf.mxu0
        %v6681 = vadd.f32 0.0, %v6680
        %v6682 = vpop.f32.mrf.mxu0
        %6683 = vmatprep.mubr.f32.mxu0 %v5983
        %6684 = vmatmul.mubr.f32.gmra.mxu0 %v5982
        %v6685 = vpop.f32.mrf.mxu0
        %v6686 = vadd.f32 0.0, %v6685
        %v6687 = vpop.f32.mrf.mxu0
        %6688 = vmatprep.mubr.f32.mxu0 %v5985
        %6689 = vmatmul.mubr.f32.gmra.mxu0 %v5984
        %v6690 = vpop.f32.mrf.mxu0
        %v6691 = vadd.f32 0.0, %v6690
        %v6692 = vpop.f32.mrf.mxu0
        %6693 = vdwg.mxu0
        %6694 = vmatprep.subr.mxu0 0.0
        %6695 = vmatpush1.msra.mxu0 %v2626
        %6696 = vmatprep.subr.mxu0 0.0
        %6697 = vmatpush1.msra.mxu0 %v2490
        %6698 = vmatprep.subr.mxu0 0.0
        %6699 = vmatpush1.msra.mxu0 %v2354
        %6700 = vmatprep.subr.mxu0 0.0
        %6701 = vmatpush1.msra.mxu0 %v2218
        %6702 = vmatprep.subr.mxu0 0.0
        %6703 = vmatpush1.msra.mxu0 %v2082
        %6704 = vmatprep.subr.mxu0 0.0
        %6705 = vmatpush1.msra.mxu0 %v1946
        %6706 = vmatprep.subr.mxu0 0.0
        %6707 = vmatpush1.msra.mxu0 %v1810
        %6708 = vmatprep.subr.mxu0 0.0
        %6709 = vmatpush1.msra.mxu0 %v1674
        %6710 = vmatprep.subr.mxu0 0.0
        %6711 = vmatpush1.msra.mxu0 %v1538
        %6712 = vmatprep.subr.mxu0 0.0
        %6713 = vmatpush1.msra.mxu0 %v1402
        %6714 = vmatprep.subr.mxu0 0.0
        %6715 = vmatpush1.msra.mxu0 %v1266
        %6716 = vmatprep.subr.mxu0 0.0
        %6717 = vmatpush1.msra.mxu0 %v1130
        %6718 = vmatprep.subr.mxu0 0.0
        %6719 = vmatpush1.msra.mxu0 %v994
        %6720 = vmatprep.subr.mxu0 0.0
        %6721 = vmatpush1.msra.mxu0 %v858
        %6722 = vmatprep.subr.mxu0 0.0
        %6723 = vmatpush1.msra.mxu0 %v722
        %6724 = vmatprep.subr.mxu0 0.0
        %6725 = vmatpush1.msra.mxu0 %v586
        %6726 = vmatprep.subr.mxu0 0.0
        %6727 = vmatpush2.msra.mxu0 %v4802
        %6728 = vmatprep.subr.mxu0 0.0
        %6729 = vmatpush2.msra.mxu0 %v4666
        %6730 = vmatprep.subr.mxu0 0.0
        %6731 = vmatpush2.msra.mxu0 %v4530
        %6732 = vmatprep.subr.mxu0 0.0
        %6733 = vmatpush2.msra.mxu0 %v4394
        %6734 = vmatprep.subr.mxu0 0.0
        %6735 = vmatpush2.msra.mxu0 %v4258
        %6736 = vmatprep.subr.mxu0 0.0
        %6737 = vmatpush2.msra.mxu0 %v4122
        %6738 = vmatprep.subr.mxu0 0.0
        %6739 = vmatpush2.msra.mxu0 %v3986
        %6740 = vmatprep.subr.mxu0 0.0
        %6741 = vmatpush2.msra.mxu0 %v3850
        %6742 = vmatprep.subr.mxu0 0.0
        %6743 = vmatpush2.msra.mxu0 %v3714
        %6744 = vmatprep.subr.mxu0 0.0
        %6745 = vmatpush2.msra.mxu0 %v3578
        %6746 = vmatprep.subr.mxu0 0.0
        %6747 = vmatpush2.msra.mxu0 %v3442
        %6748 = vmatprep.subr.mxu0 0.0
        %6749 = vmatpush2.msra.mxu0 %v3306
        %6750 = vmatprep.subr.mxu0 0.0
        %6751 = vmatpush2.msra.mxu0 %v3170
        %6752 = vmatprep.subr.mxu0 0.0
        %6753 = vmatpush2.msra.mxu0 %v3034
        %6754 = vmatprep.subr.mxu0 0.0
        %6755 = vmatpush2.msra.mxu0 %v2898
        %6756 = vmatprep.subr.mxu0 0.0
        %6757 = vmatpush2.msra.mxu0 %v2762
        %6758 = vmatprep.mubr.f32.mxu0 %v5987
        %6759 = vmatmul.mubr.f32.gmra.mxu0 %v5986
        %v6760 = vpop.f32.mrf.mxu0
        %v6761 = vadd.f32 0.0, %v6760
        %v6762 = vpop.f32.mrf.mxu0
        %6763 = vmatprep.mubr.f32.mxu0 %v5989
        %6764 = vmatmul.mubr.f32.gmra.mxu0 %v5988
        %v6765 = vpop.f32.mrf.mxu0
        %v6766 = vadd.f32 0.0, %v6765
        %v6767 = vpop.f32.mrf.mxu0
        %6768 = vmatprep.mubr.f32.mxu0 %v5991
        %6769 = vmatmul.mubr.f32.gmra.mxu0 %v5990
        %v6770 = vpop.f32.mrf.mxu0
        %v6771 = vadd.f32 0.0, %v6770
        %v6772 = vpop.f32.mrf.mxu0
        %6773 = vmatprep.mubr.f32.mxu0 %v5993
        %6774 = vmatmul.mubr.f32.gmra.mxu0 %v5992
        %v6775 = vpop.f32.mrf.mxu0
        %v6776 = vadd.f32 0.0, %v6775
        %v6777 = vpop.f32.mrf.mxu0
        %6778 = vmatprep.mubr.f32.mxu0 %v5995
        %6779 = vmatmul.mubr.f32.gmra.mxu0 %v5994
        %v6780 = vpop.f32.mrf.mxu0
        %v6781 = vadd.f32 0.0, %v6780
        %v6782 = vpop.f32.mrf.mxu0
        %6783 = vmatprep.mubr.f32.mxu0 %v5997
        %6784 = vmatmul.mubr.f32.gmra.mxu0 %v5996
        %v6785 = vpop.f32.mrf.mxu0
        %v6786 = vadd.f32 0.0, %v6785
        %v6787 = vpop.f32.mrf.mxu0
        %6788 = vmatprep.mubr.f32.mxu0 %v5999
        %6789 = vmatmul.mubr.f32.gmra.mxu0 %v5998
        %v6790 = vpop.f32.mrf.mxu0
        %v6791 = vadd.f32 0.0, %v6790
        %v6792 = vpop.f32.mrf.mxu0
        %6793 = vmatprep.mubr.f32.mxu0 %v6001
        %6794 = vmatmul.mubr.f32.gmra.mxu0 %v6000
        %v6795 = vpop.f32.mrf.mxu0
        %v6796 = vadd.f32 0.0, %v6795
        %v6797 = vpop.f32.mrf.mxu0
        %6798 = vmatprep.mubr.f32.mxu0 %v6003
        %6799 = vmatmul.mubr.f32.gmra.mxu0 %v6002
        %v6800 = vpop.f32.mrf.mxu0
        %v6801 = vadd.f32 0.0, %v6800
        %v6802 = vpop.f32.mrf.mxu0
        %6803 = vmatprep.mubr.f32.mxu0 %v6005
        %6804 = vmatmul.mubr.f32.gmra.mxu0 %v6004
        %v6805 = vpop.f32.mrf.mxu0
        %v6806 = vadd.f32 0.0, %v6805
        %v6807 = vpop.f32.mrf.mxu0
        %6808 = vmatprep.mubr.f32.mxu0 %v6007
        %6809 = vmatmul.mubr.f32.gmra.mxu0 %v6006
        %v6810 = vpop.f32.mrf.mxu0
        %v6811 = vadd.f32 0.0, %v6810
        %v6812 = vpop.f32.mrf.mxu0
        %6813 = vmatprep.mubr.f32.mxu0 %v6009
        %6814 = vmatmul.mubr.f32.gmra.mxu0 %v6008
        %v6815 = vpop.f32.mrf.mxu0
        %v6816 = vadd.f32 0.0, %v6815
        %v6817 = vpop.f32.mrf.mxu0
        %6818 = vmatprep.mubr.f32.mxu0 %v6011
        %6819 = vmatmul.mubr.f32.gmra.mxu0 %v6010
        %v6820 = vpop.f32.mrf.mxu0
        %v6821 = vadd.f32 0.0, %v6820
        %v6822 = vpop.f32.mrf.mxu0
        %6823 = vmatprep.mubr.f32.mxu0 %v6013
        %6824 = vmatmul.mubr.f32.gmra.mxu0 %v6012
        %v6825 = vpop.f32.mrf.mxu0
        %v6826 = vadd.f32 0.0, %v6825
        %v6827 = vpop.f32.mrf.mxu0
        %6828 = vmatprep.mubr.f32.mxu0 %v6015
        %6829 = vmatmul.mubr.f32.gmra.mxu0 %v6014
        %v6830 = vpop.f32.mrf.mxu0
        %v6831 = vadd.f32 0.0, %v6830
        %v6832 = vpop.f32.mrf.mxu0
        %6833 = vmatprep.mubr.f32.mxu0 %v6017
        %6834 = vmatmul.mubr.f32.gmra.mxu0 %v6016
        %v6835 = vpop.f32.mrf.mxu0
        %v6836 = vadd.f32 0.0, %v6835
        %v6837 = vpop.f32.mrf.mxu0
        %6838 = vdwg.mxu0
        %6839 = vmatprep.subr.mxu0 0.0
        %6840 = vmatpush1.msra.mxu0 %v2627
        %6841 = vmatprep.subr.mxu0 0.0
        %6842 = vmatpush1.msra.mxu0 %v2491
        %6843 = vmatprep.subr.mxu0 0.0
        %6844 = vmatpush1.msra.mxu0 %v2355
        %6845 = vmatprep.subr.mxu0 0.0
        %6846 = vmatpush1.msra.mxu0 %v2219
        %6847 = vmatprep.subr.mxu0 0.0
        %6848 = vmatpush1.msra.mxu0 %v2083
        %6849 = vmatprep.subr.mxu0 0.0
        %6850 = vmatpush1.msra.mxu0 %v1947
        %6851 = vmatprep.subr.mxu0 0.0
        %6852 = vmatpush1.msra.mxu0 %v1811
        %6853 = vmatprep.subr.mxu0 0.0
        %6854 = vmatpush1.msra.mxu0 %v1675
        %6855 = vmatprep.subr.mxu0 0.0
        %6856 = vmatpush1.msra.mxu0 %v1539
        %6857 = vmatprep.subr.mxu0 0.0
        %6858 = vmatpush1.msra.mxu0 %v1403
        %6859 = vmatprep.subr.mxu0 0.0
        %6860 = vmatpush1.msra.mxu0 %v1267
        %6861 = vmatprep.subr.mxu0 0.0
        %6862 = vmatpush1.msra.mxu0 %v1131
        %6863 = vmatprep.subr.mxu0 0.0
        %6864 = vmatpush1.msra.mxu0 %v995
        %6865 = vmatprep.subr.mxu0 0.0
        %6866 = vmatpush1.msra.mxu0 %v859
        %6867 = vmatprep.subr.mxu0 0.0
        %6868 = vmatpush1.msra.mxu0 %v723
        %6869 = vmatprep.subr.mxu0 0.0
        %6870 = vmatpush1.msra.mxu0 %v587
        %6871 = vmatprep.subr.mxu0 0.0
        %6872 = vmatpush2.msra.mxu0 %v4803
        %6873 = vmatprep.subr.mxu0 0.0
        %6874 = vmatpush2.msra.mxu0 %v4667
        %6875 = vmatprep.subr.mxu0 0.0
        %6876 = vmatpush2.msra.mxu0 %v4531
        %6877 = vmatprep.subr.mxu0 0.0
        %6878 = vmatpush2.msra.mxu0 %v4395
        %6879 = vmatprep.subr.mxu0 0.0
        %6880 = vmatpush2.msra.mxu0 %v4259
        %6881 = vmatprep.subr.mxu0 0.0
        %6882 = vmatpush2.msra.mxu0 %v4123
        %6883 = vmatprep.subr.mxu0 0.0
        %6884 = vmatpush2.msra.mxu0 %v3987
        %6885 = vmatprep.subr.mxu0 0.0
        %6886 = vmatpush2.msra.mxu0 %v3851
        %6887 = vmatprep.subr.mxu0 0.0
        %6888 = vmatpush2.msra.mxu0 %v3715
        %6889 = vmatprep.subr.mxu0 0.0
        %6890 = vmatpush2.msra.mxu0 %v3579
        %6891 = vmatprep.subr.mxu0 0.0
        %6892 = vmatpush2.msra.mxu0 %v3443
        %6893 = vmatprep.subr.mxu0 0.0
        %6894 = vmatpush2.msra.mxu0 %v3307
        %6895 = vmatprep.subr.mxu0 0.0
        %6896 = vmatpush2.msra.mxu0 %v3171
        %6897 = vmatprep.subr.mxu0 0.0
        %6898 = vmatpush2.msra.mxu0 %v3035
        %6899 = vmatprep.subr.mxu0 0.0
        %6900 = vmatpush2.msra.mxu0 %v2899
        %6901 = vmatprep.subr.mxu0 0.0
        %6902 = vmatpush2.msra.mxu0 %v2763
        %6903 = vmatprep.mubr.f32.mxu0 %v6019
        %6904 = vmatmul.mubr.f32.gmra.mxu0 %v6018
        %v6905 = vpop.f32.mrf.mxu0
        %v6906 = vadd.f32 0.0, %v6905
        %v6907 = vpop.f32.mrf.mxu0
        %6908 = vmatprep.mubr.f32.mxu0 %v6021
        %6909 = vmatmul.mubr.f32.gmra.mxu0 %v6020
        %v6910 = vpop.f32.mrf.mxu0
        %v6911 = vadd.f32 0.0, %v6910
        %v6912 = vpop.f32.mrf.mxu0
        %6913 = vmatprep.mubr.f32.mxu0 %v6023
        %6914 = vmatmul.mubr.f32.gmra.mxu0 %v6022
        %v6915 = vpop.f32.mrf.mxu0
        %v6916 = vadd.f32 0.0, %v6915
        %v6917 = vpop.f32.mrf.mxu0
        %6918 = vmatprep.mubr.f32.mxu0 %v6025
        %6919 = vmatmul.mubr.f32.gmra.mxu0 %v6024
        %v6920 = vpop.f32.mrf.mxu0
        %v6921 = vadd.f32 0.0, %v6920
        %v6922 = vpop.f32.mrf.mxu0
        %6923 = vmatprep.mubr.f32.mxu0 %v6027
        %6924 = vmatmul.mubr.f32.gmra.mxu0 %v6026
        %v6925 = vpop.f32.mrf.mxu0
        %v6926 = vadd.f32 0.0, %v6925
        %v6927 = vpop.f32.mrf.mxu0
        %6928 = vmatprep.mubr.f32.mxu0 %v6029
        %6929 = vmatmul.mubr.f32.gmra.mxu0 %v6028
        %v6930 = vpop.f32.mrf.mxu0
        %v6931 = vadd.f32 0.0, %v6930
        %v6932 = vpop.f32.mrf.mxu0
        %6933 = vmatprep.mubr.f32.mxu0 %v6031
        %6934 = vmatmul.mubr.f32.gmra.mxu0 %v6030
        %v6935 = vpop.f32.mrf.mxu0
        %v6936 = vadd.f32 0.0, %v6935
        %v6937 = vpop.f32.mrf.mxu0
        %6938 = vmatprep.mubr.f32.mxu0 %v6033
        %6939 = vmatmul.mubr.f32.gmra.mxu0 %v6032
        %v6940 = vpop.f32.mrf.mxu0
        %v6941 = vadd.f32 0.0, %v6940
        %v6942 = vpop.f32.mrf.mxu0
        %6943 = vmatprep.mubr.f32.mxu0 %v6035
        %6944 = vmatmul.mubr.f32.gmra.mxu0 %v6034
        %v6945 = vpop.f32.mrf.mxu0
        %v6946 = vadd.f32 0.0, %v6945
        %v6947 = vpop.f32.mrf.mxu0
        %6948 = vmatprep.mubr.f32.mxu0 %v6037
        %6949 = vmatmul.mubr.f32.gmra.mxu0 %v6036
        %v6950 = vpop.f32.mrf.mxu0
        %v6951 = vadd.f32 0.0, %v6950
        %v6952 = vpop.f32.mrf.mxu0
        %6953 = vmatprep.mubr.f32.mxu0 %v6039
        %6954 = vmatmul.mubr.f32.gmra.mxu0 %v6038
        %v6955 = vpop.f32.mrf.mxu0
        %v6956 = vadd.f32 0.0, %v6955
        %v6957 = vpop.f32.mrf.mxu0
        %6958 = vmatprep.mubr.f32.mxu0 %v6041
        %6959 = vmatmul.mubr.f32.gmra.mxu0 %v6040
        %v6960 = vpop.f32.mrf.mxu0
        %v6961 = vadd.f32 0.0, %v6960
        %v6962 = vpop.f32.mrf.mxu0
        %6963 = vmatprep.mubr.f32.mxu0 %v6043
        %6964 = vmatmul.mubr.f32.gmra.mxu0 %v6042
        %v6965 = vpop.f32.mrf.mxu0
        %v6966 = vadd.f32 0.0, %v6965
        %v6967 = vpop.f32.mrf.mxu0
        %6968 = vmatprep.mubr.f32.mxu0 %v6045
        %6969 = vmatmul.mubr.f32.gmra.mxu0 %v6044
        %v6970 = vpop.f32.mrf.mxu0
        %v6971 = vadd.f32 0.0, %v6970
        %v6972 = vpop.f32.mrf.mxu0
        %6973 = vmatprep.mubr.f32.mxu0 %v6047
        %6974 = vmatmul.mubr.f32.gmra.mxu0 %v6046
        %v6975 = vpop.f32.mrf.mxu0
        %v6976 = vadd.f32 0.0, %v6975
        %v6977 = vpop.f32.mrf.mxu0
        %6978 = vmatprep.mubr.f32.mxu0 %v6049
        %6979 = vmatmul.mubr.f32.gmra.mxu0 %v6048
        %v6980 = vpop.f32.mrf.mxu0
        %v6981 = vadd.f32 0.0, %v6980
        %v6982 = vpop.f32.mrf.mxu0
        %6983 = vdwg.mxu0
        %6984 = vmatprep.subr.mxu0 0.0
        %6985 = vmatpush1.msra.mxu0 %v2628
        %6986 = vmatprep.subr.mxu0 0.0
        %6987 = vmatpush1.msra.mxu0 %v2492
        %6988 = vmatprep.subr.mxu0 0.0
        %6989 = vmatpush1.msra.mxu0 %v2356
        %6990 = vmatprep.subr.mxu0 0.0
        %6991 = vmatpush1.msra.mxu0 %v2220
        %6992 = vmatprep.subr.mxu0 0.0
        %6993 = vmatpush1.msra.mxu0 %v2084
        %6994 = vmatprep.subr.mxu0 0.0
        %6995 = vmatpush1.msra.mxu0 %v1948
        %6996 = vmatprep.subr.mxu0 0.0
        %6997 = vmatpush1.msra.mxu0 %v1812
        %6998 = vmatprep.subr.mxu0 0.0
        %6999 = vmatpush1.msra.mxu0 %v1676
        %7000 = vmatprep.subr.mxu0 0.0
        %7001 = vmatpush1.msra.mxu0 %v1540
        %7002 = vmatprep.subr.mxu0 0.0
        %7003 = vmatpush1.msra.mxu0 %v1404
        %7004 = vmatprep.subr.mxu0 0.0
        %7005 = vmatpush1.msra.mxu0 %v1268
        %7006 = vmatprep.subr.mxu0 0.0
        %7007 = vmatpush1.msra.mxu0 %v1132
        %7008 = vmatprep.subr.mxu0 0.0
        %7009 = vmatpush1.msra.mxu0 %v996
        %7010 = vmatprep.subr.mxu0 0.0
        %7011 = vmatpush1.msra.mxu0 %v860
        %7012 = vmatprep.subr.mxu0 0.0
        %7013 = vmatpush1.msra.mxu0 %v724
        %7014 = vmatprep.subr.mxu0 0.0
        %7015 = vmatpush1.msra.mxu0 %v588
        %7016 = vmatprep.subr.mxu0 0.0
        %7017 = vmatpush2.msra.mxu0 %v4804
        %7018 = vmatprep.subr.mxu0 0.0
        %7019 = vmatpush2.msra.mxu0 %v4668
        %7020 = vmatprep.subr.mxu0 0.0
        %7021 = vmatpush2.msra.mxu0 %v4532
        %7022 = vmatprep.subr.mxu0 0.0
        %7023 = vmatpush2.msra.mxu0 %v4396
        %7024 = vmatprep.subr.mxu0 0.0
        %7025 = vmatpush2.msra.mxu0 %v4260
        %7026 = vmatprep.subr.mxu0 0.0
        %7027 = vmatpush2.msra.mxu0 %v4124
        %7028 = vmatprep.subr.mxu0 0.0
        %7029 = vmatpush2.msra.mxu0 %v3988
        %7030 = vmatprep.subr.mxu0 0.0
        %7031 = vmatpush2.msra.mxu0 %v3852
        %7032 = vmatprep.subr.mxu0 0.0
        %7033 = vmatpush2.msra.mxu0 %v3716
        %7034 = vmatprep.subr.mxu0 0.0
        %7035 = vmatpush2.msra.mxu0 %v3580
        %7036 = vmatprep.subr.mxu0 0.0
        %7037 = vmatpush2.msra.mxu0 %v3444
        %7038 = vmatprep.subr.mxu0 0.0
        %7039 = vmatpush2.msra.mxu0 %v3308
        %7040 = vmatprep.subr.mxu0 0.0
        %7041 = vmatpush2.msra.mxu0 %v3172
        %7042 = vmatprep.subr.mxu0 0.0
        %7043 = vmatpush2.msra.mxu0 %v3036
        %7044 = vmatprep.subr.mxu0 0.0
        %7045 = vmatpush2.msra.mxu0 %v2900
        %7046 = vmatprep.subr.mxu0 0.0
        %7047 = vmatpush2.msra.mxu0 %v2764
        %7048 = vmatprep.mubr.f32.mxu0 %v6051
        %7049 = vmatmul.mubr.f32.gmra.mxu0 %v6050
        %v7050 = vpop.f32.mrf.mxu0
        %v7051 = vadd.f32 0.0, %v7050
        %v7052 = vpop.f32.mrf.mxu0
        %7053 = vmatprep.mubr.f32.mxu0 %v6053
        %7054 = vmatmul.mubr.f32.gmra.mxu0 %v6052
        %v7055 = vpop.f32.mrf.mxu0
        %v7056 = vadd.f32 0.0, %v7055
        %v7057 = vpop.f32.mrf.mxu0
        %7058 = vmatprep.mubr.f32.mxu0 %v6055
        %7059 = vmatmul.mubr.f32.gmra.mxu0 %v6054
        %v7060 = vpop.f32.mrf.mxu0
        %v7061 = vadd.f32 0.0, %v7060
        %v7062 = vpop.f32.mrf.mxu0
        %7063 = vmatprep.mubr.f32.mxu0 %v6057
        %7064 = vmatmul.mubr.f32.gmra.mxu0 %v6056
        %v7065 = vpop.f32.mrf.mxu0
        %v7066 = vadd.f32 0.0, %v7065
        %v7067 = vpop.f32.mrf.mxu0
        %7068 = vmatprep.mubr.f32.mxu0 %v6059
        %7069 = vmatmul.mubr.f32.gmra.mxu0 %v6058
        %v7070 = vpop.f32.mrf.mxu0
        %v7071 = vadd.f32 0.0, %v7070
        %v7072 = vpop.f32.mrf.mxu0
        %7073 = vmatprep.mubr.f32.mxu0 %v6061
        %7074 = vmatmul.mubr.f32.gmra.mxu0 %v6060
        %v7075 = vpop.f32.mrf.mxu0
        %v7076 = vadd.f32 0.0, %v7075
        %v7077 = vpop.f32.mrf.mxu0
        %7078 = vmatprep.mubr.f32.mxu0 %v6063
        %7079 = vmatmul.mubr.f32.gmra.mxu0 %v6062
        %v7080 = vpop.f32.mrf.mxu0
        %v7081 = vadd.f32 0.0, %v7080
        %v7082 = vpop.f32.mrf.mxu0
        %7083 = vmatprep.mubr.f32.mxu0 %v6065
        %7084 = vmatmul.mubr.f32.gmra.mxu0 %v6064
        %v7085 = vpop.f32.mrf.mxu0
        %v7086 = vadd.f32 0.0, %v7085
        %v7087 = vpop.f32.mrf.mxu0
        %7088 = vmatprep.mubr.f32.mxu0 %v6067
        %7089 = vmatmul.mubr.f32.gmra.mxu0 %v6066
        %v7090 = vpop.f32.mrf.mxu0
        %v7091 = vadd.f32 0.0, %v7090
        %v7092 = vpop.f32.mrf.mxu0
        %7093 = vmatprep.mubr.f32.mxu0 %v6069
        %7094 = vmatmul.mubr.f32.gmra.mxu0 %v6068
        %v7095 = vpop.f32.mrf.mxu0
        %v7096 = vadd.f32 0.0, %v7095
        %v7097 = vpop.f32.mrf.mxu0
        %7098 = vmatprep.mubr.f32.mxu0 %v6071
        %7099 = vmatmul.mubr.f32.gmra.mxu0 %v6070
        %v7100 = vpop.f32.mrf.mxu0
        %v7101 = vadd.f32 0.0, %v7100
        %v7102 = vpop.f32.mrf.mxu0
        %7103 = vmatprep.mubr.f32.mxu0 %v6073
        %7104 = vmatmul.mubr.f32.gmra.mxu0 %v6072
        %v7105 = vpop.f32.mrf.mxu0
        %v7106 = vadd.f32 0.0, %v7105
        %v7107 = vpop.f32.mrf.mxu0
        %7108 = vmatprep.mubr.f32.mxu0 %v6075
        %7109 = vmatmul.mubr.f32.gmra.mxu0 %v6074
        %v7110 = vpop.f32.mrf.mxu0
        %v7111 = vadd.f32 0.0, %v7110
        %v7112 = vpop.f32.mrf.mxu0
        %7113 = vmatprep.mubr.f32.mxu0 %v6077
        %7114 = vmatmul.mubr.f32.gmra.mxu0 %v6076
        %v7115 = vpop.f32.mrf.mxu0
        %v7116 = vadd.f32 0.0, %v7115
        %v7117 = vpop.f32.mrf.mxu0
        %7118 = vmatprep.mubr.f32.mxu0 %v6079
        %7119 = vmatmul.mubr.f32.gmra.mxu0 %v6078
        %v7120 = vpop.f32.mrf.mxu0
        %v7121 = vadd.f32 0.0, %v7120
        %v7122 = vpop.f32.mrf.mxu0
        %7123 = vmatprep.mubr.f32.mxu0 %v6081
        %7124 = vmatmul.mubr.f32.gmra.mxu0 %v6080
        %v7125 = vpop.f32.mrf.mxu0
        %v7126 = vadd.f32 0.0, %v7125
        %v7127 = vpop.f32.mrf.mxu0
        %7128 = vdwg.mxu0
        %7129 = vmatprep.subr.mxu0 0.0
        %7130 = vmatpush1.msra.mxu0 %v2629
        %7131 = vmatprep.subr.mxu0 0.0
        %7132 = vmatpush1.msra.mxu0 %v2493
        %7133 = vmatprep.subr.mxu0 0.0
        %7134 = vmatpush1.msra.mxu0 %v2357
        %7135 = vmatprep.subr.mxu0 0.0
        %7136 = vmatpush1.msra.mxu0 %v2221
        %7137 = vmatprep.subr.mxu0 0.0
        %7138 = vmatpush1.msra.mxu0 %v2085
        %7139 = vmatprep.subr.mxu0 0.0
        %7140 = vmatpush1.msra.mxu0 %v1949
        %7141 = vmatprep.subr.mxu0 0.0
        %7142 = vmatpush1.msra.mxu0 %v1813
        %7143 = vmatprep.subr.mxu0 0.0
        %7144 = vmatpush1.msra.mxu0 %v1677
        %7145 = vmatprep.subr.mxu0 0.0
        %7146 = vmatpush1.msra.mxu0 %v1541
        %7147 = vmatprep.subr.mxu0 0.0
        %7148 = vmatpush1.msra.mxu0 %v1405
        %7149 = vmatprep.subr.mxu0 0.0
        %7150 = vmatpush1.msra.mxu0 %v1269
        %7151 = vmatprep.subr.mxu0 0.0
        %7152 = vmatpush1.msra.mxu0 %v1133
        %7153 = vmatprep.subr.mxu0 0.0
        %7154 = vmatpush1.msra.mxu0 %v997
        %7155 = vmatprep.subr.mxu0 0.0
        %7156 = vmatpush1.msra.mxu0 %v861
        %7157 = vmatprep.subr.mxu0 0.0
        %7158 = vmatpush1.msra.mxu0 %v725
        %7159 = vmatprep.subr.mxu0 0.0
        %7160 = vmatpush1.msra.mxu0 %v589
        %7161 = vmatprep.subr.mxu0 0.0
        %7162 = vmatpush2.msra.mxu0 %v4805
        %7163 = vmatprep.subr.mxu0 0.0
        %7164 = vmatpush2.msra.mxu0 %v4669
        %7165 = vmatprep.subr.mxu0 0.0
        %7166 = vmatpush2.msra.mxu0 %v4533
        %7167 = vmatprep.subr.mxu0 0.0
        %7168 = vmatpush2.msra.mxu0 %v4397
        %7169 = vmatprep.subr.mxu0 0.0
        %7170 = vmatpush2.msra.mxu0 %v4261
        %7171 = vmatprep.subr.mxu0 0.0
        %7172 = vmatpush2.msra.mxu0 %v4125
        %7173 = vmatprep.subr.mxu0 0.0
        %7174 = vmatpush2.msra.mxu0 %v3989
        %7175 = vmatprep.subr.mxu0 0.0
        %7176 = vmatpush2.msra.mxu0 %v3853
        %7177 = vmatprep.subr.mxu0 0.0
        %7178 = vmatpush2.msra.mxu0 %v3717
        %7179 = vmatprep.subr.mxu0 0.0
        %7180 = vmatpush2.msra.mxu0 %v3581
        %7181 = vmatprep.subr.mxu0 0.0
        %7182 = vmatpush2.msra.mxu0 %v3445
        %7183 = vmatprep.subr.mxu0 0.0
        %7184 = vmatpush2.msra.mxu0 %v3309
        %7185 = vmatprep.subr.mxu0 0.0
        %7186 = vmatpush2.msra.mxu0 %v3173
        %7187 = vmatprep.subr.mxu0 0.0
        %7188 = vmatpush2.msra.mxu0 %v3037
        %7189 = vmatprep.subr.mxu0 0.0
        %7190 = vmatpush2.msra.mxu0 %v2901
        %7191 = vmatprep.subr.mxu0 0.0
        %7192 = vmatpush2.msra.mxu0 %v2765
        %7193 = vmatprep.mubr.f32.mxu0 %v6083
        %7194 = vmatmul.mubr.f32.gmra.mxu0 %v6082
        %v7195 = vpop.f32.mrf.mxu0
        %v7196 = vadd.f32 0.0, %v7195
        %v7197 = vpop.f32.mrf.mxu0
        %7198 = vmatprep.mubr.f32.mxu0 %v6085
        %7199 = vmatmul.mubr.f32.gmra.mxu0 %v6084
        %v7200 = vpop.f32.mrf.mxu0
        %v7201 = vadd.f32 0.0, %v7200
        %v7202 = vpop.f32.mrf.mxu0
        %7203 = vmatprep.mubr.f32.mxu0 %v6087
        %7204 = vmatmul.mubr.f32.gmra.mxu0 %v6086
        %v7205 = vpop.f32.mrf.mxu0
        %v7206 = vadd.f32 0.0, %v7205
        %v7207 = vpop.f32.mrf.mxu0
        %7208 = vmatprep.mubr.f32.mxu0 %v6089
        %7209 = vmatmul.mubr.f32.gmra.mxu0 %v6088
        %v7210 = vpop.f32.mrf.mxu0
        %v7211 = vadd.f32 0.0, %v7210
        %v7212 = vpop.f32.mrf.mxu0
        %7213 = vmatprep.mubr.f32.mxu0 %v6091
        %7214 = vmatmul.mubr.f32.gmra.mxu0 %v6090
        %v7215 = vpop.f32.mrf.mxu0
        %v7216 = vadd.f32 0.0, %v7215
        %v7217 = vpop.f32.mrf.mxu0
        %7218 = vmatprep.mubr.f32.mxu0 %v6093
        %7219 = vmatmul.mubr.f32.gmra.mxu0 %v6092
        %v7220 = vpop.f32.mrf.mxu0
        %v7221 = vadd.f32 0.0, %v7220
        %v7222 = vpop.f32.mrf.mxu0
        %7223 = vmatprep.mubr.f32.mxu0 %v6095
        %7224 = vmatmul.mubr.f32.gmra.mxu0 %v6094
        %v7225 = vpop.f32.mrf.mxu0
        %v7226 = vadd.f32 0.0, %v7225
        %v7227 = vpop.f32.mrf.mxu0
        %7228 = vmatprep.mubr.f32.mxu0 %v6097
        %7229 = vmatmul.mubr.f32.gmra.mxu0 %v6096
        %v7230 = vpop.f32.mrf.mxu0
        %v7231 = vadd.f32 0.0, %v7230
        %v7232 = vpop.f32.mrf.mxu0
        %7233 = vmatprep.mubr.f32.mxu0 %v6099
        %7234 = vmatmul.mubr.f32.gmra.mxu0 %v6098
        %v7235 = vpop.f32.mrf.mxu0
        %v7236 = vadd.f32 0.0, %v7235
        %v7237 = vpop.f32.mrf.mxu0
        %7238 = vmatprep.mubr.f32.mxu0 %v6101
        %7239 = vmatmul.mubr.f32.gmra.mxu0 %v6100
        %v7240 = vpop.f32.mrf.mxu0
        %v7241 = vadd.f32 0.0, %v7240
        %v7242 = vpop.f32.mrf.mxu0
        %7243 = vmatprep.mubr.f32.mxu0 %v6103
        %7244 = vmatmul.mubr.f32.gmra.mxu0 %v6102
        %v7245 = vpop.f32.mrf.mxu0
        %v7246 = vadd.f32 0.0, %v7245
        %v7247 = vpop.f32.mrf.mxu0
        %7248 = vmatprep.mubr.f32.mxu0 %v6105
        %7249 = vmatmul.mubr.f32.gmra.mxu0 %v6104
        %v7250 = vpop.f32.mrf.mxu0
        %v7251 = vadd.f32 0.0, %v7250
        %v7252 = vpop.f32.mrf.mxu0
        %7253 = vmatprep.mubr.f32.mxu0 %v6107
        %7254 = vmatmul.mubr.f32.gmra.mxu0 %v6106
        %v7255 = vpop.f32.mrf.mxu0
        %v7256 = vadd.f32 0.0, %v7255
        %v7257 = vpop.f32.mrf.mxu0
        %7258 = vmatprep.mubr.f32.mxu0 %v6109
        %7259 = vmatmul.mubr.f32.gmra.mxu0 %v6108
        %v7260 = vpop.f32.mrf.mxu0
        %v7261 = vadd.f32 0.0, %v7260
        %v7262 = vpop.f32.mrf.mxu0
        %7263 = vmatprep.mubr.f32.mxu0 %v6111
        %7264 = vmatmul.mubr.f32.gmra.mxu0 %v6110
        %v7265 = vpop.f32.mrf.mxu0
        %v7266 = vadd.f32 0.0, %v7265
        %v7267 = vpop.f32.mrf.mxu0
        %7268 = vmatprep.mubr.f32.mxu0 %v6113
        %7269 = vmatmul.mubr.f32.gmra.mxu0 %v6112
        %v7270 = vpop.f32.mrf.mxu0
        %v7271 = vadd.f32 0.0, %v7270
        %v7272 = vpop.f32.mrf.mxu0
        %7273 = vdwg.mxu0
        %v7274 = vcombine.low %v6181, %v6471
        %v7275 = vcombine.high %v6181, %v6471
        %v7277 = vunpack.c.l.s4 1983009808
        %v7278 = vunpack.c.0.s8 %v7277
        %v7279 = vlaneseq
        %v7280 = vshrl.u32 %v7279, 7
        %v7281 = vsub.s32 %v7278, %v7280
        %v7282 = vrot.slane %v7274, %v7281
        %v7284 = vunpack.c.l.s4 1983009808
        %v7285 = vunpack.c.0.s8 %v7284
        %v7286 = vlaneseq
        %v7287 = vshrl.u32 %v7286, 7
        %v7288 = vsub.s32 %v7285, %v7287
        %v7289 = vrot.slane %v7275, %v7288
        %v7290 = vcombine.low %v6326, %v6616
        %v7291 = vcombine.high %v6326, %v6616
        %v7293 = vunpack.c.l.s4 1983009808
        %v7294 = vunpack.c.0.s8 %v7293
        %v7295 = vlaneseq
        %v7296 = vshrl.u32 %v7295, 7
        %v7297 = vsub.s32 %v7294, %v7296
        %v7298 = vrot.slane %v7290, %v7297
        %v7300 = vunpack.c.l.s4 1983009808
        %v7301 = vunpack.c.0.s8 %v7300
        %v7302 = vlaneseq
        %v7303 = vshrl.u32 %v7302, 7
        %v7304 = vsub.s32 %v7301, %v7303
        %v7305 = vrot.slane %v7291, %v7304
        %v7306 = vcombine.low %v6761, %v7051
        %v7307 = vcombine.high %v6761, %v7051
        %v7309 = vunpack.c.l.s4 1983009808
        %v7310 = vunpack.c.0.s8 %v7309
        %v7311 = vlaneseq
        %v7312 = vshrl.u32 %v7311, 7
        %v7313 = vsub.s32 %v7310, %v7312
        %v7314 = vrot.slane %v7306, %v7313
        %v7316 = vunpack.c.l.s4 1983009808
        %v7317 = vunpack.c.0.s8 %v7316
        %v7318 = vlaneseq
        %v7319 = vshrl.u32 %v7318, 7
        %v7320 = vsub.s32 %v7317, %v7319
        %v7321 = vrot.slane %v7307, %v7320
        %v7322 = vcombine.low %v6906, %v7196
        %v7323 = vcombine.high %v6906, %v7196
        %v7325 = vunpack.c.l.s4 1983009808
        %v7326 = vunpack.c.0.s8 %v7325
        %v7327 = vlaneseq
        %v7328 = vshrl.u32 %v7327, 7
        %v7329 = vsub.s32 %v7326, %v7328
        %v7330 = vrot.slane %v7322, %v7329
        %v7332 = vunpack.c.l.s4 1983009808
        %v7333 = vunpack.c.0.s8 %v7332
        %v7334 = vlaneseq
        %v7335 = vshrl.u32 %v7334, 7
        %v7336 = vsub.s32 %v7333, %v7335
        %v7337 = vrot.slane %v7323, %v7336
        %v7338 = vcombine.low %v7282, %v7298
        %v7339 = vcombine.high %v7282, %v7298
        %v7341 = vunpack.c.l.s4 1934713408
        %v7342 = vunpack.c.0.s8 %v7341
        %v7343 = vlaneseq
        %v7344 = vshrl.u32 %v7343, 7
        %v7345 = vsub.s32 %v7342, %v7344
        %v7346 = vrot.slane %v7338, %v7345
        %v7348 = vunpack.c.l.s4 1934713408
        %v7349 = vunpack.c.0.s8 %v7348
        %v7350 = vlaneseq
        %v7351 = vshrl.u32 %v7350, 7
        %v7352 = vsub.s32 %v7349, %v7351
        %v7353 = vrot.slane %v7339, %v7352
        %v7354 = vcombine.low %v7289, %v7305
        %v7355 = vcombine.high %v7289, %v7305
        %v7357 = vunpack.c.l.s4 1934713408
        %v7358 = vunpack.c.0.s8 %v7357
        %v7359 = vlaneseq
        %v7360 = vshrl.u32 %v7359, 7
        %v7361 = vsub.s32 %v7358, %v7360
        %v7362 = vrot.slane %v7354, %v7361
        %v7364 = vunpack.c.l.s4 1934713408
        %v7365 = vunpack.c.0.s8 %v7364
        %v7366 = vlaneseq
        %v7367 = vshrl.u32 %v7366, 7
        %v7368 = vsub.s32 %v7365, %v7367
        %v7369 = vrot.slane %v7355, %v7368
        %v7370 = vcombine.low %v7314, %v7330
        %v7371 = vcombine.high %v7314, %v7330
        %v7373 = vunpack.c.l.s4 1934713408
        %v7374 = vunpack.c.0.s8 %v7373
        %v7375 = vlaneseq
        %v7376 = vshrl.u32 %v7375, 7
        %v7377 = vsub.s32 %v7374, %v7376
        %v7378 = vrot.slane %v7370, %v7377
        %v7380 = vunpack.c.l.s4 1934713408
        %v7381 = vunpack.c.0.s8 %v7380
        %v7382 = vlaneseq
        %v7383 = vshrl.u32 %v7382, 7
        %v7384 = vsub.s32 %v7381, %v7383
        %v7385 = vrot.slane %v7371, %v7384
        %v7386 = vcombine.low %v7321, %v7337
        %v7387 = vcombine.high %v7321, %v7337
        %v7389 = vunpack.c.l.s4 1934713408
        %v7390 = vunpack.c.0.s8 %v7389
        %v7391 = vlaneseq
        %v7392 = vshrl.u32 %v7391, 7
        %v7393 = vsub.s32 %v7390, %v7392
        %v7394 = vrot.slane %v7386, %v7393
        %v7396 = vunpack.c.l.s4 1934713408
        %v7397 = vunpack.c.0.s8 %v7396
        %v7398 = vlaneseq
        %v7399 = vshrl.u32 %v7398, 7
        %v7400 = vsub.s32 %v7397, %v7399
        %v7401 = vrot.slane %v7387, %v7400
        %v7402 = vcombine.low %v7346, %v7378
        %v7403 = vcombine.high %v7346, %v7378
        %v7404 = vcombine.low %v7353, %v7385
        %v7405 = vcombine.high %v7353, %v7385
        %v7406 = vcombine.low %v7362, %v7394
        %v7407 = vcombine.high %v7362, %v7394
        %v7408 = vcombine.low %v7369, %v7401
        %v7409 = vcombine.high %v7369, %v7401
        %v7410 = vcombine.low %v6186, %v6476
        %v7411 = vcombine.high %v6186, %v6476
        %v7413 = vunpack.c.l.s4 1983009808
        %v7414 = vunpack.c.0.s8 %v7413
        %v7415 = vlaneseq
        %v7416 = vshrl.u32 %v7415, 7
        %v7417 = vsub.s32 %v7414, %v7416
        %v7418 = vrot.slane %v7410, %v7417
        %v7420 = vunpack.c.l.s4 1983009808
        %v7421 = vunpack.c.0.s8 %v7420
        %v7422 = vlaneseq
        %v7423 = vshrl.u32 %v7422, 7
        %v7424 = vsub.s32 %v7421, %v7423
        %v7425 = vrot.slane %v7411, %v7424
        %v7426 = vcombine.low %v6331, %v6621
        %v7427 = vcombine.high %v6331, %v6621
        %v7429 = vunpack.c.l.s4 1983009808
        %v7430 = vunpack.c.0.s8 %v7429
        %v7431 = vlaneseq
        %v7432 = vshrl.u32 %v7431, 7
        %v7433 = vsub.s32 %v7430, %v7432
        %v7434 = vrot.slane %v7426, %v7433
        %v7436 = vunpack.c.l.s4 1983009808
        %v7437 = vunpack.c.0.s8 %v7436
        %v7438 = vlaneseq
        %v7439 = vshrl.u32 %v7438, 7
        %v7440 = vsub.s32 %v7437, %v7439
        %v7441 = vrot.slane %v7427, %v7440
        %v7442 = vcombine.low %v6766, %v7056
        %v7443 = vcombine.high %v6766, %v7056
        %v7445 = vunpack.c.l.s4 1983009808
        %v7446 = vunpack.c.0.s8 %v7445
        %v7447 = vlaneseq
        %v7448 = vshrl.u32 %v7447, 7
        %v7449 = vsub.s32 %v7446, %v7448
        %v7450 = vrot.slane %v7442, %v7449
        %v7452 = vunpack.c.l.s4 1983009808
        %v7453 = vunpack.c.0.s8 %v7452
        %v7454 = vlaneseq
        %v7455 = vshrl.u32 %v7454, 7
        %v7456 = vsub.s32 %v7453, %v7455
        %v7457 = vrot.slane %v7443, %v7456
        %v7458 = vcombine.low %v6911, %v7201
        %v7459 = vcombine.high %v6911, %v7201
        %v7461 = vunpack.c.l.s4 1983009808
        %v7462 = vunpack.c.0.s8 %v7461
        %v7463 = vlaneseq
        %v7464 = vshrl.u32 %v7463, 7
        %v7465 = vsub.s32 %v7462, %v7464
        %v7466 = vrot.slane %v7458, %v7465
        %v7468 = vunpack.c.l.s4 1983009808
        %v7469 = vunpack.c.0.s8 %v7468
        %v7470 = vlaneseq
        %v7471 = vshrl.u32 %v7470, 7
        %v7472 = vsub.s32 %v7469, %v7471
        %v7473 = vrot.slane %v7459, %v7472
        %v7474 = vcombine.low %v7418, %v7434
        %v7475 = vcombine.high %v7418, %v7434
        %v7477 = vunpack.c.l.s4 1934713408
        %v7478 = vunpack.c.0.s8 %v7477
        %v7479 = vlaneseq
        %v7480 = vshrl.u32 %v7479, 7
        %v7481 = vsub.s32 %v7478, %v7480
        %v7482 = vrot.slane %v7474, %v7481
        %v7484 = vunpack.c.l.s4 1934713408
        %v7485 = vunpack.c.0.s8 %v7484
        %v7486 = vlaneseq
        %v7487 = vshrl.u32 %v7486, 7
        %v7488 = vsub.s32 %v7485, %v7487
        %v7489 = vrot.slane %v7475, %v7488
        %v7490 = vcombine.low %v7425, %v7441
        %v7491 = vcombine.high %v7425, %v7441
        %v7493 = vunpack.c.l.s4 1934713408
        %v7494 = vunpack.c.0.s8 %v7493
        %v7495 = vlaneseq
        %v7496 = vshrl.u32 %v7495, 7
        %v7497 = vsub.s32 %v7494, %v7496
        %v7498 = vrot.slane %v7490, %v7497
        %v7500 = vunpack.c.l.s4 1934713408
        %v7501 = vunpack.c.0.s8 %v7500
        %v7502 = vlaneseq
        %v7503 = vshrl.u32 %v7502, 7
        %v7504 = vsub.s32 %v7501, %v7503
        %v7505 = vrot.slane %v7491, %v7504
        %v7506 = vcombine.low %v7450, %v7466
        %v7507 = vcombine.high %v7450, %v7466
        %v7509 = vunpack.c.l.s4 1934713408
        %v7510 = vunpack.c.0.s8 %v7509
        %v7511 = vlaneseq
        %v7512 = vshrl.u32 %v7511, 7
        %v7513 = vsub.s32 %v7510, %v7512
        %v7514 = vrot.slane %v7506, %v7513
        %v7516 = vunpack.c.l.s4 1934713408
        %v7517 = vunpack.c.0.s8 %v7516
        %v7518 = vlaneseq
        %v7519 = vshrl.u32 %v7518, 7
        %v7520 = vsub.s32 %v7517, %v7519
        %v7521 = vrot.slane %v7507, %v7520
        %v7522 = vcombine.low %v7457, %v7473
        %v7523 = vcombine.high %v7457, %v7473
        %v7525 = vunpack.c.l.s4 1934713408
        %v7526 = vunpack.c.0.s8 %v7525
        %v7527 = vlaneseq
        %v7528 = vshrl.u32 %v7527, 7
        %v7529 = vsub.s32 %v7526, %v7528
        %v7530 = vrot.slane %v7522, %v7529
        %v7532 = vunpack.c.l.s4 1934713408
        %v7533 = vunpack.c.0.s8 %v7532
        %v7534 = vlaneseq
        %v7535 = vshrl.u32 %v7534, 7
        %v7536 = vsub.s32 %v7533, %v7535
        %v7537 = vrot.slane %v7523, %v7536
        %v7538 = vcombine.low %v7482, %v7514
        %v7539 = vcombine.high %v7482, %v7514
        %v7540 = vcombine.low %v7489, %v7521
        %v7541 = vcombine.high %v7489, %v7521
        %v7542 = vcombine.low %v7498, %v7530
        %v7543 = vcombine.high %v7498, %v7530
        %v7544 = vcombine.low %v7505, %v7537
        %v7545 = vcombine.high %v7505, %v7537
        %v7546 = vcombine.low %v6191, %v6481
        %v7547 = vcombine.high %v6191, %v6481
        %v7549 = vunpack.c.l.s4 1983009808
        %v7550 = vunpack.c.0.s8 %v7549
        %v7551 = vlaneseq
        %v7552 = vshrl.u32 %v7551, 7
        %v7553 = vsub.s32 %v7550, %v7552
        %v7554 = vrot.slane %v7546, %v7553
        %v7556 = vunpack.c.l.s4 1983009808
        %v7557 = vunpack.c.0.s8 %v7556
        %v7558 = vlaneseq
        %v7559 = vshrl.u32 %v7558, 7
        %v7560 = vsub.s32 %v7557, %v7559
        %v7561 = vrot.slane %v7547, %v7560
        %v7562 = vcombine.low %v6336, %v6626
        %v7563 = vcombine.high %v6336, %v6626
        %v7565 = vunpack.c.l.s4 1983009808
        %v7566 = vunpack.c.0.s8 %v7565
        %v7567 = vlaneseq
        %v7568 = vshrl.u32 %v7567, 7
        %v7569 = vsub.s32 %v7566, %v7568
        %v7570 = vrot.slane %v7562, %v7569
        %v7572 = vunpack.c.l.s4 1983009808
        %v7573 = vunpack.c.0.s8 %v7572
        %v7574 = vlaneseq
        %v7575 = vshrl.u32 %v7574, 7
        %v7576 = vsub.s32 %v7573, %v7575
        %v7577 = vrot.slane %v7563, %v7576
        %v7578 = vcombine.low %v6771, %v7061
        %v7579 = vcombine.high %v6771, %v7061
        %v7581 = vunpack.c.l.s4 1983009808
        %v7582 = vunpack.c.0.s8 %v7581
        %v7583 = vlaneseq
        %v7584 = vshrl.u32 %v7583, 7
        %v7585 = vsub.s32 %v7582, %v7584
        %v7586 = vrot.slane %v7578, %v7585
        %v7588 = vunpack.c.l.s4 1983009808
        %v7589 = vunpack.c.0.s8 %v7588
        %v7590 = vlaneseq
        %v7591 = vshrl.u32 %v7590, 7
        %v7592 = vsub.s32 %v7589, %v7591
        %v7593 = vrot.slane %v7579, %v7592
        %v7594 = vcombine.low %v6916, %v7206
        %v7595 = vcombine.high %v6916, %v7206
        %v7597 = vunpack.c.l.s4 1983009808
        %v7598 = vunpack.c.0.s8 %v7597
        %v7599 = vlaneseq
        %v7600 = vshrl.u32 %v7599, 7
        %v7601 = vsub.s32 %v7598, %v7600
        %v7602 = vrot.slane %v7594, %v7601
        %v7604 = vunpack.c.l.s4 1983009808
        %v7605 = vunpack.c.0.s8 %v7604
        %v7606 = vlaneseq
        %v7607 = vshrl.u32 %v7606, 7
        %v7608 = vsub.s32 %v7605, %v7607
        %v7609 = vrot.slane %v7595, %v7608
        %v7610 = vcombine.low %v7554, %v7570
        %v7611 = vcombine.high %v7554, %v7570
        %v7613 = vunpack.c.l.s4 1934713408
        %v7614 = vunpack.c.0.s8 %v7613
        %v7615 = vlaneseq
        %v7616 = vshrl.u32 %v7615, 7
        %v7617 = vsub.s32 %v7614, %v7616
        %v7618 = vrot.slane %v7610, %v7617
        %v7620 = vunpack.c.l.s4 1934713408
        %v7621 = vunpack.c.0.s8 %v7620
        %v7622 = vlaneseq
        %v7623 = vshrl.u32 %v7622, 7
        %v7624 = vsub.s32 %v7621, %v7623
        %v7625 = vrot.slane %v7611, %v7624
        %v7626 = vcombine.low %v7561, %v7577
        %v7627 = vcombine.high %v7561, %v7577
        %v7629 = vunpack.c.l.s4 1934713408
        %v7630 = vunpack.c.0.s8 %v7629
        %v7631 = vlaneseq
        %v7632 = vshrl.u32 %v7631, 7
        %v7633 = vsub.s32 %v7630, %v7632
        %v7634 = vrot.slane %v7626, %v7633
        %v7636 = vunpack.c.l.s4 1934713408
        %v7637 = vunpack.c.0.s8 %v7636
        %v7638 = vlaneseq
        %v7639 = vshrl.u32 %v7638, 7
        %v7640 = vsub.s32 %v7637, %v7639
        %v7641 = vrot.slane %v7627, %v7640
        %v7642 = vcombine.low %v7586, %v7602
        %v7643 = vcombine.high %v7586, %v7602
        %v7645 = vunpack.c.l.s4 1934713408
        %v7646 = vunpack.c.0.s8 %v7645
        %v7647 = vlaneseq
        %v7648 = vshrl.u32 %v7647, 7
        %v7649 = vsub.s32 %v7646, %v7648
        %v7650 = vrot.slane %v7642, %v7649
        %v7652 = vunpack.c.l.s4 1934713408
        %v7653 = vunpack.c.0.s8 %v7652
        %v7654 = vlaneseq
        %v7655 = vshrl.u32 %v7654, 7
        %v7656 = vsub.s32 %v7653, %v7655
        %v7657 = vrot.slane %v7643, %v7656
        %v7658 = vcombine.low %v7593, %v7609
        %v7659 = vcombine.high %v7593, %v7609
        %v7661 = vunpack.c.l.s4 1934713408
        %v7662 = vunpack.c.0.s8 %v7661
        %v7663 = vlaneseq
        %v7664 = vshrl.u32 %v7663, 7
        %v7665 = vsub.s32 %v7662, %v7664
        %v7666 = vrot.slane %v7658, %v7665
        %v7668 = vunpack.c.l.s4 1934713408
        %v7669 = vunpack.c.0.s8 %v7668
        %v7670 = vlaneseq
        %v7671 = vshrl.u32 %v7670, 7
        %v7672 = vsub.s32 %v7669, %v7671
        %v7673 = vrot.slane %v7659, %v7672
        %v7674 = vcombine.low %v7618, %v7650
        %v7675 = vcombine.high %v7618, %v7650
        %v7676 = vcombine.low %v7625, %v7657
        %v7677 = vcombine.high %v7625, %v7657
        %v7678 = vcombine.low %v7634, %v7666
        %v7679 = vcombine.high %v7634, %v7666
        %v7680 = vcombine.low %v7641, %v7673
        %v7681 = vcombine.high %v7641, %v7673
        %v7682 = vcombine.low %v6196, %v6486
        %v7683 = vcombine.high %v6196, %v6486
        %v7685 = vunpack.c.l.s4 1983009808
        %v7686 = vunpack.c.0.s8 %v7685
        %v7687 = vlaneseq
        %v7688 = vshrl.u32 %v7687, 7
        %v7689 = vsub.s32 %v7686, %v7688
        %v7690 = vrot.slane %v7682, %v7689
        %v7692 = vunpack.c.l.s4 1983009808
        %v7693 = vunpack.c.0.s8 %v7692
        %v7694 = vlaneseq
        %v7695 = vshrl.u32 %v7694, 7
        %v7696 = vsub.s32 %v7693, %v7695
        %v7697 = vrot.slane %v7683, %v7696
        %v7698 = vcombine.low %v6341, %v6631
        %v7699 = vcombine.high %v6341, %v6631
        %v7701 = vunpack.c.l.s4 1983009808
        %v7702 = vunpack.c.0.s8 %v7701
        %v7703 = vlaneseq
        %v7704 = vshrl.u32 %v7703, 7
        %v7705 = vsub.s32 %v7702, %v7704
        %v7706 = vrot.slane %v7698, %v7705
        %v7708 = vunpack.c.l.s4 1983009808
        %v7709 = vunpack.c.0.s8 %v7708
        %v7710 = vlaneseq
        %v7711 = vshrl.u32 %v7710, 7
        %v7712 = vsub.s32 %v7709, %v7711
        %v7713 = vrot.slane %v7699, %v7712
        %v7714 = vcombine.low %v6776, %v7066
        %v7715 = vcombine.high %v6776, %v7066
        %v7717 = vunpack.c.l.s4 1983009808
        %v7718 = vunpack.c.0.s8 %v7717
        %v7719 = vlaneseq
        %v7720 = vshrl.u32 %v7719, 7
        %v7721 = vsub.s32 %v7718, %v7720
        %v7722 = vrot.slane %v7714, %v7721
        %v7724 = vunpack.c.l.s4 1983009808
        %v7725 = vunpack.c.0.s8 %v7724
        %v7726 = vlaneseq
        %v7727 = vshrl.u32 %v7726, 7
        %v7728 = vsub.s32 %v7725, %v7727
        %v7729 = vrot.slane %v7715, %v7728
        %v7730 = vcombine.low %v6921, %v7211
        %v7731 = vcombine.high %v6921, %v7211
        %v7733 = vunpack.c.l.s4 1983009808
        %v7734 = vunpack.c.0.s8 %v7733
        %v7735 = vlaneseq
        %v7736 = vshrl.u32 %v7735, 7
        %v7737 = vsub.s32 %v7734, %v7736
        %v7738 = vrot.slane %v7730, %v7737
        %v7740 = vunpack.c.l.s4 1983009808
        %v7741 = vunpack.c.0.s8 %v7740
        %v7742 = vlaneseq
        %v7743 = vshrl.u32 %v7742, 7
        %v7744 = vsub.s32 %v7741, %v7743
        %v7745 = vrot.slane %v7731, %v7744
        %v7746 = vcombine.low %v7690, %v7706
        %v7747 = vcombine.high %v7690, %v7706
        %v7749 = vunpack.c.l.s4 1934713408
        %v7750 = vunpack.c.0.s8 %v7749
        %v7751 = vlaneseq
        %v7752 = vshrl.u32 %v7751, 7
        %v7753 = vsub.s32 %v7750, %v7752
        %v7754 = vrot.slane %v7746, %v7753
        %v7756 = vunpack.c.l.s4 1934713408
        %v7757 = vunpack.c.0.s8 %v7756
        %v7758 = vlaneseq
        %v7759 = vshrl.u32 %v7758, 7
        %v7760 = vsub.s32 %v7757, %v7759
        %v7761 = vrot.slane %v7747, %v7760
        %v7762 = vcombine.low %v7697, %v7713
        %v7763 = vcombine.high %v7697, %v7713
        %v7765 = vunpack.c.l.s4 1934713408
        %v7766 = vunpack.c.0.s8 %v7765
        %v7767 = vlaneseq
        %v7768 = vshrl.u32 %v7767, 7
        %v7769 = vsub.s32 %v7766, %v7768
        %v7770 = vrot.slane %v7762, %v7769
        %v7772 = vunpack.c.l.s4 1934713408
        %v7773 = vunpack.c.0.s8 %v7772
        %v7774 = vlaneseq
        %v7775 = vshrl.u32 %v7774, 7
        %v7776 = vsub.s32 %v7773, %v7775
        %v7777 = vrot.slane %v7763, %v7776
        %v7778 = vcombine.low %v7722, %v7738
        %v7779 = vcombine.high %v7722, %v7738
        %v7781 = vunpack.c.l.s4 1934713408
        %v7782 = vunpack.c.0.s8 %v7781
        %v7783 = vlaneseq
        %v7784 = vshrl.u32 %v7783, 7
        %v7785 = vsub.s32 %v7782, %v7784
        %v7786 = vrot.slane %v7778, %v7785
        %v7788 = vunpack.c.l.s4 1934713408
        %v7789 = vunpack.c.0.s8 %v7788
        %v7790 = vlaneseq
        %v7791 = vshrl.u32 %v7790, 7
        %v7792 = vsub.s32 %v7789, %v7791
        %v7793 = vrot.slane %v7779, %v7792
        %v7794 = vcombine.low %v7729, %v7745
        %v7795 = vcombine.high %v7729, %v7745
        %v7797 = vunpack.c.l.s4 1934713408
        %v7798 = vunpack.c.0.s8 %v7797
        %v7799 = vlaneseq
        %v7800 = vshrl.u32 %v7799, 7
        %v7801 = vsub.s32 %v7798, %v7800
        %v7802 = vrot.slane %v7794, %v7801
        %v7804 = vunpack.c.l.s4 1934713408
        %v7805 = vunpack.c.0.s8 %v7804
        %v7806 = vlaneseq
        %v7807 = vshrl.u32 %v7806, 7
        %v7808 = vsub.s32 %v7805, %v7807
        %v7809 = vrot.slane %v7795, %v7808
        %v7810 = vcombine.low %v7754, %v7786
        %v7811 = vcombine.high %v7754, %v7786
        %v7812 = vcombine.low %v7761, %v7793
        %v7813 = vcombine.high %v7761, %v7793
        %v7814 = vcombine.low %v7770, %v7802
        %v7815 = vcombine.high %v7770, %v7802
        %v7816 = vcombine.low %v7777, %v7809
        %v7817 = vcombine.high %v7777, %v7809
        %v7818 = vcombine.low %v6201, %v6491
        %v7819 = vcombine.high %v6201, %v6491
        %v7821 = vunpack.c.l.s4 1983009808
        %v7822 = vunpack.c.0.s8 %v7821
        %v7823 = vlaneseq
        %v7824 = vshrl.u32 %v7823, 7
        %v7825 = vsub.s32 %v7822, %v7824
        %v7826 = vrot.slane %v7818, %v7825
        %v7828 = vunpack.c.l.s4 1983009808
        %v7829 = vunpack.c.0.s8 %v7828
        %v7830 = vlaneseq
        %v7831 = vshrl.u32 %v7830, 7
        %v7832 = vsub.s32 %v7829, %v7831
        %v7833 = vrot.slane %v7819, %v7832
        %v7834 = vcombine.low %v6346, %v6636
        %v7835 = vcombine.high %v6346, %v6636
        %v7837 = vunpack.c.l.s4 1983009808
        %v7838 = vunpack.c.0.s8 %v7837
        %v7839 = vlaneseq
        %v7840 = vshrl.u32 %v7839, 7
        %v7841 = vsub.s32 %v7838, %v7840
        %v7842 = vrot.slane %v7834, %v7841
        %v7844 = vunpack.c.l.s4 1983009808
        %v7845 = vunpack.c.0.s8 %v7844
        %v7846 = vlaneseq
        %v7847 = vshrl.u32 %v7846, 7
        %v7848 = vsub.s32 %v7845, %v7847
        %v7849 = vrot.slane %v7835, %v7848
        %v7850 = vcombine.low %v6781, %v7071
        %v7851 = vcombine.high %v6781, %v7071
        %v7853 = vunpack.c.l.s4 1983009808
        %v7854 = vunpack.c.0.s8 %v7853
        %v7855 = vlaneseq
        %v7856 = vshrl.u32 %v7855, 7
        %v7857 = vsub.s32 %v7854, %v7856
        %v7858 = vrot.slane %v7850, %v7857
        %v7860 = vunpack.c.l.s4 1983009808
        %v7861 = vunpack.c.0.s8 %v7860
        %v7862 = vlaneseq
        %v7863 = vshrl.u32 %v7862, 7
        %v7864 = vsub.s32 %v7861, %v7863
        %v7865 = vrot.slane %v7851, %v7864
        %v7866 = vcombine.low %v6926, %v7216
        %v7867 = vcombine.high %v6926, %v7216
        %v7869 = vunpack.c.l.s4 1983009808
        %v7870 = vunpack.c.0.s8 %v7869
        %v7871 = vlaneseq
        %v7872 = vshrl.u32 %v7871, 7
        %v7873 = vsub.s32 %v7870, %v7872
        %v7874 = vrot.slane %v7866, %v7873
        %v7876 = vunpack.c.l.s4 1983009808
        %v7877 = vunpack.c.0.s8 %v7876
        %v7878 = vlaneseq
        %v7879 = vshrl.u32 %v7878, 7
        %v7880 = vsub.s32 %v7877, %v7879
        %v7881 = vrot.slane %v7867, %v7880
        %v7882 = vcombine.low %v7826, %v7842
        %v7883 = vcombine.high %v7826, %v7842
        %v7885 = vunpack.c.l.s4 1934713408
        %v7886 = vunpack.c.0.s8 %v7885
        %v7887 = vlaneseq
        %v7888 = vshrl.u32 %v7887, 7
        %v7889 = vsub.s32 %v7886, %v7888
        %v7890 = vrot.slane %v7882, %v7889
        %v7892 = vunpack.c.l.s4 1934713408
        %v7893 = vunpack.c.0.s8 %v7892
        %v7894 = vlaneseq
        %v7895 = vshrl.u32 %v7894, 7
        %v7896 = vsub.s32 %v7893, %v7895
        %v7897 = vrot.slane %v7883, %v7896
        %v7898 = vcombine.low %v7833, %v7849
        %v7899 = vcombine.high %v7833, %v7849
        %v7901 = vunpack.c.l.s4 1934713408
        %v7902 = vunpack.c.0.s8 %v7901
        %v7903 = vlaneseq
        %v7904 = vshrl.u32 %v7903, 7
        %v7905 = vsub.s32 %v7902, %v7904
        %v7906 = vrot.slane %v7898, %v7905
        %v7908 = vunpack.c.l.s4 1934713408
        %v7909 = vunpack.c.0.s8 %v7908
        %v7910 = vlaneseq
        %v7911 = vshrl.u32 %v7910, 7
        %v7912 = vsub.s32 %v7909, %v7911
        %v7913 = vrot.slane %v7899, %v7912
        %v7914 = vcombine.low %v7858, %v7874
        %v7915 = vcombine.high %v7858, %v7874
        %v7917 = vunpack.c.l.s4 1934713408
        %v7918 = vunpack.c.0.s8 %v7917
        %v7919 = vlaneseq
        %v7920 = vshrl.u32 %v7919, 7
        %v7921 = vsub.s32 %v7918, %v7920
        %v7922 = vrot.slane %v7914, %v7921
        %v7924 = vunpack.c.l.s4 1934713408
        %v7925 = vunpack.c.0.s8 %v7924
        %v7926 = vlaneseq
        %v7927 = vshrl.u32 %v7926, 7
        %v7928 = vsub.s32 %v7925, %v7927
        %v7929 = vrot.slane %v7915, %v7928
        %v7930 = vcombine.low %v7865, %v7881
        %v7931 = vcombine.high %v7865, %v7881
        %v7933 = vunpack.c.l.s4 1934713408
        %v7934 = vunpack.c.0.s8 %v7933
        %v7935 = vlaneseq
        %v7936 = vshrl.u32 %v7935, 7
        %v7937 = vsub.s32 %v7934, %v7936
        %v7938 = vrot.slane %v7930, %v7937
        %v7940 = vunpack.c.l.s4 1934713408
        %v7941 = vunpack.c.0.s8 %v7940
        %v7942 = vlaneseq
        %v7943 = vshrl.u32 %v7942, 7
        %v7944 = vsub.s32 %v7941, %v7943
        %v7945 = vrot.slane %v7931, %v7944
        %v7946 = vcombine.low %v7890, %v7922
        %v7947 = vcombine.high %v7890, %v7922
        %v7948 = vcombine.low %v7897, %v7929
        %v7949 = vcombine.high %v7897, %v7929
        %v7950 = vcombine.low %v7906, %v7938
        %v7951 = vcombine.high %v7906, %v7938
        %v7952 = vcombine.low %v7913, %v7945
        %v7953 = vcombine.high %v7913, %v7945
        %v7954 = vcombine.low %v6206, %v6496
        %v7955 = vcombine.high %v6206, %v6496
        %v7957 = vunpack.c.l.s4 1983009808
        %v7958 = vunpack.c.0.s8 %v7957
        %v7959 = vlaneseq
        %v7960 = vshrl.u32 %v7959, 7
        %v7961 = vsub.s32 %v7958, %v7960
        %v7962 = vrot.slane %v7954, %v7961
        %v7964 = vunpack.c.l.s4 1983009808
        %v7965 = vunpack.c.0.s8 %v7964
        %v7966 = vlaneseq
        %v7967 = vshrl.u32 %v7966, 7
        %v7968 = vsub.s32 %v7965, %v7967
        %v7969 = vrot.slane %v7955, %v7968
        %v7970 = vcombine.low %v6351, %v6641
        %v7971 = vcombine.high %v6351, %v6641
        %v7973 = vunpack.c.l.s4 1983009808
        %v7974 = vunpack.c.0.s8 %v7973
        %v7975 = vlaneseq
        %v7976 = vshrl.u32 %v7975, 7
        %v7977 = vsub.s32 %v7974, %v7976
        %v7978 = vrot.slane %v7970, %v7977
        %v7980 = vunpack.c.l.s4 1983009808
        %v7981 = vunpack.c.0.s8 %v7980
        %v7982 = vlaneseq
        %v7983 = vshrl.u32 %v7982, 7
        %v7984 = vsub.s32 %v7981, %v7983
        %v7985 = vrot.slane %v7971, %v7984
        %v7986 = vcombine.low %v6786, %v7076
        %v7987 = vcombine.high %v6786, %v7076
        %v7989 = vunpack.c.l.s4 1983009808
        %v7990 = vunpack.c.0.s8 %v7989
        %v7991 = vlaneseq
        %v7992 = vshrl.u32 %v7991, 7
        %v7993 = vsub.s32 %v7990, %v7992
        %v7994 = vrot.slane %v7986, %v7993
        %v7996 = vunpack.c.l.s4 1983009808
        %v7997 = vunpack.c.0.s8 %v7996
        %v7998 = vlaneseq
        %v7999 = vshrl.u32 %v7998, 7
        %v8000 = vsub.s32 %v7997, %v7999
        %v8001 = vrot.slane %v7987, %v8000
        %v8002 = vcombine.low %v6931, %v7221
        %v8003 = vcombine.high %v6931, %v7221
        %v8005 = vunpack.c.l.s4 1983009808
        %v8006 = vunpack.c.0.s8 %v8005
        %v8007 = vlaneseq
        %v8008 = vshrl.u32 %v8007, 7
        %v8009 = vsub.s32 %v8006, %v8008
        %v8010 = vrot.slane %v8002, %v8009
        %v8012 = vunpack.c.l.s4 1983009808
        %v8013 = vunpack.c.0.s8 %v8012
        %v8014 = vlaneseq
        %v8015 = vshrl.u32 %v8014, 7
        %v8016 = vsub.s32 %v8013, %v8015
        %v8017 = vrot.slane %v8003, %v8016
        %v8018 = vcombine.low %v7962, %v7978
        %v8019 = vcombine.high %v7962, %v7978
        %v8021 = vunpack.c.l.s4 1934713408
        %v8022 = vunpack.c.0.s8 %v8021
        %v8023 = vlaneseq
        %v8024 = vshrl.u32 %v8023, 7
        %v8025 = vsub.s32 %v8022, %v8024
        %v8026 = vrot.slane %v8018, %v8025
        %v8028 = vunpack.c.l.s4 1934713408
        %v8029 = vunpack.c.0.s8 %v8028
        %v8030 = vlaneseq
        %v8031 = vshrl.u32 %v8030, 7
        %v8032 = vsub.s32 %v8029, %v8031
        %v8033 = vrot.slane %v8019, %v8032
        %v8034 = vcombine.low %v7969, %v7985
        %v8035 = vcombine.high %v7969, %v7985
        %v8037 = vunpack.c.l.s4 1934713408
        %v8038 = vunpack.c.0.s8 %v8037
        %v8039 = vlaneseq
        %v8040 = vshrl.u32 %v8039, 7
        %v8041 = vsub.s32 %v8038, %v8040
        %v8042 = vrot.slane %v8034, %v8041
        %v8044 = vunpack.c.l.s4 1934713408
        %v8045 = vunpack.c.0.s8 %v8044
        %v8046 = vlaneseq
        %v8047 = vshrl.u32 %v8046, 7
        %v8048 = vsub.s32 %v8045, %v8047
        %v8049 = vrot.slane %v8035, %v8048
        %v8050 = vcombine.low %v7994, %v8010
        %v8051 = vcombine.high %v7994, %v8010
        %v8053 = vunpack.c.l.s4 1934713408
        %v8054 = vunpack.c.0.s8 %v8053
        %v8055 = vlaneseq
        %v8056 = vshrl.u32 %v8055, 7
        %v8057 = vsub.s32 %v8054, %v8056
        %v8058 = vrot.slane %v8050, %v8057
        %v8060 = vunpack.c.l.s4 1934713408
        %v8061 = vunpack.c.0.s8 %v8060
        %v8062 = vlaneseq
        %v8063 = vshrl.u32 %v8062, 7
        %v8064 = vsub.s32 %v8061, %v8063
        %v8065 = vrot.slane %v8051, %v8064
        %v8066 = vcombine.low %v8001, %v8017
        %v8067 = vcombine.high %v8001, %v8017
        %v8069 = vunpack.c.l.s4 1934713408
        %v8070 = vunpack.c.0.s8 %v8069
        %v8071 = vlaneseq
        %v8072 = vshrl.u32 %v8071, 7
        %v8073 = vsub.s32 %v8070, %v8072
        %v8074 = vrot.slane %v8066, %v8073
        %v8076 = vunpack.c.l.s4 1934713408
        %v8077 = vunpack.c.0.s8 %v8076
        %v8078 = vlaneseq
        %v8079 = vshrl.u32 %v8078, 7
        %v8080 = vsub.s32 %v8077, %v8079
        %v8081 = vrot.slane %v8067, %v8080
        %v8082 = vcombine.low %v8026, %v8058
        %v8083 = vcombine.high %v8026, %v8058
        %v8084 = vcombine.low %v8033, %v8065
        %v8085 = vcombine.high %v8033, %v8065
        %v8086 = vcombine.low %v8042, %v8074
        %v8087 = vcombine.high %v8042, %v8074
        %v8088 = vcombine.low %v8049, %v8081
        %v8089 = vcombine.high %v8049, %v8081
        %v8090 = vcombine.low %v6211, %v6501
        %v8091 = vcombine.high %v6211, %v6501
        %v8093 = vunpack.c.l.s4 1983009808
        %v8094 = vunpack.c.0.s8 %v8093
        %v8095 = vlaneseq
        %v8096 = vshrl.u32 %v8095, 7
        %v8097 = vsub.s32 %v8094, %v8096
        %v8098 = vrot.slane %v8090, %v8097
        %v8100 = vunpack.c.l.s4 1983009808
        %v8101 = vunpack.c.0.s8 %v8100
        %v8102 = vlaneseq
        %v8103 = vshrl.u32 %v8102, 7
        %v8104 = vsub.s32 %v8101, %v8103
        %v8105 = vrot.slane %v8091, %v8104
        %v8106 = vcombine.low %v6356, %v6646
        %v8107 = vcombine.high %v6356, %v6646
        %v8109 = vunpack.c.l.s4 1983009808
        %v8110 = vunpack.c.0.s8 %v8109
        %v8111 = vlaneseq
        %v8112 = vshrl.u32 %v8111, 7
        %v8113 = vsub.s32 %v8110, %v8112
        %v8114 = vrot.slane %v8106, %v8113
        %v8116 = vunpack.c.l.s4 1983009808
        %v8117 = vunpack.c.0.s8 %v8116
        %v8118 = vlaneseq
        %v8119 = vshrl.u32 %v8118, 7
        %v8120 = vsub.s32 %v8117, %v8119
        %v8121 = vrot.slane %v8107, %v8120
        %v8122 = vcombine.low %v6791, %v7081
        %v8123 = vcombine.high %v6791, %v7081
        %v8125 = vunpack.c.l.s4 1983009808
        %v8126 = vunpack.c.0.s8 %v8125
        %v8127 = vlaneseq
        %v8128 = vshrl.u32 %v8127, 7
        %v8129 = vsub.s32 %v8126, %v8128
        %v8130 = vrot.slane %v8122, %v8129
        %v8132 = vunpack.c.l.s4 1983009808
        %v8133 = vunpack.c.0.s8 %v8132
        %v8134 = vlaneseq
        %v8135 = vshrl.u32 %v8134, 7
        %v8136 = vsub.s32 %v8133, %v8135
        %v8137 = vrot.slane %v8123, %v8136
        %v8138 = vcombine.low %v6936, %v7226
        %v8139 = vcombine.high %v6936, %v7226
        %v8141 = vunpack.c.l.s4 1983009808
        %v8142 = vunpack.c.0.s8 %v8141
        %v8143 = vlaneseq
        %v8144 = vshrl.u32 %v8143, 7
        %v8145 = vsub.s32 %v8142, %v8144
        %v8146 = vrot.slane %v8138, %v8145
        %v8148 = vunpack.c.l.s4 1983009808
        %v8149 = vunpack.c.0.s8 %v8148
        %v8150 = vlaneseq
        %v8151 = vshrl.u32 %v8150, 7
        %v8152 = vsub.s32 %v8149, %v8151
        %v8153 = vrot.slane %v8139, %v8152
        %v8154 = vcombine.low %v8098, %v8114
        %v8155 = vcombine.high %v8098, %v8114
        %v8157 = vunpack.c.l.s4 1934713408
        %v8158 = vunpack.c.0.s8 %v8157
        %v8159 = vlaneseq
        %v8160 = vshrl.u32 %v8159, 7
        %v8161 = vsub.s32 %v8158, %v8160
        %v8162 = vrot.slane %v8154, %v8161
        %v8164 = vunpack.c.l.s4 1934713408
        %v8165 = vunpack.c.0.s8 %v8164
        %v8166 = vlaneseq
        %v8167 = vshrl.u32 %v8166, 7
        %v8168 = vsub.s32 %v8165, %v8167
        %v8169 = vrot.slane %v8155, %v8168
        %v8170 = vcombine.low %v8105, %v8121
        %v8171 = vcombine.high %v8105, %v8121
        %v8173 = vunpack.c.l.s4 1934713408
        %v8174 = vunpack.c.0.s8 %v8173
        %v8175 = vlaneseq
        %v8176 = vshrl.u32 %v8175, 7
        %v8177 = vsub.s32 %v8174, %v8176
        %v8178 = vrot.slane %v8170, %v8177
        %v8180 = vunpack.c.l.s4 1934713408
        %v8181 = vunpack.c.0.s8 %v8180
        %v8182 = vlaneseq
        %v8183 = vshrl.u32 %v8182, 7
        %v8184 = vsub.s32 %v8181, %v8183
        %v8185 = vrot.slane %v8171, %v8184
        %v8186 = vcombine.low %v8130, %v8146
        %v8187 = vcombine.high %v8130, %v8146
        %v8189 = vunpack.c.l.s4 1934713408
        %v8190 = vunpack.c.0.s8 %v8189
        %v8191 = vlaneseq
        %v8192 = vshrl.u32 %v8191, 7
        %v8193 = vsub.s32 %v8190, %v8192
        %v8194 = vrot.slane %v8186, %v8193
        %v8196 = vunpack.c.l.s4 1934713408
        %v8197 = vunpack.c.0.s8 %v8196
        %v8198 = vlaneseq
        %v8199 = vshrl.u32 %v8198, 7
        %v8200 = vsub.s32 %v8197, %v8199
        %v8201 = vrot.slane %v8187, %v8200
        %v8202 = vcombine.low %v8137, %v8153
        %v8203 = vcombine.high %v8137, %v8153
        %v8205 = vunpack.c.l.s4 1934713408
        %v8206 = vunpack.c.0.s8 %v8205
        %v8207 = vlaneseq
        %v8208 = vshrl.u32 %v8207, 7
        %v8209 = vsub.s32 %v8206, %v8208
        %v8210 = vrot.slane %v8202, %v8209
        %v8212 = vunpack.c.l.s4 1934713408
        %v8213 = vunpack.c.0.s8 %v8212
        %v8214 = vlaneseq
        %v8215 = vshrl.u32 %v8214, 7
        %v8216 = vsub.s32 %v8213, %v8215
        %v8217 = vrot.slane %v8203, %v8216
        %v8218 = vcombine.low %v8162, %v8194
        %v8219 = vcombine.high %v8162, %v8194
        %v8220 = vcombine.low %v8169, %v8201
        %v8221 = vcombine.high %v8169, %v8201
        %v8222 = vcombine.low %v8178, %v8210
        %v8223 = vcombine.high %v8178, %v8210
        %v8224 = vcombine.low %v8185, %v8217
        %v8225 = vcombine.high %v8185, %v8217
        %v8226 = vcombine.low %v6216, %v6506
        %v8227 = vcombine.high %v6216, %v6506
        %v8229 = vunpack.c.l.s4 1983009808
        %v8230 = vunpack.c.0.s8 %v8229
        %v8231 = vlaneseq
        %v8232 = vshrl.u32 %v8231, 7
        %v8233 = vsub.s32 %v8230, %v8232
        %v8234 = vrot.slane %v8226, %v8233
        %v8236 = vunpack.c.l.s4 1983009808
        %v8237 = vunpack.c.0.s8 %v8236
        %v8238 = vlaneseq
        %v8239 = vshrl.u32 %v8238, 7
        %v8240 = vsub.s32 %v8237, %v8239
        %v8241 = vrot.slane %v8227, %v8240
        %v8242 = vcombine.low %v6361, %v6651
        %v8243 = vcombine.high %v6361, %v6651
        %v8245 = vunpack.c.l.s4 1983009808
        %v8246 = vunpack.c.0.s8 %v8245
        %v8247 = vlaneseq
        %v8248 = vshrl.u32 %v8247, 7
        %v8249 = vsub.s32 %v8246, %v8248
        %v8250 = vrot.slane %v8242, %v8249
        %v8252 = vunpack.c.l.s4 1983009808
        %v8253 = vunpack.c.0.s8 %v8252
        %v8254 = vlaneseq
        %v8255 = vshrl.u32 %v8254, 7
        %v8256 = vsub.s32 %v8253, %v8255
        %v8257 = vrot.slane %v8243, %v8256
        %v8258 = vcombine.low %v6796, %v7086
        %v8259 = vcombine.high %v6796, %v7086
        %v8261 = vunpack.c.l.s4 1983009808
        %v8262 = vunpack.c.0.s8 %v8261
        %v8263 = vlaneseq
        %v8264 = vshrl.u32 %v8263, 7
        %v8265 = vsub.s32 %v8262, %v8264
        %v8266 = vrot.slane %v8258, %v8265
        %v8268 = vunpack.c.l.s4 1983009808
        %v8269 = vunpack.c.0.s8 %v8268
        %v8270 = vlaneseq
        %v8271 = vshrl.u32 %v8270, 7
        %v8272 = vsub.s32 %v8269, %v8271
        %v8273 = vrot.slane %v8259, %v8272
        %v8274 = vcombine.low %v6941, %v7231
        %v8275 = vcombine.high %v6941, %v7231
        %v8277 = vunpack.c.l.s4 1983009808
        %v8278 = vunpack.c.0.s8 %v8277
        %v8279 = vlaneseq
        %v8280 = vshrl.u32 %v8279, 7
        %v8281 = vsub.s32 %v8278, %v8280
        %v8282 = vrot.slane %v8274, %v8281
        %v8284 = vunpack.c.l.s4 1983009808
        %v8285 = vunpack.c.0.s8 %v8284
        %v8286 = vlaneseq
        %v8287 = vshrl.u32 %v8286, 7
        %v8288 = vsub.s32 %v8285, %v8287
        %v8289 = vrot.slane %v8275, %v8288
        %v8290 = vcombine.low %v8234, %v8250
        %v8291 = vcombine.high %v8234, %v8250
        %v8293 = vunpack.c.l.s4 1934713408
        %v8294 = vunpack.c.0.s8 %v8293
        %v8295 = vlaneseq
        %v8296 = vshrl.u32 %v8295, 7
        %v8297 = vsub.s32 %v8294, %v8296
        %v8298 = vrot.slane %v8290, %v8297
        %v8300 = vunpack.c.l.s4 1934713408
        %v8301 = vunpack.c.0.s8 %v8300
        %v8302 = vlaneseq
        %v8303 = vshrl.u32 %v8302, 7
        %v8304 = vsub.s32 %v8301, %v8303
        %v8305 = vrot.slane %v8291, %v8304
        %v8306 = vcombine.low %v8241, %v8257
        %v8307 = vcombine.high %v8241, %v8257
        %v8309 = vunpack.c.l.s4 1934713408
        %v8310 = vunpack.c.0.s8 %v8309
        %v8311 = vlaneseq
        %v8312 = vshrl.u32 %v8311, 7
        %v8313 = vsub.s32 %v8310, %v8312
        %v8314 = vrot.slane %v8306, %v8313
        %v8316 = vunpack.c.l.s4 1934713408
        %v8317 = vunpack.c.0.s8 %v8316
        %v8318 = vlaneseq
        %v8319 = vshrl.u32 %v8318, 7
        %v8320 = vsub.s32 %v8317, %v8319
        %v8321 = vrot.slane %v8307, %v8320
        %v8322 = vcombine.low %v8266, %v8282
        %v8323 = vcombine.high %v8266, %v8282
        %v8325 = vunpack.c.l.s4 1934713408
        %v8326 = vunpack.c.0.s8 %v8325
        %v8327 = vlaneseq
        %v8328 = vshrl.u32 %v8327, 7
        %v8329 = vsub.s32 %v8326, %v8328
        %v8330 = vrot.slane %v8322, %v8329
        %v8332 = vunpack.c.l.s4 1934713408
        %v8333 = vunpack.c.0.s8 %v8332
        %v8334 = vlaneseq
        %v8335 = vshrl.u32 %v8334, 7
        %v8336 = vsub.s32 %v8333, %v8335
        %v8337 = vrot.slane %v8323, %v8336
        %v8338 = vcombine.low %v8273, %v8289
        %v8339 = vcombine.high %v8273, %v8289
        %v8341 = vunpack.c.l.s4 1934713408
        %v8342 = vunpack.c.0.s8 %v8341
        %v8343 = vlaneseq
        %v8344 = vshrl.u32 %v8343, 7
        %v8345 = vsub.s32 %v8342, %v8344
        %v8346 = vrot.slane %v8338, %v8345
        %v8348 = vunpack.c.l.s4 1934713408
        %v8349 = vunpack.c.0.s8 %v8348
        %v8350 = vlaneseq
        %v8351 = vshrl.u32 %v8350, 7
        %v8352 = vsub.s32 %v8349, %v8351
        %v8353 = vrot.slane %v8339, %v8352
        %v8354 = vcombine.low %v8298, %v8330
        %v8355 = vcombine.high %v8298, %v8330
        %v8356 = vcombine.low %v8305, %v8337
        %v8357 = vcombine.high %v8305, %v8337
        %v8358 = vcombine.low %v8314, %v8346
        %v8359 = vcombine.high %v8314, %v8346
        %v8360 = vcombine.low %v8321, %v8353
        %v8361 = vcombine.high %v8321, %v8353
        %v8362 = vcombine.low %v6221, %v6511
        %v8363 = vcombine.high %v6221, %v6511
        %v8365 = vunpack.c.l.s4 1983009808
        %v8366 = vunpack.c.0.s8 %v8365
        %v8367 = vlaneseq
        %v8368 = vshrl.u32 %v8367, 7
        %v8369 = vsub.s32 %v8366, %v8368
        %v8370 = vrot.slane %v8362, %v8369
        %v8372 = vunpack.c.l.s4 1983009808
        %v8373 = vunpack.c.0.s8 %v8372
        %v8374 = vlaneseq
        %v8375 = vshrl.u32 %v8374, 7
        %v8376 = vsub.s32 %v8373, %v8375
        %v8377 = vrot.slane %v8363, %v8376
        %v8378 = vcombine.low %v6366, %v6656
        %v8379 = vcombine.high %v6366, %v6656
        %v8381 = vunpack.c.l.s4 1983009808
        %v8382 = vunpack.c.0.s8 %v8381
        %v8383 = vlaneseq
        %v8384 = vshrl.u32 %v8383, 7
        %v8385 = vsub.s32 %v8382, %v8384
        %v8386 = vrot.slane %v8378, %v8385
        %v8388 = vunpack.c.l.s4 1983009808
        %v8389 = vunpack.c.0.s8 %v8388
        %v8390 = vlaneseq
        %v8391 = vshrl.u32 %v8390, 7
        %v8392 = vsub.s32 %v8389, %v8391
        %v8393 = vrot.slane %v8379, %v8392
        %v8394 = vcombine.low %v6801, %v7091
        %v8395 = vcombine.high %v6801, %v7091
        %v8397 = vunpack.c.l.s4 1983009808
        %v8398 = vunpack.c.0.s8 %v8397
        %v8399 = vlaneseq
        %v8400 = vshrl.u32 %v8399, 7
        %v8401 = vsub.s32 %v8398, %v8400
        %v8402 = vrot.slane %v8394, %v8401
        %v8404 = vunpack.c.l.s4 1983009808
        %v8405 = vunpack.c.0.s8 %v8404
        %v8406 = vlaneseq
        %v8407 = vshrl.u32 %v8406, 7
        %v8408 = vsub.s32 %v8405, %v8407
        %v8409 = vrot.slane %v8395, %v8408
        %v8410 = vcombine.low %v6946, %v7236
        %v8411 = vcombine.high %v6946, %v7236
        %v8413 = vunpack.c.l.s4 1983009808
        %v8414 = vunpack.c.0.s8 %v8413
        %v8415 = vlaneseq
        %v8416 = vshrl.u32 %v8415, 7
        %v8417 = vsub.s32 %v8414, %v8416
        %v8418 = vrot.slane %v8410, %v8417
        %v8420 = vunpack.c.l.s4 1983009808
        %v8421 = vunpack.c.0.s8 %v8420
        %v8422 = vlaneseq
        %v8423 = vshrl.u32 %v8422, 7
        %v8424 = vsub.s32 %v8421, %v8423
        %v8425 = vrot.slane %v8411, %v8424
        %v8426 = vcombine.low %v8370, %v8386
        %v8427 = vcombine.high %v8370, %v8386
        %v8429 = vunpack.c.l.s4 1934713408
        %v8430 = vunpack.c.0.s8 %v8429
        %v8431 = vlaneseq
        %v8432 = vshrl.u32 %v8431, 7
        %v8433 = vsub.s32 %v8430, %v8432
        %v8434 = vrot.slane %v8426, %v8433
        %v8436 = vunpack.c.l.s4 1934713408
        %v8437 = vunpack.c.0.s8 %v8436
        %v8438 = vlaneseq
        %v8439 = vshrl.u32 %v8438, 7
        %v8440 = vsub.s32 %v8437, %v8439
        %v8441 = vrot.slane %v8427, %v8440
        %v8442 = vcombine.low %v8377, %v8393
        %v8443 = vcombine.high %v8377, %v8393
        %v8445 = vunpack.c.l.s4 1934713408
        %v8446 = vunpack.c.0.s8 %v8445
        %v8447 = vlaneseq
        %v8448 = vshrl.u32 %v8447, 7
        %v8449 = vsub.s32 %v8446, %v8448
        %v8450 = vrot.slane %v8442, %v8449
        %v8452 = vunpack.c.l.s4 1934713408
        %v8453 = vunpack.c.0.s8 %v8452
        %v8454 = vlaneseq
        %v8455 = vshrl.u32 %v8454, 7
        %v8456 = vsub.s32 %v8453, %v8455
        %v8457 = vrot.slane %v8443, %v8456
        %v8458 = vcombine.low %v8402, %v8418
        %v8459 = vcombine.high %v8402, %v8418
        %v8461 = vunpack.c.l.s4 1934713408
        %v8462 = vunpack.c.0.s8 %v8461
        %v8463 = vlaneseq
        %v8464 = vshrl.u32 %v8463, 7
        %v8465 = vsub.s32 %v8462, %v8464
        %v8466 = vrot.slane %v8458, %v8465
        %v8468 = vunpack.c.l.s4 1934713408
        %v8469 = vunpack.c.0.s8 %v8468
        %v8470 = vlaneseq
        %v8471 = vshrl.u32 %v8470, 7
        %v8472 = vsub.s32 %v8469, %v8471
        %v8473 = vrot.slane %v8459, %v8472
        %v8474 = vcombine.low %v8409, %v8425
        %v8475 = vcombine.high %v8409, %v8425
        %v8477 = vunpack.c.l.s4 1934713408
        %v8478 = vunpack.c.0.s8 %v8477
        %v8479 = vlaneseq
        %v8480 = vshrl.u32 %v8479, 7
        %v8481 = vsub.s32 %v8478, %v8480
        %v8482 = vrot.slane %v8474, %v8481
        %v8484 = vunpack.c.l.s4 1934713408
        %v8485 = vunpack.c.0.s8 %v8484
        %v8486 = vlaneseq
        %v8487 = vshrl.u32 %v8486, 7
        %v8488 = vsub.s32 %v8485, %v8487
        %v8489 = vrot.slane %v8475, %v8488
        %v8490 = vcombine.low %v8434, %v8466
        %v8491 = vcombine.high %v8434, %v8466
        %v8492 = vcombine.low %v8441, %v8473
        %v8493 = vcombine.high %v8441, %v8473
        %v8494 = vcombine.low %v8450, %v8482
        %v8495 = vcombine.high %v8450, %v8482
        %v8496 = vcombine.low %v8457, %v8489
        %v8497 = vcombine.high %v8457, %v8489
        %v8498 = vcombine.low %v6226, %v6516
        %v8499 = vcombine.high %v6226, %v6516
        %v8501 = vunpack.c.l.s4 1983009808
        %v8502 = vunpack.c.0.s8 %v8501
        %v8503 = vlaneseq
        %v8504 = vshrl.u32 %v8503, 7
        %v8505 = vsub.s32 %v8502, %v8504
        %v8506 = vrot.slane %v8498, %v8505
        %v8508 = vunpack.c.l.s4 1983009808
        %v8509 = vunpack.c.0.s8 %v8508
        %v8510 = vlaneseq
        %v8511 = vshrl.u32 %v8510, 7
        %v8512 = vsub.s32 %v8509, %v8511
        %v8513 = vrot.slane %v8499, %v8512
        %v8514 = vcombine.low %v6371, %v6661
        %v8515 = vcombine.high %v6371, %v6661
        %v8517 = vunpack.c.l.s4 1983009808
        %v8518 = vunpack.c.0.s8 %v8517
        %v8519 = vlaneseq
        %v8520 = vshrl.u32 %v8519, 7
        %v8521 = vsub.s32 %v8518, %v8520
        %v8522 = vrot.slane %v8514, %v8521
        %v8524 = vunpack.c.l.s4 1983009808
        %v8525 = vunpack.c.0.s8 %v8524
        %v8526 = vlaneseq
        %v8527 = vshrl.u32 %v8526, 7
        %v8528 = vsub.s32 %v8525, %v8527
        %v8529 = vrot.slane %v8515, %v8528
        %v8530 = vcombine.low %v6806, %v7096
        %v8531 = vcombine.high %v6806, %v7096
        %v8533 = vunpack.c.l.s4 1983009808
        %v8534 = vunpack.c.0.s8 %v8533
        %v8535 = vlaneseq
        %v8536 = vshrl.u32 %v8535, 7
        %v8537 = vsub.s32 %v8534, %v8536
        %v8538 = vrot.slane %v8530, %v8537
        %v8540 = vunpack.c.l.s4 1983009808
        %v8541 = vunpack.c.0.s8 %v8540
        %v8542 = vlaneseq
        %v8543 = vshrl.u32 %v8542, 7
        %v8544 = vsub.s32 %v8541, %v8543
        %v8545 = vrot.slane %v8531, %v8544
        %v8546 = vcombine.low %v6951, %v7241
        %v8547 = vcombine.high %v6951, %v7241
        %v8549 = vunpack.c.l.s4 1983009808
        %v8550 = vunpack.c.0.s8 %v8549
        %v8551 = vlaneseq
        %v8552 = vshrl.u32 %v8551, 7
        %v8553 = vsub.s32 %v8550, %v8552
        %v8554 = vrot.slane %v8546, %v8553
        %v8556 = vunpack.c.l.s4 1983009808
        %v8557 = vunpack.c.0.s8 %v8556
        %v8558 = vlaneseq
        %v8559 = vshrl.u32 %v8558, 7
        %v8560 = vsub.s32 %v8557, %v8559
        %v8561 = vrot.slane %v8547, %v8560
        %v8562 = vcombine.low %v8506, %v8522
        %v8563 = vcombine.high %v8506, %v8522
        %v8565 = vunpack.c.l.s4 1934713408
        %v8566 = vunpack.c.0.s8 %v8565
        %v8567 = vlaneseq
        %v8568 = vshrl.u32 %v8567, 7
        %v8569 = vsub.s32 %v8566, %v8568
        %v8570 = vrot.slane %v8562, %v8569
        %v8572 = vunpack.c.l.s4 1934713408
        %v8573 = vunpack.c.0.s8 %v8572
        %v8574 = vlaneseq
        %v8575 = vshrl.u32 %v8574, 7
        %v8576 = vsub.s32 %v8573, %v8575
        %v8577 = vrot.slane %v8563, %v8576
        %v8578 = vcombine.low %v8513, %v8529
        %v8579 = vcombine.high %v8513, %v8529
        %v8581 = vunpack.c.l.s4 1934713408
        %v8582 = vunpack.c.0.s8 %v8581
        %v8583 = vlaneseq
        %v8584 = vshrl.u32 %v8583, 7
        %v8585 = vsub.s32 %v8582, %v8584
        %v8586 = vrot.slane %v8578, %v8585
        %v8588 = vunpack.c.l.s4 1934713408
        %v8589 = vunpack.c.0.s8 %v8588
        %v8590 = vlaneseq
        %v8591 = vshrl.u32 %v8590, 7
        %v8592 = vsub.s32 %v8589, %v8591
        %v8593 = vrot.slane %v8579, %v8592
        %v8594 = vcombine.low %v8538, %v8554
        %v8595 = vcombine.high %v8538, %v8554
        %v8597 = vunpack.c.l.s4 1934713408
        %v8598 = vunpack.c.0.s8 %v8597
        %v8599 = vlaneseq
        %v8600 = vshrl.u32 %v8599, 7
        %v8601 = vsub.s32 %v8598, %v8600
        %v8602 = vrot.slane %v8594, %v8601
        %v8604 = vunpack.c.l.s4 1934713408
        %v8605 = vunpack.c.0.s8 %v8604
        %v8606 = vlaneseq
        %v8607 = vshrl.u32 %v8606, 7
        %v8608 = vsub.s32 %v8605, %v8607
        %v8609 = vrot.slane %v8595, %v8608
        %v8610 = vcombine.low %v8545, %v8561
        %v8611 = vcombine.high %v8545, %v8561
        %v8613 = vunpack.c.l.s4 1934713408
        %v8614 = vunpack.c.0.s8 %v8613
        %v8615 = vlaneseq
        %v8616 = vshrl.u32 %v8615, 7
        %v8617 = vsub.s32 %v8614, %v8616
        %v8618 = vrot.slane %v8610, %v8617
        %v8620 = vunpack.c.l.s4 1934713408
        %v8621 = vunpack.c.0.s8 %v8620
        %v8622 = vlaneseq
        %v8623 = vshrl.u32 %v8622, 7
        %v8624 = vsub.s32 %v8621, %v8623
        %v8625 = vrot.slane %v8611, %v8624
        %v8626 = vcombine.low %v8570, %v8602
        %v8627 = vcombine.high %v8570, %v8602
        %v8628 = vcombine.low %v8577, %v8609
        %v8629 = vcombine.high %v8577, %v8609
        %v8630 = vcombine.low %v8586, %v8618
        %v8631 = vcombine.high %v8586, %v8618
        %v8632 = vcombine.low %v8593, %v8625
        %v8633 = vcombine.high %v8593, %v8625
        %v8634 = vcombine.low %v6231, %v6521
        %v8635 = vcombine.high %v6231, %v6521
        %v8637 = vunpack.c.l.s4 1983009808
        %v8638 = vunpack.c.0.s8 %v8637
        %v8639 = vlaneseq
        %v8640 = vshrl.u32 %v8639, 7
        %v8641 = vsub.s32 %v8638, %v8640
        %v8642 = vrot.slane %v8634, %v8641
        %v8644 = vunpack.c.l.s4 1983009808
        %v8645 = vunpack.c.0.s8 %v8644
        %v8646 = vlaneseq
        %v8647 = vshrl.u32 %v8646, 7
        %v8648 = vsub.s32 %v8645, %v8647
        %v8649 = vrot.slane %v8635, %v8648
        %v8650 = vcombine.low %v6376, %v6666
        %v8651 = vcombine.high %v6376, %v6666
        %v8653 = vunpack.c.l.s4 1983009808
        %v8654 = vunpack.c.0.s8 %v8653
        %v8655 = vlaneseq
        %v8656 = vshrl.u32 %v8655, 7
        %v8657 = vsub.s32 %v8654, %v8656
        %v8658 = vrot.slane %v8650, %v8657
        %v8660 = vunpack.c.l.s4 1983009808
        %v8661 = vunpack.c.0.s8 %v8660
        %v8662 = vlaneseq
        %v8663 = vshrl.u32 %v8662, 7
        %v8664 = vsub.s32 %v8661, %v8663
        %v8665 = vrot.slane %v8651, %v8664
        %v8666 = vcombine.low %v6811, %v7101
        %v8667 = vcombine.high %v6811, %v7101
        %v8669 = vunpack.c.l.s4 1983009808
        %v8670 = vunpack.c.0.s8 %v8669
        %v8671 = vlaneseq
        %v8672 = vshrl.u32 %v8671, 7
        %v8673 = vsub.s32 %v8670, %v8672
        %v8674 = vrot.slane %v8666, %v8673
        %v8676 = vunpack.c.l.s4 1983009808
        %v8677 = vunpack.c.0.s8 %v8676
        %v8678 = vlaneseq
        %v8679 = vshrl.u32 %v8678, 7
        %v8680 = vsub.s32 %v8677, %v8679
        %v8681 = vrot.slane %v8667, %v8680
        %v8682 = vcombine.low %v6956, %v7246
        %v8683 = vcombine.high %v6956, %v7246
        %v8685 = vunpack.c.l.s4 1983009808
        %v8686 = vunpack.c.0.s8 %v8685
        %v8687 = vlaneseq
        %v8688 = vshrl.u32 %v8687, 7
        %v8689 = vsub.s32 %v8686, %v8688
        %v8690 = vrot.slane %v8682, %v8689
        %v8692 = vunpack.c.l.s4 1983009808
        %v8693 = vunpack.c.0.s8 %v8692
        %v8694 = vlaneseq
        %v8695 = vshrl.u32 %v8694, 7
        %v8696 = vsub.s32 %v8693, %v8695
        %v8697 = vrot.slane %v8683, %v8696
        %v8698 = vcombine.low %v8642, %v8658
        %v8699 = vcombine.high %v8642, %v8658
        %v8701 = vunpack.c.l.s4 1934713408
        %v8702 = vunpack.c.0.s8 %v8701
        %v8703 = vlaneseq
        %v8704 = vshrl.u32 %v8703, 7
        %v8705 = vsub.s32 %v8702, %v8704
        %v8706 = vrot.slane %v8698, %v8705
        %v8708 = vunpack.c.l.s4 1934713408
        %v8709 = vunpack.c.0.s8 %v8708
        %v8710 = vlaneseq
        %v8711 = vshrl.u32 %v8710, 7
        %v8712 = vsub.s32 %v8709, %v8711
        %v8713 = vrot.slane %v8699, %v8712
        %v8714 = vcombine.low %v8649, %v8665
        %v8715 = vcombine.high %v8649, %v8665
        %v8717 = vunpack.c.l.s4 1934713408
        %v8718 = vunpack.c.0.s8 %v8717
        %v8719 = vlaneseq
        %v8720 = vshrl.u32 %v8719, 7
        %v8721 = vsub.s32 %v8718, %v8720
        %v8722 = vrot.slane %v8714, %v8721
        %v8724 = vunpack.c.l.s4 1934713408
        %v8725 = vunpack.c.0.s8 %v8724
        %v8726 = vlaneseq
        %v8727 = vshrl.u32 %v8726, 7
        %v8728 = vsub.s32 %v8725, %v8727
        %v8729 = vrot.slane %v8715, %v8728
        %v8730 = vcombine.low %v8674, %v8690
        %v8731 = vcombine.high %v8674, %v8690
        %v8733 = vunpack.c.l.s4 1934713408
        %v8734 = vunpack.c.0.s8 %v8733
        %v8735 = vlaneseq
        %v8736 = vshrl.u32 %v8735, 7
        %v8737 = vsub.s32 %v8734, %v8736
        %v8738 = vrot.slane %v8730, %v8737
        %v8740 = vunpack.c.l.s4 1934713408
        %v8741 = vunpack.c.0.s8 %v8740
        %v8742 = vlaneseq
        %v8743 = vshrl.u32 %v8742, 7
        %v8744 = vsub.s32 %v8741, %v8743
        %v8745 = vrot.slane %v8731, %v8744
        %v8746 = vcombine.low %v8681, %v8697
        %v8747 = vcombine.high %v8681, %v8697
        %v8749 = vunpack.c.l.s4 1934713408
        %v8750 = vunpack.c.0.s8 %v8749
        %v8751 = vlaneseq
        %v8752 = vshrl.u32 %v8751, 7
        %v8753 = vsub.s32 %v8750, %v8752
        %v8754 = vrot.slane %v8746, %v8753
        %v8756 = vunpack.c.l.s4 1934713408
        %v8757 = vunpack.c.0.s8 %v8756
        %v8758 = vlaneseq
        %v8759 = vshrl.u32 %v8758, 7
        %v8760 = vsub.s32 %v8757, %v8759
        %v8761 = vrot.slane %v8747, %v8760
        %v8762 = vcombine.low %v8706, %v8738
        %v8763 = vcombine.high %v8706, %v8738
        %v8764 = vcombine.low %v8713, %v8745
        %v8765 = vcombine.high %v8713, %v8745
        %v8766 = vcombine.low %v8722, %v8754
        %v8767 = vcombine.high %v8722, %v8754
        %v8768 = vcombine.low %v8729, %v8761
        %v8769 = vcombine.high %v8729, %v8761
        %v8770 = vcombine.low %v6236, %v6526
        %v8771 = vcombine.high %v6236, %v6526
        %v8773 = vunpack.c.l.s4 1983009808
        %v8774 = vunpack.c.0.s8 %v8773
        %v8775 = vlaneseq
        %v8776 = vshrl.u32 %v8775, 7
        %v8777 = vsub.s32 %v8774, %v8776
        %v8778 = vrot.slane %v8770, %v8777
        %v8780 = vunpack.c.l.s4 1983009808
        %v8781 = vunpack.c.0.s8 %v8780
        %v8782 = vlaneseq
        %v8783 = vshrl.u32 %v8782, 7
        %v8784 = vsub.s32 %v8781, %v8783
        %v8785 = vrot.slane %v8771, %v8784
        %v8786 = vcombine.low %v6381, %v6671
        %v8787 = vcombine.high %v6381, %v6671
        %v8789 = vunpack.c.l.s4 1983009808
        %v8790 = vunpack.c.0.s8 %v8789
        %v8791 = vlaneseq
        %v8792 = vshrl.u32 %v8791, 7
        %v8793 = vsub.s32 %v8790, %v8792
        %v8794 = vrot.slane %v8786, %v8793
        %v8796 = vunpack.c.l.s4 1983009808
        %v8797 = vunpack.c.0.s8 %v8796
        %v8798 = vlaneseq
        %v8799 = vshrl.u32 %v8798, 7
        %v8800 = vsub.s32 %v8797, %v8799
        %v8801 = vrot.slane %v8787, %v8800
        %v8802 = vcombine.low %v6816, %v7106
        %v8803 = vcombine.high %v6816, %v7106
        %v8805 = vunpack.c.l.s4 1983009808
        %v8806 = vunpack.c.0.s8 %v8805
        %v8807 = vlaneseq
        %v8808 = vshrl.u32 %v8807, 7
        %v8809 = vsub.s32 %v8806, %v8808
        %v8810 = vrot.slane %v8802, %v8809
        %v8812 = vunpack.c.l.s4 1983009808
        %v8813 = vunpack.c.0.s8 %v8812
        %v8814 = vlaneseq
        %v8815 = vshrl.u32 %v8814, 7
        %v8816 = vsub.s32 %v8813, %v8815
        %v8817 = vrot.slane %v8803, %v8816
        %v8818 = vcombine.low %v6961, %v7251
        %v8819 = vcombine.high %v6961, %v7251
        %v8821 = vunpack.c.l.s4 1983009808
        %v8822 = vunpack.c.0.s8 %v8821
        %v8823 = vlaneseq
        %v8824 = vshrl.u32 %v8823, 7
        %v8825 = vsub.s32 %v8822, %v8824
        %v8826 = vrot.slane %v8818, %v8825
        %v8828 = vunpack.c.l.s4 1983009808
        %v8829 = vunpack.c.0.s8 %v8828
        %v8830 = vlaneseq
        %v8831 = vshrl.u32 %v8830, 7
        %v8832 = vsub.s32 %v8829, %v8831
        %v8833 = vrot.slane %v8819, %v8832
        %v8834 = vcombine.low %v8778, %v8794
        %v8835 = vcombine.high %v8778, %v8794
        %v8837 = vunpack.c.l.s4 1934713408
        %v8838 = vunpack.c.0.s8 %v8837
        %v8839 = vlaneseq
        %v8840 = vshrl.u32 %v8839, 7
        %v8841 = vsub.s32 %v8838, %v8840
        %v8842 = vrot.slane %v8834, %v8841
        %v8844 = vunpack.c.l.s4 1934713408
        %v8845 = vunpack.c.0.s8 %v8844
        %v8846 = vlaneseq
        %v8847 = vshrl.u32 %v8846, 7
        %v8848 = vsub.s32 %v8845, %v8847
        %v8849 = vrot.slane %v8835, %v8848
        %v8850 = vcombine.low %v8785, %v8801
        %v8851 = vcombine.high %v8785, %v8801
        %v8853 = vunpack.c.l.s4 1934713408
        %v8854 = vunpack.c.0.s8 %v8853
        %v8855 = vlaneseq
        %v8856 = vshrl.u32 %v8855, 7
        %v8857 = vsub.s32 %v8854, %v8856
        %v8858 = vrot.slane %v8850, %v8857
        %v8860 = vunpack.c.l.s4 1934713408
        %v8861 = vunpack.c.0.s8 %v8860
        %v8862 = vlaneseq
        %v8863 = vshrl.u32 %v8862, 7
        %v8864 = vsub.s32 %v8861, %v8863
        %v8865 = vrot.slane %v8851, %v8864
        %v8866 = vcombine.low %v8810, %v8826
        %v8867 = vcombine.high %v8810, %v8826
        %v8869 = vunpack.c.l.s4 1934713408
        %v8870 = vunpack.c.0.s8 %v8869
        %v8871 = vlaneseq
        %v8872 = vshrl.u32 %v8871, 7
        %v8873 = vsub.s32 %v8870, %v8872
        %v8874 = vrot.slane %v8866, %v8873
        %v8876 = vunpack.c.l.s4 1934713408
        %v8877 = vunpack.c.0.s8 %v8876
        %v8878 = vlaneseq
        %v8879 = vshrl.u32 %v8878, 7
        %v8880 = vsub.s32 %v8877, %v8879
        %v8881 = vrot.slane %v8867, %v8880
        %v8882 = vcombine.low %v8817, %v8833
        %v8883 = vcombine.high %v8817, %v8833
        %v8885 = vunpack.c.l.s4 1934713408
        %v8886 = vunpack.c.0.s8 %v8885
        %v8887 = vlaneseq
        %v8888 = vshrl.u32 %v8887, 7
        %v8889 = vsub.s32 %v8886, %v8888
        %v8890 = vrot.slane %v8882, %v8889
        %v8892 = vunpack.c.l.s4 1934713408
        %v8893 = vunpack.c.0.s8 %v8892
        %v8894 = vlaneseq
        %v8895 = vshrl.u32 %v8894, 7
        %v8896 = vsub.s32 %v8893, %v8895
        %v8897 = vrot.slane %v8883, %v8896
        %v8898 = vcombine.low %v8842, %v8874
        %v8899 = vcombine.high %v8842, %v8874
        %v8900 = vcombine.low %v8849, %v8881
        %v8901 = vcombine.high %v8849, %v8881
        %v8902 = vcombine.low %v8858, %v8890
        %v8903 = vcombine.high %v8858, %v8890
        %v8904 = vcombine.low %v8865, %v8897
        %v8905 = vcombine.high %v8865, %v8897
        %v8906 = vcombine.low %v6241, %v6531
        %v8907 = vcombine.high %v6241, %v6531
        %v8909 = vunpack.c.l.s4 1983009808
        %v8910 = vunpack.c.0.s8 %v8909
        %v8911 = vlaneseq
        %v8912 = vshrl.u32 %v8911, 7
        %v8913 = vsub.s32 %v8910, %v8912
        %v8914 = vrot.slane %v8906, %v8913
        %v8916 = vunpack.c.l.s4 1983009808
        %v8917 = vunpack.c.0.s8 %v8916
        %v8918 = vlaneseq
        %v8919 = vshrl.u32 %v8918, 7
        %v8920 = vsub.s32 %v8917, %v8919
        %v8921 = vrot.slane %v8907, %v8920
        %v8922 = vcombine.low %v6386, %v6676
        %v8923 = vcombine.high %v6386, %v6676
        %v8925 = vunpack.c.l.s4 1983009808
        %v8926 = vunpack.c.0.s8 %v8925
        %v8927 = vlaneseq
        %v8928 = vshrl.u32 %v8927, 7
        %v8929 = vsub.s32 %v8926, %v8928
        %v8930 = vrot.slane %v8922, %v8929
        %v8932 = vunpack.c.l.s4 1983009808
        %v8933 = vunpack.c.0.s8 %v8932
        %v8934 = vlaneseq
        %v8935 = vshrl.u32 %v8934, 7
        %v8936 = vsub.s32 %v8933, %v8935
        %v8937 = vrot.slane %v8923, %v8936
        %v8938 = vcombine.low %v6821, %v7111
        %v8939 = vcombine.high %v6821, %v7111
        %v8941 = vunpack.c.l.s4 1983009808
        %v8942 = vunpack.c.0.s8 %v8941
        %v8943 = vlaneseq
        %v8944 = vshrl.u32 %v8943, 7
        %v8945 = vsub.s32 %v8942, %v8944
        %v8946 = vrot.slane %v8938, %v8945
        %v8948 = vunpack.c.l.s4 1983009808
        %v8949 = vunpack.c.0.s8 %v8948
        %v8950 = vlaneseq
        %v8951 = vshrl.u32 %v8950, 7
        %v8952 = vsub.s32 %v8949, %v8951
        %v8953 = vrot.slane %v8939, %v8952
        %v8954 = vcombine.low %v6966, %v7256
        %v8955 = vcombine.high %v6966, %v7256
        %v8957 = vunpack.c.l.s4 1983009808
        %v8958 = vunpack.c.0.s8 %v8957
        %v8959 = vlaneseq
        %v8960 = vshrl.u32 %v8959, 7
        %v8961 = vsub.s32 %v8958, %v8960
        %v8962 = vrot.slane %v8954, %v8961
        %v8964 = vunpack.c.l.s4 1983009808
        %v8965 = vunpack.c.0.s8 %v8964
        %v8966 = vlaneseq
        %v8967 = vshrl.u32 %v8966, 7
        %v8968 = vsub.s32 %v8965, %v8967
        %v8969 = vrot.slane %v8955, %v8968
        %v8970 = vcombine.low %v8914, %v8930
        %v8971 = vcombine.high %v8914, %v8930
        %v8973 = vunpack.c.l.s4 1934713408
        %v8974 = vunpack.c.0.s8 %v8973
        %v8975 = vlaneseq
        %v8976 = vshrl.u32 %v8975, 7
        %v8977 = vsub.s32 %v8974, %v8976
        %v8978 = vrot.slane %v8970, %v8977
        %v8980 = vunpack.c.l.s4 1934713408
        %v8981 = vunpack.c.0.s8 %v8980
        %v8982 = vlaneseq
        %v8983 = vshrl.u32 %v8982, 7
        %v8984 = vsub.s32 %v8981, %v8983
        %v8985 = vrot.slane %v8971, %v8984
        %v8986 = vcombine.low %v8921, %v8937
        %v8987 = vcombine.high %v8921, %v8937
        %v8989 = vunpack.c.l.s4 1934713408
        %v8990 = vunpack.c.0.s8 %v8989
        %v8991 = vlaneseq
        %v8992 = vshrl.u32 %v8991, 7
        %v8993 = vsub.s32 %v8990, %v8992
        %v8994 = vrot.slane %v8986, %v8993
        %v8996 = vunpack.c.l.s4 1934713408
        %v8997 = vunpack.c.0.s8 %v8996
        %v8998 = vlaneseq
        %v8999 = vshrl.u32 %v8998, 7
        %v9000 = vsub.s32 %v8997, %v8999
        %v9001 = vrot.slane %v8987, %v9000
        %v9002 = vcombine.low %v8946, %v8962
        %v9003 = vcombine.high %v8946, %v8962
        %v9005 = vunpack.c.l.s4 1934713408
        %v9006 = vunpack.c.0.s8 %v9005
        %v9007 = vlaneseq
        %v9008 = vshrl.u32 %v9007, 7
        %v9009 = vsub.s32 %v9006, %v9008
        %v9010 = vrot.slane %v9002, %v9009
        %v9012 = vunpack.c.l.s4 1934713408
        %v9013 = vunpack.c.0.s8 %v9012
        %v9014 = vlaneseq
        %v9015 = vshrl.u32 %v9014, 7
        %v9016 = vsub.s32 %v9013, %v9015
        %v9017 = vrot.slane %v9003, %v9016
        %v9018 = vcombine.low %v8953, %v8969
        %v9019 = vcombine.high %v8953, %v8969
        %v9021 = vunpack.c.l.s4 1934713408
        %v9022 = vunpack.c.0.s8 %v9021
        %v9023 = vlaneseq
        %v9024 = vshrl.u32 %v9023, 7
        %v9025 = vsub.s32 %v9022, %v9024
        %v9026 = vrot.slane %v9018, %v9025
        %v9028 = vunpack.c.l.s4 1934713408
        %v9029 = vunpack.c.0.s8 %v9028
        %v9030 = vlaneseq
        %v9031 = vshrl.u32 %v9030, 7
        %v9032 = vsub.s32 %v9029, %v9031
        %v9033 = vrot.slane %v9019, %v9032
        %v9034 = vcombine.low %v8978, %v9010
        %v9035 = vcombine.high %v8978, %v9010
        %v9036 = vcombine.low %v8985, %v9017
        %v9037 = vcombine.high %v8985, %v9017
        %v9038 = vcombine.low %v8994, %v9026
        %v9039 = vcombine.high %v8994, %v9026
        %v9040 = vcombine.low %v9001, %v9033
        %v9041 = vcombine.high %v9001, %v9033
        %v9042 = vcombine.low %v6246, %v6536
        %v9043 = vcombine.high %v6246, %v6536
        %v9045 = vunpack.c.l.s4 1983009808
        %v9046 = vunpack.c.0.s8 %v9045
        %v9047 = vlaneseq
        %v9048 = vshrl.u32 %v9047, 7
        %v9049 = vsub.s32 %v9046, %v9048
        %v9050 = vrot.slane %v9042, %v9049
        %v9052 = vunpack.c.l.s4 1983009808
        %v9053 = vunpack.c.0.s8 %v9052
        %v9054 = vlaneseq
        %v9055 = vshrl.u32 %v9054, 7
        %v9056 = vsub.s32 %v9053, %v9055
        %v9057 = vrot.slane %v9043, %v9056
        %v9058 = vcombine.low %v6391, %v6681
        %v9059 = vcombine.high %v6391, %v6681
        %v9061 = vunpack.c.l.s4 1983009808
        %v9062 = vunpack.c.0.s8 %v9061
        %v9063 = vlaneseq
        %v9064 = vshrl.u32 %v9063, 7
        %v9065 = vsub.s32 %v9062, %v9064
        %v9066 = vrot.slane %v9058, %v9065
        %v9068 = vunpack.c.l.s4 1983009808
        %v9069 = vunpack.c.0.s8 %v9068
        %v9070 = vlaneseq
        %v9071 = vshrl.u32 %v9070, 7
        %v9072 = vsub.s32 %v9069, %v9071
        %v9073 = vrot.slane %v9059, %v9072
        %v9074 = vcombine.low %v6826, %v7116
        %v9075 = vcombine.high %v6826, %v7116
        %v9077 = vunpack.c.l.s4 1983009808
        %v9078 = vunpack.c.0.s8 %v9077
        %v9079 = vlaneseq
        %v9080 = vshrl.u32 %v9079, 7
        %v9081 = vsub.s32 %v9078, %v9080
        %v9082 = vrot.slane %v9074, %v9081
        %v9084 = vunpack.c.l.s4 1983009808
        %v9085 = vunpack.c.0.s8 %v9084
        %v9086 = vlaneseq
        %v9087 = vshrl.u32 %v9086, 7
        %v9088 = vsub.s32 %v9085, %v9087
        %v9089 = vrot.slane %v9075, %v9088
        %v9090 = vcombine.low %v6971, %v7261
        %v9091 = vcombine.high %v6971, %v7261
        %v9093 = vunpack.c.l.s4 1983009808
        %v9094 = vunpack.c.0.s8 %v9093
        %v9095 = vlaneseq
        %v9096 = vshrl.u32 %v9095, 7
        %v9097 = vsub.s32 %v9094, %v9096
        %v9098 = vrot.slane %v9090, %v9097
        %v9100 = vunpack.c.l.s4 1983009808
        %v9101 = vunpack.c.0.s8 %v9100
        %v9102 = vlaneseq
        %v9103 = vshrl.u32 %v9102, 7
        %v9104 = vsub.s32 %v9101, %v9103
        %v9105 = vrot.slane %v9091, %v9104
        %v9106 = vcombine.low %v9050, %v9066
        %v9107 = vcombine.high %v9050, %v9066
        %v9109 = vunpack.c.l.s4 1934713408
        %v9110 = vunpack.c.0.s8 %v9109
        %v9111 = vlaneseq
        %v9112 = vshrl.u32 %v9111, 7
        %v9113 = vsub.s32 %v9110, %v9112
        %v9114 = vrot.slane %v9106, %v9113
        %v9116 = vunpack.c.l.s4 1934713408
        %v9117 = vunpack.c.0.s8 %v9116
        %v9118 = vlaneseq
        %v9119 = vshrl.u32 %v9118, 7
        %v9120 = vsub.s32 %v9117, %v9119
        %v9121 = vrot.slane %v9107, %v9120
        %v9122 = vcombine.low %v9057, %v9073
        %v9123 = vcombine.high %v9057, %v9073
        %v9125 = vunpack.c.l.s4 1934713408
        %v9126 = vunpack.c.0.s8 %v9125
        %v9127 = vlaneseq
        %v9128 = vshrl.u32 %v9127, 7
        %v9129 = vsub.s32 %v9126, %v9128
        %v9130 = vrot.slane %v9122, %v9129
        %v9132 = vunpack.c.l.s4 1934713408
        %v9133 = vunpack.c.0.s8 %v9132
        %v9134 = vlaneseq
        %v9135 = vshrl.u32 %v9134, 7
        %v9136 = vsub.s32 %v9133, %v9135
        %v9137 = vrot.slane %v9123, %v9136
        %v9138 = vcombine.low %v9082, %v9098
        %v9139 = vcombine.high %v9082, %v9098
        %v9141 = vunpack.c.l.s4 1934713408
        %v9142 = vunpack.c.0.s8 %v9141
        %v9143 = vlaneseq
        %v9144 = vshrl.u32 %v9143, 7
        %v9145 = vsub.s32 %v9142, %v9144
        %v9146 = vrot.slane %v9138, %v9145
        %v9148 = vunpack.c.l.s4 1934713408
        %v9149 = vunpack.c.0.s8 %v9148
        %v9150 = vlaneseq
        %v9151 = vshrl.u32 %v9150, 7
        %v9152 = vsub.s32 %v9149, %v9151
        %v9153 = vrot.slane %v9139, %v9152
        %v9154 = vcombine.low %v9089, %v9105
        %v9155 = vcombine.high %v9089, %v9105
        %v9157 = vunpack.c.l.s4 1934713408
        %v9158 = vunpack.c.0.s8 %v9157
        %v9159 = vlaneseq
        %v9160 = vshrl.u32 %v9159, 7
        %v9161 = vsub.s32 %v9158, %v9160
        %v9162 = vrot.slane %v9154, %v9161
        %v9164 = vunpack.c.l.s4 1934713408
        %v9165 = vunpack.c.0.s8 %v9164
        %v9166 = vlaneseq
        %v9167 = vshrl.u32 %v9166, 7
        %v9168 = vsub.s32 %v9165, %v9167
        %v9169 = vrot.slane %v9155, %v9168
        %v9170 = vcombine.low %v9114, %v9146
        %v9171 = vcombine.high %v9114, %v9146
        %v9172 = vcombine.low %v9121, %v9153
        %v9173 = vcombine.high %v9121, %v9153
        %v9174 = vcombine.low %v9130, %v9162
        %v9175 = vcombine.high %v9130, %v9162
        %v9176 = vcombine.low %v9137, %v9169
        %v9177 = vcombine.high %v9137, %v9169
        %v9178 = vcombine.low %v6251, %v6541
        %v9179 = vcombine.high %v6251, %v6541
        %v9181 = vunpack.c.l.s4 1983009808
        %v9182 = vunpack.c.0.s8 %v9181
        %v9183 = vlaneseq
        %v9184 = vshrl.u32 %v9183, 7
        %v9185 = vsub.s32 %v9182, %v9184
        %v9186 = vrot.slane %v9178, %v9185
        %v9188 = vunpack.c.l.s4 1983009808
        %v9189 = vunpack.c.0.s8 %v9188
        %v9190 = vlaneseq
        %v9191 = vshrl.u32 %v9190, 7
        %v9192 = vsub.s32 %v9189, %v9191
        %v9193 = vrot.slane %v9179, %v9192
        %v9194 = vcombine.low %v6396, %v6686
        %v9195 = vcombine.high %v6396, %v6686
        %v9197 = vunpack.c.l.s4 1983009808
        %v9198 = vunpack.c.0.s8 %v9197
        %v9199 = vlaneseq
        %v9200 = vshrl.u32 %v9199, 7
        %v9201 = vsub.s32 %v9198, %v9200
        %v9202 = vrot.slane %v9194, %v9201
        %v9204 = vunpack.c.l.s4 1983009808
        %v9205 = vunpack.c.0.s8 %v9204
        %v9206 = vlaneseq
        %v9207 = vshrl.u32 %v9206, 7
        %v9208 = vsub.s32 %v9205, %v9207
        %v9209 = vrot.slane %v9195, %v9208
        %v9210 = vcombine.low %v6831, %v7121
        %v9211 = vcombine.high %v6831, %v7121
        %v9213 = vunpack.c.l.s4 1983009808
        %v9214 = vunpack.c.0.s8 %v9213
        %v9215 = vlaneseq
        %v9216 = vshrl.u32 %v9215, 7
        %v9217 = vsub.s32 %v9214, %v9216
        %v9218 = vrot.slane %v9210, %v9217
        %v9220 = vunpack.c.l.s4 1983009808
        %v9221 = vunpack.c.0.s8 %v9220
        %v9222 = vlaneseq
        %v9223 = vshrl.u32 %v9222, 7
        %v9224 = vsub.s32 %v9221, %v9223
        %v9225 = vrot.slane %v9211, %v9224
        %v9226 = vcombine.low %v6976, %v7266
        %v9227 = vcombine.high %v6976, %v7266
        %v9229 = vunpack.c.l.s4 1983009808
        %v9230 = vunpack.c.0.s8 %v9229
        %v9231 = vlaneseq
        %v9232 = vshrl.u32 %v9231, 7
        %v9233 = vsub.s32 %v9230, %v9232
        %v9234 = vrot.slane %v9226, %v9233
        %v9236 = vunpack.c.l.s4 1983009808
        %v9237 = vunpack.c.0.s8 %v9236
        %v9238 = vlaneseq
        %v9239 = vshrl.u32 %v9238, 7
        %v9240 = vsub.s32 %v9237, %v9239
        %v9241 = vrot.slane %v9227, %v9240
        %v9242 = vcombine.low %v9186, %v9202
        %v9243 = vcombine.high %v9186, %v9202
        %v9245 = vunpack.c.l.s4 1934713408
        %v9246 = vunpack.c.0.s8 %v9245
        %v9247 = vlaneseq
        %v9248 = vshrl.u32 %v9247, 7
        %v9249 = vsub.s32 %v9246, %v9248
        %v9250 = vrot.slane %v9242, %v9249
        %v9252 = vunpack.c.l.s4 1934713408
        %v9253 = vunpack.c.0.s8 %v9252
        %v9254 = vlaneseq
        %v9255 = vshrl.u32 %v9254, 7
        %v9256 = vsub.s32 %v9253, %v9255
        %v9257 = vrot.slane %v9243, %v9256
        %v9258 = vcombine.low %v9193, %v9209
        %v9259 = vcombine.high %v9193, %v9209
        %v9261 = vunpack.c.l.s4 1934713408
        %v9262 = vunpack.c.0.s8 %v9261
        %v9263 = vlaneseq
        %v9264 = vshrl.u32 %v9263, 7
        %v9265 = vsub.s32 %v9262, %v9264
        %v9266 = vrot.slane %v9258, %v9265
        %v9268 = vunpack.c.l.s4 1934713408
        %v9269 = vunpack.c.0.s8 %v9268
        %v9270 = vlaneseq
        %v9271 = vshrl.u32 %v9270, 7
        %v9272 = vsub.s32 %v9269, %v9271
        %v9273 = vrot.slane %v9259, %v9272
        %v9274 = vcombine.low %v9218, %v9234
        %v9275 = vcombine.high %v9218, %v9234
        %v9277 = vunpack.c.l.s4 1934713408
        %v9278 = vunpack.c.0.s8 %v9277
        %v9279 = vlaneseq
        %v9280 = vshrl.u32 %v9279, 7
        %v9281 = vsub.s32 %v9278, %v9280
        %v9282 = vrot.slane %v9274, %v9281
        %v9284 = vunpack.c.l.s4 1934713408
        %v9285 = vunpack.c.0.s8 %v9284
        %v9286 = vlaneseq
        %v9287 = vshrl.u32 %v9286, 7
        %v9288 = vsub.s32 %v9285, %v9287
        %v9289 = vrot.slane %v9275, %v9288
        %v9290 = vcombine.low %v9225, %v9241
        %v9291 = vcombine.high %v9225, %v9241
        %v9293 = vunpack.c.l.s4 1934713408
        %v9294 = vunpack.c.0.s8 %v9293
        %v9295 = vlaneseq
        %v9296 = vshrl.u32 %v9295, 7
        %v9297 = vsub.s32 %v9294, %v9296
        %v9298 = vrot.slane %v9290, %v9297
        %v9300 = vunpack.c.l.s4 1934713408
        %v9301 = vunpack.c.0.s8 %v9300
        %v9302 = vlaneseq
        %v9303 = vshrl.u32 %v9302, 7
        %v9304 = vsub.s32 %v9301, %v9303
        %v9305 = vrot.slane %v9291, %v9304
        %v9306 = vcombine.low %v9250, %v9282
        %v9307 = vcombine.high %v9250, %v9282
        %v9308 = vcombine.low %v9257, %v9289
        %v9309 = vcombine.high %v9257, %v9289
        %v9310 = vcombine.low %v9266, %v9298
        %v9311 = vcombine.high %v9266, %v9298
        %v9312 = vcombine.low %v9273, %v9305
        %v9313 = vcombine.high %v9273, %v9305
        %v9314 = vcombine.low %v6256, %v6546
        %v9315 = vcombine.high %v6256, %v6546
        %v9317 = vunpack.c.l.s4 1983009808
        %v9318 = vunpack.c.0.s8 %v9317
        %v9319 = vlaneseq
        %v9320 = vshrl.u32 %v9319, 7
        %v9321 = vsub.s32 %v9318, %v9320
        %v9322 = vrot.slane %v9314, %v9321
        %v9324 = vunpack.c.l.s4 1983009808
        %v9325 = vunpack.c.0.s8 %v9324
        %v9326 = vlaneseq
        %v9327 = vshrl.u32 %v9326, 7
        %v9328 = vsub.s32 %v9325, %v9327
        %v9329 = vrot.slane %v9315, %v9328
        %v9330 = vcombine.low %v6401, %v6691
        %v9331 = vcombine.high %v6401, %v6691
        %v9333 = vunpack.c.l.s4 1983009808
        %v9334 = vunpack.c.0.s8 %v9333
        %v9335 = vlaneseq
        %v9336 = vshrl.u32 %v9335, 7
        %v9337 = vsub.s32 %v9334, %v9336
        %v9338 = vrot.slane %v9330, %v9337
        %v9340 = vunpack.c.l.s4 1983009808
        %v9341 = vunpack.c.0.s8 %v9340
        %v9342 = vlaneseq
        %v9343 = vshrl.u32 %v9342, 7
        %v9344 = vsub.s32 %v9341, %v9343
        %v9345 = vrot.slane %v9331, %v9344
        %v9346 = vcombine.low %v6836, %v7126
        %v9347 = vcombine.high %v6836, %v7126
        %v9349 = vunpack.c.l.s4 1983009808
        %v9350 = vunpack.c.0.s8 %v9349
        %v9351 = vlaneseq
        %v9352 = vshrl.u32 %v9351, 7
        %v9353 = vsub.s32 %v9350, %v9352
        %v9354 = vrot.slane %v9346, %v9353
        %v9356 = vunpack.c.l.s4 1983009808
        %v9357 = vunpack.c.0.s8 %v9356
        %v9358 = vlaneseq
        %v9359 = vshrl.u32 %v9358, 7
        %v9360 = vsub.s32 %v9357, %v9359
        %v9361 = vrot.slane %v9347, %v9360
        %v9362 = vcombine.low %v6981, %v7271
        %v9363 = vcombine.high %v6981, %v7271
        %v9365 = vunpack.c.l.s4 1983009808
        %v9366 = vunpack.c.0.s8 %v9365
        %v9367 = vlaneseq
        %v9368 = vshrl.u32 %v9367, 7
        %v9369 = vsub.s32 %v9366, %v9368
        %v9370 = vrot.slane %v9362, %v9369
        %v9372 = vunpack.c.l.s4 1983009808
        %v9373 = vunpack.c.0.s8 %v9372
        %v9374 = vlaneseq
        %v9375 = vshrl.u32 %v9374, 7
        %v9376 = vsub.s32 %v9373, %v9375
        %v9377 = vrot.slane %v9363, %v9376
        %v9378 = vcombine.low %v9322, %v9338
        %v9379 = vcombine.high %v9322, %v9338
        %v9381 = vunpack.c.l.s4 1934713408
        %v9382 = vunpack.c.0.s8 %v9381
        %v9383 = vlaneseq
        %v9384 = vshrl.u32 %v9383, 7
        %v9385 = vsub.s32 %v9382, %v9384
        %v9386 = vrot.slane %v9378, %v9385
        %v9388 = vunpack.c.l.s4 1934713408
        %v9389 = vunpack.c.0.s8 %v9388
        %v9390 = vlaneseq
        %v9391 = vshrl.u32 %v9390, 7
        %v9392 = vsub.s32 %v9389, %v9391
        %v9393 = vrot.slane %v9379, %v9392
        %v9394 = vcombine.low %v9329, %v9345
        %v9395 = vcombine.high %v9329, %v9345
        %v9397 = vunpack.c.l.s4 1934713408
        %v9398 = vunpack.c.0.s8 %v9397
        %v9399 = vlaneseq
        %v9400 = vshrl.u32 %v9399, 7
        %v9401 = vsub.s32 %v9398, %v9400
        %v9402 = vrot.slane %v9394, %v9401
        %v9404 = vunpack.c.l.s4 1934713408
        %v9405 = vunpack.c.0.s8 %v9404
        %v9406 = vlaneseq
        %v9407 = vshrl.u32 %v9406, 7
        %v9408 = vsub.s32 %v9405, %v9407
        %v9409 = vrot.slane %v9395, %v9408
        %v9410 = vcombine.low %v9354, %v9370
        %v9411 = vcombine.high %v9354, %v9370
        %v9413 = vunpack.c.l.s4 1934713408
        %v9414 = vunpack.c.0.s8 %v9413
        %v9415 = vlaneseq
        %v9416 = vshrl.u32 %v9415, 7
        %v9417 = vsub.s32 %v9414, %v9416
        %v9418 = vrot.slane %v9410, %v9417
        %v9420 = vunpack.c.l.s4 1934713408
        %v9421 = vunpack.c.0.s8 %v9420
        %v9422 = vlaneseq
        %v9423 = vshrl.u32 %v9422, 7
        %v9424 = vsub.s32 %v9421, %v9423
        %v9425 = vrot.slane %v9411, %v9424
        %v9426 = vcombine.low %v9361, %v9377
        %v9427 = vcombine.high %v9361, %v9377
        %v9429 = vunpack.c.l.s4 1934713408
        %v9430 = vunpack.c.0.s8 %v9429
        %v9431 = vlaneseq
        %v9432 = vshrl.u32 %v9431, 7
        %v9433 = vsub.s32 %v9430, %v9432
        %v9434 = vrot.slane %v9426, %v9433
        %v9436 = vunpack.c.l.s4 1934713408
        %v9437 = vunpack.c.0.s8 %v9436
        %v9438 = vlaneseq
        %v9439 = vshrl.u32 %v9438, 7
        %v9440 = vsub.s32 %v9437, %v9439
        %v9441 = vrot.slane %v9427, %v9440
        %v9442 = vcombine.low %v9386, %v9418
        %v9443 = vcombine.high %v9386, %v9418
        %v9444 = vcombine.low %v9393, %v9425
        %v9445 = vcombine.high %v9393, %v9425
        %v9446 = vcombine.low %v9402, %v9434
        %v9447 = vcombine.high %v9402, %v9434
        %v9448 = vcombine.low %v9409, %v9441
        %v9449 = vcombine.high %v9409, %v9441
        %9450 = vst [vmem:[%s197] sm:$0xff] %v7402
        %9451 = vst [vmem:[%s197 + $0x8] sm:$0xff] %v7403
        %9452 = vst [vmem:[%s197 + $0x10] sm:$0xff] %v7404
        %9453 = vst [vmem:[%s197 + $0x18] sm:$0xff] %v7405
        %9454 = vst [vmem:[%s197 + $0x20] sm:$0xff] %v7406
        %9455 = vst [vmem:[%s197 + $0x28] sm:$0xff] %v7407
        %9456 = vst [vmem:[%s197 + $0x30] sm:$0xff] %v7408
        %9457 = vst [vmem:[%s197 + $0x38] sm:$0xff] %v7409
        %9458 = vst [vmem:[%s197 + $0x40] sm:$0xff] %v7538
        %9459 = vst [vmem:[%s197 + $0x48] sm:$0xff] %v7539
        %9460 = vst [vmem:[%s197 + $0x50] sm:$0xff] %v7540
        %9461 = vst [vmem:[%s197 + $0x58] sm:$0xff] %v7541
        %9462 = vst [vmem:[%s197 + $0x60] sm:$0xff] %v7542
        %9463 = vst [vmem:[%s197 + $0x68] sm:$0xff] %v7543
        %9464 = vst [vmem:[%s197 + $0x70] sm:$0xff] %v7544
        %9465 = vst [vmem:[%s197 + $0x78] sm:$0xff] %v7545
        %9466 = vst [vmem:[%s197 + $0x80] sm:$0xff] %v7674
        %9467 = vst [vmem:[%s197 + $0x88] sm:$0xff] %v7675
        %9468 = vst [vmem:[%s197 + $0x90] sm:$0xff] %v7676
        %9469 = vst [vmem:[%s197 + $0x98] sm:$0xff] %v7677
        %9470 = vst [vmem:[%s197 + $0xa0] sm:$0xff] %v7678
        %9471 = vst [vmem:[%s197 + $0xa8] sm:$0xff] %v7679
        %9472 = vst [vmem:[%s197 + $0xb0] sm:$0xff] %v7680
        %9473 = vst [vmem:[%s197 + $0xb8] sm:$0xff] %v7681
        %9474 = vst [vmem:[%s197 + $0xc0] sm:$0xff] %v7810
        %9475 = vst [vmem:[%s197 + $0xc8] sm:$0xff] %v7811
        %9476 = vst [vmem:[%s197 + $0xd0] sm:$0xff] %v7812
        %9477 = vst [vmem:[%s197 + $0xd8] sm:$0xff] %v7813
        %9478 = vst [vmem:[%s197 + $0xe0] sm:$0xff] %v7814
        %9479 = vst [vmem:[%s197 + $0xe8] sm:$0xff] %v7815
        %9480 = vst [vmem:[%s197 + $0xf0] sm:$0xff] %v7816
        %9481 = vst [vmem:[%s197 + $0xf8] sm:$0xff] %v7817
        %9482 = vst [vmem:[%s197 + $0x100] sm:$0xff] %v7946
        %9483 = vst [vmem:[%s197 + $0x108] sm:$0xff] %v7947
        %9484 = vst [vmem:[%s197 + $0x110] sm:$0xff] %v7948
        %9485 = vst [vmem:[%s197 + $0x118] sm:$0xff] %v7949
        %9486 = vst [vmem:[%s197 + $0x120] sm:$0xff] %v7950
        %9487 = vst [vmem:[%s197 + $0x128] sm:$0xff] %v7951
        %9488 = vst [vmem:[%s197 + $0x130] sm:$0xff] %v7952
        %9489 = vst [vmem:[%s197 + $0x138] sm:$0xff] %v7953
        %9490 = vst [vmem:[%s197 + $0x140] sm:$0xff] %v8082
        %9491 = vst [vmem:[%s197 + $0x148] sm:$0xff] %v8083
        %9492 = vst [vmem:[%s197 + $0x150] sm:$0xff] %v8084
        %9493 = vst [vmem:[%s197 + $0x158] sm:$0xff] %v8085
        %9494 = vst [vmem:[%s197 + $0x160] sm:$0xff] %v8086
        %9495 = vst [vmem:[%s197 + $0x168] sm:$0xff] %v8087
        %9496 = vst [vmem:[%s197 + $0x170] sm:$0xff] %v8088
        %9497 = vst [vmem:[%s197 + $0x178] sm:$0xff] %v8089
        %9498 = vst [vmem:[%s197 + $0x180] sm:$0xff] %v8218
        %9499 = vst [vmem:[%s197 + $0x188] sm:$0xff] %v8219
        %9500 = vst [vmem:[%s197 + $0x190] sm:$0xff] %v8220
        %9501 = vst [vmem:[%s197 + $0x198] sm:$0xff] %v8221
        %9502 = vst [vmem:[%s197 + $0x1a0] sm:$0xff] %v8222
        %9503 = vst [vmem:[%s197 + $0x1a8] sm:$0xff] %v8223
        %9504 = vst [vmem:[%s197 + $0x1b0] sm:$0xff] %v8224
        %9505 = vst [vmem:[%s197 + $0x1b8] sm:$0xff] %v8225
        %9506 = vst [vmem:[%s197 + $0x1c0] sm:$0xff] %v8354
        %9507 = vst [vmem:[%s197 + $0x1c8] sm:$0xff] %v8355
        %9508 = vst [vmem:[%s197 + $0x1d0] sm:$0xff] %v8356
        %9509 = vst [vmem:[%s197 + $0x1d8] sm:$0xff] %v8357
        %9510 = vst [vmem:[%s197 + $0x1e0] sm:$0xff] %v8358
        %9511 = vst [vmem:[%s197 + $0x1e8] sm:$0xff] %v8359
        %9512 = vst [vmem:[%s197 + $0x1f0] sm:$0xff] %v8360
        %9513 = vst [vmem:[%s197 + $0x1f8] sm:$0xff] %v8361
        %9514 = vst [vmem:[%s197 + $0x200] sm:$0xff] %v8490
        %9515 = vst [vmem:[%s197 + $0x208] sm:$0xff] %v8491
        %9516 = vst [vmem:[%s197 + $0x210] sm:$0xff] %v8492
        %9517 = vst [vmem:[%s197 + $0x218] sm:$0xff] %v8493
        %9518 = vst [vmem:[%s197 + $0x220] sm:$0xff] %v8494
        %9519 = vst [vmem:[%s197 + $0x228] sm:$0xff] %v8495
        %9520 = vst [vmem:[%s197 + $0x230] sm:$0xff] %v8496
        %9521 = vst [vmem:[%s197 + $0x238] sm:$0xff] %v8497
        %9522 = vst [vmem:[%s197 + $0x240] sm:$0xff] %v8626
        %9523 = vst [vmem:[%s197 + $0x248] sm:$0xff] %v8627
        %9524 = vst [vmem:[%s197 + $0x250] sm:$0xff] %v8628
        %9525 = vst [vmem:[%s197 + $0x258] sm:$0xff] %v8629
        %9526 = vst [vmem:[%s197 + $0x260] sm:$0xff] %v8630
        %9527 = vst [vmem:[%s197 + $0x268] sm:$0xff] %v8631
        %9528 = vst [vmem:[%s197 + $0x270] sm:$0xff] %v8632
        %9529 = vst [vmem:[%s197 + $0x278] sm:$0xff] %v8633
        %9530 = vst [vmem:[%s197 + $0x280] sm:$0xff] %v8762
        %9531 = vst [vmem:[%s197 + $0x288] sm:$0xff] %v8763
        %9532 = vst [vmem:[%s197 + $0x290] sm:$0xff] %v8764
        %9533 = vst [vmem:[%s197 + $0x298] sm:$0xff] %v8765
        %9534 = vst [vmem:[%s197 + $0x2a0] sm:$0xff] %v8766
        %9535 = vst [vmem:[%s197 + $0x2a8] sm:$0xff] %v8767
        %9536 = vst [vmem:[%s197 + $0x2b0] sm:$0xff] %v8768
        %9537 = vst [vmem:[%s197 + $0x2b8] sm:$0xff] %v8769
        %9538 = vst [vmem:[%s197 + $0x2c0] sm:$0xff] %v8898
        %9539 = vst [vmem:[%s197 + $0x2c8] sm:$0xff] %v8899
        %9540 = vst [vmem:[%s197 + $0x2d0] sm:$0xff] %v8900
        %9541 = vst [vmem:[%s197 + $0x2d8] sm:$0xff] %v8901
        %9542 = vst [vmem:[%s197 + $0x2e0] sm:$0xff] %v8902
        %9543 = vst [vmem:[%s197 + $0x2e8] sm:$0xff] %v8903
        %9544 = vst [vmem:[%s197 + $0x2f0] sm:$0xff] %v8904
        %9545 = vst [vmem:[%s197 + $0x2f8] sm:$0xff] %v8905
        %9546 = vst [vmem:[%s197 + $0x300] sm:$0xff] %v9034
        %9547 = vst [vmem:[%s197 + $0x308] sm:$0xff] %v9035
        %9548 = vst [vmem:[%s197 + $0x310] sm:$0xff] %v9036
        %9549 = vst [vmem:[%s197 + $0x318] sm:$0xff] %v9037
        %9550 = vst [vmem:[%s197 + $0x320] sm:$0xff] %v9038
        %9551 = vst [vmem:[%s197 + $0x328] sm:$0xff] %v9039
        %9552 = vst [vmem:[%s197 + $0x330] sm:$0xff] %v9040
        %9553 = vst [vmem:[%s197 + $0x338] sm:$0xff] %v9041
        %9554 = vst [vmem:[%s197 + $0x340] sm:$0xff] %v9170
        %9555 = vst [vmem:[%s197 + $0x348] sm:$0xff] %v9171
        %9556 = vst [vmem:[%s197 + $0x350] sm:$0xff] %v9172
        %9557 = vst [vmem:[%s197 + $0x358] sm:$0xff] %v9173
        %9558 = vst [vmem:[%s197 + $0x360] sm:$0xff] %v9174
        %9559 = vst [vmem:[%s197 + $0x368] sm:$0xff] %v9175
        %9560 = vst [vmem:[%s197 + $0x370] sm:$0xff] %v9176
        %9561 = vst [vmem:[%s197 + $0x378] sm:$0xff] %v9177
        %9562 = vst [vmem:[%s197 + $0x380] sm:$0xff] %v9306
        %9563 = vst [vmem:[%s197 + $0x388] sm:$0xff] %v9307
        %9564 = vst [vmem:[%s197 + $0x390] sm:$0xff] %v9308
        %9565 = vst [vmem:[%s197 + $0x398] sm:$0xff] %v9309
        %9566 = vst [vmem:[%s197 + $0x3a0] sm:$0xff] %v9310
        %9567 = vst [vmem:[%s197 + $0x3a8] sm:$0xff] %v9311
        %9568 = vst [vmem:[%s197 + $0x3b0] sm:$0xff] %v9312
        %9569 = vst [vmem:[%s197 + $0x3b8] sm:$0xff] %v9313
        %9570 = vst [vmem:[%s197 + $0x3c0] sm:$0xff] %v9442
        %9571 = vst [vmem:[%s197 + $0x3c8] sm:$0xff] %v9443
        %9572 = vst [vmem:[%s197 + $0x3d0] sm:$0xff] %v9444
        %9573 = vst [vmem:[%s197 + $0x3d8] sm:$0xff] %v9445
        %9574 = vst [vmem:[%s197 + $0x3e0] sm:$0xff] %v9446
        %9575 = vst [vmem:[%s197 + $0x3e8] sm:$0xff] %v9447
        %9576 = vst [vmem:[%s197 + $0x3f0] sm:$0xff] %v9448
        %9577 = vst [vmem:[%s197 + $0x3f8] sm:$0xff] %v9449
        %s9578 = sand.u32 %s82, 1
        %s9579 = scalar_lea.sflag [#allocation4], %s9578
        %s9580 = sand.u32 %s82, 1
        %s9581 = smul.addr %s9580, 1024
        %s9582 = scalar_lea.vmem [#allocation7], %s9581
        // Predicated region
        $region37: #{tpu_custom_call.1} parent=27 // pred_check
          %p9583 = pneg %p92
        $region38: #{tpu_custom_call.1} parent=27 // pred_check_branch
          %9585 = sbr.rel (%p9583) target = $region40
        $region39: #{tpu_custom_call.1} parent=27 // pred_region
          %s9587 = ssub.s32 16384, 16384
          %9588 = vsyncadd %s9579, %s9587
          %s9589 = smul.addr %s22, 128
          %s9590 = scalar_lea.hbm %s2, %s9589
          %s9591 = sshll.u32 %s9582, 4
          %s9592 = int_to_ptr.vmem [resolvable:$true] %s9591
          %9597 = dma.vmem_to_hbm [thread:$0]  %s9592, 16384, %s9590, %s9579, 128, 256, 8
        $region40: #{tpu_custom_call.1} parent=27 // pred_fallthru
          _
      $region28: #{tpu_custom_call.1} parent=5 // pred_fallthru
        _
      %p9598 = scmp.le.s32.totalorder 2, %s17
      // Predicated region
      $region41: #{tpu_custom_call.1} parent=5 // pred_check
        %p9599 = pneg %p9598
      $region42: #{tpu_custom_call.1} parent=5 // pred_check_branch
        %9601 = sbr.rel (%p9599) target = $region44
      $region43: #{tpu_custom_call.1} parent=5 // pred_region
        %s9602 = ssub.s32 %s17, 2
        // Predicated region
        $region45: #{tpu_custom_call.1} parent=43 // pred_check
          %p9603 = pneg %p98
        $region46: #{tpu_custom_call.1} parent=43 // pred_check_branch
          %9605 = sbr.rel (%p9603) target = $region48
        $region47: #{tpu_custom_call.1} parent=43 // pred_region
          %s9606 = sand.u32 %s83, 1
          %s9607 = scalar_lea.sflag [#allocation4], %s9606
          %s9608 = sand.u32 %s83, 1
          %s9609 = smul.addr %s9608, 1024
          %s9610 = scalar_lea.vmem [#allocation7], %s9609
          %9611 = dma.done %s9607, 16384
        $region48: #{tpu_custom_call.1} parent=43 // pred_fallthru
          _
      $region44: #{tpu_custom_call.1} parent=5 // pred_fallthru
        _
    $region6: #{tpu_custom_call.1} parent=1 // loop_footer
      %s21 = sadd.s32 1, %s17
    $region7: #{tpu_custom_call.1} parent=1 // loop_footer_branch
      %16 = sbr.rel target = $region3
    $region8: #{tpu_custom_call.1} parent=1 // loop_exit
      _
    %9612 = vsyncpa [#allocation3], 1
    %s9613 = scalar_lea.sflag [#allocation3], 1
    %9614 = vsyncpa %s9613, 1
    %9615 = vsyncpa [#allocation6], 1
    %s9616 = scalar_lea.sflag [#allocation6], 1
    %9617 = vsyncpa %s9616, 1
    %9618 = vsyncpa [#allocation4], 1
    %s9619 = scalar_lea.sflag [#allocation4], 1
    %9620 = vsyncpa %s9619, 1

</llo_original>
